<compile_context>
chip_gen: v7x
topology: tpu7x:2x2x1
jax: 0.10.0
libtpu: 0.0.40
codegen_flags: <defaults>
</compile_context>

<pallas_src>
import jax
import jax.numpy as jnp
from jax.experimental import pallas as pl
from jax.experimental.pallas import tpu as pltpu


def mlp_kernel(x_ref, w1_ref, b1_ref, w2_ref, b2_ref, o_ref, h_ref):
    j = pl.program_id(0)          # K-split index (one per TensorCore on v7x)
    k = pl.program_id(1)          # reduction step within the split
    tk = w2_ref.shape[0]

    # Hoisted first layer + accumulator init, once per split.
    @pl.when(k == 0)
    def _():
        x = x_ref[...].astype(jnp.bfloat16)
        h = jnp.dot(x, w1_ref[...], preferred_element_type=jnp.float32)
        h = jnp.maximum(h + b1_ref[...], 0.0)
        h_ref[...] = h.astype(h_ref.dtype)
        # Initialize the VMEM-resident output block with b2 on split 0 only
        # (so the cross-split sum adds the bias exactly once); other splits
        # start from zero.  Removes the old zero-fill + final bias-add pass.
        b2_once = b2_ref[...] * (j == 0).astype(jnp.float32)
        o_ref[...] = jnp.broadcast_to(b2_once, o_ref.shape)

    # Second-layer contribution of this hidden slice, accumulated directly in the
    # output block (block index constant along k => VMEM resident).
    start = pl.multiple_of(k * tk, tk)
    h_k = h_ref[:, pl.ds(start, tk)]
    o_ref[...] += jnp.dot(h_k, w2_ref[...], preferred_element_type=jnp.float32)


def prepare_metadata_encoder_params(w1, b1, w2, b2):
    """One-time parameter preparation. Call ONCE at load time, not per forward.

    w1: (in, hidden), w2: (hidden, out)  -- i.e. (in_features, out_features),
    transposed relative to PyTorch nn.Linear storage.  Weights are cast to bf16
    (halves the dominant W2 HBM stream); biases stay f32.
    """
    D, H = w1.shape
    H2, N = w2.shape
    assert H == H2 and b1.size == H and b2.size == N
    return (
        jnp.asarray(w1, jnp.bfloat16),
        jnp.asarray(b1, jnp.float32).reshape(1, H),
        jnp.asarray(w2, jnp.bfloat16),
        jnp.asarray(b2, jnp.float32).reshape(1, N),
    )


def _default_n_splits():
    # v7x has 2 TensorCores per chip: a contiguous K-row split of W2 across them
    # roughly halves per-core DMA time with zero padding.  v5e/v6e have 1 TC,
    # where an extra split only adds step overhead.
    try:
        kind = jax.devices()[0].device_kind.lower()
    except Exception:
        return 1
    return 2 if ("v7" in kind or "tpu7" in kind) else 1


def metadata_encoder(meta, params, *, tk=1536, n_splits=None):
    """meta: (B, D) f32.  params: output of prepare_metadata_encoder_params()."""
    w1, b1, w2, b2 = params
    B, D = meta.shape
    H = w1.shape[1]
    N = w2.shape[1]

    if n_splits is None:
        n_splits = _default_n_splits()
    assert H % n_splits == 0, "hidden dim must be divisible by n_splits"
    h_split = H // n_splits
    tk = min(tk, h_split)
    assert h_split % tk == 0, "per-split hidden dim must be divisible by tk"
    k_steps = h_split // tk

    meta = meta.astype(jnp.float32)

    # Advisory cost: this is a ~13 MB memory-bound op with ~1e8 flops.
    cost = pl.CostEstimate(
        flops=2 * B * D * H + 2 * B * H * N,
        transcendentals=0,
        bytes_accessed=(meta.size * 4 + w1.size * 2 + b1.size * 4
                        + w2.size * 2 + b2.size * 4 + B * N * 4),
    )

    partials = pl.pallas_call(
        mlp_kernel,
        out_shape=jax.ShapeDtypeStruct((n_splits, B, N), jnp.float32),
        grid_spec=pltpu.PrefetchScalarGridSpec(
            num_scalar_prefetch=0,
            grid=(n_splits, k_steps),
            in_specs=[
                pl.BlockSpec((B, D), lambda j, k: (0, 0)),            # x: resident
                pl.BlockSpec((D, h_split), lambda j, k: (0, j)),      # W1 split (bf16, tiny)
                pl.BlockSpec((1, h_split), lambda j, k: (0, j)),      # b1 split
                pl.BlockSpec((tk, N), lambda j, k: (j * k_steps + k, 0)),  # W2: dominant stream
                pl.BlockSpec((1, N), lambda j, k: (0, 0)),            # b2: resident
            ],
            # Each split writes its own (B, N) partial; leading dim squeezed in-kernel.
            out_specs=pl.BlockSpec((None, B, N), lambda j, k: (j, 0, 0)),
            scratch_shapes=[pltpu.VMEM((B, h_split), jnp.bfloat16)],  # hoisted hidden acts
        ),
        compiler_params=pltpu.CompilerParams(
            dimension_semantics=("parallel", "arbitrary"),
            vmem_limit_bytes=32 << 20,
        ),
        cost_estimate=cost,
    )(meta, w1, b1, w2, b2)

    # Cross-split reduction (trivial ~66 KB f32 add; b2 was added on split 0 only).
    return partials[0] if n_splits == 1 else jnp.sum(partials, axis=0)


if __name__ == "__main__":
    INPUT_DIM = 23
    HIDDEN = 3072
    OUTPUT_DIM = 2080
    B = 8

    key = jax.random.PRNGKey(0)
    k_meta, k_w1, k_b1, k_w2, k_b2 = jax.random.split(key, 5)

    meta = jax.random.normal(k_meta, (B, INPUT_DIM), dtype=jnp.float32)
    # Deterministic synthetic params (stored as (in, out), transposed vs PyTorch).
    w1 = jax.random.normal(k_w1, (INPUT_DIM, HIDDEN), dtype=jnp.float32) * 0.05
    b1 = jax.random.normal(k_b1, (HIDDEN,), dtype=jnp.float32) * 0.05
    w2 = jax.random.normal(k_w2, (HIDDEN, OUTPUT_DIM), dtype=jnp.float32) * 0.02
    b2 = jax.random.normal(k_b2, (OUTPUT_DIM,), dtype=jnp.float32) * 0.02

    # One-time parameter prep (off the per-call path).
    params = prepare_metadata_encoder_params(w1, b1, w2, b2)
    params = jax.block_until_ready(params)

    out = metadata_encoder(meta, params)
    out = jax.block_until_ready(out)
    assert out.shape == (B, OUTPUT_DIM)

    # Reference with the same bf16 weight precision / f32 accumulation as the kernel.
    w1_bf, b1_2d, w2_bf, b2_2d = params
    h_ref = jnp.maximum(
        jnp.dot(meta.astype(jnp.bfloat16), w1_bf, preferred_element_type=jnp.float32) + b1_2d,
        0.0,
    )
    ref_bf = jnp.dot(h_ref.astype(jnp.bfloat16), w2_bf, preferred_element_type=jnp.float32) + b2_2d
    assert jnp.allclose(out, ref_bf, atol=5e-3, rtol=5e-3), "mismatch vs bf16 reference"

    # Loose sanity check against the full-f32 forward (semantics of the PyTorch module).
    ref_f32 = jnp.maximum(meta @ w1 + b1, 0.0) @ w2 + b2
    assert jnp.allclose(out, ref_f32, atol=5e-2, rtol=5e-2), "mismatch vs f32 reference"

    print("KERNEL_OK")
</pallas_src>

<mosaic_0001>
module attributes {stable_mosaic.version = 11 : i64} {
  func.func @mlp_kernel(%arg0: i32, %arg1: i32, %arg2: memref<8x23xf32, #tpu.memory_space<vmem>>, %arg3: memref<23x3072xbf16, #tpu.memory_space<vmem>>, %arg4: memref<1x3072xf32, #tpu.memory_space<vmem>>, %arg5: memref<1536x2080xbf16, #tpu.memory_space<vmem>>, %arg6: memref<1x2080xf32, #tpu.memory_space<vmem>>, %arg7: memref<1x8x2080xf32, #tpu.memory_space<vmem>>, %arg8: memref<8x3072xbf16, #tpu.memory_space<vmem>>) attributes {dimension_semantics = [#tpu.dimension_semantics<parallel>, #tpu.dimension_semantics<arbitrary>], iteration_bounds = array<i64: 1, 2>, scalar_prefetch = 0 : i64, scratch_operands = 1 : i64, tpu.core_type = #tpu.core_type<tc>, window_params = [{pipeline_mode = #tpu.pipeline_mode<synchronous>, transform_indices = @transform_0, window_bounds = array<i64: 8, 23>}, {transform_indices = @transform_1, window_bounds = array<i64: 23, 3072>}, {transform_indices = @transform_2, window_bounds = array<i64: 1, 3072>}, {transform_indices = @transform_3, window_bounds = array<i64: 1536, 2080>}, {pipeline_mode = #tpu.pipeline_mode<synchronous>, transform_indices = @transform_4, window_bounds = array<i64: 1, 2080>}, {transform_indices = @transform_5, window_bounds = array<i64: 1, 8, 2080>}]} {
    %c0_i32 = arith.constant 0 : i32
    %0 = arith.cmpi eq, %arg1, %c0_i32 : i32
    %1 = arith.extui %0 : i1 to i32
    %c0_i32_0 = arith.constant 0 : i32
    %2 = arith.cmpi ne, %1, %c0_i32_0 : i32
    scf.if %2 {
      %c0_9 = arith.constant 0 : index
      %c0_10 = arith.constant 0 : index
      %15 = vector.load %arg2[%c0_9, %c0_10] : memref<8x23xf32, #tpu.memory_space<vmem>>, vector<8x23xf32>
      %16 = arith.truncf %15 : vector<8x23xf32> to vector<8x23xbf16>
      %c0_11 = arith.constant 0 : index
      %c0_12 = arith.constant 0 : index
      %17 = vector.load %arg3[%c0_11, %c0_12] : memref<23x3072xbf16, #tpu.memory_space<vmem>>, vector<23x3072xbf16>
      %cst_13 = arith.constant dense<0.000000e+00> : vector<8x3072xf32>
      %18 = tpu.matmul %16, %17, %cst_13 {dimension_numbers = #tpu.dot_dimension_numbers<[1], [0], [0], [1], [0, 0, 1, 1], [], []>} : vector<8x23xbf16>, vector<23x3072xbf16>, vector<8x3072xf32> -> vector<8x3072xf32>
      %c0_14 = arith.constant 0 : index
      %c0_15 = arith.constant 0 : index
      %19 = vector.load %arg4[%c0_14, %c0_15] : memref<1x3072xf32, #tpu.memory_space<vmem>>, vector<1x3072xf32>
      %20 = vector.broadcast %19 : vector<1x3072xf32> to vector<8x3072xf32>
      %21 = arith.addf %18, %20 : vector<8x3072xf32>
      %cst_16 = arith.constant 0.000000e+00 : f32
      %22 = vector.broadcast %cst_16 : f32 to vector<8x3072xf32>
      %23 = arith.maximumf %21, %22 : vector<8x3072xf32>
      %24 = arith.truncf %23 : vector<8x3072xf32> to vector<8x3072xbf16>
      %c0_17 = arith.constant 0 : index
      %c0_18 = arith.constant 0 : index
      %25 = vector.load %arg8[%c0_17, %c0_18] : memref<8x3072xbf16, #tpu.memory_space<vmem>>, vector<8x3072xbf16>
      tpu.vector_store %arg8[%c0_17, %c0_18], %24 {strides = array<i32>} : memref<8x3072xbf16, #tpu.memory_space<vmem>>, vector<8x3072xbf16>,
      %c0_19 = arith.constant 0 : index
      %c0_20 = arith.constant 0 : index
      %26 = vector.load %arg6[%c0_19, %c0_20] : memref<1x2080xf32, #tpu.memory_space<vmem>>, vector<1x2080xf32>
      %c0_i32_21 = arith.constant 0 : i32
      %27 = arith.cmpi eq, %arg0, %c0_i32_21 : i32
      %28 = arith.extui %27 : i1 to i32
      %29 = arith.sitofp %28 : i32 to f32
      %30 = vector.broadcast %29 : f32 to vector<1x2080xf32>
      %31 = arith.mulf %26, %30 : vector<1x2080xf32>
      %32 = vector.shape_cast %31 : vector<1x2080xf32> to vector<1x2080xf32>
      %33 = vector.broadcast %32 : vector<1x2080xf32> to vector<8x2080xf32>
      %c0_22 = arith.constant 0 : index
      %c0_23 = arith.constant 0 : index
      %c0_24 = arith.constant 0 : index
      %34 = vector.load %arg7[%c0_22, %c0_23, %c0_24] : memref<1x8x2080xf32, #tpu.memory_space<vmem>>, vector<1x8x2080xf32>
      %35 = vector.shape_cast %34 : vector<1x8x2080xf32> to vector<8x2080xf32>
      %36 = vector.shape_cast %33 : vector<8x2080xf32> to vector<1x8x2080xf32>
      tpu.vector_store %arg7[%c0_22, %c0_23, %c0_24], %36 {strides = array<i32>} : memref<1x8x2080xf32, #tpu.memory_space<vmem>>, vector<1x8x2080xf32>,
    } else {
    }
    %c1536_i32 = arith.constant 1536 : i32
    %3 = arith.muli %arg1, %c1536_i32 : i32
    %4 = tpu.assume_multiple %3, 1536 : i32
    %c0 = arith.constant 0 : index
    %5 = arith.index_cast %4 : i32 to index
    %6 = vector.load %arg8[%c0, %5] : memref<8x3072xbf16, #tpu.memory_space<vmem>>, vector<8x1536xbf16>
    %c0_1 = arith.constant 0 : index
    %c0_2 = arith.constant 0 : index
    %c0_3 = arith.constant 0 : index
    %7 = vector.load %arg7[%c0_1, %c0_2, %c0_3] : memref<1x8x2080xf32, #tpu.memory_space<vmem>>, vector<1x8x2080xf32>
    %8 = vector.shape_cast %7 : vector<1x8x2080xf32> to vector<8x2080xf32>
    %c0_4 = arith.constant 0 : index
    %c0_5 = arith.constant 0 : index
    %9 = vector.load %arg5[%c0_4, %c0_5] : memref<1536x2080xbf16, #tpu.memory_space<vmem>>, vector<1536x2080xbf16>
    %cst = arith.constant dense<0.000000e+00> : vector<8x2080xf32>
    %10 = tpu.matmul %6, %9, %cst {dimension_numbers = #tpu.dot_dimension_numbers<[1], [0], [0], [1], [0, 0, 1, 1], [], []>} : vector<8x1536xbf16>, vector<1536x2080xbf16>, vector<8x2080xf32> -> vector<8x2080xf32>
    %11 = arith.addf %8, %10 : vector<8x2080xf32>
    %c0_6 = arith.constant 0 : index
    %c0_7 = arith.constant 0 : index
    %c0_8 = arith.constant 0 : index
    %12 = vector.load %arg7[%c0_6, %c0_7, %c0_8] : memref<1x8x2080xf32, #tpu.memory_space<vmem>>, vector<1x8x2080xf32>
    %13 = vector.shape_cast %12 : vector<1x8x2080xf32> to vector<8x2080xf32>
    %14 = vector.shape_cast %11 : vector<8x2080xf32> to vector<1x8x2080xf32>
    tpu.vector_store %arg7[%c0_6, %c0_7, %c0_8], %14 {strides = array<i32>} : memref<1x8x2080xf32, #tpu.memory_space<vmem>>, vector<1x8x2080xf32>,
    return
  }
  func.func @transform_0(%arg0: i32, %arg1: i32) -> (i32, i32) {
    %c0_i32 = arith.constant 0 : i32
    %c0_i32_0 = arith.constant 0 : i32
    %c0_i32_1 = arith.constant 0 : i32
    return %c0_i32, %c0_i32_0 : i32, i32
  }
  func.func @transform_1(%arg0: i32, %arg1: i32) -> (i32, i32) {
    %c0_i32 = arith.constant 0 : i32
    %c0_i32_0 = arith.constant 0 : i32
    return %c0_i32, %arg0 : i32, i32
  }
  func.func @transform_2(%arg0: i32, %arg1: i32) -> (i32, i32) {
    %c0_i32 = arith.constant 0 : i32
    %c0_i32_0 = arith.constant 0 : i32
    return %c0_i32, %arg0 : i32, i32
  }
  func.func @transform_3(%arg0: i32, %arg1: i32) -> (i32, i32) {
    %c2_i32 = arith.constant 2 : i32
    %0 = arith.muli %arg0, %c2_i32 : i32
    %1 = arith.addi %0, %arg1 : i32
    %c0_i32 = arith.constant 0 : i32
    %c0_i32_0 = arith.constant 0 : i32
    return %1, %c0_i32 : i32, i32
  }
  func.func @transform_4(%arg0: i32, %arg1: i32) -> (i32, i32) {
    %c0_i32 = arith.constant 0 : i32
    %c0_i32_0 = arith.constant 0 : i32
    %c0_i32_1 = arith.constant 0 : i32
    return %c0_i32, %c0_i32_0 : i32, i32
  }
  func.func @transform_5(%arg0: i32, %arg1: i32) -> (i32, i32, i32) {
    %c0_i32 = arith.constant 0 : i32
    %c0_i32_0 = arith.constant 0 : i32
    %c0_i32_1 = arith.constant 0 : i32
    return %arg0, %c0_i32, %c0_i32_0 : i32, i32, i32
  }
}

</mosaic_0001>

<llo_original>
// kernel: tpu_custom_call.1
$region0: #{tpu_custom_call.1}
  #allocation0 [shape = 'u32[]', space=smem, size = 0x4, offset = 0x4, fixed_abs, tag = 'smem constant byte address 0x4 - core index']
  #allocation1 [shape = 'u32[144,128]{1,0:T(1,128)}', space=vmem, size = 0x12000, scoped, tag = 'internal scratch']
  #allocation2 [shape = 'bf16[8,3072]{1,0:T(8,128)(2,1)}', space=vmem, size = 0xc000, scoped, tag = 'scratch operand']
  %s0 = inlined_call_operand.vmem [shape: f32[8,23], index: 0, kind: input, shape index: {}]
  %s1 = inlined_call_operand.vmem [shape: bf16[23,3072], index: 1, kind: input, shape index: {}]
  %s2 = inlined_call_operand.vmem [shape: f32[1,3072], index: 2, kind: input, shape index: {}]
  %s3 = inlined_call_operand.vmem [shape: bf16[3072,2080], index: 3, kind: input, shape index: {}]
  %s4 = inlined_call_operand.vmem [shape: f32[1,2080], index: 4, kind: input, shape index: {}]
  %s5 = inlined_call_operand.hbm [shape: f32[1,8,2080], index: 5, kind: output, shape index: {}]
  %s6 = sld [smem:[#allocation0]]
  $region57: #{tpu_custom_call.1} parent=0
    _
  %s8 = ssub.s32 1, %s6
  %s9 = scalar_select 0, %s8, %s6
  $region1: #{tpu_custom_call.1} parent=0
    #allocation3 [shape = 'u8[69632]{0}', space=vmem, size = 0x11000, scoped, tag = 'output window, operand 0, single buffered']
    #allocation4 [shape = 's32[2]{0}', space=sflag, size = 0x8, scoped, tag = 'scoped memory for tpu_custom_call.1']
    %10 = vsyncpa [#allocation4], 0
    loop: start=0, step=1, limit=4
    $region2: #{tpu_custom_call.1} parent=1 // loop_pre_header
      _
    $region3: #{tpu_custom_call.1} parent=1 // loop_header
      %s12 = sphi 0, %s16
      %p13 = scmp.ge.s32.totalorder %s12, 4
      %s19 = sphi 0, %s31
      %s20 = sphi 0, %s27
      %s21 = sphi 0, %s19
      %s22 = sphi 0, %s20
      %s23 = sphi 0, %s21
      %s24 = sphi 0, %s22
      %s32 = sphi 0, %s32
      %s34 = sphi 0, %s32
      %s35 = sphi 0, %s34
      %s49 = sphi 0, %s35
      %s55 = sphi 0, %s57
      %s58 = sphi 0, %s55
      %s59 = sphi 0, %s58
      %s75 = sphi 0, %s59
      %s81 = sphi 0, %s83
      %s84 = sphi 0, %s81
      %s85 = sphi 0, %s84
      %s101 = sphi 0, %s85
      %s111 = sphi 0, %s113
      %s114 = sphi 0, %s111
      %s115 = sphi 0, %s114
      %s131 = sphi 0, %s115
      %s135 = sphi 0, %s135
      %s137 = sphi 0, %s135
      %s138 = sphi 0, %s137
      %s152 = sphi 0, %s138
      %s158 = sphi 0, %s160
      %s161 = sphi 0, %s158
      %s162 = sphi 0, %s161
      %s178 = sphi 0, %s162
    $region4: #{tpu_custom_call.1} parent=1 // loop_header_branch
      %15 = sbr.rel (%p13) target = $region8
    $region5: #{tpu_custom_call.1} parent=1 // loop_body
      %s17 = ssub.s32 %s12, 1
      %s18 = ssub.s32 %s12, 2
      %s25 = sadd.s32 1, %s20
      %p26 = scmp.ge.s32.totalorder %s25, 2
      %s27 = scalar_select %p26, 0, %s25
      %s28 = sadd.s32 1, %s19
      %s29 = scalar_select %p26, %s28, %s19
      %p30 = scmp.ge.s32.totalorder %s29, 1
      %s31 = scalar_select %p30, 0, %s29
      %s33 = sadd.s32 %s32, 1
      %p36 = scmp.eq.s32.totalorder %s12, 1
      %p37 = scmp.ne.s32.totalorder %s32, %s34
      %p38 = scmp.eq.s32.totalorder %s12, 0
      %p39 = por %p37, %p38
      %p40 = scmp.ne.s32.totalorder %s32, %s34
      %p41 = scmp.eq.s32.totalorder %s17, 1
      %p42 = por %p40, %p41
      %p43 = scmp.ne.s32.totalorder %s34, %s35
      %p44 = scmp.eq.s32.totalorder %s17, 0
      %p45 = por %p43, %p44
      %p46 = scmp.ne.s32.totalorder %s34, %s35
      %p47 = scmp.eq.s32.totalorder %s18, 1
      %p48 = por %p46, %p47
      %p50 = scmp.ne.s32.totalorder %s35, %s49
      %p51 = scmp.eq.s32.totalorder %s18, 0
      %p52 = por %p50, %p51
      %s53 = ssub.s32 %s19, %s31
      %p54 = scmp.eq.s32.totalorder %s53, 0
      %s56 = sadd.s32 %s55, 1
      %s57 = scalar_select %p54, %s55, %s56
      %p60 = pneg %p54
      %p61 = scmp.eq.s32.totalorder %s12, 1
      %p62 = por %p60, %p61
      %p63 = scmp.ne.s32.totalorder %s55, %s58
      %p64 = scmp.eq.s32.totalorder %s12, 0
      %p65 = por %p63, %p64
      %p66 = scmp.ne.s32.totalorder %s55, %s58
      %p67 = scmp.eq.s32.totalorder %s17, 1
      %p68 = por %p66, %p67
      %p69 = scmp.ne.s32.totalorder %s58, %s59
      %p70 = scmp.eq.s32.totalorder %s17, 0
      %p71 = por %p69, %p70
      %p72 = scmp.ne.s32.totalorder %s58, %s59
      %p73 = scmp.eq.s32.totalorder %s18, 1
      %p74 = por %p72, %p73
      %p76 = scmp.ne.s32.totalorder %s59, %s75
      %p77 = scmp.eq.s32.totalorder %s18, 0
      %p78 = por %p76, %p77
      %s79 = ssub.s32 %s19, %s31
      %p80 = scmp.eq.s32.totalorder %s79, 0
      %s82 = sadd.s32 %s81, 1
      %s83 = scalar_select %p80, %s81, %s82
      %p86 = pneg %p80
      %p87 = scmp.eq.s32.totalorder %s12, 1
      %p88 = por %p86, %p87
      %p89 = scmp.ne.s32.totalorder %s81, %s84
      %p90 = scmp.eq.s32.totalorder %s12, 0
      %p91 = por %p89, %p90
      %p92 = scmp.ne.s32.totalorder %s81, %s84
      %p93 = scmp.eq.s32.totalorder %s17, 1
      %p94 = por %p92, %p93
      %p95 = scmp.ne.s32.totalorder %s84, %s85
      %p96 = scmp.eq.s32.totalorder %s17, 0
      %p97 = por %p95, %p96
      %p98 = scmp.ne.s32.totalorder %s84, %s85
      %p99 = scmp.eq.s32.totalorder %s18, 1
      %p100 = por %p98, %p99
      %p102 = scmp.ne.s32.totalorder %s85, %s101
      %p103 = scmp.eq.s32.totalorder %s18, 0
      %p104 = por %p102, %p103
      %s105 = smul.u32 %s19, 2
      %s106 = sadd.s32 %s105, %s20
      %s107 = smul.u32 %s31, 2
      %s108 = sadd.s32 %s107, %s27
      %s109 = ssub.s32 %s106, %s108
      %p110 = scmp.eq.s32.totalorder %s109, 0
      %s112 = sadd.s32 %s111, 1
      %s113 = scalar_select %p110, %s111, %s112
      %p116 = pneg %p110
      %p117 = scmp.eq.s32.totalorder %s12, 1
      %p118 = por %p116, %p117
      %p119 = scmp.ne.s32.totalorder %s111, %s114
      %p120 = scmp.eq.s32.totalorder %s12, 0
      %p121 = por %p119, %p120
      %p122 = scmp.ne.s32.totalorder %s111, %s114
      %p123 = scmp.eq.s32.totalorder %s17, 1
      %p124 = por %p122, %p123
      %p125 = scmp.ne.s32.totalorder %s114, %s115
      %p126 = scmp.eq.s32.totalorder %s17, 0
      %p127 = por %p125, %p126
      %p128 = scmp.ne.s32.totalorder %s114, %s115
      %p129 = scmp.eq.s32.totalorder %s18, 1
      %p130 = por %p128, %p129
      %p132 = scmp.ne.s32.totalorder %s115, %s131
      %p133 = scmp.eq.s32.totalorder %s18, 0
      %p134 = por %p132, %p133
      %s136 = sadd.s32 %s135, 1
      %p139 = scmp.eq.s32.totalorder %s12, 1
      %p140 = scmp.ne.s32.totalorder %s135, %s137
      %p141 = scmp.eq.s32.totalorder %s12, 0
      %p142 = por %p140, %p141
      %p143 = scmp.ne.s32.totalorder %s135, %s137
      %p144 = scmp.eq.s32.totalorder %s17, 1
      %p145 = por %p143, %p144
      %p146 = scmp.ne.s32.totalorder %s137, %s138
      %p147 = scmp.eq.s32.totalorder %s17, 0
      %p148 = por %p146, %p147
      %p149 = scmp.ne.s32.totalorder %s137, %s138
      %p150 = scmp.eq.s32.totalorder %s18, 1
      %p151 = por %p149, %p150
      %p153 = scmp.ne.s32.totalorder %s138, %s152
      %p154 = scmp.eq.s32.totalorder %s18, 0
      %p155 = por %p153, %p154
      %s156 = ssub.s32 %s19, %s31
      %p157 = scmp.eq.s32.totalorder %s156, 0
      %s159 = sadd.s32 %s158, 1
      %s160 = scalar_select %p157, %s158, %s159
      %p163 = pneg %p157
      %p164 = scmp.eq.s32.totalorder %s12, 1
      %p165 = por %p163, %p164
      %p166 = scmp.ne.s32.totalorder %s158, %s161
      %p167 = scmp.eq.s32.totalorder %s12, 0
      %p168 = por %p166, %p167
      %p169 = scmp.ne.s32.totalorder %s158, %s161
      %p170 = scmp.eq.s32.totalorder %s17, 1
      %p171 = por %p169, %p170
      %p172 = scmp.ne.s32.totalorder %s161, %s162
      %p173 = scmp.eq.s32.totalorder %s17, 0
      %p174 = por %p172, %p173
      %p175 = scmp.ne.s32.totalorder %s161, %s162
      %p176 = scmp.eq.s32.totalorder %s18, 1
      %p177 = por %p175, %p176
      %p179 = scmp.ne.s32.totalorder %s162, %s178
      %p180 = scmp.eq.s32.totalorder %s18, 0
      %p181 = por %p179, %p180
      %p182 = scmp.le.s32.totalorder 1, %s12
      %p183 = scmp.lt.s32.totalorder %s12, 3
      %p184 = pnand %p182, %p183
      %p185 = pneg %p184
      // Predicated region
      $region9: #{tpu_custom_call.1} parent=5 // pred_check
        _
      $region10: #{tpu_custom_call.1} parent=5 // pred_check_branch
        %187 = sbr.rel (%p184) target = $region12
      $region11: #{tpu_custom_call.1} parent=5 // pred_region
        %s188 = ssub.s32 %s12, 1
        // Predicated region
        $region13: #{tpu_custom_call.1} parent=11 // pred_check
          %p189 = pneg %p45
        $region14: #{tpu_custom_call.1} parent=11 // pred_check_branch
          %191 = sbr.rel (%p189) target = $region16
        $region15: #{tpu_custom_call.1} parent=11 // pred_region
          _
        $region16: #{tpu_custom_call.1} parent=11 // pred_fallthru
          _
        // Predicated region
        $region17: #{tpu_custom_call.1} parent=11 // pred_check
          %p192 = pneg %p71
        $region18: #{tpu_custom_call.1} parent=11 // pred_check_branch
          %194 = sbr.rel (%p192) target = $region20
        $region19: #{tpu_custom_call.1} parent=11 // pred_region
          %s195 = smul.u32 24, %s21
          %p196 = scmp.lt.s32.totalorder %s195, 23
          %s197 = scalar_select %p196, %s195, 23
          %s198 = smul.addr %s197, 4
          %s199 = scalar_lea.vmem %s1, %s198
          %s200 = smul.u32 24, %s21
        $region20: #{tpu_custom_call.1} parent=11 // pred_fallthru
          _
        // Predicated region
        $region21: #{tpu_custom_call.1} parent=11 // pred_check
          %p201 = pneg %p97
        $region22: #{tpu_custom_call.1} parent=11 // pred_check_branch
          %203 = sbr.rel (%p201) target = $region24
        $region23: #{tpu_custom_call.1} parent=11 // pred_region
          %s204 = smul.u32 24, %s21
          %p205 = scmp.lt.s32.totalorder %s204, 23
          %s206 = scalar_select %p205, %s204, 23
          %s207 = scalar_lea.vmem %s2, %s206
          %s208 = smul.u32 24, %s21
        $region24: #{tpu_custom_call.1} parent=11 // pred_fallthru
          _
        // Predicated region
        $region25: #{tpu_custom_call.1} parent=11 // pred_check
          %p209 = pneg %p148
        $region26: #{tpu_custom_call.1} parent=11 // pred_check_branch
          %211 = sbr.rel (%p209) target = $region28
        $region27: #{tpu_custom_call.1} parent=11 // pred_region
          _
        $region28: #{tpu_custom_call.1} parent=11 // pred_fallthru
          _
      $region12: #{tpu_custom_call.1} parent=5 // pred_fallthru
        _
      %p212 = scmp.lt.s32.totalorder %s12, 2
      // Predicated region
      $region29: #{tpu_custom_call.1} parent=5 // pred_check
        %p213 = pneg %p212
      $region30: #{tpu_custom_call.1} parent=5 // pred_check_branch
        %215 = sbr.rel (%p213) target = $region32
      $region31: #{tpu_custom_call.1} parent=5 // pred_region
        // Predicated region
        $region33: #{tpu_custom_call.1} parent=31 // pred_check
          %p216 = pneg %p121
        $region34: #{tpu_custom_call.1} parent=31 // pred_check_branch
          %218 = sbr.rel (%p216) target = $region36
        $region35: #{tpu_custom_call.1} parent=31 // pred_region
          %s219 = smul.u32 %s19, 2
          %s220 = sadd.s32 %s219, %s20
          %s221 = smul.u32 192, %s220
          %p222 = scmp.lt.s32.totalorder %s221, 383
          %s223 = scalar_select %p222, %s221, 383
          %s224 = smul.addr %s223, 17
          %s225 = smul.addr %s224, 4
          %s226 = scalar_lea.vmem %s3, %s225
          %s227 = smul.u32 %s19, 2
          %s228 = sadd.s32 %s227, %s20
          %s229 = smul.u32 192, %s228
        $region36: #{tpu_custom_call.1} parent=31 // pred_fallthru
          _
      $region32: #{tpu_custom_call.1} parent=5 // pred_fallthru
        _
      %p230 = scmp.le.s32.totalorder 1, %s12
      %p231 = scmp.lt.s32.totalorder %s12, 3
      %p232 = pnand %p230, %p231
      %p233 = pneg %p232
      // Predicated region
      $region37: #{tpu_custom_call.1} parent=5 // pred_check
        _
      $region38: #{tpu_custom_call.1} parent=5 // pred_check_branch
        %235 = sbr.rel (%p232) target = $region40
      $region39: #{tpu_custom_call.1} parent=5 // pred_region
        %s236 = ssub.s32 %s12, 1
        %p237 = pneg %p45
        %p238 = pneg %p42
        %s239 = smul.u32 24, %s21
        %p240 = scmp.lt.s32.totalorder %s239, 23
        %s241 = scalar_select %p240, %s239, 23
        %s242 = smul.addr %s241, 4
        %s243 = scalar_lea.vmem %s1, %s242
        %p244 = pneg %p71
        %p245 = pneg %p68
        %s246 = smul.u32 24, %s21
        %p247 = scmp.lt.s32.totalorder %s246, 23
        %s248 = scalar_select %p247, %s246, 23
        %s249 = scalar_lea.vmem %s2, %s248
        %p250 = pneg %p97
        %p251 = pneg %p94
        %s252 = smul.u32 %s21, 2
        %s253 = sadd.s32 %s252, %s22
        %s254 = smul.u32 192, %s253
        %p255 = scmp.lt.s32.totalorder %s254, 383
        %s256 = scalar_select %p255, %s254, 383
        %s257 = smul.addr %s256, 17
        %s258 = smul.addr %s257, 4
        %s259 = scalar_lea.vmem %s3, %s258
        %p260 = pneg %p127
        %p261 = pneg %p124
        %p262 = pneg %p148
        %p263 = pneg %p145
        %p264 = pneg %p174
        %p265 = pneg %p171
        %s266 = smul.u32 24, %s21
        %p267 = scmp.lt.s32.totalorder %s266, 23
        %s268 = scalar_select %p267, %s266, 23
        %s269 = smul.addr %s268, 4
        %s270 = scalar_lea.vmem %s1, %s269
        %s271 = smul.u32 24, %s21
        %s272 = smul.u32 24, %s21
        %p273 = scmp.lt.s32.totalorder %s272, 23
        %s274 = scalar_select %p273, %s272, 23
        %s275 = scalar_lea.vmem %s2, %s274
        %s276 = smul.u32 24, %s21
        %s277 = smul.u32 %s21, 2
        %s278 = sadd.s32 %s277, %s22
        %s279 = smul.u32 192, %s278
        %p280 = scmp.lt.s32.totalorder %s279, 383
        %s281 = scalar_select %p280, %s279, 383
        %s282 = smul.addr %s281, 17
        %s283 = smul.addr %s282, 4
        %s284 = scalar_lea.vmem %s3, %s283
        %s285 = smul.u32 %s21, 2
        %s286 = sadd.s32 %s285, %s22
        %s287 = smul.u32 192, %s286
        %p289 = scmp.eq.s32.totalorder %s22, 0
        // Predicated region
        $region41: #{tpu_custom_call.1} parent=39 // pred_check
          %p290 = pneg %p289
        $region42: #{tpu_custom_call.1} parent=39 // pred_check_branch
          %292 = sbr.rel (%p290) target = $region44
        $region43: #{tpu_custom_call.1} parent=39 // pred_region
          %v293 = vld [vmem:[%s0] sm:$0xff]
          %v294 = vpack.c.bf16 %v293, %v293
          %v295 = vld [vmem:[%s270] sm:$0xff]
          %v296 = vld [vmem:[%s270 + $0x8] sm:$0xff]
          %v297 = vld [vmem:[%s270 + $0x10] sm:$0xff]
          %v298 = vld [vmem:[%s270 + $0x18] sm:$0xff]
          %v299 = vld [vmem:[%s270 + $0x20] sm:$0xff]
          %v300 = vld [vmem:[%s270 + $0x28] sm:$0xff]
          %v301 = vld [vmem:[%s270 + $0x30] sm:$0xff]
          %v302 = vld [vmem:[%s270 + $0x38] sm:$0xff]
          %v303 = vld [vmem:[%s270 + $0x40] sm:$0xff]
          %v304 = vld [vmem:[%s270 + $0x48] sm:$0xff]
          %v305 = vld [vmem:[%s270 + $0x50] sm:$0xff]
          %v306 = vld [vmem:[%s270 + $0x58] sm:$0xff]
          %v307 = vld [vmem:[%s270 + $0x60] sm:$0xff]
          %v308 = vld [vmem:[%s270 + $0x68] sm:$0xff]
          %v309 = vld [vmem:[%s270 + $0x70] sm:$0xff]
          %v310 = vld [vmem:[%s270 + $0x78] sm:$0xff]
          %v311 = vld [vmem:[%s270 + $0x80] sm:$0xff]
          %v312 = vld [vmem:[%s270 + $0x88] sm:$0xff]
          %v313 = vld [vmem:[%s270 + $0x90] sm:$0xff]
          %v314 = vld [vmem:[%s270 + $0x98] sm:$0xff]
          %v315 = vld [vmem:[%s270 + $0xa0] sm:$0xff]
          %v316 = vld [vmem:[%s270 + $0xa8] sm:$0xff]
          %v317 = vld [vmem:[%s270 + $0xb0] sm:$0xff]
          %v318 = vld [vmem:[%s270 + $0xb8] sm:$0xff]
          %v319 = vld [vmem:[%s270 + $0xc0] sm:$0xff]
          %v320 = vld [vmem:[%s270 + $0xc8] sm:$0xff]
          %v321 = vld [vmem:[%s270 + $0xd0] sm:$0xff]
          %v322 = vld [vmem:[%s270 + $0xd8] sm:$0xff]
          %v323 = vld [vmem:[%s270 + $0xe0] sm:$0xff]
          %v324 = vld [vmem:[%s270 + $0xe8] sm:$0xff]
          %v325 = vld [vmem:[%s270 + $0xf0] sm:$0xff]
          %v326 = vld [vmem:[%s270 + $0xf8] sm:$0xff]
          %v327 = vld [vmem:[%s270 + $0x100] sm:$0xff]
          %v328 = vld [vmem:[%s270 + $0x108] sm:$0xff]
          %v329 = vld [vmem:[%s270 + $0x110] sm:$0xff]
          %v330 = vld [vmem:[%s270 + $0x118] sm:$0xff]
          %v331 = vld [vmem:[%s275] sm:$0xff]
          %v332 = vld [vmem:[%s275 + $0x8] sm:$0xff]
          %v333 = vld [vmem:[%s275 + $0x10] sm:$0xff]
          %v337 = vlaneseq
          %v338 = vshrl.u32 %v337, 7
          %v339 = vsub.s32 0, %v338
          %v340 = vrot.slane %v331, %v339
          %v341 = vlaneseq
          %v342 = vshrl.u32 %v341, 7
          %v343 = vsub.s32 1, %v342
          %v344 = vrot.slane %v331, %v343
          %v345 = vlaneseq
          %v346 = vshrl.u32 %v345, 7
          %v347 = vsub.s32 2, %v346
          %v348 = vrot.slane %v331, %v347
          %v349 = vlaneseq
          %v350 = vshrl.u32 %v349, 7
          %v351 = vsub.s32 3, %v350
          %v352 = vrot.slane %v331, %v351
          %v353 = vlaneseq
          %v354 = vshrl.u32 %v353, 7
          %v355 = vsub.s32 4, %v354
          %v356 = vrot.slane %v331, %v355
          %v357 = vlaneseq
          %v358 = vshrl.u32 %v357, 7
          %v359 = vsub.s32 5, %v358
          %v360 = vrot.slane %v331, %v359
          %v361 = vlaneseq
          %v362 = vshrl.u32 %v361, 7
          %v363 = vsub.s32 6, %v362
          %v364 = vrot.slane %v331, %v363
          %v365 = vlaneseq
          %v366 = vshrl.u32 %v365, 7
          %v367 = vsub.s32 7, %v366
          %v368 = vrot.slane %v331, %v367
          %v369 = vlaneseq
          %v370 = vshrl.u32 %v369, 7
          %v371 = vsub.s32 0, %v370
          %v372 = vrot.slane %v332, %v371
          %v373 = vlaneseq
          %v374 = vshrl.u32 %v373, 7
          %v375 = vsub.s32 1, %v374
          %v376 = vrot.slane %v332, %v375
          %v377 = vlaneseq
          %v378 = vshrl.u32 %v377, 7
          %v379 = vsub.s32 2, %v378
          %v380 = vrot.slane %v332, %v379
          %v381 = vlaneseq
          %v382 = vshrl.u32 %v381, 7
          %v383 = vsub.s32 3, %v382
          %v384 = vrot.slane %v332, %v383
          %v385 = vlaneseq
          %v386 = vshrl.u32 %v385, 7
          %v387 = vsub.s32 4, %v386
          %v388 = vrot.slane %v332, %v387
          %v389 = vlaneseq
          %v390 = vshrl.u32 %v389, 7
          %v391 = vsub.s32 5, %v390
          %v392 = vrot.slane %v332, %v391
          %v393 = vlaneseq
          %v394 = vshrl.u32 %v393, 7
          %v395 = vsub.s32 6, %v394
          %v396 = vrot.slane %v332, %v395
          %v397 = vlaneseq
          %v398 = vshrl.u32 %v397, 7
          %v399 = vsub.s32 7, %v398
          %v400 = vrot.slane %v332, %v399
          %v401 = vlaneseq
          %v402 = vshrl.u32 %v401, 7
          %v403 = vsub.s32 0, %v402
          %v404 = vrot.slane %v333, %v403
          %v405 = vlaneseq
          %v406 = vshrl.u32 %v405, 7
          %v407 = vsub.s32 1, %v406
          %v408 = vrot.slane %v333, %v407
          %v409 = vlaneseq
          %v410 = vshrl.u32 %v409, 7
          %v411 = vsub.s32 2, %v410
          %v412 = vrot.slane %v333, %v411
          %v413 = vlaneseq
          %v414 = vshrl.u32 %v413, 7
          %v415 = vsub.s32 3, %v414
          %v416 = vrot.slane %v333, %v415
          %v417 = vlaneseq
          %v418 = vshrl.u32 %v417, 7
          %v419 = vsub.s32 4, %v418
          %v420 = vrot.slane %v333, %v419
          %v421 = vlaneseq
          %v422 = vshrl.u32 %v421, 7
          %v423 = vsub.s32 5, %v422
          %v424 = vrot.slane %v333, %v423
          %v425 = vlaneseq
          %v426 = vshrl.u32 %v425, 7
          %v427 = vsub.s32 6, %v426
          %v428 = vrot.slane %v333, %v427
          %v429 = vlaneseq
          %v430 = vshrl.u32 %v429, 7
          %v431 = vsub.s32 7, %v430
          %v432 = vrot.slane %v333, %v431
          %v493 = vunpack.c.l.b16 %v295
          %v494 = vunpack.c.h.b16 %v295
          %v495 = vunpack.c.l.b16 %v296
          %v496 = vunpack.c.h.b16 %v296
          %v497 = vunpack.c.l.b16 %v297
          %v498 = vunpack.c.h.b16 %v297
          %v499 = vunpack.c.l.b16 %v298
          %v500 = vunpack.c.h.b16 %v298
          %v501 = vunpack.c.l.b16 %v299
          %v502 = vunpack.c.h.b16 %v299
          %v503 = vunpack.c.l.b16 %v300
          %v504 = vunpack.c.h.b16 %v300
          %v505 = vunpack.c.l.b16 %v301
          %v506 = vunpack.c.h.b16 %v301
          %v507 = vunpack.c.l.b16 %v302
          %v508 = vunpack.c.h.b16 %v302
          %v509 = vunpack.c.l.b16 %v303
          %v510 = vunpack.c.h.b16 %v303
          %v511 = vunpack.c.l.b16 %v304
          %v512 = vunpack.c.h.b16 %v304
          %v513 = vunpack.c.l.b16 %v305
          %v514 = vunpack.c.h.b16 %v305
          %v515 = vunpack.c.l.b16 %v306
          %v516 = vunpack.c.h.b16 %v306
          %v517 = vunpack.c.l.b16 %v307
          %v518 = vunpack.c.h.b16 %v307
          %v519 = vunpack.c.l.b16 %v308
          %v520 = vunpack.c.h.b16 %v308
          %v521 = vunpack.c.l.b16 %v309
          %v522 = vunpack.c.h.b16 %v309
          %v523 = vunpack.c.l.b16 %v310
          %v524 = vunpack.c.h.b16 %v310
          %v525 = vunpack.c.l.b16 %v311
          %v526 = vunpack.c.h.b16 %v311
          %v527 = vunpack.c.l.b16 %v312
          %v528 = vunpack.c.h.b16 %v312
          %v529 = vunpack.c.l.b16 %v313
          %v530 = vunpack.c.h.b16 %v313
          %v531 = vunpack.c.l.b16 %v314
          %v532 = vunpack.c.h.b16 %v314
          %v533 = vunpack.c.l.b16 %v315
          %v534 = vunpack.c.h.b16 %v315
          %v535 = vunpack.c.l.b16 %v316
          %v536 = vunpack.c.h.b16 %v316
          %v537 = vunpack.c.l.b16 %v317
          %v538 = vunpack.c.h.b16 %v317
          %v539 = vunpack.c.l.b16 %v318
          %v540 = vunpack.c.h.b16 %v318
          %v541 = vunpack.c.l.b16 %v319
          %v542 = vunpack.c.h.b16 %v319
          %v543 = vunpack.c.l.b16 %v320
          %v544 = vunpack.c.h.b16 %v320
          %v545 = vunpack.c.l.b16 %v321
          %v546 = vunpack.c.h.b16 %v321
          %v547 = vunpack.c.l.b16 %v322
          %v548 = vunpack.c.h.b16 %v322
          %v549 = vunpack.c.l.b16 %v323
          %v550 = vunpack.c.h.b16 %v323
          %v551 = vunpack.c.l.b16 %v324
          %v552 = vunpack.c.h.b16 %v324
          %v553 = vunpack.c.l.b16 %v325
          %v554 = vunpack.c.h.b16 %v325
          %v555 = vunpack.c.l.b16 %v326
          %v556 = vunpack.c.h.b16 %v326
          %v557 = vunpack.c.l.b16 %v327
          %v558 = vunpack.c.h.b16 %v327
          %v559 = vunpack.c.l.b16 %v328
          %v560 = vunpack.c.h.b16 %v328
          %v561 = vunpack.c.l.b16 %v329
          %v562 = vunpack.c.h.b16 %v329
          %v563 = vunpack.c.l.b16 %v330
          %v564 = vunpack.c.h.b16 %v330
          %v565 = vpack.c.b16 %v517, %v493
          %v566 = vpack.c.b16 %v518, %v494
          %v567 = vpack.c.b16 %v519, %v495
          %v568 = vpack.c.b16 %v520, %v496
          %v569 = vpack.c.b16 %v521, %v497
          %v570 = vpack.c.b16 %v522, %v498
          %v571 = vpack.c.b16 %v523, %v499
          %v572 = vpack.c.b16 %v524, %v500
          %v573 = vpack.c.b16 %v525, %v501
          %v574 = vpack.c.b16 %v526, %v502
          %v575 = vpack.c.b16 %v527, %v503
          %v576 = vpack.c.b16 %v528, %v504
          %v577 = vpack.c.b16 %v529, %v505
          %v578 = vpack.c.b16 %v530, %v506
          %v579 = vpack.c.b16 %v531, %v507
          %v580 = vpack.c.b16 %v532, %v508
          %v581 = vpack.c.b16 %v533, %v509
          %v582 = vpack.c.b16 %v534, %v510
          %v583 = vpack.c.b16 %v535, %v511
          %v584 = vpack.c.b16 %v536, %v512
          %v585 = vpack.c.b16 %v537, %v513
          %v586 = vpack.c.b16 %v538, %v514
          %v587 = vpack.c.b16 %v539, %v515
          %v588 = vpack.c.b16 %v540, %v516
          %v589 = vpack.c.b16 %v541, %v541
          %v590 = vpack.c.b16 %v542, %v542
          %v591 = vpack.c.b16 %v543, %v543
          %v592 = vpack.c.b16 %v544, %v544
          %v593 = vpack.c.b16 %v545, %v545
          %v594 = vpack.c.b16 %v546, %v546
          %v595 = vpack.c.b16 %v547, %v547
          %v596 = vpack.c.b16 %v548, %v548
          %v597 = vpack.c.b16 %v549, %v549
          %v598 = vpack.c.b16 %v550, %v550
          %v599 = vpack.c.b16 %v551, %v551
          %v600 = vpack.c.b16 %v552, %v552
          %v601 = vpack.c.b16 %v553, %v553
          %v602 = vpack.c.b16 %v554, %v554
          %v603 = vpack.c.b16 %v555, %v555
          %v604 = vpack.c.b16 %v556, %v556
          %v605 = vpack.c.b16 %v557, %v557
          %v606 = vpack.c.b16 %v558, %v558
          %v607 = vpack.c.b16 %v559, %v559
          %v608 = vpack.c.b16 %v560, %v560
          %v609 = vpack.c.b16 %v561, %v561
          %v610 = vpack.c.b16 %v562, %v562
          %v611 = vpack.c.b16 %v563, %v563
          %v612 = vpack.c.b16 %v564, %v564
          %vm637 = vcmask 187392
          %v639 = vsel %vm637, %v294, 0
          %vm641 = vcmask 1042432
          %vm642 = vcmask 1043456
          %v643 = vsel %vm641, 4294967295, 65535
          %v644 = vsel %vm642, %v643, 0
          %v646 = vand.u32 %v589, %v644
          %v649 = vand.u32 %v590, %v644
          %v652 = vand.u32 %v591, %v644
          %v655 = vand.u32 %v592, %v644
          %v658 = vand.u32 %v593, %v644
          %v661 = vand.u32 %v594, %v644
          %v664 = vand.u32 %v595, %v644
          %v667 = vand.u32 %v596, %v644
          %v670 = vand.u32 %v597, %v644
          %v673 = vand.u32 %v598, %v644
          %v676 = vand.u32 %v599, %v644
          %v679 = vand.u32 %v600, %v644
          %v682 = vand.u32 %v601, %v644
          %v685 = vand.u32 %v602, %v644
          %v688 = vand.u32 %v603, %v644
          %v691 = vand.u32 %v604, %v644
          %v694 = vand.u32 %v605, %v644
          %v697 = vand.u32 %v606, %v644
          %v700 = vand.u32 %v607, %v644
          %v703 = vand.u32 %v608, %v644
          %v706 = vand.u32 %v609, %v644
          %v709 = vand.u32 %v610, %v644
          %v712 = vand.u32 %v611, %v644
          %v715 = vand.u32 %v612, %v644
          %717 = vmatprep.subr.bf16.mxu0 %v566
          %718 = vmatpush1.bf16.msra.mxu0 %v565
          %719 = vmatprep.subr.bf16.mxu0 %v649
          %720 = vmatpush1.bf16.msra.mxu0 %v646
          %721 = vmatprep.subr.bf16.mxu0 0
          %722 = vmatpush1.bf16.msra.mxu0 0
          %723 = vmatprep.subr.bf16.mxu0 0
          %724 = vmatpush1.bf16.msra.mxu0 0
          %725 = vmatprep.subr.bf16.mxu0 0
          %726 = vmatpush1.bf16.msra.mxu0 0
          %727 = vmatprep.subr.bf16.mxu0 0
          %728 = vmatpush1.bf16.msra.mxu0 0
          %729 = vmatprep.subr.bf16.mxu0 0
          %730 = vmatpush1.bf16.msra.mxu0 0
          %731 = vmatprep.subr.bf16.mxu0 0
          %732 = vmatpush1.bf16.msra.mxu0 0
          %733 = vmatprep.subr.bf16.mxu0 0
          %734 = vmatpush1.bf16.msra.mxu0 0
          %735 = vmatprep.subr.bf16.mxu0 0
          %736 = vmatpush1.bf16.msra.mxu0 0
          %737 = vmatprep.subr.bf16.mxu0 0
          %738 = vmatpush1.bf16.msra.mxu0 0
          %739 = vmatprep.subr.bf16.mxu0 0
          %740 = vmatpush1.bf16.msra.mxu0 0
          %741 = vmatprep.subr.bf16.mxu0 0
          %742 = vmatpush1.bf16.msra.mxu0 0
          %743 = vmatprep.subr.bf16.mxu0 0
          %744 = vmatpush1.bf16.msra.mxu0 0
          %745 = vmatprep.subr.bf16.mxu0 0
          %746 = vmatpush1.bf16.msra.mxu0 0
          %747 = vmatprep.subr.bf16.mxu0 0
          %748 = vmatpush1.bf16.msra.mxu0 0
          %749 = vmatprep.mubr.bf16.mxu0 0
          %750 = vmatmul.mubr.bf16.gmra.mrb[0].mxu0 %v639
          %v751 = vpop.f32.mrb[0].mxu0
          %v752 = vadd.f32 %v340, %v751
          %v753 = vpop.f32.mrb[0].mxu0
          %v754 = vadd.f32 %v344, %v753
          %v755 = vpop.f32.mrb[0].mxu0
          %v756 = vpop.f32.mrb[0].mxu0
          %757 = vdwg.mxu0
          %758 = vmatprep.subr.bf16.mxu0 %v568
          %759 = vmatpush1.bf16.msra.mxu0 %v567
          %760 = vmatprep.subr.bf16.mxu0 %v655
          %761 = vmatpush1.bf16.msra.mxu0 %v652
          %762 = vmatprep.subr.bf16.mxu0 0
          %763 = vmatpush1.bf16.msra.mxu0 0
          %764 = vmatprep.subr.bf16.mxu0 0
          %765 = vmatpush1.bf16.msra.mxu0 0
          %766 = vmatprep.subr.bf16.mxu0 0
          %767 = vmatpush1.bf16.msra.mxu0 0
          %768 = vmatprep.subr.bf16.mxu0 0
          %769 = vmatpush1.bf16.msra.mxu0 0
          %770 = vmatprep.subr.bf16.mxu0 0
          %771 = vmatpush1.bf16.msra.mxu0 0
          %772 = vmatprep.subr.bf16.mxu0 0
          %773 = vmatpush1.bf16.msra.mxu0 0
          %774 = vmatprep.subr.bf16.mxu0 0
          %775 = vmatpush1.bf16.msra.mxu0 0
          %776 = vmatprep.subr.bf16.mxu0 0
          %777 = vmatpush1.bf16.msra.mxu0 0
          %778 = vmatprep.subr.bf16.mxu0 0
          %779 = vmatpush1.bf16.msra.mxu0 0
          %780 = vmatprep.subr.bf16.mxu0 0
          %781 = vmatpush1.bf16.msra.mxu0 0
          %782 = vmatprep.subr.bf16.mxu0 0
          %783 = vmatpush1.bf16.msra.mxu0 0
          %784 = vmatprep.subr.bf16.mxu0 0
          %785 = vmatpush1.bf16.msra.mxu0 0
          %786 = vmatprep.subr.bf16.mxu0 0
          %787 = vmatpush1.bf16.msra.mxu0 0
          %788 = vmatprep.subr.bf16.mxu0 0
          %789 = vmatpush1.bf16.msra.mxu0 0
          %790 = vmatprep.mubr.bf16.mxu0 0
          %791 = vmatmul.mubr.bf16.gmra.mrb[0].mxu0 %v639
          %v792 = vpop.f32.mrb[0].mxu0
          %v793 = vadd.f32 %v348, %v792
          %v794 = vpop.f32.mrb[0].mxu0
          %v795 = vadd.f32 %v352, %v794
          %v796 = vpop.f32.mrb[0].mxu0
          %v797 = vpop.f32.mrb[0].mxu0
          %798 = vdwg.mxu0
          %799 = vmatprep.subr.bf16.mxu0 %v570
          %800 = vmatpush1.bf16.msra.mxu0 %v569
          %801 = vmatprep.subr.bf16.mxu0 %v661
          %802 = vmatpush1.bf16.msra.mxu0 %v658
          %803 = vmatprep.subr.bf16.mxu0 0
          %804 = vmatpush1.bf16.msra.mxu0 0
          %805 = vmatprep.subr.bf16.mxu0 0
          %806 = vmatpush1.bf16.msra.mxu0 0
          %807 = vmatprep.subr.bf16.mxu0 0
          %808 = vmatpush1.bf16.msra.mxu0 0
          %809 = vmatprep.subr.bf16.mxu0 0
          %810 = vmatpush1.bf16.msra.mxu0 0
          %811 = vmatprep.subr.bf16.mxu0 0
          %812 = vmatpush1.bf16.msra.mxu0 0
          %813 = vmatprep.subr.bf16.mxu0 0
          %814 = vmatpush1.bf16.msra.mxu0 0
          %815 = vmatprep.subr.bf16.mxu0 0
          %816 = vmatpush1.bf16.msra.mxu0 0
          %817 = vmatprep.subr.bf16.mxu0 0
          %818 = vmatpush1.bf16.msra.mxu0 0
          %819 = vmatprep.subr.bf16.mxu0 0
          %820 = vmatpush1.bf16.msra.mxu0 0
          %821 = vmatprep.subr.bf16.mxu0 0
          %822 = vmatpush1.bf16.msra.mxu0 0
          %823 = vmatprep.subr.bf16.mxu0 0
          %824 = vmatpush1.bf16.msra.mxu0 0
          %825 = vmatprep.subr.bf16.mxu0 0
          %826 = vmatpush1.bf16.msra.mxu0 0
          %827 = vmatprep.subr.bf16.mxu0 0
          %828 = vmatpush1.bf16.msra.mxu0 0
          %829 = vmatprep.subr.bf16.mxu0 0
          %830 = vmatpush1.bf16.msra.mxu0 0
          %831 = vmatprep.mubr.bf16.mxu0 0
          %832 = vmatmul.mubr.bf16.gmra.mrb[0].mxu0 %v639
          %v833 = vpop.f32.mrb[0].mxu0
          %v834 = vadd.f32 %v356, %v833
          %v835 = vpop.f32.mrb[0].mxu0
          %v836 = vadd.f32 %v360, %v835
          %v837 = vpop.f32.mrb[0].mxu0
          %v838 = vpop.f32.mrb[0].mxu0
          %839 = vdwg.mxu0
          %840 = vmatprep.subr.bf16.mxu0 %v572
          %841 = vmatpush1.bf16.msra.mxu0 %v571
          %842 = vmatprep.subr.bf16.mxu0 %v667
          %843 = vmatpush1.bf16.msra.mxu0 %v664
          %844 = vmatprep.subr.bf16.mxu0 0
          %845 = vmatpush1.bf16.msra.mxu0 0
          %846 = vmatprep.subr.bf16.mxu0 0
          %847 = vmatpush1.bf16.msra.mxu0 0
          %848 = vmatprep.subr.bf16.mxu0 0
          %849 = vmatpush1.bf16.msra.mxu0 0
          %850 = vmatprep.subr.bf16.mxu0 0
          %851 = vmatpush1.bf16.msra.mxu0 0
          %852 = vmatprep.subr.bf16.mxu0 0
          %853 = vmatpush1.bf16.msra.mxu0 0
          %854 = vmatprep.subr.bf16.mxu0 0
          %855 = vmatpush1.bf16.msra.mxu0 0
          %856 = vmatprep.subr.bf16.mxu0 0
          %857 = vmatpush1.bf16.msra.mxu0 0
          %858 = vmatprep.subr.bf16.mxu0 0
          %859 = vmatpush1.bf16.msra.mxu0 0
          %860 = vmatprep.subr.bf16.mxu0 0
          %861 = vmatpush1.bf16.msra.mxu0 0
          %862 = vmatprep.subr.bf16.mxu0 0
          %863 = vmatpush1.bf16.msra.mxu0 0
          %864 = vmatprep.subr.bf16.mxu0 0
          %865 = vmatpush1.bf16.msra.mxu0 0
          %866 = vmatprep.subr.bf16.mxu0 0
          %867 = vmatpush1.bf16.msra.mxu0 0
          %868 = vmatprep.subr.bf16.mxu0 0
          %869 = vmatpush1.bf16.msra.mxu0 0
          %870 = vmatprep.subr.bf16.mxu0 0
          %871 = vmatpush1.bf16.msra.mxu0 0
          %872 = vmatprep.mubr.bf16.mxu0 0
          %873 = vmatmul.mubr.bf16.gmra.mrb[0].mxu0 %v639
          %v874 = vpop.f32.mrb[0].mxu0
          %v875 = vadd.f32 %v364, %v874
          %v876 = vpop.f32.mrb[0].mxu0
          %v877 = vadd.f32 %v368, %v876
          %v878 = vpop.f32.mrb[0].mxu0
          %v879 = vpop.f32.mrb[0].mxu0
          %880 = vdwg.mxu0
          %881 = vmatprep.subr.bf16.mxu0 %v574
          %882 = vmatpush1.bf16.msra.mxu0 %v573
          %883 = vmatprep.subr.bf16.mxu0 %v673
          %884 = vmatpush1.bf16.msra.mxu0 %v670
          %885 = vmatprep.subr.bf16.mxu0 0
          %886 = vmatpush1.bf16.msra.mxu0 0
          %887 = vmatprep.subr.bf16.mxu0 0
          %888 = vmatpush1.bf16.msra.mxu0 0
          %889 = vmatprep.subr.bf16.mxu0 0
          %890 = vmatpush1.bf16.msra.mxu0 0
          %891 = vmatprep.subr.bf16.mxu0 0
          %892 = vmatpush1.bf16.msra.mxu0 0
          %893 = vmatprep.subr.bf16.mxu0 0
          %894 = vmatpush1.bf16.msra.mxu0 0
          %895 = vmatprep.subr.bf16.mxu0 0
          %896 = vmatpush1.bf16.msra.mxu0 0
          %897 = vmatprep.subr.bf16.mxu0 0
          %898 = vmatpush1.bf16.msra.mxu0 0
          %899 = vmatprep.subr.bf16.mxu0 0
          %900 = vmatpush1.bf16.msra.mxu0 0
          %901 = vmatprep.subr.bf16.mxu0 0
          %902 = vmatpush1.bf16.msra.mxu0 0
          %903 = vmatprep.subr.bf16.mxu0 0
          %904 = vmatpush1.bf16.msra.mxu0 0
          %905 = vmatprep.subr.bf16.mxu0 0
          %906 = vmatpush1.bf16.msra.mxu0 0
          %907 = vmatprep.subr.bf16.mxu0 0
          %908 = vmatpush1.bf16.msra.mxu0 0
          %909 = vmatprep.subr.bf16.mxu0 0
          %910 = vmatpush1.bf16.msra.mxu0 0
          %911 = vmatprep.subr.bf16.mxu0 0
          %912 = vmatpush1.bf16.msra.mxu0 0
          %913 = vmatprep.mubr.bf16.mxu0 0
          %914 = vmatmul.mubr.bf16.gmra.mrb[0].mxu0 %v639
          %v915 = vpop.f32.mrb[0].mxu0
          %v916 = vadd.f32 %v372, %v915
          %v917 = vpop.f32.mrb[0].mxu0
          %v918 = vadd.f32 %v376, %v917
          %v919 = vpop.f32.mrb[0].mxu0
          %v920 = vpop.f32.mrb[0].mxu0
          %921 = vdwg.mxu0
          %922 = vmatprep.subr.bf16.mxu0 %v576
          %923 = vmatpush1.bf16.msra.mxu0 %v575
          %924 = vmatprep.subr.bf16.mxu0 %v679
          %925 = vmatpush1.bf16.msra.mxu0 %v676
          %926 = vmatprep.subr.bf16.mxu0 0
          %927 = vmatpush1.bf16.msra.mxu0 0
          %928 = vmatprep.subr.bf16.mxu0 0
          %929 = vmatpush1.bf16.msra.mxu0 0
          %930 = vmatprep.subr.bf16.mxu0 0
          %931 = vmatpush1.bf16.msra.mxu0 0
          %932 = vmatprep.subr.bf16.mxu0 0
          %933 = vmatpush1.bf16.msra.mxu0 0
          %934 = vmatprep.subr.bf16.mxu0 0
          %935 = vmatpush1.bf16.msra.mxu0 0
          %936 = vmatprep.subr.bf16.mxu0 0
          %937 = vmatpush1.bf16.msra.mxu0 0
          %938 = vmatprep.subr.bf16.mxu0 0
          %939 = vmatpush1.bf16.msra.mxu0 0
          %940 = vmatprep.subr.bf16.mxu0 0
          %941 = vmatpush1.bf16.msra.mxu0 0
          %942 = vmatprep.subr.bf16.mxu0 0
          %943 = vmatpush1.bf16.msra.mxu0 0
          %944 = vmatprep.subr.bf16.mxu0 0
          %945 = vmatpush1.bf16.msra.mxu0 0
          %946 = vmatprep.subr.bf16.mxu0 0
          %947 = vmatpush1.bf16.msra.mxu0 0
          %948 = vmatprep.subr.bf16.mxu0 0
          %949 = vmatpush1.bf16.msra.mxu0 0
          %950 = vmatprep.subr.bf16.mxu0 0
          %951 = vmatpush1.bf16.msra.mxu0 0
          %952 = vmatprep.subr.bf16.mxu0 0
          %953 = vmatpush1.bf16.msra.mxu0 0
          %954 = vmatprep.mubr.bf16.mxu0 0
          %955 = vmatmul.mubr.bf16.gmra.mrb[0].mxu0 %v639
          %v956 = vpop.f32.mrb[0].mxu0
          %v957 = vadd.f32 %v380, %v956
          %v958 = vpop.f32.mrb[0].mxu0
          %v959 = vadd.f32 %v384, %v958
          %v960 = vpop.f32.mrb[0].mxu0
          %v961 = vpop.f32.mrb[0].mxu0
          %962 = vdwg.mxu0
          %963 = vmatprep.subr.bf16.mxu0 %v578
          %964 = vmatpush1.bf16.msra.mxu0 %v577
          %965 = vmatprep.subr.bf16.mxu0 %v685
          %966 = vmatpush1.bf16.msra.mxu0 %v682
          %967 = vmatprep.subr.bf16.mxu0 0
          %968 = vmatpush1.bf16.msra.mxu0 0
          %969 = vmatprep.subr.bf16.mxu0 0
          %970 = vmatpush1.bf16.msra.mxu0 0
          %971 = vmatprep.subr.bf16.mxu0 0
          %972 = vmatpush1.bf16.msra.mxu0 0
          %973 = vmatprep.subr.bf16.mxu0 0
          %974 = vmatpush1.bf16.msra.mxu0 0
          %975 = vmatprep.subr.bf16.mxu0 0
          %976 = vmatpush1.bf16.msra.mxu0 0
          %977 = vmatprep.subr.bf16.mxu0 0
          %978 = vmatpush1.bf16.msra.mxu0 0
          %979 = vmatprep.subr.bf16.mxu0 0
          %980 = vmatpush1.bf16.msra.mxu0 0
          %981 = vmatprep.subr.bf16.mxu0 0
          %982 = vmatpush1.bf16.msra.mxu0 0
          %983 = vmatprep.subr.bf16.mxu0 0
          %984 = vmatpush1.bf16.msra.mxu0 0
          %985 = vmatprep.subr.bf16.mxu0 0
          %986 = vmatpush1.bf16.msra.mxu0 0
          %987 = vmatprep.subr.bf16.mxu0 0
          %988 = vmatpush1.bf16.msra.mxu0 0
          %989 = vmatprep.subr.bf16.mxu0 0
          %990 = vmatpush1.bf16.msra.mxu0 0
          %991 = vmatprep.subr.bf16.mxu0 0
          %992 = vmatpush1.bf16.msra.mxu0 0
          %993 = vmatprep.subr.bf16.mxu0 0
          %994 = vmatpush1.bf16.msra.mxu0 0
          %995 = vmatprep.mubr.bf16.mxu0 0
          %996 = vmatmul.mubr.bf16.gmra.mrb[0].mxu0 %v639
          %v997 = vpop.f32.mrb[0].mxu0
          %v998 = vadd.f32 %v388, %v997
          %v999 = vpop.f32.mrb[0].mxu0
          %v1000 = vadd.f32 %v392, %v999
          %v1001 = vpop.f32.mrb[0].mxu0
          %v1002 = vpop.f32.mrb[0].mxu0
          %1003 = vdwg.mxu0
          %1004 = vmatprep.subr.bf16.mxu0 %v580
          %1005 = vmatpush1.bf16.msra.mxu0 %v579
          %1006 = vmatprep.subr.bf16.mxu0 %v691
          %1007 = vmatpush1.bf16.msra.mxu0 %v688
          %1008 = vmatprep.subr.bf16.mxu0 0
          %1009 = vmatpush1.bf16.msra.mxu0 0
          %1010 = vmatprep.subr.bf16.mxu0 0
          %1011 = vmatpush1.bf16.msra.mxu0 0
          %1012 = vmatprep.subr.bf16.mxu0 0
          %1013 = vmatpush1.bf16.msra.mxu0 0
          %1014 = vmatprep.subr.bf16.mxu0 0
          %1015 = vmatpush1.bf16.msra.mxu0 0
          %1016 = vmatprep.subr.bf16.mxu0 0
          %1017 = vmatpush1.bf16.msra.mxu0 0
          %1018 = vmatprep.subr.bf16.mxu0 0
          %1019 = vmatpush1.bf16.msra.mxu0 0
          %1020 = vmatprep.subr.bf16.mxu0 0
          %1021 = vmatpush1.bf16.msra.mxu0 0
          %1022 = vmatprep.subr.bf16.mxu0 0
          %1023 = vmatpush1.bf16.msra.mxu0 0
          %1024 = vmatprep.subr.bf16.mxu0 0
          %1025 = vmatpush1.bf16.msra.mxu0 0
          %1026 = vmatprep.subr.bf16.mxu0 0
          %1027 = vmatpush1.bf16.msra.mxu0 0
          %1028 = vmatprep.subr.bf16.mxu0 0
          %1029 = vmatpush1.bf16.msra.mxu0 0
          %1030 = vmatprep.subr.bf16.mxu0 0
          %1031 = vmatpush1.bf16.msra.mxu0 0
          %1032 = vmatprep.subr.bf16.mxu0 0
          %1033 = vmatpush1.bf16.msra.mxu0 0
          %1034 = vmatprep.subr.bf16.mxu0 0
          %1035 = vmatpush1.bf16.msra.mxu0 0
          %1036 = vmatprep.mubr.bf16.mxu0 0
          %1037 = vmatmul.mubr.bf16.gmra.mrb[0].mxu0 %v639
          %v1038 = vpop.f32.mrb[0].mxu0
          %v1039 = vadd.f32 %v396, %v1038
          %v1040 = vpop.f32.mrb[0].mxu0
          %v1041 = vadd.f32 %v400, %v1040
          %v1042 = vpop.f32.mrb[0].mxu0
          %v1043 = vpop.f32.mrb[0].mxu0
          %1044 = vdwg.mxu0
          %1045 = vmatprep.subr.bf16.mxu0 %v582
          %1046 = vmatpush1.bf16.msra.mxu0 %v581
          %1047 = vmatprep.subr.bf16.mxu0 %v697
          %1048 = vmatpush1.bf16.msra.mxu0 %v694
          %1049 = vmatprep.subr.bf16.mxu0 0
          %1050 = vmatpush1.bf16.msra.mxu0 0
          %1051 = vmatprep.subr.bf16.mxu0 0
          %1052 = vmatpush1.bf16.msra.mxu0 0
          %1053 = vmatprep.subr.bf16.mxu0 0
          %1054 = vmatpush1.bf16.msra.mxu0 0
          %1055 = vmatprep.subr.bf16.mxu0 0
          %1056 = vmatpush1.bf16.msra.mxu0 0
          %1057 = vmatprep.subr.bf16.mxu0 0
          %1058 = vmatpush1.bf16.msra.mxu0 0
          %1059 = vmatprep.subr.bf16.mxu0 0
          %1060 = vmatpush1.bf16.msra.mxu0 0
          %1061 = vmatprep.subr.bf16.mxu0 0
          %1062 = vmatpush1.bf16.msra.mxu0 0
          %1063 = vmatprep.subr.bf16.mxu0 0
          %1064 = vmatpush1.bf16.msra.mxu0 0
          %1065 = vmatprep.subr.bf16.mxu0 0
          %1066 = vmatpush1.bf16.msra.mxu0 0
          %1067 = vmatprep.subr.bf16.mxu0 0
          %1068 = vmatpush1.bf16.msra.mxu0 0
          %1069 = vmatprep.subr.bf16.mxu0 0
          %1070 = vmatpush1.bf16.msra.mxu0 0
          %1071 = vmatprep.subr.bf16.mxu0 0
          %1072 = vmatpush1.bf16.msra.mxu0 0
          %1073 = vmatprep.subr.bf16.mxu0 0
          %1074 = vmatpush1.bf16.msra.mxu0 0
          %1075 = vmatprep.subr.bf16.mxu0 0
          %1076 = vmatpush1.bf16.msra.mxu0 0
          %1077 = vmatprep.mubr.bf16.mxu0 0
          %1078 = vmatmul.mubr.bf16.gmra.mrb[0].mxu0 %v639
          %v1079 = vpop.f32.mrb[0].mxu0
          %v1080 = vadd.f32 %v404, %v1079
          %v1081 = vpop.f32.mrb[0].mxu0
          %v1082 = vadd.f32 %v408, %v1081
          %v1083 = vpop.f32.mrb[0].mxu0
          %v1084 = vpop.f32.mrb[0].mxu0
          %1085 = vdwg.mxu0
          %1086 = vmatprep.subr.bf16.mxu0 %v584
          %1087 = vmatpush1.bf16.msra.mxu0 %v583
          %1088 = vmatprep.subr.bf16.mxu0 %v703
          %1089 = vmatpush1.bf16.msra.mxu0 %v700
          %1090 = vmatprep.subr.bf16.mxu0 0
          %1091 = vmatpush1.bf16.msra.mxu0 0
          %1092 = vmatprep.subr.bf16.mxu0 0
          %1093 = vmatpush1.bf16.msra.mxu0 0
          %1094 = vmatprep.subr.bf16.mxu0 0
          %1095 = vmatpush1.bf16.msra.mxu0 0
          %1096 = vmatprep.subr.bf16.mxu0 0
          %1097 = vmatpush1.bf16.msra.mxu0 0
          %1098 = vmatprep.subr.bf16.mxu0 0
          %1099 = vmatpush1.bf16.msra.mxu0 0
          %1100 = vmatprep.subr.bf16.mxu0 0
          %1101 = vmatpush1.bf16.msra.mxu0 0
          %1102 = vmatprep.subr.bf16.mxu0 0
          %1103 = vmatpush1.bf16.msra.mxu0 0
          %1104 = vmatprep.subr.bf16.mxu0 0
          %1105 = vmatpush1.bf16.msra.mxu0 0
          %1106 = vmatprep.subr.bf16.mxu0 0
          %1107 = vmatpush1.bf16.msra.mxu0 0
          %1108 = vmatprep.subr.bf16.mxu0 0
          %1109 = vmatpush1.bf16.msra.mxu0 0
          %1110 = vmatprep.subr.bf16.mxu0 0
          %1111 = vmatpush1.bf16.msra.mxu0 0
          %1112 = vmatprep.subr.bf16.mxu0 0
          %1113 = vmatpush1.bf16.msra.mxu0 0
          %1114 = vmatprep.subr.bf16.mxu0 0
          %1115 = vmatpush1.bf16.msra.mxu0 0
          %1116 = vmatprep.subr.bf16.mxu0 0
          %1117 = vmatpush1.bf16.msra.mxu0 0
          %1118 = vmatprep.mubr.bf16.mxu0 0
          %1119 = vmatmul.mubr.bf16.gmra.mrb[0].mxu0 %v639
          %v1120 = vpop.f32.mrb[0].mxu0
          %v1121 = vadd.f32 %v412, %v1120
          %v1122 = vpop.f32.mrb[0].mxu0
          %v1123 = vadd.f32 %v416, %v1122
          %v1124 = vpop.f32.mrb[0].mxu0
          %v1125 = vpop.f32.mrb[0].mxu0
          %1126 = vdwg.mxu0
          %1127 = vmatprep.subr.bf16.mxu0 %v586
          %1128 = vmatpush1.bf16.msra.mxu0 %v585
          %1129 = vmatprep.subr.bf16.mxu0 %v709
          %1130 = vmatpush1.bf16.msra.mxu0 %v706
          %1131 = vmatprep.subr.bf16.mxu0 0
          %1132 = vmatpush1.bf16.msra.mxu0 0
          %1133 = vmatprep.subr.bf16.mxu0 0
          %1134 = vmatpush1.bf16.msra.mxu0 0
          %1135 = vmatprep.subr.bf16.mxu0 0
          %1136 = vmatpush1.bf16.msra.mxu0 0
          %1137 = vmatprep.subr.bf16.mxu0 0
          %1138 = vmatpush1.bf16.msra.mxu0 0
          %1139 = vmatprep.subr.bf16.mxu0 0
          %1140 = vmatpush1.bf16.msra.mxu0 0
          %1141 = vmatprep.subr.bf16.mxu0 0
          %1142 = vmatpush1.bf16.msra.mxu0 0
          %1143 = vmatprep.subr.bf16.mxu0 0
          %1144 = vmatpush1.bf16.msra.mxu0 0
          %1145 = vmatprep.subr.bf16.mxu0 0
          %1146 = vmatpush1.bf16.msra.mxu0 0
          %1147 = vmatprep.subr.bf16.mxu0 0
          %1148 = vmatpush1.bf16.msra.mxu0 0
          %1149 = vmatprep.subr.bf16.mxu0 0
          %1150 = vmatpush1.bf16.msra.mxu0 0
          %1151 = vmatprep.subr.bf16.mxu0 0
          %1152 = vmatpush1.bf16.msra.mxu0 0
          %1153 = vmatprep.subr.bf16.mxu0 0
          %1154 = vmatpush1.bf16.msra.mxu0 0
          %1155 = vmatprep.subr.bf16.mxu0 0
          %1156 = vmatpush1.bf16.msra.mxu0 0
          %1157 = vmatprep.subr.bf16.mxu0 0
          %1158 = vmatpush1.bf16.msra.mxu0 0
          %1159 = vmatprep.mubr.bf16.mxu0 0
          %1160 = vmatmul.mubr.bf16.gmra.mrb[0].mxu0 %v639
          %v1161 = vpop.f32.mrb[0].mxu0
          %v1162 = vadd.f32 %v420, %v1161
          %v1163 = vpop.f32.mrb[0].mxu0
          %v1164 = vadd.f32 %v424, %v1163
          %v1165 = vpop.f32.mrb[0].mxu0
          %v1166 = vpop.f32.mrb[0].mxu0
          %1167 = vdwg.mxu0
          %1168 = vmatprep.subr.bf16.mxu0 %v588
          %1169 = vmatpush1.bf16.msra.mxu0 %v587
          %1170 = vmatprep.subr.bf16.mxu0 %v715
          %1171 = vmatpush1.bf16.msra.mxu0 %v712
          %1172 = vmatprep.subr.bf16.mxu0 0
          %1173 = vmatpush1.bf16.msra.mxu0 0
          %1174 = vmatprep.subr.bf16.mxu0 0
          %1175 = vmatpush1.bf16.msra.mxu0 0
          %1176 = vmatprep.subr.bf16.mxu0 0
          %1177 = vmatpush1.bf16.msra.mxu0 0
          %1178 = vmatprep.subr.bf16.mxu0 0
          %1179 = vmatpush1.bf16.msra.mxu0 0
          %1180 = vmatprep.subr.bf16.mxu0 0
          %1181 = vmatpush1.bf16.msra.mxu0 0
          %1182 = vmatprep.subr.bf16.mxu0 0
          %1183 = vmatpush1.bf16.msra.mxu0 0
          %1184 = vmatprep.subr.bf16.mxu0 0
          %1185 = vmatpush1.bf16.msra.mxu0 0
          %1186 = vmatprep.subr.bf16.mxu0 0
          %1187 = vmatpush1.bf16.msra.mxu0 0
          %1188 = vmatprep.subr.bf16.mxu0 0
          %1189 = vmatpush1.bf16.msra.mxu0 0
          %1190 = vmatprep.subr.bf16.mxu0 0
          %1191 = vmatpush1.bf16.msra.mxu0 0
          %1192 = vmatprep.subr.bf16.mxu0 0
          %1193 = vmatpush1.bf16.msra.mxu0 0
          %1194 = vmatprep.subr.bf16.mxu0 0
          %1195 = vmatpush1.bf16.msra.mxu0 0
          %1196 = vmatprep.subr.bf16.mxu0 0
          %1197 = vmatpush1.bf16.msra.mxu0 0
          %1198 = vmatprep.subr.bf16.mxu0 0
          %1199 = vmatpush1.bf16.msra.mxu0 0
          %1200 = vmatprep.mubr.bf16.mxu0 0
          %1201 = vmatmul.mubr.bf16.gmra.mrb[0].mxu0 %v639
          %v1202 = vpop.f32.mrb[0].mxu0
          %v1203 = vadd.f32 %v428, %v1202
          %v1204 = vpop.f32.mrb[0].mxu0
          %v1205 = vadd.f32 %v432, %v1204
          %v1206 = vpop.f32.mrb[0].mxu0
          %v1207 = vpop.f32.mrb[0].mxu0
          %1208 = vdwg.mxu0
          %v1209 = vmax.f32 %v752, 0.0
          %v1210 = vmax.f32 %v754, 0.0
          %v1211 = vmax.f32 %v793, 0.0
          %v1212 = vmax.f32 %v795, 0.0
          %v1213 = vmax.f32 %v834, 0.0
          %v1214 = vmax.f32 %v836, 0.0
          %v1215 = vmax.f32 %v875, 0.0
          %v1216 = vmax.f32 %v877, 0.0
          %v1217 = vmax.f32 %v916, 0.0
          %v1218 = vmax.f32 %v918, 0.0
          %v1219 = vmax.f32 %v957, 0.0
          %v1220 = vmax.f32 %v959, 0.0
          %v1221 = vmax.f32 %v998, 0.0
          %v1222 = vmax.f32 %v1000, 0.0
          %v1223 = vmax.f32 %v1039, 0.0
          %v1224 = vmax.f32 %v1041, 0.0
          %v1225 = vmax.f32 %v1080, 0.0
          %v1226 = vmax.f32 %v1082, 0.0
          %v1227 = vmax.f32 %v1121, 0.0
          %v1228 = vmax.f32 %v1123, 0.0
          %v1229 = vmax.f32 %v1162, 0.0
          %v1230 = vmax.f32 %v1164, 0.0
          %v1231 = vmax.f32 %v1203, 0.0
          %v1232 = vmax.f32 %v1205, 0.0
          %v1233 = vpack.c.bf16 %v1209, %v1209
          %v1234 = vpack.c.bf16 %v1210, %v1210
          %v1235 = vpack.c.bf16 %v1211, %v1211
          %v1236 = vpack.c.bf16 %v1212, %v1212
          %v1237 = vpack.c.bf16 %v1213, %v1213
          %v1238 = vpack.c.bf16 %v1214, %v1214
          %v1239 = vpack.c.bf16 %v1215, %v1215
          %v1240 = vpack.c.bf16 %v1216, %v1216
          %v1241 = vpack.c.bf16 %v1217, %v1217
          %v1242 = vpack.c.bf16 %v1218, %v1218
          %v1243 = vpack.c.bf16 %v1219, %v1219
          %v1244 = vpack.c.bf16 %v1220, %v1220
          %v1245 = vpack.c.bf16 %v1221, %v1221
          %v1246 = vpack.c.bf16 %v1222, %v1222
          %v1247 = vpack.c.bf16 %v1223, %v1223
          %v1248 = vpack.c.bf16 %v1224, %v1224
          %v1249 = vpack.c.bf16 %v1225, %v1225
          %v1250 = vpack.c.bf16 %v1226, %v1226
          %v1251 = vpack.c.bf16 %v1227, %v1227
          %v1252 = vpack.c.bf16 %v1228, %v1228
          %v1253 = vpack.c.bf16 %v1229, %v1229
          %v1254 = vpack.c.bf16 %v1230, %v1230
          %v1255 = vpack.c.bf16 %v1231, %v1231
          %v1256 = vpack.c.bf16 %v1232, %v1232
          %v1281 = vunpack.c.l.b16 %v1233
          %v1282 = vunpack.c.l.b16 %v1234
          %v1283 = vunpack.c.l.b16 %v1235
          %v1284 = vunpack.c.l.b16 %v1236
          %v1285 = vunpack.c.l.b16 %v1237
          %v1286 = vunpack.c.l.b16 %v1238
          %v1287 = vunpack.c.l.b16 %v1239
          %v1288 = vunpack.c.l.b16 %v1240
          %v1289 = vunpack.c.l.b16 %v1241
          %v1290 = vunpack.c.l.b16 %v1242
          %v1291 = vunpack.c.l.b16 %v1243
          %v1292 = vunpack.c.l.b16 %v1244
          %v1293 = vunpack.c.l.b16 %v1245
          %v1294 = vunpack.c.l.b16 %v1246
          %v1295 = vunpack.c.l.b16 %v1247
          %v1296 = vunpack.c.l.b16 %v1248
          %v1297 = vunpack.c.l.b16 %v1249
          %v1298 = vunpack.c.l.b16 %v1250
          %v1299 = vunpack.c.l.b16 %v1251
          %v1300 = vunpack.c.l.b16 %v1252
          %v1301 = vunpack.c.l.b16 %v1253
          %v1302 = vunpack.c.l.b16 %v1254
          %v1303 = vunpack.c.l.b16 %v1255
          %v1304 = vunpack.c.l.b16 %v1256
          %v1305 = vpack.c.b16 %v1282, %v1281
          %v1306 = vpack.c.b16 %v1284, %v1283
          %v1307 = vpack.c.b16 %v1286, %v1285
          %v1308 = vpack.c.b16 %v1288, %v1287
          %v1309 = vpack.c.b16 %v1290, %v1289
          %v1310 = vpack.c.b16 %v1292, %v1291
          %v1311 = vpack.c.b16 %v1294, %v1293
          %v1312 = vpack.c.b16 %v1296, %v1295
          %v1313 = vpack.c.b16 %v1298, %v1297
          %v1314 = vpack.c.b16 %v1300, %v1299
          %v1315 = vpack.c.b16 %v1302, %v1301
          %v1316 = vpack.c.b16 %v1304, %v1303
          %1329 = vst [vmem:[#allocation2] sm:$0xff] %v1305
          %1330 = vst [vmem:[#allocation2 + $0x8] sm:$0xff] %v1306
          %1331 = vst [vmem:[#allocation2 + $0x10] sm:$0xff] %v1307
          %1332 = vst [vmem:[#allocation2 + $0x18] sm:$0xff] %v1308
          %1333 = vst [vmem:[#allocation2 + $0x20] sm:$0xff] %v1309
          %1334 = vst [vmem:[#allocation2 + $0x28] sm:$0xff] %v1310
          %1335 = vst [vmem:[#allocation2 + $0x30] sm:$0xff] %v1311
          %1336 = vst [vmem:[#allocation2 + $0x38] sm:$0xff] %v1312
          %1337 = vst [vmem:[#allocation2 + $0x40] sm:$0xff] %v1313
          %1338 = vst [vmem:[#allocation2 + $0x48] sm:$0xff] %v1314
          %1339 = vst [vmem:[#allocation2 + $0x50] sm:$0xff] %v1315
          %1340 = vst [vmem:[#allocation2 + $0x58] sm:$0xff] %v1316
          %v1341 = vld [vmem:[%s4] sm:$0xff]
          %v1342 = vld [vmem:[%s4 + $0x8] sm:$0xff]
          %v1343 = vld [vmem:[%s4 + $0x10] sm:$0x1]
          %p1344 = scmp.eq.s32.totalorder %s21, 0
          %s1345 = scalar_select %p1344, 1, 0
          %s1346 = scvt.s32.f32 %s1345
          %v1347 = vstv %s1346
          %v1348 = vmul.f32 %v1341, %v1347
          %v1349 = vmul.f32 %v1342, %v1347
          %v1350 = vmul.f32 %v1343, %v1347
          %v1354 = vlaneseq
          %v1355 = vshrl.u32 %v1354, 7
          %v1356 = vsub.s32 0, %v1355
          %v1357 = vrot.slane %v1348, %v1356
          %v1358 = vlaneseq
          %v1359 = vshrl.u32 %v1358, 7
          %v1360 = vsub.s32 1, %v1359
          %v1361 = vrot.slane %v1348, %v1360
          %v1362 = vlaneseq
          %v1363 = vshrl.u32 %v1362, 7
          %v1364 = vsub.s32 2, %v1363
          %v1365 = vrot.slane %v1348, %v1364
          %v1366 = vlaneseq
          %v1367 = vshrl.u32 %v1366, 7
          %v1368 = vsub.s32 3, %v1367
          %v1369 = vrot.slane %v1348, %v1368
          %v1370 = vlaneseq
          %v1371 = vshrl.u32 %v1370, 7
          %v1372 = vsub.s32 4, %v1371
          %v1373 = vrot.slane %v1348, %v1372
          %v1374 = vlaneseq
          %v1375 = vshrl.u32 %v1374, 7
          %v1376 = vsub.s32 5, %v1375
          %v1377 = vrot.slane %v1348, %v1376
          %v1378 = vlaneseq
          %v1379 = vshrl.u32 %v1378, 7
          %v1380 = vsub.s32 6, %v1379
          %v1381 = vrot.slane %v1348, %v1380
          %v1382 = vlaneseq
          %v1383 = vshrl.u32 %v1382, 7
          %v1384 = vsub.s32 7, %v1383
          %v1385 = vrot.slane %v1348, %v1384
          %v1386 = vlaneseq
          %v1387 = vshrl.u32 %v1386, 7
          %v1388 = vsub.s32 0, %v1387
          %v1389 = vrot.slane %v1349, %v1388
          %v1390 = vlaneseq
          %v1391 = vshrl.u32 %v1390, 7
          %v1392 = vsub.s32 1, %v1391
          %v1393 = vrot.slane %v1349, %v1392
          %v1394 = vlaneseq
          %v1395 = vshrl.u32 %v1394, 7
          %v1396 = vsub.s32 2, %v1395
          %v1397 = vrot.slane %v1349, %v1396
          %v1398 = vlaneseq
          %v1399 = vshrl.u32 %v1398, 7
          %v1400 = vsub.s32 3, %v1399
          %v1401 = vrot.slane %v1349, %v1400
          %v1402 = vlaneseq
          %v1403 = vshrl.u32 %v1402, 7
          %v1404 = vsub.s32 4, %v1403
          %v1405 = vrot.slane %v1349, %v1404
          %v1406 = vlaneseq
          %v1407 = vshrl.u32 %v1406, 7
          %v1408 = vsub.s32 5, %v1407
          %v1409 = vrot.slane %v1349, %v1408
          %v1410 = vlaneseq
          %v1411 = vshrl.u32 %v1410, 7
          %v1412 = vsub.s32 6, %v1411
          %v1413 = vrot.slane %v1349, %v1412
          %v1414 = vlaneseq
          %v1415 = vshrl.u32 %v1414, 7
          %v1416 = vsub.s32 7, %v1415
          %v1417 = vrot.slane %v1349, %v1416
          %v1418 = vlaneseq
          %v1419 = vshrl.u32 %v1418, 7
          %v1420 = vsub.s32 0, %v1419
          %v1421 = vrot.slane %v1350, %v1420
          %1439 = vst [vmem:[#allocation3] sm:$0xff] %v1357
          %1440 = vst [vmem:[#allocation3 + $0x8] sm:$0xff] %v1361
          %1441 = vst [vmem:[#allocation3 + $0x10] sm:$0xff] %v1365
          %1442 = vst [vmem:[#allocation3 + $0x18] sm:$0xff] %v1369
          %1443 = vst [vmem:[#allocation3 + $0x20] sm:$0xff] %v1373
          %1444 = vst [vmem:[#allocation3 + $0x28] sm:$0xff] %v1377
          %1445 = vst [vmem:[#allocation3 + $0x30] sm:$0xff] %v1381
          %1446 = vst [vmem:[#allocation3 + $0x38] sm:$0xff] %v1385
          %1447 = vst [vmem:[#allocation3 + $0x40] sm:$0xff] %v1389
          %1448 = vst [vmem:[#allocation3 + $0x48] sm:$0xff] %v1393
          %1449 = vst [vmem:[#allocation3 + $0x50] sm:$0xff] %v1397
          %1450 = vst [vmem:[#allocation3 + $0x58] sm:$0xff] %v1401
          %1451 = vst [vmem:[#allocation3 + $0x60] sm:$0xff] %v1405
          %1452 = vst [vmem:[#allocation3 + $0x68] sm:$0xff] %v1409
          %1453 = vst [vmem:[#allocation3 + $0x70] sm:$0xff] %v1413
          %1454 = vst [vmem:[#allocation3 + $0x78] sm:$0xff] %v1417
          %vm1455 = vcmask 261120
          %1456 = vst.msk [vmem:[#allocation3 + $0x80] sm:$0xff] %vm1455, %v1421
        $region44: #{tpu_custom_call.1} parent=39 // pred_fallthru
          _
        %s1457 = smul.u32 %s22, 1536
        %s1458 = sshra.s32 %s1457, 7
        %s1459 = sand.u32 %s1457, 127
        %s1460 = smul.addr %s1458, 4
        %s1461 = scalar_lea.vmem [#allocation2], %s1460
        %v1462 = vld [vmem:[%s1461] sm:$0xff]
        %v1463 = vld [vmem:[%s1461 + $0x8] sm:$0xff]
        %v1464 = vld [vmem:[%s1461 + $0x10] sm:$0xff]
        %v1465 = vld [vmem:[%s1461 + $0x18] sm:$0xff]
        %v1466 = vld [vmem:[%s1461 + $0x20] sm:$0xff]
        %v1467 = vld [vmem:[%s1461 + $0x28] sm:$0xff]
        %v1468 = vld [vmem:[#allocation3] sm:$0xff]
        %v1469 = vld [vmem:[#allocation3 + $0x8] sm:$0xff]
        %v1470 = vld [vmem:[#allocation3 + $0x10] sm:$0xff]
        %v1471 = vld [vmem:[#allocation3 + $0x18] sm:$0xff]
        %v1472 = vld [vmem:[#allocation3 + $0x20] sm:$0xff]
        %v1473 = vld [vmem:[#allocation3 + $0x28] sm:$0xff]
        %v1474 = vld [vmem:[#allocation3 + $0x30] sm:$0xff]
        %v1475 = vld [vmem:[#allocation3 + $0x38] sm:$0xff]
        %v1476 = vld [vmem:[#allocation3 + $0x40] sm:$0xff]
        %v1477 = vld [vmem:[#allocation3 + $0x48] sm:$0xff]
        %v1478 = vld [vmem:[#allocation3 + $0x50] sm:$0xff]
        %v1479 = vld [vmem:[#allocation3 + $0x58] sm:$0xff]
        %v1480 = vld [vmem:[#allocation3 + $0x60] sm:$0xff]
        %v1481 = vld [vmem:[#allocation3 + $0x68] sm:$0xff]
        %v1482 = vld [vmem:[#allocation3 + $0x70] sm:$0xff]
        %v1483 = vld [vmem:[#allocation3 + $0x78] sm:$0xff]
        %v1484 = vld [vmem:[#allocation3 + $0x80] sm:$0xff]
        %v1485 = vld [vmem:[%s284] sm:$0xff]
        %v1486 = vld [vmem:[%s284 + $0x8] sm:$0xff]
        %v1487 = vld [vmem:[%s284 + $0x10] sm:$0xff]
        %v1488 = vld [vmem:[%s284 + $0x18] sm:$0xff]
        %v1489 = vld [vmem:[%s284 + $0x20] sm:$0xff]
        %v1490 = vld [vmem:[%s284 + $0x28] sm:$0xff]
        %v1491 = vld [vmem:[%s284 + $0x30] sm:$0xff]
        %v1492 = vld [vmem:[%s284 + $0x38] sm:$0xff]
        %v1493 = vld [vmem:[%s284 + $0x40] sm:$0xf]
        %v1494 = vld [vmem:[%s284 + $0x44] sm:$0xff]
        %v1495 = vld [vmem:[%s284 + $0x4c] sm:$0xff]
        %v1496 = vld [vmem:[%s284 + $0x54] sm:$0xff]
        %v1497 = vld [vmem:[%s284 + $0x5c] sm:$0xff]
        %v1498 = vld [vmem:[%s284 + $0x64] sm:$0xff]
        %v1499 = vld [vmem:[%s284 + $0x6c] sm:$0xff]
        %v1500 = vld [vmem:[%s284 + $0x74] sm:$0xff]
        %v1501 = vld [vmem:[%s284 + $0x7c] sm:$0xff]
        %v1502 = vld [vmem:[%s284 + $0x84] sm:$0xf]
        %v1503 = vld [vmem:[%s284 + $0x88] sm:$0xff]
        %v1504 = vld [vmem:[%s284 + $0x90] sm:$0xff]
        %v1505 = vld [vmem:[%s284 + $0x98] sm:$0xff]
        %v1506 = vld [vmem:[%s284 + $0xa0] sm:$0xff]
        %v1507 = vld [vmem:[%s284 + $0xa8] sm:$0xff]
        %v1508 = vld [vmem:[%s284 + $0xb0] sm:$0xff]
        %v1509 = vld [vmem:[%s284 + $0xb8] sm:$0xff]
        %v1510 = vld [vmem:[%s284 + $0xc0] sm:$0xff]
        %v1511 = vld [vmem:[%s284 + $0xc8] sm:$0xf]
        %v1512 = vld [vmem:[%s284 + $0xcc] sm:$0xff]
        %v1513 = vld [vmem:[%s284 + $0xd4] sm:$0xff]
        %v1514 = vld [vmem:[%s284 + $0xdc] sm:$0xff]
        %v1515 = vld [vmem:[%s284 + $0xe4] sm:$0xff]
        %v1516 = vld [vmem:[%s284 + $0xec] sm:$0xff]
        %v1517 = vld [vmem:[%s284 + $0xf4] sm:$0xff]
        %v1518 = vld [vmem:[%s284 + $0xfc] sm:$0xff]
        %v1519 = vld [vmem:[%s284 + $0x104] sm:$0xff]
        %v1520 = vld [vmem:[%s284 + $0x10c] sm:$0xf]
        %v1521 = vld [vmem:[%s284 + $0x110] sm:$0xff]
        %v1522 = vld [vmem:[%s284 + $0x118] sm:$0xff]
        %v1523 = vld [vmem:[%s284 + $0x120] sm:$0xff]
        %v1524 = vld [vmem:[%s284 + $0x128] sm:$0xff]
        %v1525 = vld [vmem:[%s284 + $0x130] sm:$0xff]
        %v1526 = vld [vmem:[%s284 + $0x138] sm:$0xff]
        %v1527 = vld [vmem:[%s284 + $0x140] sm:$0xff]
        %v1528 = vld [vmem:[%s284 + $0x148] sm:$0xff]
        %v1529 = vld [vmem:[%s284 + $0x150] sm:$0xf]
        %v1530 = vld [vmem:[%s284 + $0x154] sm:$0xff]
        %v1531 = vld [vmem:[%s284 + $0x15c] sm:$0xff]
        %v1532 = vld [vmem:[%s284 + $0x164] sm:$0xff]
        %v1533 = vld [vmem:[%s284 + $0x16c] sm:$0xff]
        %v1534 = vld [vmem:[%s284 + $0x174] sm:$0xff]
        %v1535 = vld [vmem:[%s284 + $0x17c] sm:$0xff]
        %v1536 = vld [vmem:[%s284 + $0x184] sm:$0xff]
        %v1537 = vld [vmem:[%s284 + $0x18c] sm:$0xff]
        %v1538 = vld [vmem:[%s284 + $0x194] sm:$0xf]
        %v1539 = vld [vmem:[%s284 + $0x198] sm:$0xff]
        %v1540 = vld [vmem:[%s284 + $0x1a0] sm:$0xff]
        %v1541 = vld [vmem:[%s284 + $0x1a8] sm:$0xff]
        %v1542 = vld [vmem:[%s284 + $0x1b0] sm:$0xff]
        %v1543 = vld [vmem:[%s284 + $0x1b8] sm:$0xff]
        %v1544 = vld [vmem:[%s284 + $0x1c0] sm:$0xff]
        %v1545 = vld [vmem:[%s284 + $0x1c8] sm:$0xff]
        %v1546 = vld [vmem:[%s284 + $0x1d0] sm:$0xff]
        %v1547 = vld [vmem:[%s284 + $0x1d8] sm:$0xf]
        %v1548 = vld [vmem:[%s284 + $0x1dc] sm:$0xff]
        %v1549 = vld [vmem:[%s284 + $0x1e4] sm:$0xff]
        %v1550 = vld [vmem:[%s284 + $0x1ec] sm:$0xff]
        %v1551 = vld [vmem:[%s284 + $0x1f4] sm:$0xff]
        %v1552 = vld [vmem:[%s284 + $0x1fc] sm:$0xff]
        %v1553 = vld [vmem:[%s284 + $0x204] sm:$0xff]
        %v1554 = vld [vmem:[%s284 + $0x20c] sm:$0xff]
        %v1555 = vld [vmem:[%s284 + $0x214] sm:$0xff]
        %v1556 = vld [vmem:[%s284 + $0x21c] sm:$0xf]
        %v1557 = vld [vmem:[%s284 + $0x220] sm:$0xff]
        %v1558 = vld [vmem:[%s284 + $0x228] sm:$0xff]
        %v1559 = vld [vmem:[%s284 + $0x230] sm:$0xff]
        %v1560 = vld [vmem:[%s284 + $0x238] sm:$0xff]
        %v1561 = vld [vmem:[%s284 + $0x240] sm:$0xff]
        %v1562 = vld [vmem:[%s284 + $0x248] sm:$0xff]
        %v1563 = vld [vmem:[%s284 + $0x250] sm:$0xff]
        %v1564 = vld [vmem:[%s284 + $0x258] sm:$0xff]
        %v1565 = vld [vmem:[%s284 + $0x260] sm:$0xf]
        %v1566 = vld [vmem:[%s284 + $0x264] sm:$0xff]
        %v1567 = vld [vmem:[%s284 + $0x26c] sm:$0xff]
        %v1568 = vld [vmem:[%s284 + $0x274] sm:$0xff]
        %v1569 = vld [vmem:[%s284 + $0x27c] sm:$0xff]
        %v1570 = vld [vmem:[%s284 + $0x284] sm:$0xff]
        %v1571 = vld [vmem:[%s284 + $0x28c] sm:$0xff]
        %v1572 = vld [vmem:[%s284 + $0x294] sm:$0xff]
        %v1573 = vld [vmem:[%s284 + $0x29c] sm:$0xff]
        %v1574 = vld [vmem:[%s284 + $0x2a4] sm:$0xf]
        %v1575 = vld [vmem:[%s284 + $0x2a8] sm:$0xff]
        %v1576 = vld [vmem:[%s284 + $0x2b0] sm:$0xff]
        %v1577 = vld [vmem:[%s284 + $0x2b8] sm:$0xff]
        %v1578 = vld [vmem:[%s284 + $0x2c0] sm:$0xff]
        %v1579 = vld [vmem:[%s284 + $0x2c8] sm:$0xff]
        %v1580 = vld [vmem:[%s284 + $0x2d0] sm:$0xff]
        %v1581 = vld [vmem:[%s284 + $0x2d8] sm:$0xff]
        %v1582 = vld [vmem:[%s284 + $0x2e0] sm:$0xff]
        %v1583 = vld [vmem:[%s284 + $0x2e8] sm:$0xf]
        %v1584 = vld [vmem:[%s284 + $0x2ec] sm:$0xff]
        %v1585 = vld [vmem:[%s284 + $0x2f4] sm:$0xff]
        %v1586 = vld [vmem:[%s284 + $0x2fc] sm:$0xff]
        %v1587 = vld [vmem:[%s284 + $0x304] sm:$0xff]
        %v1588 = vld [vmem:[%s284 + $0x30c] sm:$0xff]
        %v1589 = vld [vmem:[%s284 + $0x314] sm:$0xff]
        %v1590 = vld [vmem:[%s284 + $0x31c] sm:$0xff]
        %v1591 = vld [vmem:[%s284 + $0x324] sm:$0xff]
        %v1592 = vld [vmem:[%s284 + $0x32c] sm:$0xf]
        %v1593 = vld [vmem:[%s284 + $0x330] sm:$0xff]
        %v1594 = vld [vmem:[%s284 + $0x338] sm:$0xff]
        %v1595 = vld [vmem:[%s284 + $0x340] sm:$0xff]
        %v1596 = vld [vmem:[%s284 + $0x348] sm:$0xff]
        %v1597 = vld [vmem:[%s284 + $0x350] sm:$0xff]
        %v1598 = vld [vmem:[%s284 + $0x358] sm:$0xff]
        %v1599 = vld [vmem:[%s284 + $0x360] sm:$0xff]
        %v1600 = vld [vmem:[%s284 + $0x368] sm:$0xff]
        %v1601 = vld [vmem:[%s284 + $0x370] sm:$0xf]
        %v1602 = vld [vmem:[%s284 + $0x374] sm:$0xff]
        %v1603 = vld [vmem:[%s284 + $0x37c] sm:$0xff]
        %v1604 = vld [vmem:[%s284 + $0x384] sm:$0xff]
        %v1605 = vld [vmem:[%s284 + $0x38c] sm:$0xff]
        %v1606 = vld [vmem:[%s284 + $0x394] sm:$0xff]
        %v1607 = vld [vmem:[%s284 + $0x39c] sm:$0xff]
        %v1608 = vld [vmem:[%s284 + $0x3a4] sm:$0xff]
        %v1609 = vld [vmem:[%s284 + $0x3ac] sm:$0xff]
        %v1610 = vld [vmem:[%s284 + $0x3b4] sm:$0xf]
        %v1611 = vld [vmem:[%s284 + $0x3b8] sm:$0xff]
        %v1612 = vld [vmem:[%s284 + $0x3c0] sm:$0xff]
        %v1613 = vld [vmem:[%s284 + $0x3c8] sm:$0xff]
        %v1614 = vld [vmem:[%s284 + $0x3d0] sm:$0xff]
        %v1615 = vld [vmem:[%s284 + $0x3d8] sm:$0xff]
        %v1616 = vld [vmem:[%s284 + $0x3e0] sm:$0xff]
        %v1617 = vld [vmem:[%s284 + $0x3e8] sm:$0xff]
        %v1618 = vld [vmem:[%s284 + $0x3f0] sm:$0xff]
        %v1619 = vld [vmem:[%s284 + $0x3f8] sm:$0xf]
        %v1620 = vld [vmem:[%s284 + $0x3fc] sm:$0xff]
        %v1621 = vld [vmem:[%s284 + $0x404] sm:$0xff]
        %v1622 = vld [vmem:[%s284 + $0x40c] sm:$0xff]
        %v1623 = vld [vmem:[%s284 + $0x414] sm:$0xff]
        %v1624 = vld [vmem:[%s284 + $0x41c] sm:$0xff]
        %v1625 = vld [vmem:[%s284 + $0x424] sm:$0xff]
        %v1626 = vld [vmem:[%s284 + $0x42c] sm:$0xff]
        %v1627 = vld [vmem:[%s284 + $0x434] sm:$0xff]
        %v1628 = vld [vmem:[%s284 + $0x43c] sm:$0xf]
        %v1629 = vld [vmem:[%s284 + $0x440] sm:$0xff]
        %v1630 = vld [vmem:[%s284 + $0x448] sm:$0xff]
        %v1631 = vld [vmem:[%s284 + $0x450] sm:$0xff]
        %v1632 = vld [vmem:[%s284 + $0x458] sm:$0xff]
        %v1633 = vld [vmem:[%s284 + $0x460] sm:$0xff]
        %v1634 = vld [vmem:[%s284 + $0x468] sm:$0xff]
        %v1635 = vld [vmem:[%s284 + $0x470] sm:$0xff]
        %v1636 = vld [vmem:[%s284 + $0x478] sm:$0xff]
        %v1637 = vld [vmem:[%s284 + $0x480] sm:$0xf]
        %v1638 = vld [vmem:[%s284 + $0x484] sm:$0xff]
        %v1639 = vld [vmem:[%s284 + $0x48c] sm:$0xff]
        %v1640 = vld [vmem:[%s284 + $0x494] sm:$0xff]
        %v1641 = vld [vmem:[%s284 + $0x49c] sm:$0xff]
        %v1642 = vld [vmem:[%s284 + $0x4a4] sm:$0xff]
        %v1643 = vld [vmem:[%s284 + $0x4ac] sm:$0xff]
        %v1644 = vld [vmem:[%s284 + $0x4b4] sm:$0xff]
        %v1645 = vld [vmem:[%s284 + $0x4bc] sm:$0xff]
        %v1646 = vld [vmem:[%s284 + $0x4c4] sm:$0xf]
        %v1647 = vld [vmem:[%s284 + $0x4c8] sm:$0xff]
        %v1648 = vld [vmem:[%s284 + $0x4d0] sm:$0xff]
        %v1649 = vld [vmem:[%s284 + $0x4d8] sm:$0xff]
        %v1650 = vld [vmem:[%s284 + $0x4e0] sm:$0xff]
        %v1651 = vld [vmem:[%s284 + $0x4e8] sm:$0xff]
        %v1652 = vld [vmem:[%s284 + $0x4f0] sm:$0xff]
        %v1653 = vld [vmem:[%s284 + $0x4f8] sm:$0xff]
        %v1654 = vld [vmem:[%s284 + $0x500] sm:$0xff]
        %v1655 = vld [vmem:[%s284 + $0x508] sm:$0xf]
        %v1656 = vld [vmem:[%s284 + $0x50c] sm:$0xff]
        %v1657 = vld [vmem:[%s284 + $0x514] sm:$0xff]
        %v1658 = vld [vmem:[%s284 + $0x51c] sm:$0xff]
        %v1659 = vld [vmem:[%s284 + $0x524] sm:$0xff]
        %v1660 = vld [vmem:[%s284 + $0x52c] sm:$0xff]
        %v1661 = vld [vmem:[%s284 + $0x534] sm:$0xff]
        %v1662 = vld [vmem:[%s284 + $0x53c] sm:$0xff]
        %v1663 = vld [vmem:[%s284 + $0x544] sm:$0xff]
        %v1664 = vld [vmem:[%s284 + $0x54c] sm:$0xf]
        %v1665 = vld [vmem:[%s284 + $0x550] sm:$0xff]
        %v1666 = vld [vmem:[%s284 + $0x558] sm:$0xff]
        %v1667 = vld [vmem:[%s284 + $0x560] sm:$0xff]
        %v1668 = vld [vmem:[%s284 + $0x568] sm:$0xff]
        %v1669 = vld [vmem:[%s284 + $0x570] sm:$0xff]
        %v1670 = vld [vmem:[%s284 + $0x578] sm:$0xff]
        %v1671 = vld [vmem:[%s284 + $0x580] sm:$0xff]
        %v1672 = vld [vmem:[%s284 + $0x588] sm:$0xff]
        %v1673 = vld [vmem:[%s284 + $0x590] sm:$0xf]
        %v1674 = vld [vmem:[%s284 + $0x594] sm:$0xff]
        %v1675 = vld [vmem:[%s284 + $0x59c] sm:$0xff]
        %v1676 = vld [vmem:[%s284 + $0x5a4] sm:$0xff]
        %v1677 = vld [vmem:[%s284 + $0x5ac] sm:$0xff]
        %v1678 = vld [vmem:[%s284 + $0x5b4] sm:$0xff]
        %v1679 = vld [vmem:[%s284 + $0x5bc] sm:$0xff]
        %v1680 = vld [vmem:[%s284 + $0x5c4] sm:$0xff]
        %v1681 = vld [vmem:[%s284 + $0x5cc] sm:$0xff]
        %v1682 = vld [vmem:[%s284 + $0x5d4] sm:$0xf]
        %v1683 = vld [vmem:[%s284 + $0x5d8] sm:$0xff]
        %v1684 = vld [vmem:[%s284 + $0x5e0] sm:$0xff]
        %v1685 = vld [vmem:[%s284 + $0x5e8] sm:$0xff]
        %v1686 = vld [vmem:[%s284 + $0x5f0] sm:$0xff]
        %v1687 = vld [vmem:[%s284 + $0x5f8] sm:$0xff]
        %v1688 = vld [vmem:[%s284 + $0x600] sm:$0xff]
        %v1689 = vld [vmem:[%s284 + $0x608] sm:$0xff]
        %v1690 = vld [vmem:[%s284 + $0x610] sm:$0xff]
        %v1691 = vld [vmem:[%s284 + $0x618] sm:$0xf]
        %v1692 = vld [vmem:[%s284 + $0x61c] sm:$0xff]
        %v1693 = vld [vmem:[%s284 + $0x624] sm:$0xff]
        %v1694 = vld [vmem:[%s284 + $0x62c] sm:$0xff]
        %v1695 = vld [vmem:[%s284 + $0x634] sm:$0xff]
        %v1696 = vld [vmem:[%s284 + $0x63c] sm:$0xff]
        %v1697 = vld [vmem:[%s284 + $0x644] sm:$0xff]
        %v1698 = vld [vmem:[%s284 + $0x64c] sm:$0xff]
        %v1699 = vld [vmem:[%s284 + $0x654] sm:$0xff]
        %v1700 = vld [vmem:[%s284 + $0x65c] sm:$0xf]
        %v1701 = vld [vmem:[%s284 + $0x660] sm:$0xff]
        %v1702 = vld [vmem:[%s284 + $0x668] sm:$0xff]
        %v1703 = vld [vmem:[%s284 + $0x670] sm:$0xff]
        %v1704 = vld [vmem:[%s284 + $0x678] sm:$0xff]
        %v1705 = vld [vmem:[%s284 + $0x680] sm:$0xff]
        %v1706 = vld [vmem:[%s284 + $0x688] sm:$0xff]
        %v1707 = vld [vmem:[%s284 + $0x690] sm:$0xff]
        %v1708 = vld [vmem:[%s284 + $0x698] sm:$0xff]
        %v1709 = vld [vmem:[%s284 + $0x6a0] sm:$0xf]
        %v1710 = vld [vmem:[%s284 + $0x6a4] sm:$0xff]
        %v1711 = vld [vmem:[%s284 + $0x6ac] sm:$0xff]
        %v1712 = vld [vmem:[%s284 + $0x6b4] sm:$0xff]
        %v1713 = vld [vmem:[%s284 + $0x6bc] sm:$0xff]
        %v1714 = vld [vmem:[%s284 + $0x6c4] sm:$0xff]
        %v1715 = vld [vmem:[%s284 + $0x6cc] sm:$0xff]
        %v1716 = vld [vmem:[%s284 + $0x6d4] sm:$0xff]
        %v1717 = vld [vmem:[%s284 + $0x6dc] sm:$0xff]
        %v1718 = vld [vmem:[%s284 + $0x6e4] sm:$0xf]
        %v1719 = vld [vmem:[%s284 + $0x6e8] sm:$0xff]
        %v1720 = vld [vmem:[%s284 + $0x6f0] sm:$0xff]
        %v1721 = vld [vmem:[%s284 + $0x6f8] sm:$0xff]
        %v1722 = vld [vmem:[%s284 + $0x700] sm:$0xff]
        %v1723 = vld [vmem:[%s284 + $0x708] sm:$0xff]
        %v1724 = vld [vmem:[%s284 + $0x710] sm:$0xff]
        %v1725 = vld [vmem:[%s284 + $0x718] sm:$0xff]
        %v1726 = vld [vmem:[%s284 + $0x720] sm:$0xff]
        %v1727 = vld [vmem:[%s284 + $0x728] sm:$0xf]
        %v1728 = vld [vmem:[%s284 + $0x72c] sm:$0xff]
        %v1729 = vld [vmem:[%s284 + $0x734] sm:$0xff]
        %v1730 = vld [vmem:[%s284 + $0x73c] sm:$0xff]
        %v1731 = vld [vmem:[%s284 + $0x744] sm:$0xff]
        %v1732 = vld [vmem:[%s284 + $0x74c] sm:$0xff]
        %v1733 = vld [vmem:[%s284 + $0x754] sm:$0xff]
        %v1734 = vld [vmem:[%s284 + $0x75c] sm:$0xff]
        %v1735 = vld [vmem:[%s284 + $0x764] sm:$0xff]
        %v1736 = vld [vmem:[%s284 + $0x76c] sm:$0xf]
        %v1737 = vld [vmem:[%s284 + $0x770] sm:$0xff]
        %v1738 = vld [vmem:[%s284 + $0x778] sm:$0xff]
        %v1739 = vld [vmem:[%s284 + $0x780] sm:$0xff]
        %v1740 = vld [vmem:[%s284 + $0x788] sm:$0xff]
        %v1741 = vld [vmem:[%s284 + $0x790] sm:$0xff]
        %v1742 = vld [vmem:[%s284 + $0x798] sm:$0xff]
        %v1743 = vld [vmem:[%s284 + $0x7a0] sm:$0xff]
        %v1744 = vld [vmem:[%s284 + $0x7a8] sm:$0xff]
        %v1745 = vld [vmem:[%s284 + $0x7b0] sm:$0xf]
        %v1746 = vld [vmem:[%s284 + $0x7b4] sm:$0xff]
        %v1747 = vld [vmem:[%s284 + $0x7bc] sm:$0xff]
        %v1748 = vld [vmem:[%s284 + $0x7c4] sm:$0xff]
        %v1749 = vld [vmem:[%s284 + $0x7cc] sm:$0xff]
        %v1750 = vld [vmem:[%s284 + $0x7d4] sm:$0xff]
        %v1751 = vld [vmem:[%s284 + $0x7dc] sm:$0xff]
        %v1752 = vld [vmem:[%s284 + $0x7e4] sm:$0xff]
        %v1753 = vld [vmem:[%s284 + $0x7ec] sm:$0xff]
        %v1754 = vld [vmem:[%s284 + $0x7f4] sm:$0xf]
        %v1755 = vld [vmem:[%s284 + $0x7f8] sm:$0xff]
        %v1756 = vld [vmem:[%s284 + $0x800] sm:$0xff]
        %v1757 = vld [vmem:[%s284 + $0x808] sm:$0xff]
        %v1758 = vld [vmem:[%s284 + $0x810] sm:$0xff]
        %v1759 = vld [vmem:[%s284 + $0x818] sm:$0xff]
        %v1760 = vld [vmem:[%s284 + $0x820] sm:$0xff]
        %v1761 = vld [vmem:[%s284 + $0x828] sm:$0xff]
        %v1762 = vld [vmem:[%s284 + $0x830] sm:$0xff]
        %v1763 = vld [vmem:[%s284 + $0x838] sm:$0xf]
        %v1764 = vld [vmem:[%s284 + $0x83c] sm:$0xff]
        %v1765 = vld [vmem:[%s284 + $0x844] sm:$0xff]
        %v1766 = vld [vmem:[%s284 + $0x84c] sm:$0xff]
        %v1767 = vld [vmem:[%s284 + $0x854] sm:$0xff]
        %v1768 = vld [vmem:[%s284 + $0x85c] sm:$0xff]
        %v1769 = vld [vmem:[%s284 + $0x864] sm:$0xff]
        %v1770 = vld [vmem:[%s284 + $0x86c] sm:$0xff]
        %v1771 = vld [vmem:[%s284 + $0x874] sm:$0xff]
        %v1772 = vld [vmem:[%s284 + $0x87c] sm:$0xf]
        %v1773 = vld [vmem:[%s284 + $0x880] sm:$0xff]
        %v1774 = vld [vmem:[%s284 + $0x888] sm:$0xff]
        %v1775 = vld [vmem:[%s284 + $0x890] sm:$0xff]
        %v1776 = vld [vmem:[%s284 + $0x898] sm:$0xff]
        %v1777 = vld [vmem:[%s284 + $0x8a0] sm:$0xff]
        %v1778 = vld [vmem:[%s284 + $0x8a8] sm:$0xff]
        %v1779 = vld [vmem:[%s284 + $0x8b0] sm:$0xff]
        %v1780 = vld [vmem:[%s284 + $0x8b8] sm:$0xff]
        %v1781 = vld [vmem:[%s284 + $0x8c0] sm:$0xf]
        %v1782 = vld [vmem:[%s284 + $0x8c4] sm:$0xff]
        %v1783 = vld [vmem:[%s284 + $0x8cc] sm:$0xff]
        %v1784 = vld [vmem:[%s284 + $0x8d4] sm:$0xff]
        %v1785 = vld [vmem:[%s284 + $0x8dc] sm:$0xff]
        %v1786 = vld [vmem:[%s284 + $0x8e4] sm:$0xff]
        %v1787 = vld [vmem:[%s284 + $0x8ec] sm:$0xff]
        %v1788 = vld [vmem:[%s284 + $0x8f4] sm:$0xff]
        %v1789 = vld [vmem:[%s284 + $0x8fc] sm:$0xff]
        %v1790 = vld [vmem:[%s284 + $0x904] sm:$0xf]
        %v1791 = vld [vmem:[%s284 + $0x908] sm:$0xff]
        %v1792 = vld [vmem:[%s284 + $0x910] sm:$0xff]
        %v1793 = vld [vmem:[%s284 + $0x918] sm:$0xff]
        %v1794 = vld [vmem:[%s284 + $0x920] sm:$0xff]
        %v1795 = vld [vmem:[%s284 + $0x928] sm:$0xff]
        %v1796 = vld [vmem:[%s284 + $0x930] sm:$0xff]
        %v1797 = vld [vmem:[%s284 + $0x938] sm:$0xff]
        %v1798 = vld [vmem:[%s284 + $0x940] sm:$0xff]
        %v1799 = vld [vmem:[%s284 + $0x948] sm:$0xf]
        %v1800 = vld [vmem:[%s284 + $0x94c] sm:$0xff]
        %v1801 = vld [vmem:[%s284 + $0x954] sm:$0xff]
        %v1802 = vld [vmem:[%s284 + $0x95c] sm:$0xff]
        %v1803 = vld [vmem:[%s284 + $0x964] sm:$0xff]
        %v1804 = vld [vmem:[%s284 + $0x96c] sm:$0xff]
        %v1805 = vld [vmem:[%s284 + $0x974] sm:$0xff]
        %v1806 = vld [vmem:[%s284 + $0x97c] sm:$0xff]
        %v1807 = vld [vmem:[%s284 + $0x984] sm:$0xff]
        %v1808 = vld [vmem:[%s284 + $0x98c] sm:$0xf]
        %v1809 = vld [vmem:[%s284 + $0x990] sm:$0xff]
        %v1810 = vld [vmem:[%s284 + $0x998] sm:$0xff]
        %v1811 = vld [vmem:[%s284 + $0x9a0] sm:$0xff]
        %v1812 = vld [vmem:[%s284 + $0x9a8] sm:$0xff]
        %v1813 = vld [vmem:[%s284 + $0x9b0] sm:$0xff]
        %v1814 = vld [vmem:[%s284 + $0x9b8] sm:$0xff]
        %v1815 = vld [vmem:[%s284 + $0x9c0] sm:$0xff]
        %v1816 = vld [vmem:[%s284 + $0x9c8] sm:$0xff]
        %v1817 = vld [vmem:[%s284 + $0x9d0] sm:$0xf]
        %v1818 = vld [vmem:[%s284 + $0x9d4] sm:$0xff]
        %v1819 = vld [vmem:[%s284 + $0x9dc] sm:$0xff]
        %v1820 = vld [vmem:[%s284 + $0x9e4] sm:$0xff]
        %v1821 = vld [vmem:[%s284 + $0x9ec] sm:$0xff]
        %v1822 = vld [vmem:[%s284 + $0x9f4] sm:$0xff]
        %v1823 = vld [vmem:[%s284 + $0x9fc] sm:$0xff]
        %v1824 = vld [vmem:[%s284 + $0xa04] sm:$0xff]
        %v1825 = vld [vmem:[%s284 + $0xa0c] sm:$0xff]
        %v1826 = vld [vmem:[%s284 + $0xa14] sm:$0xf]
        %v1827 = vld [vmem:[%s284 + $0xa18] sm:$0xff]
        %v1828 = vld [vmem:[%s284 + $0xa20] sm:$0xff]
        %v1829 = vld [vmem:[%s284 + $0xa28] sm:$0xff]
        %v1830 = vld [vmem:[%s284 + $0xa30] sm:$0xff]
        %v1831 = vld [vmem:[%s284 + $0xa38] sm:$0xff]
        %v1832 = vld [vmem:[%s284 + $0xa40] sm:$0xff]
        %v1833 = vld [vmem:[%s284 + $0xa48] sm:$0xff]
        %v1834 = vld [vmem:[%s284 + $0xa50] sm:$0xff]
        %v1835 = vld [vmem:[%s284 + $0xa58] sm:$0xf]
        %v1836 = vld [vmem:[%s284 + $0xa5c] sm:$0xff]
        %v1837 = vld [vmem:[%s284 + $0xa64] sm:$0xff]
        %v1838 = vld [vmem:[%s284 + $0xa6c] sm:$0xff]
        %v1839 = vld [vmem:[%s284 + $0xa74] sm:$0xff]
        %v1840 = vld [vmem:[%s284 + $0xa7c] sm:$0xff]
        %v1841 = vld [vmem:[%s284 + $0xa84] sm:$0xff]
        %v1842 = vld [vmem:[%s284 + $0xa8c] sm:$0xff]
        %v1843 = vld [vmem:[%s284 + $0xa94] sm:$0xff]
        %v1844 = vld [vmem:[%s284 + $0xa9c] sm:$0xf]
        %v1845 = vld [vmem:[%s284 + $0xaa0] sm:$0xff]
        %v1846 = vld [vmem:[%s284 + $0xaa8] sm:$0xff]
        %v1847 = vld [vmem:[%s284 + $0xab0] sm:$0xff]
        %v1848 = vld [vmem:[%s284 + $0xab8] sm:$0xff]
        %v1849 = vld [vmem:[%s284 + $0xac0] sm:$0xff]
        %v1850 = vld [vmem:[%s284 + $0xac8] sm:$0xff]
        %v1851 = vld [vmem:[%s284 + $0xad0] sm:$0xff]
        %v1852 = vld [vmem:[%s284 + $0xad8] sm:$0xff]
        %v1853 = vld [vmem:[%s284 + $0xae0] sm:$0xf]
        %v1854 = vld [vmem:[%s284 + $0xae4] sm:$0xff]
        %v1855 = vld [vmem:[%s284 + $0xaec] sm:$0xff]
        %v1856 = vld [vmem:[%s284 + $0xaf4] sm:$0xff]
        %v1857 = vld [vmem:[%s284 + $0xafc] sm:$0xff]
        %v1858 = vld [vmem:[%s284 + $0xb04] sm:$0xff]
        %v1859 = vld [vmem:[%s284 + $0xb0c] sm:$0xff]
        %v1860 = vld [vmem:[%s284 + $0xb14] sm:$0xff]
        %v1861 = vld [vmem:[%s284 + $0xb1c] sm:$0xff]
        %v1862 = vld [vmem:[%s284 + $0xb24] sm:$0xf]
        %v1863 = vld [vmem:[%s284 + $0xb28] sm:$0xff]
        %v1864 = vld [vmem:[%s284 + $0xb30] sm:$0xff]
        %v1865 = vld [vmem:[%s284 + $0xb38] sm:$0xff]
        %v1866 = vld [vmem:[%s284 + $0xb40] sm:$0xff]
        %v1867 = vld [vmem:[%s284 + $0xb48] sm:$0xff]
        %v1868 = vld [vmem:[%s284 + $0xb50] sm:$0xff]
        %v1869 = vld [vmem:[%s284 + $0xb58] sm:$0xff]
        %v1870 = vld [vmem:[%s284 + $0xb60] sm:$0xff]
        %v1871 = vld [vmem:[%s284 + $0xb68] sm:$0xf]
        %v1872 = vld [vmem:[%s284 + $0xb6c] sm:$0xff]
        %v1873 = vld [vmem:[%s284 + $0xb74] sm:$0xff]
        %v1874 = vld [vmem:[%s284 + $0xb7c] sm:$0xff]
        %v1875 = vld [vmem:[%s284 + $0xb84] sm:$0xff]
        %v1876 = vld [vmem:[%s284 + $0xb8c] sm:$0xff]
        %v1877 = vld [vmem:[%s284 + $0xb94] sm:$0xff]
        %v1878 = vld [vmem:[%s284 + $0xb9c] sm:$0xff]
        %v1879 = vld [vmem:[%s284 + $0xba4] sm:$0xff]
        %v1880 = vld [vmem:[%s284 + $0xbac] sm:$0xf]
        %v1881 = vld [vmem:[%s284 + $0xbb0] sm:$0xff]
        %v1882 = vld [vmem:[%s284 + $0xbb8] sm:$0xff]
        %v1883 = vld [vmem:[%s284 + $0xbc0] sm:$0xff]
        %v1884 = vld [vmem:[%s284 + $0xbc8] sm:$0xff]
        %v1885 = vld [vmem:[%s284 + $0xbd0] sm:$0xff]
        %v1886 = vld [vmem:[%s284 + $0xbd8] sm:$0xff]
        %v1887 = vld [vmem:[%s284 + $0xbe0] sm:$0xff]
        %v1888 = vld [vmem:[%s284 + $0xbe8] sm:$0xff]
        %v1889 = vld [vmem:[%s284 + $0xbf0] sm:$0xf]
        %v1890 = vld [vmem:[%s284 + $0xbf4] sm:$0xff]
        %v1891 = vld [vmem:[%s284 + $0xbfc] sm:$0xff]
        %v1892 = vld [vmem:[%s284 + $0xc04] sm:$0xff]
        %v1893 = vld [vmem:[%s284 + $0xc0c] sm:$0xff]
        %v1894 = vld [vmem:[%s284 + $0xc14] sm:$0xff]
        %v1895 = vld [vmem:[%s284 + $0xc1c] sm:$0xff]
        %v1896 = vld [vmem:[%s284 + $0xc24] sm:$0xff]
        %v1897 = vld [vmem:[%s284 + $0xc2c] sm:$0xff]
        %v1898 = vld [vmem:[%s284 + $0xc34] sm:$0xf]
        %v1899 = vld [vmem:[%s284 + $0xc38] sm:$0xff]
        %v1900 = vld [vmem:[%s284 + $0xc40] sm:$0xff]
        %v1901 = vld [vmem:[%s284 + $0xc48] sm:$0xff]
        %v1902 = vld [vmem:[%s284 + $0xc50] sm:$0xff]
        %v1903 = vld [vmem:[%s284 + $0xc58] sm:$0xff]
        %v1904 = vld [vmem:[%s284 + $0xc60] sm:$0xff]
        %v1905 = vld [vmem:[%s284 + $0xc68] sm:$0xff]
        %v1906 = vld [vmem:[%s284 + $0xc70] sm:$0xff]
        %v1907 = vld [vmem:[%s284 + $0xc78] sm:$0xf]
        %v1908 = vld [vmem:[%s284 + $0xc7c] sm:$0xff]
        %v1909 = vld [vmem:[%s284 + $0xc84] sm:$0xff]
        %v1910 = vld [vmem:[%s284 + $0xc8c] sm:$0xff]
        %v1911 = vld [vmem:[%s284 + $0xc94] sm:$0xff]
        %v1912 = vld [vmem:[%s284 + $0xc9c] sm:$0xff]
        %v1913 = vld [vmem:[%s284 + $0xca4] sm:$0xff]
        %v1914 = vld [vmem:[%s284 + $0xcac] sm:$0xff]
        %v1915 = vld [vmem:[%s284 + $0xcb4] sm:$0xff]
        %v1916 = vld [vmem:[%s284 + $0xcbc] sm:$0xf]
        %v1917 = vld [vmem:[%s284 + $0xcc0] sm:$0xff]
        %v1918 = vld [vmem:[%s284 + $0xcc8] sm:$0xff]
        %v1919 = vld [vmem:[%s284 + $0xcd0] sm:$0xff]
        %v1920 = vld [vmem:[%s284 + $0xcd8] sm:$0xff]
        %v1921 = vld [vmem:[%s284 + $0xce0] sm:$0xff]
        %v1922 = vld [vmem:[%s284 + $0xce8] sm:$0xff]
        %v1923 = vld [vmem:[%s284 + $0xcf0] sm:$0xff]
        %v1924 = vld [vmem:[%s284 + $0xcf8] sm:$0xff]
        %v1925 = vld [vmem:[%s284 + $0xd00] sm:$0xf]
        %v1926 = vld [vmem:[%s284 + $0xd04] sm:$0xff]
        %v1927 = vld [vmem:[%s284 + $0xd0c] sm:$0xff]
        %v1928 = vld [vmem:[%s284 + $0xd14] sm:$0xff]
        %v1929 = vld [vmem:[%s284 + $0xd1c] sm:$0xff]
        %v1930 = vld [vmem:[%s284 + $0xd24] sm:$0xff]
        %v1931 = vld [vmem:[%s284 + $0xd2c] sm:$0xff]
        %v1932 = vld [vmem:[%s284 + $0xd34] sm:$0xff]
        %v1933 = vld [vmem:[%s284 + $0xd3c] sm:$0xff]
        %v1934 = vld [vmem:[%s284 + $0xd44] sm:$0xf]
        %v1935 = vld [vmem:[%s284 + $0xd48] sm:$0xff]
        %v1936 = vld [vmem:[%s284 + $0xd50] sm:$0xff]
        %v1937 = vld [vmem:[%s284 + $0xd58] sm:$0xff]
        %v1938 = vld [vmem:[%s284 + $0xd60] sm:$0xff]
        %v1939 = vld [vmem:[%s284 + $0xd68] sm:$0xff]
        %v1940 = vld [vmem:[%s284 + $0xd70] sm:$0xff]
        %v1941 = vld [vmem:[%s284 + $0xd78] sm:$0xff]
        %v1942 = vld [vmem:[%s284 + $0xd80] sm:$0xff]
        %v1943 = vld [vmem:[%s284 + $0xd88] sm:$0xf]
        %v1944 = vld [vmem:[%s284 + $0xd8c] sm:$0xff]
        %v1945 = vld [vmem:[%s284 + $0xd94] sm:$0xff]
        %v1946 = vld [vmem:[%s284 + $0xd9c] sm:$0xff]
        %v1947 = vld [vmem:[%s284 + $0xda4] sm:$0xff]
        %v1948 = vld [vmem:[%s284 + $0xdac] sm:$0xff]
        %v1949 = vld [vmem:[%s284 + $0xdb4] sm:$0xff]
        %v1950 = vld [vmem:[%s284 + $0xdbc] sm:$0xff]
        %v1951 = vld [vmem:[%s284 + $0xdc4] sm:$0xff]
        %v1952 = vld [vmem:[%s284 + $0xdcc] sm:$0xf]
        %v1953 = vld [vmem:[%s284 + $0xdd0] sm:$0xff]
        %v1954 = vld [vmem:[%s284 + $0xdd8] sm:$0xff]
        %v1955 = vld [vmem:[%s284 + $0xde0] sm:$0xff]
        %v1956 = vld [vmem:[%s284 + $0xde8] sm:$0xff]
        %v1957 = vld [vmem:[%s284 + $0xdf0] sm:$0xff]
        %v1958 = vld [vmem:[%s284 + $0xdf8] sm:$0xff]
        %v1959 = vld [vmem:[%s284 + $0xe00] sm:$0xff]
        %v1960 = vld [vmem:[%s284 + $0xe08] sm:$0xff]
        %v1961 = vld [vmem:[%s284 + $0xe10] sm:$0xf]
        %v1962 = vld [vmem:[%s284 + $0xe14] sm:$0xff]
        %v1963 = vld [vmem:[%s284 + $0xe1c] sm:$0xff]
        %v1964 = vld [vmem:[%s284 + $0xe24] sm:$0xff]
        %v1965 = vld [vmem:[%s284 + $0xe2c] sm:$0xff]
        %v1966 = vld [vmem:[%s284 + $0xe34] sm:$0xff]
        %v1967 = vld [vmem:[%s284 + $0xe3c] sm:$0xff]
        %v1968 = vld [vmem:[%s284 + $0xe44] sm:$0xff]
        %v1969 = vld [vmem:[%s284 + $0xe4c] sm:$0xff]
        %v1970 = vld [vmem:[%s284 + $0xe54] sm:$0xf]
        %v1971 = vld [vmem:[%s284 + $0xe58] sm:$0xff]
        %v1972 = vld [vmem:[%s284 + $0xe60] sm:$0xff]
        %v1973 = vld [vmem:[%s284 + $0xe68] sm:$0xff]
        %v1974 = vld [vmem:[%s284 + $0xe70] sm:$0xff]
        %v1975 = vld [vmem:[%s284 + $0xe78] sm:$0xff]
        %v1976 = vld [vmem:[%s284 + $0xe80] sm:$0xff]
        %v1977 = vld [vmem:[%s284 + $0xe88] sm:$0xff]
        %v1978 = vld [vmem:[%s284 + $0xe90] sm:$0xff]
        %v1979 = vld [vmem:[%s284 + $0xe98] sm:$0xf]
        %v1980 = vld [vmem:[%s284 + $0xe9c] sm:$0xff]
        %v1981 = vld [vmem:[%s284 + $0xea4] sm:$0xff]
        %v1982 = vld [vmem:[%s284 + $0xeac] sm:$0xff]
        %v1983 = vld [vmem:[%s284 + $0xeb4] sm:$0xff]
        %v1984 = vld [vmem:[%s284 + $0xebc] sm:$0xff]
        %v1985 = vld [vmem:[%s284 + $0xec4] sm:$0xff]
        %v1986 = vld [vmem:[%s284 + $0xecc] sm:$0xff]
        %v1987 = vld [vmem:[%s284 + $0xed4] sm:$0xff]
        %v1988 = vld [vmem:[%s284 + $0xedc] sm:$0xf]
        %v1989 = vld [vmem:[%s284 + $0xee0] sm:$0xff]
        %v1990 = vld [vmem:[%s284 + $0xee8] sm:$0xff]
        %v1991 = vld [vmem:[%s284 + $0xef0] sm:$0xff]
        %v1992 = vld [vmem:[%s284 + $0xef8] sm:$0xff]
        %v1993 = vld [vmem:[%s284 + $0xf00] sm:$0xff]
        %v1994 = vld [vmem:[%s284 + $0xf08] sm:$0xff]
        %v1995 = vld [vmem:[%s284 + $0xf10] sm:$0xff]
        %v1996 = vld [vmem:[%s284 + $0xf18] sm:$0xff]
        %v1997 = vld [vmem:[%s284 + $0xf20] sm:$0xf]
        %v1998 = vld [vmem:[%s284 + $0xf24] sm:$0xff]
        %v1999 = vld [vmem:[%s284 + $0xf2c] sm:$0xff]
        %v2000 = vld [vmem:[%s284 + $0xf34] sm:$0xff]
        %v2001 = vld [vmem:[%s284 + $0xf3c] sm:$0xff]
        %v2002 = vld [vmem:[%s284 + $0xf44] sm:$0xff]
        %v2003 = vld [vmem:[%s284 + $0xf4c] sm:$0xff]
        %v2004 = vld [vmem:[%s284 + $0xf54] sm:$0xff]
        %v2005 = vld [vmem:[%s284 + $0xf5c] sm:$0xff]
        %v2006 = vld [vmem:[%s284 + $0xf64] sm:$0xf]
        %v2007 = vld [vmem:[%s284 + $0xf68] sm:$0xff]
        %v2008 = vld [vmem:[%s284 + $0xf70] sm:$0xff]
        %v2009 = vld [vmem:[%s284 + $0xf78] sm:$0xff]
        %v2010 = vld [vmem:[%s284 + $0xf80] sm:$0xff]
        %v2011 = vld [vmem:[%s284 + $0xf88] sm:$0xff]
        %v2012 = vld [vmem:[%s284 + $0xf90] sm:$0xff]
        %v2013 = vld [vmem:[%s284 + $0xf98] sm:$0xff]
        %v2014 = vld [vmem:[%s284 + $0xfa0] sm:$0xff]
        %v2015 = vld [vmem:[%s284 + $0xfa8] sm:$0xf]
        %v2016 = vld [vmem:[%s284 + $0xfac] sm:$0xff]
        %v2017 = vld [vmem:[%s284 + $0xfb4] sm:$0xff]
        %v2018 = vld [vmem:[%s284 + $0xfbc] sm:$0xff]
        %v2019 = vld [vmem:[%s284 + $0xfc4] sm:$0xff]
        %v2020 = vld [vmem:[%s284 + $0xfcc] sm:$0xff]
        %v2021 = vld [vmem:[%s284 + $0xfd4] sm:$0xff]
        %v2022 = vld [vmem:[%s284 + $0xfdc] sm:$0xff]
        %v2023 = vld [vmem:[%s284 + $0xfe4] sm:$0xff]
        %v2024 = vld [vmem:[%s284 + $0xfec] sm:$0xf]
        %v2025 = vld [vmem:[%s284 + $0xff0] sm:$0xff]
        %v2026 = vld [vmem:[%s284 + $0xff8] sm:$0xff]
        %v2027 = vld [vmem:[%s284 + $0x1000] sm:$0xff]
        %v2028 = vld [vmem:[%s284 + $0x1008] sm:$0xff]
        %v2029 = vld [vmem:[%s284 + $0x1010] sm:$0xff]
        %v2030 = vld [vmem:[%s284 + $0x1018] sm:$0xff]
        %v2031 = vld [vmem:[%s284 + $0x1020] sm:$0xff]
        %v2032 = vld [vmem:[%s284 + $0x1028] sm:$0xff]
        %v2033 = vld [vmem:[%s284 + $0x1030] sm:$0xf]
        %v2034 = vld [vmem:[%s284 + $0x1034] sm:$0xff]
        %v2035 = vld [vmem:[%s284 + $0x103c] sm:$0xff]
        %v2036 = vld [vmem:[%s284 + $0x1044] sm:$0xff]
        %v2037 = vld [vmem:[%s284 + $0x104c] sm:$0xff]
        %v2038 = vld [vmem:[%s284 + $0x1054] sm:$0xff]
        %v2039 = vld [vmem:[%s284 + $0x105c] sm:$0xff]
        %v2040 = vld [vmem:[%s284 + $0x1064] sm:$0xff]
        %v2041 = vld [vmem:[%s284 + $0x106c] sm:$0xff]
        %v2042 = vld [vmem:[%s284 + $0x1074] sm:$0xf]
        %v2043 = vld [vmem:[%s284 + $0x1078] sm:$0xff]
        %v2044 = vld [vmem:[%s284 + $0x1080] sm:$0xff]
        %v2045 = vld [vmem:[%s284 + $0x1088] sm:$0xff]
        %v2046 = vld [vmem:[%s284 + $0x1090] sm:$0xff]
        %v2047 = vld [vmem:[%s284 + $0x1098] sm:$0xff]
        %v2048 = vld [vmem:[%s284 + $0x10a0] sm:$0xff]
        %v2049 = vld [vmem:[%s284 + $0x10a8] sm:$0xff]
        %v2050 = vld [vmem:[%s284 + $0x10b0] sm:$0xff]
        %v2051 = vld [vmem:[%s284 + $0x10b8] sm:$0xf]
        %v2052 = vld [vmem:[%s284 + $0x10bc] sm:$0xff]
        %v2053 = vld [vmem:[%s284 + $0x10c4] sm:$0xff]
        %v2054 = vld [vmem:[%s284 + $0x10cc] sm:$0xff]
        %v2055 = vld [vmem:[%s284 + $0x10d4] sm:$0xff]
        %v2056 = vld [vmem:[%s284 + $0x10dc] sm:$0xff]
        %v2057 = vld [vmem:[%s284 + $0x10e4] sm:$0xff]
        %v2058 = vld [vmem:[%s284 + $0x10ec] sm:$0xff]
        %v2059 = vld [vmem:[%s284 + $0x10f4] sm:$0xff]
        %v2060 = vld [vmem:[%s284 + $0x10fc] sm:$0xf]
        %v2061 = vld [vmem:[%s284 + $0x1100] sm:$0xff]
        %v2062 = vld [vmem:[%s284 + $0x1108] sm:$0xff]
        %v2063 = vld [vmem:[%s284 + $0x1110] sm:$0xff]
        %v2064 = vld [vmem:[%s284 + $0x1118] sm:$0xff]
        %v2065 = vld [vmem:[%s284 + $0x1120] sm:$0xff]
        %v2066 = vld [vmem:[%s284 + $0x1128] sm:$0xff]
        %v2067 = vld [vmem:[%s284 + $0x1130] sm:$0xff]
        %v2068 = vld [vmem:[%s284 + $0x1138] sm:$0xff]
        %v2069 = vld [vmem:[%s284 + $0x1140] sm:$0xf]
        %v2070 = vld [vmem:[%s284 + $0x1144] sm:$0xff]
        %v2071 = vld [vmem:[%s284 + $0x114c] sm:$0xff]
        %v2072 = vld [vmem:[%s284 + $0x1154] sm:$0xff]
        %v2073 = vld [vmem:[%s284 + $0x115c] sm:$0xff]
        %v2074 = vld [vmem:[%s284 + $0x1164] sm:$0xff]
        %v2075 = vld [vmem:[%s284 + $0x116c] sm:$0xff]
        %v2076 = vld [vmem:[%s284 + $0x1174] sm:$0xff]
        %v2077 = vld [vmem:[%s284 + $0x117c] sm:$0xff]
        %v2078 = vld [vmem:[%s284 + $0x1184] sm:$0xf]
        %v2079 = vld [vmem:[%s284 + $0x1188] sm:$0xff]
        %v2080 = vld [vmem:[%s284 + $0x1190] sm:$0xff]
        %v2081 = vld [vmem:[%s284 + $0x1198] sm:$0xff]
        %v2082 = vld [vmem:[%s284 + $0x11a0] sm:$0xff]
        %v2083 = vld [vmem:[%s284 + $0x11a8] sm:$0xff]
        %v2084 = vld [vmem:[%s284 + $0x11b0] sm:$0xff]
        %v2085 = vld [vmem:[%s284 + $0x11b8] sm:$0xff]
        %v2086 = vld [vmem:[%s284 + $0x11c0] sm:$0xff]
        %v2087 = vld [vmem:[%s284 + $0x11c8] sm:$0xf]
        %v2088 = vld [vmem:[%s284 + $0x11cc] sm:$0xff]
        %v2089 = vld [vmem:[%s284 + $0x11d4] sm:$0xff]
        %v2090 = vld [vmem:[%s284 + $0x11dc] sm:$0xff]
        %v2091 = vld [vmem:[%s284 + $0x11e4] sm:$0xff]
        %v2092 = vld [vmem:[%s284 + $0x11ec] sm:$0xff]
        %v2093 = vld [vmem:[%s284 + $0x11f4] sm:$0xff]
        %v2094 = vld [vmem:[%s284 + $0x11fc] sm:$0xff]
        %v2095 = vld [vmem:[%s284 + $0x1204] sm:$0xff]
        %v2096 = vld [vmem:[%s284 + $0x120c] sm:$0xf]
        %v2097 = vld [vmem:[%s284 + $0x1210] sm:$0xff]
        %v2098 = vld [vmem:[%s284 + $0x1218] sm:$0xff]
        %v2099 = vld [vmem:[%s284 + $0x1220] sm:$0xff]
        %v2100 = vld [vmem:[%s284 + $0x1228] sm:$0xff]
        %v2101 = vld [vmem:[%s284 + $0x1230] sm:$0xff]
        %v2102 = vld [vmem:[%s284 + $0x1238] sm:$0xff]
        %v2103 = vld [vmem:[%s284 + $0x1240] sm:$0xff]
        %v2104 = vld [vmem:[%s284 + $0x1248] sm:$0xff]
        %v2105 = vld [vmem:[%s284 + $0x1250] sm:$0xf]
        %v2106 = vld [vmem:[%s284 + $0x1254] sm:$0xff]
        %v2107 = vld [vmem:[%s284 + $0x125c] sm:$0xff]
        %v2108 = vld [vmem:[%s284 + $0x1264] sm:$0xff]
        %v2109 = vld [vmem:[%s284 + $0x126c] sm:$0xff]
        %v2110 = vld [vmem:[%s284 + $0x1274] sm:$0xff]
        %v2111 = vld [vmem:[%s284 + $0x127c] sm:$0xff]
        %v2112 = vld [vmem:[%s284 + $0x1284] sm:$0xff]
        %v2113 = vld [vmem:[%s284 + $0x128c] sm:$0xff]
        %v2114 = vld [vmem:[%s284 + $0x1294] sm:$0xf]
        %v2115 = vld [vmem:[%s284 + $0x1298] sm:$0xff]
        %v2116 = vld [vmem:[%s284 + $0x12a0] sm:$0xff]
        %v2117 = vld [vmem:[%s284 + $0x12a8] sm:$0xff]
        %v2118 = vld [vmem:[%s284 + $0x12b0] sm:$0xff]
        %v2119 = vld [vmem:[%s284 + $0x12b8] sm:$0xff]
        %v2120 = vld [vmem:[%s284 + $0x12c0] sm:$0xff]
        %v2121 = vld [vmem:[%s284 + $0x12c8] sm:$0xff]
        %v2122 = vld [vmem:[%s284 + $0x12d0] sm:$0xff]
        %v2123 = vld [vmem:[%s284 + $0x12d8] sm:$0xf]
        %v2124 = vld [vmem:[%s284 + $0x12dc] sm:$0xff]
        %v2125 = vld [vmem:[%s284 + $0x12e4] sm:$0xff]
        %v2126 = vld [vmem:[%s284 + $0x12ec] sm:$0xff]
        %v2127 = vld [vmem:[%s284 + $0x12f4] sm:$0xff]
        %v2128 = vld [vmem:[%s284 + $0x12fc] sm:$0xff]
        %v2129 = vld [vmem:[%s284 + $0x1304] sm:$0xff]
        %v2130 = vld [vmem:[%s284 + $0x130c] sm:$0xff]
        %v2131 = vld [vmem:[%s284 + $0x1314] sm:$0xff]
        %v2132 = vld [vmem:[%s284 + $0x131c] sm:$0xf]
        %v2133 = vld [vmem:[%s284 + $0x1320] sm:$0xff]
        %v2134 = vld [vmem:[%s284 + $0x1328] sm:$0xff]
        %v2135 = vld [vmem:[%s284 + $0x1330] sm:$0xff]
        %v2136 = vld [vmem:[%s284 + $0x1338] sm:$0xff]
        %v2137 = vld [vmem:[%s284 + $0x1340] sm:$0xff]
        %v2138 = vld [vmem:[%s284 + $0x1348] sm:$0xff]
        %v2139 = vld [vmem:[%s284 + $0x1350] sm:$0xff]
        %v2140 = vld [vmem:[%s284 + $0x1358] sm:$0xff]
        %v2141 = vld [vmem:[%s284 + $0x1360] sm:$0xf]
        %v2142 = vld [vmem:[%s284 + $0x1364] sm:$0xff]
        %v2143 = vld [vmem:[%s284 + $0x136c] sm:$0xff]
        %v2144 = vld [vmem:[%s284 + $0x1374] sm:$0xff]
        %v2145 = vld [vmem:[%s284 + $0x137c] sm:$0xff]
        %v2146 = vld [vmem:[%s284 + $0x1384] sm:$0xff]
        %v2147 = vld [vmem:[%s284 + $0x138c] sm:$0xff]
        %v2148 = vld [vmem:[%s284 + $0x1394] sm:$0xff]
        %v2149 = vld [vmem:[%s284 + $0x139c] sm:$0xff]
        %v2150 = vld [vmem:[%s284 + $0x13a4] sm:$0xf]
        %v2151 = vld [vmem:[%s284 + $0x13a8] sm:$0xff]
        %v2152 = vld [vmem:[%s284 + $0x13b0] sm:$0xff]
        %v2153 = vld [vmem:[%s284 + $0x13b8] sm:$0xff]
        %v2154 = vld [vmem:[%s284 + $0x13c0] sm:$0xff]
        %v2155 = vld [vmem:[%s284 + $0x13c8] sm:$0xff]
        %v2156 = vld [vmem:[%s284 + $0x13d0] sm:$0xff]
        %v2157 = vld [vmem:[%s284 + $0x13d8] sm:$0xff]
        %v2158 = vld [vmem:[%s284 + $0x13e0] sm:$0xff]
        %v2159 = vld [vmem:[%s284 + $0x13e8] sm:$0xf]
        %v2160 = vld [vmem:[%s284 + $0x13ec] sm:$0xff]
        %v2161 = vld [vmem:[%s284 + $0x13f4] sm:$0xff]
        %v2162 = vld [vmem:[%s284 + $0x13fc] sm:$0xff]
        %v2163 = vld [vmem:[%s284 + $0x1404] sm:$0xff]
        %v2164 = vld [vmem:[%s284 + $0x140c] sm:$0xff]
        %v2165 = vld [vmem:[%s284 + $0x1414] sm:$0xff]
        %v2166 = vld [vmem:[%s284 + $0x141c] sm:$0xff]
        %v2167 = vld [vmem:[%s284 + $0x1424] sm:$0xff]
        %v2168 = vld [vmem:[%s284 + $0x142c] sm:$0xf]
        %v2169 = vld [vmem:[%s284 + $0x1430] sm:$0xff]
        %v2170 = vld [vmem:[%s284 + $0x1438] sm:$0xff]
        %v2171 = vld [vmem:[%s284 + $0x1440] sm:$0xff]
        %v2172 = vld [vmem:[%s284 + $0x1448] sm:$0xff]
        %v2173 = vld [vmem:[%s284 + $0x1450] sm:$0xff]
        %v2174 = vld [vmem:[%s284 + $0x1458] sm:$0xff]
        %v2175 = vld [vmem:[%s284 + $0x1460] sm:$0xff]
        %v2176 = vld [vmem:[%s284 + $0x1468] sm:$0xff]
        %v2177 = vld [vmem:[%s284 + $0x1470] sm:$0xf]
        %v2178 = vld [vmem:[%s284 + $0x1474] sm:$0xff]
        %v2179 = vld [vmem:[%s284 + $0x147c] sm:$0xff]
        %v2180 = vld [vmem:[%s284 + $0x1484] sm:$0xff]
        %v2181 = vld [vmem:[%s284 + $0x148c] sm:$0xff]
        %v2182 = vld [vmem:[%s284 + $0x1494] sm:$0xff]
        %v2183 = vld [vmem:[%s284 + $0x149c] sm:$0xff]
        %v2184 = vld [vmem:[%s284 + $0x14a4] sm:$0xff]
        %v2185 = vld [vmem:[%s284 + $0x14ac] sm:$0xff]
        %v2186 = vld [vmem:[%s284 + $0x14b4] sm:$0xf]
        %v2187 = vld [vmem:[%s284 + $0x14b8] sm:$0xff]
        %v2188 = vld [vmem:[%s284 + $0x14c0] sm:$0xff]
        %v2189 = vld [vmem:[%s284 + $0x14c8] sm:$0xff]
        %v2190 = vld [vmem:[%s284 + $0x14d0] sm:$0xff]
        %v2191 = vld [vmem:[%s284 + $0x14d8] sm:$0xff]
        %v2192 = vld [vmem:[%s284 + $0x14e0] sm:$0xff]
        %v2193 = vld [vmem:[%s284 + $0x14e8] sm:$0xff]
        %v2194 = vld [vmem:[%s284 + $0x14f0] sm:$0xff]
        %v2195 = vld [vmem:[%s284 + $0x14f8] sm:$0xf]
        %v2196 = vld [vmem:[%s284 + $0x14fc] sm:$0xff]
        %v2197 = vld [vmem:[%s284 + $0x1504] sm:$0xff]
        %v2198 = vld [vmem:[%s284 + $0x150c] sm:$0xff]
        %v2199 = vld [vmem:[%s284 + $0x1514] sm:$0xff]
        %v2200 = vld [vmem:[%s284 + $0x151c] sm:$0xff]
        %v2201 = vld [vmem:[%s284 + $0x1524] sm:$0xff]
        %v2202 = vld [vmem:[%s284 + $0x152c] sm:$0xff]
        %v2203 = vld [vmem:[%s284 + $0x1534] sm:$0xff]
        %v2204 = vld [vmem:[%s284 + $0x153c] sm:$0xf]
        %v2205 = vld [vmem:[%s284 + $0x1540] sm:$0xff]
        %v2206 = vld [vmem:[%s284 + $0x1548] sm:$0xff]
        %v2207 = vld [vmem:[%s284 + $0x1550] sm:$0xff]
        %v2208 = vld [vmem:[%s284 + $0x1558] sm:$0xff]
        %v2209 = vld [vmem:[%s284 + $0x1560] sm:$0xff]
        %v2210 = vld [vmem:[%s284 + $0x1568] sm:$0xff]
        %v2211 = vld [vmem:[%s284 + $0x1570] sm:$0xff]
        %v2212 = vld [vmem:[%s284 + $0x1578] sm:$0xff]
        %v2213 = vld [vmem:[%s284 + $0x1580] sm:$0xf]
        %v2214 = vld [vmem:[%s284 + $0x1584] sm:$0xff]
        %v2215 = vld [vmem:[%s284 + $0x158c] sm:$0xff]
        %v2216 = vld [vmem:[%s284 + $0x1594] sm:$0xff]
        %v2217 = vld [vmem:[%s284 + $0x159c] sm:$0xff]
        %v2218 = vld [vmem:[%s284 + $0x15a4] sm:$0xff]
        %v2219 = vld [vmem:[%s284 + $0x15ac] sm:$0xff]
        %v2220 = vld [vmem:[%s284 + $0x15b4] sm:$0xff]
        %v2221 = vld [vmem:[%s284 + $0x15bc] sm:$0xff]
        %v2222 = vld [vmem:[%s284 + $0x15c4] sm:$0xf]
        %v2223 = vld [vmem:[%s284 + $0x15c8] sm:$0xff]
        %v2224 = vld [vmem:[%s284 + $0x15d0] sm:$0xff]
        %v2225 = vld [vmem:[%s284 + $0x15d8] sm:$0xff]
        %v2226 = vld [vmem:[%s284 + $0x15e0] sm:$0xff]
        %v2227 = vld [vmem:[%s284 + $0x15e8] sm:$0xff]
        %v2228 = vld [vmem:[%s284 + $0x15f0] sm:$0xff]
        %v2229 = vld [vmem:[%s284 + $0x15f8] sm:$0xff]
        %v2230 = vld [vmem:[%s284 + $0x1600] sm:$0xff]
        %v2231 = vld [vmem:[%s284 + $0x1608] sm:$0xf]
        %v2232 = vld [vmem:[%s284 + $0x160c] sm:$0xff]
        %v2233 = vld [vmem:[%s284 + $0x1614] sm:$0xff]
        %v2234 = vld [vmem:[%s284 + $0x161c] sm:$0xff]
        %v2235 = vld [vmem:[%s284 + $0x1624] sm:$0xff]
        %v2236 = vld [vmem:[%s284 + $0x162c] sm:$0xff]
        %v2237 = vld [vmem:[%s284 + $0x1634] sm:$0xff]
        %v2238 = vld [vmem:[%s284 + $0x163c] sm:$0xff]
        %v2239 = vld [vmem:[%s284 + $0x1644] sm:$0xff]
        %v2240 = vld [vmem:[%s284 + $0x164c] sm:$0xf]
        %v2241 = vld [vmem:[%s284 + $0x1650] sm:$0xff]
        %v2242 = vld [vmem:[%s284 + $0x1658] sm:$0xff]
        %v2243 = vld [vmem:[%s284 + $0x1660] sm:$0xff]
        %v2244 = vld [vmem:[%s284 + $0x1668] sm:$0xff]
        %v2245 = vld [vmem:[%s284 + $0x1670] sm:$0xff]
        %v2246 = vld [vmem:[%s284 + $0x1678] sm:$0xff]
        %v2247 = vld [vmem:[%s284 + $0x1680] sm:$0xff]
        %v2248 = vld [vmem:[%s284 + $0x1688] sm:$0xff]
        %v2249 = vld [vmem:[%s284 + $0x1690] sm:$0xf]
        %v2250 = vld [vmem:[%s284 + $0x1694] sm:$0xff]
        %v2251 = vld [vmem:[%s284 + $0x169c] sm:$0xff]
        %v2252 = vld [vmem:[%s284 + $0x16a4] sm:$0xff]
        %v2253 = vld [vmem:[%s284 + $0x16ac] sm:$0xff]
        %v2254 = vld [vmem:[%s284 + $0x16b4] sm:$0xff]
        %v2255 = vld [vmem:[%s284 + $0x16bc] sm:$0xff]
        %v2256 = vld [vmem:[%s284 + $0x16c4] sm:$0xff]
        %v2257 = vld [vmem:[%s284 + $0x16cc] sm:$0xff]
        %v2258 = vld [vmem:[%s284 + $0x16d4] sm:$0xf]
        %v2259 = vld [vmem:[%s284 + $0x16d8] sm:$0xff]
        %v2260 = vld [vmem:[%s284 + $0x16e0] sm:$0xff]
        %v2261 = vld [vmem:[%s284 + $0x16e8] sm:$0xff]
        %v2262 = vld [vmem:[%s284 + $0x16f0] sm:$0xff]
        %v2263 = vld [vmem:[%s284 + $0x16f8] sm:$0xff]
        %v2264 = vld [vmem:[%s284 + $0x1700] sm:$0xff]
        %v2265 = vld [vmem:[%s284 + $0x1708] sm:$0xff]
        %v2266 = vld [vmem:[%s284 + $0x1710] sm:$0xff]
        %v2267 = vld [vmem:[%s284 + $0x1718] sm:$0xf]
        %v2268 = vld [vmem:[%s284 + $0x171c] sm:$0xff]
        %v2269 = vld [vmem:[%s284 + $0x1724] sm:$0xff]
        %v2270 = vld [vmem:[%s284 + $0x172c] sm:$0xff]
        %v2271 = vld [vmem:[%s284 + $0x1734] sm:$0xff]
        %v2272 = vld [vmem:[%s284 + $0x173c] sm:$0xff]
        %v2273 = vld [vmem:[%s284 + $0x1744] sm:$0xff]
        %v2274 = vld [vmem:[%s284 + $0x174c] sm:$0xff]
        %v2275 = vld [vmem:[%s284 + $0x1754] sm:$0xff]
        %v2276 = vld [vmem:[%s284 + $0x175c] sm:$0xf]
        %v2277 = vld [vmem:[%s284 + $0x1760] sm:$0xff]
        %v2278 = vld [vmem:[%s284 + $0x1768] sm:$0xff]
        %v2279 = vld [vmem:[%s284 + $0x1770] sm:$0xff]
        %v2280 = vld [vmem:[%s284 + $0x1778] sm:$0xff]
        %v2281 = vld [vmem:[%s284 + $0x1780] sm:$0xff]
        %v2282 = vld [vmem:[%s284 + $0x1788] sm:$0xff]
        %v2283 = vld [vmem:[%s284 + $0x1790] sm:$0xff]
        %v2284 = vld [vmem:[%s284 + $0x1798] sm:$0xff]
        %v2285 = vld [vmem:[%s284 + $0x17a0] sm:$0xf]
        %v2286 = vld [vmem:[%s284 + $0x17a4] sm:$0xff]
        %v2287 = vld [vmem:[%s284 + $0x17ac] sm:$0xff]
        %v2288 = vld [vmem:[%s284 + $0x17b4] sm:$0xff]
        %v2289 = vld [vmem:[%s284 + $0x17bc] sm:$0xff]
        %v2290 = vld [vmem:[%s284 + $0x17c4] sm:$0xff]
        %v2291 = vld [vmem:[%s284 + $0x17cc] sm:$0xff]
        %v2292 = vld [vmem:[%s284 + $0x17d4] sm:$0xff]
        %v2293 = vld [vmem:[%s284 + $0x17dc] sm:$0xff]
        %v2294 = vld [vmem:[%s284 + $0x17e4] sm:$0xf]
        %v2295 = vld [vmem:[%s284 + $0x17e8] sm:$0xff]
        %v2296 = vld [vmem:[%s284 + $0x17f0] sm:$0xff]
        %v2297 = vld [vmem:[%s284 + $0x17f8] sm:$0xff]
        %v2298 = vld [vmem:[%s284 + $0x1800] sm:$0xff]
        %v2299 = vld [vmem:[%s284 + $0x1808] sm:$0xff]
        %v2300 = vld [vmem:[%s284 + $0x1810] sm:$0xff]
        %v2301 = vld [vmem:[%s284 + $0x1818] sm:$0xff]
        %v2302 = vld [vmem:[%s284 + $0x1820] sm:$0xff]
        %v2303 = vld [vmem:[%s284 + $0x1828] sm:$0xf]
        %v2304 = vld [vmem:[%s284 + $0x182c] sm:$0xff]
        %v2305 = vld [vmem:[%s284 + $0x1834] sm:$0xff]
        %v2306 = vld [vmem:[%s284 + $0x183c] sm:$0xff]
        %v2307 = vld [vmem:[%s284 + $0x1844] sm:$0xff]
        %v2308 = vld [vmem:[%s284 + $0x184c] sm:$0xff]
        %v2309 = vld [vmem:[%s284 + $0x1854] sm:$0xff]
        %v2310 = vld [vmem:[%s284 + $0x185c] sm:$0xff]
        %v2311 = vld [vmem:[%s284 + $0x1864] sm:$0xff]
        %v2312 = vld [vmem:[%s284 + $0x186c] sm:$0xf]
        %v2313 = vld [vmem:[%s284 + $0x1870] sm:$0xff]
        %v2314 = vld [vmem:[%s284 + $0x1878] sm:$0xff]
        %v2315 = vld [vmem:[%s284 + $0x1880] sm:$0xff]
        %v2316 = vld [vmem:[%s284 + $0x1888] sm:$0xff]
        %v2317 = vld [vmem:[%s284 + $0x1890] sm:$0xff]
        %v2318 = vld [vmem:[%s284 + $0x1898] sm:$0xff]
        %v2319 = vld [vmem:[%s284 + $0x18a0] sm:$0xff]
        %v2320 = vld [vmem:[%s284 + $0x18a8] sm:$0xff]
        %v2321 = vld [vmem:[%s284 + $0x18b0] sm:$0xf]
        %v2322 = vld [vmem:[%s284 + $0x18b4] sm:$0xff]
        %v2323 = vld [vmem:[%s284 + $0x18bc] sm:$0xff]
        %v2324 = vld [vmem:[%s284 + $0x18c4] sm:$0xff]
        %v2325 = vld [vmem:[%s284 + $0x18cc] sm:$0xff]
        %v2326 = vld [vmem:[%s284 + $0x18d4] sm:$0xff]
        %v2327 = vld [vmem:[%s284 + $0x18dc] sm:$0xff]
        %v2328 = vld [vmem:[%s284 + $0x18e4] sm:$0xff]
        %v2329 = vld [vmem:[%s284 + $0x18ec] sm:$0xff]
        %v2330 = vld [vmem:[%s284 + $0x18f4] sm:$0xf]
        %v2331 = vld [vmem:[%s284 + $0x18f8] sm:$0xff]
        %v2332 = vld [vmem:[%s284 + $0x1900] sm:$0xff]
        %v2333 = vld [vmem:[%s284 + $0x1908] sm:$0xff]
        %v2334 = vld [vmem:[%s284 + $0x1910] sm:$0xff]
        %v2335 = vld [vmem:[%s284 + $0x1918] sm:$0xff]
        %v2336 = vld [vmem:[%s284 + $0x1920] sm:$0xff]
        %v2337 = vld [vmem:[%s284 + $0x1928] sm:$0xff]
        %v2338 = vld [vmem:[%s284 + $0x1930] sm:$0xff]
        %v2339 = vld [vmem:[%s284 + $0x1938] sm:$0xf]
        %v2340 = vld [vmem:[%s284 + $0x193c] sm:$0xff]
        %v2341 = vld [vmem:[%s284 + $0x1944] sm:$0xff]
        %v2342 = vld [vmem:[%s284 + $0x194c] sm:$0xff]
        %v2343 = vld [vmem:[%s284 + $0x1954] sm:$0xff]
        %v2344 = vld [vmem:[%s284 + $0x195c] sm:$0xff]
        %v2345 = vld [vmem:[%s284 + $0x1964] sm:$0xff]
        %v2346 = vld [vmem:[%s284 + $0x196c] sm:$0xff]
        %v2347 = vld [vmem:[%s284 + $0x1974] sm:$0xff]
        %v2348 = vld [vmem:[%s284 + $0x197c] sm:$0xf]
        %v2349 = vld [vmem:[%s284 + $0x1980] sm:$0xff]
        %v2350 = vld [vmem:[%s284 + $0x1988] sm:$0xff]
        %v2351 = vld [vmem:[%s284 + $0x1990] sm:$0xff]
        %v2352 = vld [vmem:[%s284 + $0x1998] sm:$0xff]
        %v2353 = vld [vmem:[%s284 + $0x19a0] sm:$0xff]
        %v2354 = vld [vmem:[%s284 + $0x19a8] sm:$0xff]
        %v2355 = vld [vmem:[%s284 + $0x19b0] sm:$0xff]
        %v2356 = vld [vmem:[%s284 + $0x19b8] sm:$0xff]
        %v2357 = vld [vmem:[%s284 + $0x19c0] sm:$0xf]
        %v2358 = vld [vmem:[%s284 + $0x19c4] sm:$0xff]
        %v2359 = vld [vmem:[%s284 + $0x19cc] sm:$0xff]
        %v2360 = vld [vmem:[%s284 + $0x19d4] sm:$0xff]
        %v2361 = vld [vmem:[%s284 + $0x19dc] sm:$0xff]
        %v2362 = vld [vmem:[%s284 + $0x19e4] sm:$0xff]
        %v2363 = vld [vmem:[%s284 + $0x19ec] sm:$0xff]
        %v2364 = vld [vmem:[%s284 + $0x19f4] sm:$0xff]
        %v2365 = vld [vmem:[%s284 + $0x19fc] sm:$0xff]
        %v2366 = vld [vmem:[%s284 + $0x1a04] sm:$0xf]
        %v2367 = vld [vmem:[%s284 + $0x1a08] sm:$0xff]
        %v2368 = vld [vmem:[%s284 + $0x1a10] sm:$0xff]
        %v2369 = vld [vmem:[%s284 + $0x1a18] sm:$0xff]
        %v2370 = vld [vmem:[%s284 + $0x1a20] sm:$0xff]
        %v2371 = vld [vmem:[%s284 + $0x1a28] sm:$0xff]
        %v2372 = vld [vmem:[%s284 + $0x1a30] sm:$0xff]
        %v2373 = vld [vmem:[%s284 + $0x1a38] sm:$0xff]
        %v2374 = vld [vmem:[%s284 + $0x1a40] sm:$0xff]
        %v2375 = vld [vmem:[%s284 + $0x1a48] sm:$0xf]
        %v2376 = vld [vmem:[%s284 + $0x1a4c] sm:$0xff]
        %v2377 = vld [vmem:[%s284 + $0x1a54] sm:$0xff]
        %v2378 = vld [vmem:[%s284 + $0x1a5c] sm:$0xff]
        %v2379 = vld [vmem:[%s284 + $0x1a64] sm:$0xff]
        %v2380 = vld [vmem:[%s284 + $0x1a6c] sm:$0xff]
        %v2381 = vld [vmem:[%s284 + $0x1a74] sm:$0xff]
        %v2382 = vld [vmem:[%s284 + $0x1a7c] sm:$0xff]
        %v2383 = vld [vmem:[%s284 + $0x1a84] sm:$0xff]
        %v2384 = vld [vmem:[%s284 + $0x1a8c] sm:$0xf]
        %v2385 = vld [vmem:[%s284 + $0x1a90] sm:$0xff]
        %v2386 = vld [vmem:[%s284 + $0x1a98] sm:$0xff]
        %v2387 = vld [vmem:[%s284 + $0x1aa0] sm:$0xff]
        %v2388 = vld [vmem:[%s284 + $0x1aa8] sm:$0xff]
        %v2389 = vld [vmem:[%s284 + $0x1ab0] sm:$0xff]
        %v2390 = vld [vmem:[%s284 + $0x1ab8] sm:$0xff]
        %v2391 = vld [vmem:[%s284 + $0x1ac0] sm:$0xff]
        %v2392 = vld [vmem:[%s284 + $0x1ac8] sm:$0xff]
        %v2393 = vld [vmem:[%s284 + $0x1ad0] sm:$0xf]
        %v2394 = vld [vmem:[%s284 + $0x1ad4] sm:$0xff]
        %v2395 = vld [vmem:[%s284 + $0x1adc] sm:$0xff]
        %v2396 = vld [vmem:[%s284 + $0x1ae4] sm:$0xff]
        %v2397 = vld [vmem:[%s284 + $0x1aec] sm:$0xff]
        %v2398 = vld [vmem:[%s284 + $0x1af4] sm:$0xff]
        %v2399 = vld [vmem:[%s284 + $0x1afc] sm:$0xff]
        %v2400 = vld [vmem:[%s284 + $0x1b04] sm:$0xff]
        %v2401 = vld [vmem:[%s284 + $0x1b0c] sm:$0xff]
        %v2402 = vld [vmem:[%s284 + $0x1b14] sm:$0xf]
        %v2403 = vld [vmem:[%s284 + $0x1b18] sm:$0xff]
        %v2404 = vld [vmem:[%s284 + $0x1b20] sm:$0xff]
        %v2405 = vld [vmem:[%s284 + $0x1b28] sm:$0xff]
        %v2406 = vld [vmem:[%s284 + $0x1b30] sm:$0xff]
        %v2407 = vld [vmem:[%s284 + $0x1b38] sm:$0xff]
        %v2408 = vld [vmem:[%s284 + $0x1b40] sm:$0xff]
        %v2409 = vld [vmem:[%s284 + $0x1b48] sm:$0xff]
        %v2410 = vld [vmem:[%s284 + $0x1b50] sm:$0xff]
        %v2411 = vld [vmem:[%s284 + $0x1b58] sm:$0xf]
        %v2412 = vld [vmem:[%s284 + $0x1b5c] sm:$0xff]
        %v2413 = vld [vmem:[%s284 + $0x1b64] sm:$0xff]
        %v2414 = vld [vmem:[%s284 + $0x1b6c] sm:$0xff]
        %v2415 = vld [vmem:[%s284 + $0x1b74] sm:$0xff]
        %v2416 = vld [vmem:[%s284 + $0x1b7c] sm:$0xff]
        %v2417 = vld [vmem:[%s284 + $0x1b84] sm:$0xff]
        %v2418 = vld [vmem:[%s284 + $0x1b8c] sm:$0xff]
        %v2419 = vld [vmem:[%s284 + $0x1b94] sm:$0xff]
        %v2420 = vld [vmem:[%s284 + $0x1b9c] sm:$0xf]
        %v2421 = vld [vmem:[%s284 + $0x1ba0] sm:$0xff]
        %v2422 = vld [vmem:[%s284 + $0x1ba8] sm:$0xff]
        %v2423 = vld [vmem:[%s284 + $0x1bb0] sm:$0xff]
        %v2424 = vld [vmem:[%s284 + $0x1bb8] sm:$0xff]
        %v2425 = vld [vmem:[%s284 + $0x1bc0] sm:$0xff]
        %v2426 = vld [vmem:[%s284 + $0x1bc8] sm:$0xff]
        %v2427 = vld [vmem:[%s284 + $0x1bd0] sm:$0xff]
        %v2428 = vld [vmem:[%s284 + $0x1bd8] sm:$0xff]
        %v2429 = vld [vmem:[%s284 + $0x1be0] sm:$0xf]
        %v2430 = vld [vmem:[%s284 + $0x1be4] sm:$0xff]
        %v2431 = vld [vmem:[%s284 + $0x1bec] sm:$0xff]
        %v2432 = vld [vmem:[%s284 + $0x1bf4] sm:$0xff]
        %v2433 = vld [vmem:[%s284 + $0x1bfc] sm:$0xff]
        %v2434 = vld [vmem:[%s284 + $0x1c04] sm:$0xff]
        %v2435 = vld [vmem:[%s284 + $0x1c0c] sm:$0xff]
        %v2436 = vld [vmem:[%s284 + $0x1c14] sm:$0xff]
        %v2437 = vld [vmem:[%s284 + $0x1c1c] sm:$0xff]
        %v2438 = vld [vmem:[%s284 + $0x1c24] sm:$0xf]
        %v2439 = vld [vmem:[%s284 + $0x1c28] sm:$0xff]
        %v2440 = vld [vmem:[%s284 + $0x1c30] sm:$0xff]
        %v2441 = vld [vmem:[%s284 + $0x1c38] sm:$0xff]
        %v2442 = vld [vmem:[%s284 + $0x1c40] sm:$0xff]
        %v2443 = vld [vmem:[%s284 + $0x1c48] sm:$0xff]
        %v2444 = vld [vmem:[%s284 + $0x1c50] sm:$0xff]
        %v2445 = vld [vmem:[%s284 + $0x1c58] sm:$0xff]
        %v2446 = vld [vmem:[%s284 + $0x1c60] sm:$0xff]
        %v2447 = vld [vmem:[%s284 + $0x1c68] sm:$0xf]
        %v2448 = vld [vmem:[%s284 + $0x1c6c] sm:$0xff]
        %v2449 = vld [vmem:[%s284 + $0x1c74] sm:$0xff]
        %v2450 = vld [vmem:[%s284 + $0x1c7c] sm:$0xff]
        %v2451 = vld [vmem:[%s284 + $0x1c84] sm:$0xff]
        %v2452 = vld [vmem:[%s284 + $0x1c8c] sm:$0xff]
        %v2453 = vld [vmem:[%s284 + $0x1c94] sm:$0xff]
        %v2454 = vld [vmem:[%s284 + $0x1c9c] sm:$0xff]
        %v2455 = vld [vmem:[%s284 + $0x1ca4] sm:$0xff]
        %v2456 = vld [vmem:[%s284 + $0x1cac] sm:$0xf]
        %v2457 = vld [vmem:[%s284 + $0x1cb0] sm:$0xff]
        %v2458 = vld [vmem:[%s284 + $0x1cb8] sm:$0xff]
        %v2459 = vld [vmem:[%s284 + $0x1cc0] sm:$0xff]
        %v2460 = vld [vmem:[%s284 + $0x1cc8] sm:$0xff]
        %v2461 = vld [vmem:[%s284 + $0x1cd0] sm:$0xff]
        %v2462 = vld [vmem:[%s284 + $0x1cd8] sm:$0xff]
        %v2463 = vld [vmem:[%s284 + $0x1ce0] sm:$0xff]
        %v2464 = vld [vmem:[%s284 + $0x1ce8] sm:$0xff]
        %v2465 = vld [vmem:[%s284 + $0x1cf0] sm:$0xf]
        %v2466 = vld [vmem:[%s284 + $0x1cf4] sm:$0xff]
        %v2467 = vld [vmem:[%s284 + $0x1cfc] sm:$0xff]
        %v2468 = vld [vmem:[%s284 + $0x1d04] sm:$0xff]
        %v2469 = vld [vmem:[%s284 + $0x1d0c] sm:$0xff]
        %v2470 = vld [vmem:[%s284 + $0x1d14] sm:$0xff]
        %v2471 = vld [vmem:[%s284 + $0x1d1c] sm:$0xff]
        %v2472 = vld [vmem:[%s284 + $0x1d24] sm:$0xff]
        %v2473 = vld [vmem:[%s284 + $0x1d2c] sm:$0xff]
        %v2474 = vld [vmem:[%s284 + $0x1d34] sm:$0xf]
        %v2475 = vld [vmem:[%s284 + $0x1d38] sm:$0xff]
        %v2476 = vld [vmem:[%s284 + $0x1d40] sm:$0xff]
        %v2477 = vld [vmem:[%s284 + $0x1d48] sm:$0xff]
        %v2478 = vld [vmem:[%s284 + $0x1d50] sm:$0xff]
        %v2479 = vld [vmem:[%s284 + $0x1d58] sm:$0xff]
        %v2480 = vld [vmem:[%s284 + $0x1d60] sm:$0xff]
        %v2481 = vld [vmem:[%s284 + $0x1d68] sm:$0xff]
        %v2482 = vld [vmem:[%s284 + $0x1d70] sm:$0xff]
        %v2483 = vld [vmem:[%s284 + $0x1d78] sm:$0xf]
        %v2484 = vld [vmem:[%s284 + $0x1d7c] sm:$0xff]
        %v2485 = vld [vmem:[%s284 + $0x1d84] sm:$0xff]
        %v2486 = vld [vmem:[%s284 + $0x1d8c] sm:$0xff]
        %v2487 = vld [vmem:[%s284 + $0x1d94] sm:$0xff]
        %v2488 = vld [vmem:[%s284 + $0x1d9c] sm:$0xff]
        %v2489 = vld [vmem:[%s284 + $0x1da4] sm:$0xff]
        %v2490 = vld [vmem:[%s284 + $0x1dac] sm:$0xff]
        %v2491 = vld [vmem:[%s284 + $0x1db4] sm:$0xff]
        %v2492 = vld [vmem:[%s284 + $0x1dbc] sm:$0xf]
        %v2493 = vld [vmem:[%s284 + $0x1dc0] sm:$0xff]
        %v2494 = vld [vmem:[%s284 + $0x1dc8] sm:$0xff]
        %v2495 = vld [vmem:[%s284 + $0x1dd0] sm:$0xff]
        %v2496 = vld [vmem:[%s284 + $0x1dd8] sm:$0xff]
        %v2497 = vld [vmem:[%s284 + $0x1de0] sm:$0xff]
        %v2498 = vld [vmem:[%s284 + $0x1de8] sm:$0xff]
        %v2499 = vld [vmem:[%s284 + $0x1df0] sm:$0xff]
        %v2500 = vld [vmem:[%s284 + $0x1df8] sm:$0xff]
        %v2501 = vld [vmem:[%s284 + $0x1e00] sm:$0xf]
        %v2502 = vld [vmem:[%s284 + $0x1e04] sm:$0xff]
        %v2503 = vld [vmem:[%s284 + $0x1e0c] sm:$0xff]
        %v2504 = vld [vmem:[%s284 + $0x1e14] sm:$0xff]
        %v2505 = vld [vmem:[%s284 + $0x1e1c] sm:$0xff]
        %v2506 = vld [vmem:[%s284 + $0x1e24] sm:$0xff]
        %v2507 = vld [vmem:[%s284 + $0x1e2c] sm:$0xff]
        %v2508 = vld [vmem:[%s284 + $0x1e34] sm:$0xff]
        %v2509 = vld [vmem:[%s284 + $0x1e3c] sm:$0xff]
        %v2510 = vld [vmem:[%s284 + $0x1e44] sm:$0xf]
        %v2511 = vld [vmem:[%s284 + $0x1e48] sm:$0xff]
        %v2512 = vld [vmem:[%s284 + $0x1e50] sm:$0xff]
        %v2513 = vld [vmem:[%s284 + $0x1e58] sm:$0xff]
        %v2514 = vld [vmem:[%s284 + $0x1e60] sm:$0xff]
        %v2515 = vld [vmem:[%s284 + $0x1e68] sm:$0xff]
        %v2516 = vld [vmem:[%s284 + $0x1e70] sm:$0xff]
        %v2517 = vld [vmem:[%s284 + $0x1e78] sm:$0xff]
        %v2518 = vld [vmem:[%s284 + $0x1e80] sm:$0xff]
        %v2519 = vld [vmem:[%s284 + $0x1e88] sm:$0xf]
        %v2520 = vld [vmem:[%s284 + $0x1e8c] sm:$0xff]
        %v2521 = vld [vmem:[%s284 + $0x1e94] sm:$0xff]
        %v2522 = vld [vmem:[%s284 + $0x1e9c] sm:$0xff]
        %v2523 = vld [vmem:[%s284 + $0x1ea4] sm:$0xff]
        %v2524 = vld [vmem:[%s284 + $0x1eac] sm:$0xff]
        %v2525 = vld [vmem:[%s284 + $0x1eb4] sm:$0xff]
        %v2526 = vld [vmem:[%s284 + $0x1ebc] sm:$0xff]
        %v2527 = vld [vmem:[%s284 + $0x1ec4] sm:$0xff]
        %v2528 = vld [vmem:[%s284 + $0x1ecc] sm:$0xf]
        %v2529 = vld [vmem:[%s284 + $0x1ed0] sm:$0xff]
        %v2530 = vld [vmem:[%s284 + $0x1ed8] sm:$0xff]
        %v2531 = vld [vmem:[%s284 + $0x1ee0] sm:$0xff]
        %v2532 = vld [vmem:[%s284 + $0x1ee8] sm:$0xff]
        %v2533 = vld [vmem:[%s284 + $0x1ef0] sm:$0xff]
        %v2534 = vld [vmem:[%s284 + $0x1ef8] sm:$0xff]
        %v2535 = vld [vmem:[%s284 + $0x1f00] sm:$0xff]
        %v2536 = vld [vmem:[%s284 + $0x1f08] sm:$0xff]
        %v2537 = vld [vmem:[%s284 + $0x1f10] sm:$0xf]
        %v2538 = vld [vmem:[%s284 + $0x1f14] sm:$0xff]
        %v2539 = vld [vmem:[%s284 + $0x1f1c] sm:$0xff]
        %v2540 = vld [vmem:[%s284 + $0x1f24] sm:$0xff]
        %v2541 = vld [vmem:[%s284 + $0x1f2c] sm:$0xff]
        %v2542 = vld [vmem:[%s284 + $0x1f34] sm:$0xff]
        %v2543 = vld [vmem:[%s284 + $0x1f3c] sm:$0xff]
        %v2544 = vld [vmem:[%s284 + $0x1f44] sm:$0xff]
        %v2545 = vld [vmem:[%s284 + $0x1f4c] sm:$0xff]
        %v2546 = vld [vmem:[%s284 + $0x1f54] sm:$0xf]
        %v2547 = vld [vmem:[%s284 + $0x1f58] sm:$0xff]
        %v2548 = vld [vmem:[%s284 + $0x1f60] sm:$0xff]
        %v2549 = vld [vmem:[%s284 + $0x1f68] sm:$0xff]
        %v2550 = vld [vmem:[%s284 + $0x1f70] sm:$0xff]
        %v2551 = vld [vmem:[%s284 + $0x1f78] sm:$0xff]
        %v2552 = vld [vmem:[%s284 + $0x1f80] sm:$0xff]
        %v2553 = vld [vmem:[%s284 + $0x1f88] sm:$0xff]
        %v2554 = vld [vmem:[%s284 + $0x1f90] sm:$0xff]
        %v2555 = vld [vmem:[%s284 + $0x1f98] sm:$0xf]
        %v2556 = vld [vmem:[%s284 + $0x1f9c] sm:$0xff]
        %v2557 = vld [vmem:[%s284 + $0x1fa4] sm:$0xff]
        %v2558 = vld [vmem:[%s284 + $0x1fac] sm:$0xff]
        %v2559 = vld [vmem:[%s284 + $0x1fb4] sm:$0xff]
        %v2560 = vld [vmem:[%s284 + $0x1fbc] sm:$0xff]
        %v2561 = vld [vmem:[%s284 + $0x1fc4] sm:$0xff]
        %v2562 = vld [vmem:[%s284 + $0x1fcc] sm:$0xff]
        %v2563 = vld [vmem:[%s284 + $0x1fd4] sm:$0xff]
        %v2564 = vld [vmem:[%s284 + $0x1fdc] sm:$0xf]
        %v2565 = vld [vmem:[%s284 + $0x1fe0] sm:$0xff]
        %v2566 = vld [vmem:[%s284 + $0x1fe8] sm:$0xff]
        %v2567 = vld [vmem:[%s284 + $0x1ff0] sm:$0xff]
        %v2568 = vld [vmem:[%s284 + $0x1ff8] sm:$0xff]
        %v2569 = vld [vmem:[%s284 + $0x2000] sm:$0xff]
        %v2570 = vld [vmem:[%s284 + $0x2008] sm:$0xff]
        %v2571 = vld [vmem:[%s284 + $0x2010] sm:$0xff]
        %v2572 = vld [vmem:[%s284 + $0x2018] sm:$0xff]
        %v2573 = vld [vmem:[%s284 + $0x2020] sm:$0xf]
        %v2574 = vld [vmem:[%s284 + $0x2024] sm:$0xff]
        %v2575 = vld [vmem:[%s284 + $0x202c] sm:$0xff]
        %v2576 = vld [vmem:[%s284 + $0x2034] sm:$0xff]
        %v2577 = vld [vmem:[%s284 + $0x203c] sm:$0xff]
        %v2578 = vld [vmem:[%s284 + $0x2044] sm:$0xff]
        %v2579 = vld [vmem:[%s284 + $0x204c] sm:$0xff]
        %v2580 = vld [vmem:[%s284 + $0x2054] sm:$0xff]
        %v2581 = vld [vmem:[%s284 + $0x205c] sm:$0xff]
        %v2582 = vld [vmem:[%s284 + $0x2064] sm:$0xf]
        %v2583 = vld [vmem:[%s284 + $0x2068] sm:$0xff]
        %v2584 = vld [vmem:[%s284 + $0x2070] sm:$0xff]
        %v2585 = vld [vmem:[%s284 + $0x2078] sm:$0xff]
        %v2586 = vld [vmem:[%s284 + $0x2080] sm:$0xff]
        %v2587 = vld [vmem:[%s284 + $0x2088] sm:$0xff]
        %v2588 = vld [vmem:[%s284 + $0x2090] sm:$0xff]
        %v2589 = vld [vmem:[%s284 + $0x2098] sm:$0xff]
        %v2590 = vld [vmem:[%s284 + $0x20a0] sm:$0xff]
        %v2591 = vld [vmem:[%s284 + $0x20a8] sm:$0xf]
        %v2592 = vld [vmem:[%s284 + $0x20ac] sm:$0xff]
        %v2593 = vld [vmem:[%s284 + $0x20b4] sm:$0xff]
        %v2594 = vld [vmem:[%s284 + $0x20bc] sm:$0xff]
        %v2595 = vld [vmem:[%s284 + $0x20c4] sm:$0xff]
        %v2596 = vld [vmem:[%s284 + $0x20cc] sm:$0xff]
        %v2597 = vld [vmem:[%s284 + $0x20d4] sm:$0xff]
        %v2598 = vld [vmem:[%s284 + $0x20dc] sm:$0xff]
        %v2599 = vld [vmem:[%s284 + $0x20e4] sm:$0xff]
        %v2600 = vld [vmem:[%s284 + $0x20ec] sm:$0xf]
        %v2601 = vld [vmem:[%s284 + $0x20f0] sm:$0xff]
        %v2602 = vld [vmem:[%s284 + $0x20f8] sm:$0xff]
        %v2603 = vld [vmem:[%s284 + $0x2100] sm:$0xff]
        %v2604 = vld [vmem:[%s284 + $0x2108] sm:$0xff]
        %v2605 = vld [vmem:[%s284 + $0x2110] sm:$0xff]
        %v2606 = vld [vmem:[%s284 + $0x2118] sm:$0xff]
        %v2607 = vld [vmem:[%s284 + $0x2120] sm:$0xff]
        %v2608 = vld [vmem:[%s284 + $0x2128] sm:$0xff]
        %v2609 = vld [vmem:[%s284 + $0x2130] sm:$0xf]
        %v2610 = vld [vmem:[%s284 + $0x2134] sm:$0xff]
        %v2611 = vld [vmem:[%s284 + $0x213c] sm:$0xff]
        %v2612 = vld [vmem:[%s284 + $0x2144] sm:$0xff]
        %v2613 = vld [vmem:[%s284 + $0x214c] sm:$0xff]
        %v2614 = vld [vmem:[%s284 + $0x2154] sm:$0xff]
        %v2615 = vld [vmem:[%s284 + $0x215c] sm:$0xff]
        %v2616 = vld [vmem:[%s284 + $0x2164] sm:$0xff]
        %v2617 = vld [vmem:[%s284 + $0x216c] sm:$0xff]
        %v2618 = vld [vmem:[%s284 + $0x2174] sm:$0xf]
        %v2619 = vld [vmem:[%s284 + $0x2178] sm:$0xff]
        %v2620 = vld [vmem:[%s284 + $0x2180] sm:$0xff]
        %v2621 = vld [vmem:[%s284 + $0x2188] sm:$0xff]
        %v2622 = vld [vmem:[%s284 + $0x2190] sm:$0xff]
        %v2623 = vld [vmem:[%s284 + $0x2198] sm:$0xff]
        %v2624 = vld [vmem:[%s284 + $0x21a0] sm:$0xff]
        %v2625 = vld [vmem:[%s284 + $0x21a8] sm:$0xff]
        %v2626 = vld [vmem:[%s284 + $0x21b0] sm:$0xff]
        %v2627 = vld [vmem:[%s284 + $0x21b8] sm:$0xf]
        %v2628 = vld [vmem:[%s284 + $0x21bc] sm:$0xff]
        %v2629 = vld [vmem:[%s284 + $0x21c4] sm:$0xff]
        %v2630 = vld [vmem:[%s284 + $0x21cc] sm:$0xff]
        %v2631 = vld [vmem:[%s284 + $0x21d4] sm:$0xff]
        %v2632 = vld [vmem:[%s284 + $0x21dc] sm:$0xff]
        %v2633 = vld [vmem:[%s284 + $0x21e4] sm:$0xff]
        %v2634 = vld [vmem:[%s284 + $0x21ec] sm:$0xff]
        %v2635 = vld [vmem:[%s284 + $0x21f4] sm:$0xff]
        %v2636 = vld [vmem:[%s284 + $0x21fc] sm:$0xf]
        %v2637 = vld [vmem:[%s284 + $0x2200] sm:$0xff]
        %v2638 = vld [vmem:[%s284 + $0x2208] sm:$0xff]
        %v2639 = vld [vmem:[%s284 + $0x2210] sm:$0xff]
        %v2640 = vld [vmem:[%s284 + $0x2218] sm:$0xff]
        %v2641 = vld [vmem:[%s284 + $0x2220] sm:$0xff]
        %v2642 = vld [vmem:[%s284 + $0x2228] sm:$0xff]
        %v2643 = vld [vmem:[%s284 + $0x2230] sm:$0xff]
        %v2644 = vld [vmem:[%s284 + $0x2238] sm:$0xff]
        %v2645 = vld [vmem:[%s284 + $0x2240] sm:$0xf]
        %v2646 = vld [vmem:[%s284 + $0x2244] sm:$0xff]
        %v2647 = vld [vmem:[%s284 + $0x224c] sm:$0xff]
        %v2648 = vld [vmem:[%s284 + $0x2254] sm:$0xff]
        %v2649 = vld [vmem:[%s284 + $0x225c] sm:$0xff]
        %v2650 = vld [vmem:[%s284 + $0x2264] sm:$0xff]
        %v2651 = vld [vmem:[%s284 + $0x226c] sm:$0xff]
        %v2652 = vld [vmem:[%s284 + $0x2274] sm:$0xff]
        %v2653 = vld [vmem:[%s284 + $0x227c] sm:$0xff]
        %v2654 = vld [vmem:[%s284 + $0x2284] sm:$0xf]
        %v2655 = vld [vmem:[%s284 + $0x2288] sm:$0xff]
        %v2656 = vld [vmem:[%s284 + $0x2290] sm:$0xff]
        %v2657 = vld [vmem:[%s284 + $0x2298] sm:$0xff]
        %v2658 = vld [vmem:[%s284 + $0x22a0] sm:$0xff]
        %v2659 = vld [vmem:[%s284 + $0x22a8] sm:$0xff]
        %v2660 = vld [vmem:[%s284 + $0x22b0] sm:$0xff]
        %v2661 = vld [vmem:[%s284 + $0x22b8] sm:$0xff]
        %v2662 = vld [vmem:[%s284 + $0x22c0] sm:$0xff]
        %v2663 = vld [vmem:[%s284 + $0x22c8] sm:$0xf]
        %v2664 = vld [vmem:[%s284 + $0x22cc] sm:$0xff]
        %v2665 = vld [vmem:[%s284 + $0x22d4] sm:$0xff]
        %v2666 = vld [vmem:[%s284 + $0x22dc] sm:$0xff]
        %v2667 = vld [vmem:[%s284 + $0x22e4] sm:$0xff]
        %v2668 = vld [vmem:[%s284 + $0x22ec] sm:$0xff]
        %v2669 = vld [vmem:[%s284 + $0x22f4] sm:$0xff]
        %v2670 = vld [vmem:[%s284 + $0x22fc] sm:$0xff]
        %v2671 = vld [vmem:[%s284 + $0x2304] sm:$0xff]
        %v2672 = vld [vmem:[%s284 + $0x230c] sm:$0xf]
        %v2673 = vld [vmem:[%s284 + $0x2310] sm:$0xff]
        %v2674 = vld [vmem:[%s284 + $0x2318] sm:$0xff]
        %v2675 = vld [vmem:[%s284 + $0x2320] sm:$0xff]
        %v2676 = vld [vmem:[%s284 + $0x2328] sm:$0xff]
        %v2677 = vld [vmem:[%s284 + $0x2330] sm:$0xff]
        %v2678 = vld [vmem:[%s284 + $0x2338] sm:$0xff]
        %v2679 = vld [vmem:[%s284 + $0x2340] sm:$0xff]
        %v2680 = vld [vmem:[%s284 + $0x2348] sm:$0xff]
        %v2681 = vld [vmem:[%s284 + $0x2350] sm:$0xf]
        %v2682 = vld [vmem:[%s284 + $0x2354] sm:$0xff]
        %v2683 = vld [vmem:[%s284 + $0x235c] sm:$0xff]
        %v2684 = vld [vmem:[%s284 + $0x2364] sm:$0xff]
        %v2685 = vld [vmem:[%s284 + $0x236c] sm:$0xff]
        %v2686 = vld [vmem:[%s284 + $0x2374] sm:$0xff]
        %v2687 = vld [vmem:[%s284 + $0x237c] sm:$0xff]
        %v2688 = vld [vmem:[%s284 + $0x2384] sm:$0xff]
        %v2689 = vld [vmem:[%s284 + $0x238c] sm:$0xff]
        %v2690 = vld [vmem:[%s284 + $0x2394] sm:$0xf]
        %v2691 = vld [vmem:[%s284 + $0x2398] sm:$0xff]
        %v2692 = vld [vmem:[%s284 + $0x23a0] sm:$0xff]
        %v2693 = vld [vmem:[%s284 + $0x23a8] sm:$0xff]
        %v2694 = vld [vmem:[%s284 + $0x23b0] sm:$0xff]
        %v2695 = vld [vmem:[%s284 + $0x23b8] sm:$0xff]
        %v2696 = vld [vmem:[%s284 + $0x23c0] sm:$0xff]
        %v2697 = vld [vmem:[%s284 + $0x23c8] sm:$0xff]
        %v2698 = vld [vmem:[%s284 + $0x23d0] sm:$0xff]
        %v2699 = vld [vmem:[%s284 + $0x23d8] sm:$0xf]
        %v2700 = vld [vmem:[%s284 + $0x23dc] sm:$0xff]
        %v2701 = vld [vmem:[%s284 + $0x23e4] sm:$0xff]
        %v2702 = vld [vmem:[%s284 + $0x23ec] sm:$0xff]
        %v2703 = vld [vmem:[%s284 + $0x23f4] sm:$0xff]
        %v2704 = vld [vmem:[%s284 + $0x23fc] sm:$0xff]
        %v2705 = vld [vmem:[%s284 + $0x2404] sm:$0xff]
        %v2706 = vld [vmem:[%s284 + $0x240c] sm:$0xff]
        %v2707 = vld [vmem:[%s284 + $0x2414] sm:$0xff]
        %v2708 = vld [vmem:[%s284 + $0x241c] sm:$0xf]
        %v2709 = vld [vmem:[%s284 + $0x2420] sm:$0xff]
        %v2710 = vld [vmem:[%s284 + $0x2428] sm:$0xff]
        %v2711 = vld [vmem:[%s284 + $0x2430] sm:$0xff]
        %v2712 = vld [vmem:[%s284 + $0x2438] sm:$0xff]
        %v2713 = vld [vmem:[%s284 + $0x2440] sm:$0xff]
        %v2714 = vld [vmem:[%s284 + $0x2448] sm:$0xff]
        %v2715 = vld [vmem:[%s284 + $0x2450] sm:$0xff]
        %v2716 = vld [vmem:[%s284 + $0x2458] sm:$0xff]
        %v2717 = vld [vmem:[%s284 + $0x2460] sm:$0xf]
        %v2718 = vld [vmem:[%s284 + $0x2464] sm:$0xff]
        %v2719 = vld [vmem:[%s284 + $0x246c] sm:$0xff]
        %v2720 = vld [vmem:[%s284 + $0x2474] sm:$0xff]
        %v2721 = vld [vmem:[%s284 + $0x247c] sm:$0xff]
        %v2722 = vld [vmem:[%s284 + $0x2484] sm:$0xff]
        %v2723 = vld [vmem:[%s284 + $0x248c] sm:$0xff]
        %v2724 = vld [vmem:[%s284 + $0x2494] sm:$0xff]
        %v2725 = vld [vmem:[%s284 + $0x249c] sm:$0xff]
        %v2726 = vld [vmem:[%s284 + $0x24a4] sm:$0xf]
        %v2727 = vld [vmem:[%s284 + $0x24a8] sm:$0xff]
        %v2728 = vld [vmem:[%s284 + $0x24b0] sm:$0xff]
        %v2729 = vld [vmem:[%s284 + $0x24b8] sm:$0xff]
        %v2730 = vld [vmem:[%s284 + $0x24c0] sm:$0xff]
        %v2731 = vld [vmem:[%s284 + $0x24c8] sm:$0xff]
        %v2732 = vld [vmem:[%s284 + $0x24d0] sm:$0xff]
        %v2733 = vld [vmem:[%s284 + $0x24d8] sm:$0xff]
        %v2734 = vld [vmem:[%s284 + $0x24e0] sm:$0xff]
        %v2735 = vld [vmem:[%s284 + $0x24e8] sm:$0xf]
        %v2736 = vld [vmem:[%s284 + $0x24ec] sm:$0xff]
        %v2737 = vld [vmem:[%s284 + $0x24f4] sm:$0xff]
        %v2738 = vld [vmem:[%s284 + $0x24fc] sm:$0xff]
        %v2739 = vld [vmem:[%s284 + $0x2504] sm:$0xff]
        %v2740 = vld [vmem:[%s284 + $0x250c] sm:$0xff]
        %v2741 = vld [vmem:[%s284 + $0x2514] sm:$0xff]
        %v2742 = vld [vmem:[%s284 + $0x251c] sm:$0xff]
        %v2743 = vld [vmem:[%s284 + $0x2524] sm:$0xff]
        %v2744 = vld [vmem:[%s284 + $0x252c] sm:$0xf]
        %v2745 = vld [vmem:[%s284 + $0x2530] sm:$0xff]
        %v2746 = vld [vmem:[%s284 + $0x2538] sm:$0xff]
        %v2747 = vld [vmem:[%s284 + $0x2540] sm:$0xff]
        %v2748 = vld [vmem:[%s284 + $0x2548] sm:$0xff]
        %v2749 = vld [vmem:[%s284 + $0x2550] sm:$0xff]
        %v2750 = vld [vmem:[%s284 + $0x2558] sm:$0xff]
        %v2751 = vld [vmem:[%s284 + $0x2560] sm:$0xff]
        %v2752 = vld [vmem:[%s284 + $0x2568] sm:$0xff]
        %v2753 = vld [vmem:[%s284 + $0x2570] sm:$0xf]
        %v2754 = vld [vmem:[%s284 + $0x2574] sm:$0xff]
        %v2755 = vld [vmem:[%s284 + $0x257c] sm:$0xff]
        %v2756 = vld [vmem:[%s284 + $0x2584] sm:$0xff]
        %v2757 = vld [vmem:[%s284 + $0x258c] sm:$0xff]
        %v2758 = vld [vmem:[%s284 + $0x2594] sm:$0xff]
        %v2759 = vld [vmem:[%s284 + $0x259c] sm:$0xff]
        %v2760 = vld [vmem:[%s284 + $0x25a4] sm:$0xff]
        %v2761 = vld [vmem:[%s284 + $0x25ac] sm:$0xff]
        %v2762 = vld [vmem:[%s284 + $0x25b4] sm:$0xf]
        %v2763 = vld [vmem:[%s284 + $0x25b8] sm:$0xff]
        %v2764 = vld [vmem:[%s284 + $0x25c0] sm:$0xff]
        %v2765 = vld [vmem:[%s284 + $0x25c8] sm:$0xff]
        %v2766 = vld [vmem:[%s284 + $0x25d0] sm:$0xff]
        %v2767 = vld [vmem:[%s284 + $0x25d8] sm:$0xff]
        %v2768 = vld [vmem:[%s284 + $0x25e0] sm:$0xff]
        %v2769 = vld [vmem:[%s284 + $0x25e8] sm:$0xff]
        %v2770 = vld [vmem:[%s284 + $0x25f0] sm:$0xff]
        %v2771 = vld [vmem:[%s284 + $0x25f8] sm:$0xf]
        %v2772 = vld [vmem:[%s284 + $0x25fc] sm:$0xff]
        %v2773 = vld [vmem:[%s284 + $0x2604] sm:$0xff]
        %v2774 = vld [vmem:[%s284 + $0x260c] sm:$0xff]
        %v2775 = vld [vmem:[%s284 + $0x2614] sm:$0xff]
        %v2776 = vld [vmem:[%s284 + $0x261c] sm:$0xff]
        %v2777 = vld [vmem:[%s284 + $0x2624] sm:$0xff]
        %v2778 = vld [vmem:[%s284 + $0x262c] sm:$0xff]
        %v2779 = vld [vmem:[%s284 + $0x2634] sm:$0xff]
        %v2780 = vld [vmem:[%s284 + $0x263c] sm:$0xf]
        %v2781 = vld [vmem:[%s284 + $0x2640] sm:$0xff]
        %v2782 = vld [vmem:[%s284 + $0x2648] sm:$0xff]
        %v2783 = vld [vmem:[%s284 + $0x2650] sm:$0xff]
        %v2784 = vld [vmem:[%s284 + $0x2658] sm:$0xff]
        %v2785 = vld [vmem:[%s284 + $0x2660] sm:$0xff]
        %v2786 = vld [vmem:[%s284 + $0x2668] sm:$0xff]
        %v2787 = vld [vmem:[%s284 + $0x2670] sm:$0xff]
        %v2788 = vld [vmem:[%s284 + $0x2678] sm:$0xff]
        %v2789 = vld [vmem:[%s284 + $0x2680] sm:$0xf]
        %v2790 = vld [vmem:[%s284 + $0x2684] sm:$0xff]
        %v2791 = vld [vmem:[%s284 + $0x268c] sm:$0xff]
        %v2792 = vld [vmem:[%s284 + $0x2694] sm:$0xff]
        %v2793 = vld [vmem:[%s284 + $0x269c] sm:$0xff]
        %v2794 = vld [vmem:[%s284 + $0x26a4] sm:$0xff]
        %v2795 = vld [vmem:[%s284 + $0x26ac] sm:$0xff]
        %v2796 = vld [vmem:[%s284 + $0x26b4] sm:$0xff]
        %v2797 = vld [vmem:[%s284 + $0x26bc] sm:$0xff]
        %v2798 = vld [vmem:[%s284 + $0x26c4] sm:$0xf]
        %v2799 = vld [vmem:[%s284 + $0x26c8] sm:$0xff]
        %v2800 = vld [vmem:[%s284 + $0x26d0] sm:$0xff]
        %v2801 = vld [vmem:[%s284 + $0x26d8] sm:$0xff]
        %v2802 = vld [vmem:[%s284 + $0x26e0] sm:$0xff]
        %v2803 = vld [vmem:[%s284 + $0x26e8] sm:$0xff]
        %v2804 = vld [vmem:[%s284 + $0x26f0] sm:$0xff]
        %v2805 = vld [vmem:[%s284 + $0x26f8] sm:$0xff]
        %v2806 = vld [vmem:[%s284 + $0x2700] sm:$0xff]
        %v2807 = vld [vmem:[%s284 + $0x2708] sm:$0xf]
        %v2808 = vld [vmem:[%s284 + $0x270c] sm:$0xff]
        %v2809 = vld [vmem:[%s284 + $0x2714] sm:$0xff]
        %v2810 = vld [vmem:[%s284 + $0x271c] sm:$0xff]
        %v2811 = vld [vmem:[%s284 + $0x2724] sm:$0xff]
        %v2812 = vld [vmem:[%s284 + $0x272c] sm:$0xff]
        %v2813 = vld [vmem:[%s284 + $0x2734] sm:$0xff]
        %v2814 = vld [vmem:[%s284 + $0x273c] sm:$0xff]
        %v2815 = vld [vmem:[%s284 + $0x2744] sm:$0xff]
        %v2816 = vld [vmem:[%s284 + $0x274c] sm:$0xf]
        %v2817 = vld [vmem:[%s284 + $0x2750] sm:$0xff]
        %v2818 = vld [vmem:[%s284 + $0x2758] sm:$0xff]
        %v2819 = vld [vmem:[%s284 + $0x2760] sm:$0xff]
        %v2820 = vld [vmem:[%s284 + $0x2768] sm:$0xff]
        %v2821 = vld [vmem:[%s284 + $0x2770] sm:$0xff]
        %v2822 = vld [vmem:[%s284 + $0x2778] sm:$0xff]
        %v2823 = vld [vmem:[%s284 + $0x2780] sm:$0xff]
        %v2824 = vld [vmem:[%s284 + $0x2788] sm:$0xff]
        %v2825 = vld [vmem:[%s284 + $0x2790] sm:$0xf]
        %v2826 = vld [vmem:[%s284 + $0x2794] sm:$0xff]
        %v2827 = vld [vmem:[%s284 + $0x279c] sm:$0xff]
        %v2828 = vld [vmem:[%s284 + $0x27a4] sm:$0xff]
        %v2829 = vld [vmem:[%s284 + $0x27ac] sm:$0xff]
        %v2830 = vld [vmem:[%s284 + $0x27b4] sm:$0xff]
        %v2831 = vld [vmem:[%s284 + $0x27bc] sm:$0xff]
        %v2832 = vld [vmem:[%s284 + $0x27c4] sm:$0xff]
        %v2833 = vld [vmem:[%s284 + $0x27cc] sm:$0xff]
        %v2834 = vld [vmem:[%s284 + $0x27d4] sm:$0xf]
        %v2835 = vld [vmem:[%s284 + $0x27d8] sm:$0xff]
        %v2836 = vld [vmem:[%s284 + $0x27e0] sm:$0xff]
        %v2837 = vld [vmem:[%s284 + $0x27e8] sm:$0xff]
        %v2838 = vld [vmem:[%s284 + $0x27f0] sm:$0xff]
        %v2839 = vld [vmem:[%s284 + $0x27f8] sm:$0xff]
        %v2840 = vld [vmem:[%s284 + $0x2800] sm:$0xff]
        %v2841 = vld [vmem:[%s284 + $0x2808] sm:$0xff]
        %v2842 = vld [vmem:[%s284 + $0x2810] sm:$0xff]
        %v2843 = vld [vmem:[%s284 + $0x2818] sm:$0xf]
        %v2844 = vld [vmem:[%s284 + $0x281c] sm:$0xff]
        %v2845 = vld [vmem:[%s284 + $0x2824] sm:$0xff]
        %v2846 = vld [vmem:[%s284 + $0x282c] sm:$0xff]
        %v2847 = vld [vmem:[%s284 + $0x2834] sm:$0xff]
        %v2848 = vld [vmem:[%s284 + $0x283c] sm:$0xff]
        %v2849 = vld [vmem:[%s284 + $0x2844] sm:$0xff]
        %v2850 = vld [vmem:[%s284 + $0x284c] sm:$0xff]
        %v2851 = vld [vmem:[%s284 + $0x2854] sm:$0xff]
        %v2852 = vld [vmem:[%s284 + $0x285c] sm:$0xf]
        %v2853 = vld [vmem:[%s284 + $0x2860] sm:$0xff]
        %v2854 = vld [vmem:[%s284 + $0x2868] sm:$0xff]
        %v2855 = vld [vmem:[%s284 + $0x2870] sm:$0xff]
        %v2856 = vld [vmem:[%s284 + $0x2878] sm:$0xff]
        %v2857 = vld [vmem:[%s284 + $0x2880] sm:$0xff]
        %v2858 = vld [vmem:[%s284 + $0x2888] sm:$0xff]
        %v2859 = vld [vmem:[%s284 + $0x2890] sm:$0xff]
        %v2860 = vld [vmem:[%s284 + $0x2898] sm:$0xff]
        %v2861 = vld [vmem:[%s284 + $0x28a0] sm:$0xf]
        %v2862 = vld [vmem:[%s284 + $0x28a4] sm:$0xff]
        %v2863 = vld [vmem:[%s284 + $0x28ac] sm:$0xff]
        %v2864 = vld [vmem:[%s284 + $0x28b4] sm:$0xff]
        %v2865 = vld [vmem:[%s284 + $0x28bc] sm:$0xff]
        %v2866 = vld [vmem:[%s284 + $0x28c4] sm:$0xff]
        %v2867 = vld [vmem:[%s284 + $0x28cc] sm:$0xff]
        %v2868 = vld [vmem:[%s284 + $0x28d4] sm:$0xff]
        %v2869 = vld [vmem:[%s284 + $0x28dc] sm:$0xff]
        %v2870 = vld [vmem:[%s284 + $0x28e4] sm:$0xf]
        %v2871 = vld [vmem:[%s284 + $0x28e8] sm:$0xff]
        %v2872 = vld [vmem:[%s284 + $0x28f0] sm:$0xff]
        %v2873 = vld [vmem:[%s284 + $0x28f8] sm:$0xff]
        %v2874 = vld [vmem:[%s284 + $0x2900] sm:$0xff]
        %v2875 = vld [vmem:[%s284 + $0x2908] sm:$0xff]
        %v2876 = vld [vmem:[%s284 + $0x2910] sm:$0xff]
        %v2877 = vld [vmem:[%s284 + $0x2918] sm:$0xff]
        %v2878 = vld [vmem:[%s284 + $0x2920] sm:$0xff]
        %v2879 = vld [vmem:[%s284 + $0x2928] sm:$0xf]
        %v2880 = vld [vmem:[%s284 + $0x292c] sm:$0xff]
        %v2881 = vld [vmem:[%s284 + $0x2934] sm:$0xff]
        %v2882 = vld [vmem:[%s284 + $0x293c] sm:$0xff]
        %v2883 = vld [vmem:[%s284 + $0x2944] sm:$0xff]
        %v2884 = vld [vmem:[%s284 + $0x294c] sm:$0xff]
        %v2885 = vld [vmem:[%s284 + $0x2954] sm:$0xff]
        %v2886 = vld [vmem:[%s284 + $0x295c] sm:$0xff]
        %v2887 = vld [vmem:[%s284 + $0x2964] sm:$0xff]
        %v2888 = vld [vmem:[%s284 + $0x296c] sm:$0xf]
        %v2889 = vld [vmem:[%s284 + $0x2970] sm:$0xff]
        %v2890 = vld [vmem:[%s284 + $0x2978] sm:$0xff]
        %v2891 = vld [vmem:[%s284 + $0x2980] sm:$0xff]
        %v2892 = vld [vmem:[%s284 + $0x2988] sm:$0xff]
        %v2893 = vld [vmem:[%s284 + $0x2990] sm:$0xff]
        %v2894 = vld [vmem:[%s284 + $0x2998] sm:$0xff]
        %v2895 = vld [vmem:[%s284 + $0x29a0] sm:$0xff]
        %v2896 = vld [vmem:[%s284 + $0x29a8] sm:$0xff]
        %v2897 = vld [vmem:[%s284 + $0x29b0] sm:$0xf]
        %v2898 = vld [vmem:[%s284 + $0x29b4] sm:$0xff]
        %v2899 = vld [vmem:[%s284 + $0x29bc] sm:$0xff]
        %v2900 = vld [vmem:[%s284 + $0x29c4] sm:$0xff]
        %v2901 = vld [vmem:[%s284 + $0x29cc] sm:$0xff]
        %v2902 = vld [vmem:[%s284 + $0x29d4] sm:$0xff]
        %v2903 = vld [vmem:[%s284 + $0x29dc] sm:$0xff]
        %v2904 = vld [vmem:[%s284 + $0x29e4] sm:$0xff]
        %v2905 = vld [vmem:[%s284 + $0x29ec] sm:$0xff]
        %v2906 = vld [vmem:[%s284 + $0x29f4] sm:$0xf]
        %v2907 = vld [vmem:[%s284 + $0x29f8] sm:$0xff]
        %v2908 = vld [vmem:[%s284 + $0x2a00] sm:$0xff]
        %v2909 = vld [vmem:[%s284 + $0x2a08] sm:$0xff]
        %v2910 = vld [vmem:[%s284 + $0x2a10] sm:$0xff]
        %v2911 = vld [vmem:[%s284 + $0x2a18] sm:$0xff]
        %v2912 = vld [vmem:[%s284 + $0x2a20] sm:$0xff]
        %v2913 = vld [vmem:[%s284 + $0x2a28] sm:$0xff]
        %v2914 = vld [vmem:[%s284 + $0x2a30] sm:$0xff]
        %v2915 = vld [vmem:[%s284 + $0x2a38] sm:$0xf]
        %v2916 = vld [vmem:[%s284 + $0x2a3c] sm:$0xff]
        %v2917 = vld [vmem:[%s284 + $0x2a44] sm:$0xff]
        %v2918 = vld [vmem:[%s284 + $0x2a4c] sm:$0xff]
        %v2919 = vld [vmem:[%s284 + $0x2a54] sm:$0xff]
        %v2920 = vld [vmem:[%s284 + $0x2a5c] sm:$0xff]
        %v2921 = vld [vmem:[%s284 + $0x2a64] sm:$0xff]
        %v2922 = vld [vmem:[%s284 + $0x2a6c] sm:$0xff]
        %v2923 = vld [vmem:[%s284 + $0x2a74] sm:$0xff]
        %v2924 = vld [vmem:[%s284 + $0x2a7c] sm:$0xf]
        %v2925 = vld [vmem:[%s284 + $0x2a80] sm:$0xff]
        %v2926 = vld [vmem:[%s284 + $0x2a88] sm:$0xff]
        %v2927 = vld [vmem:[%s284 + $0x2a90] sm:$0xff]
        %v2928 = vld [vmem:[%s284 + $0x2a98] sm:$0xff]
        %v2929 = vld [vmem:[%s284 + $0x2aa0] sm:$0xff]
        %v2930 = vld [vmem:[%s284 + $0x2aa8] sm:$0xff]
        %v2931 = vld [vmem:[%s284 + $0x2ab0] sm:$0xff]
        %v2932 = vld [vmem:[%s284 + $0x2ab8] sm:$0xff]
        %v2933 = vld [vmem:[%s284 + $0x2ac0] sm:$0xf]
        %v2934 = vld [vmem:[%s284 + $0x2ac4] sm:$0xff]
        %v2935 = vld [vmem:[%s284 + $0x2acc] sm:$0xff]
        %v2936 = vld [vmem:[%s284 + $0x2ad4] sm:$0xff]
        %v2937 = vld [vmem:[%s284 + $0x2adc] sm:$0xff]
        %v2938 = vld [vmem:[%s284 + $0x2ae4] sm:$0xff]
        %v2939 = vld [vmem:[%s284 + $0x2aec] sm:$0xff]
        %v2940 = vld [vmem:[%s284 + $0x2af4] sm:$0xff]
        %v2941 = vld [vmem:[%s284 + $0x2afc] sm:$0xff]
        %v2942 = vld [vmem:[%s284 + $0x2b04] sm:$0xf]
        %v2943 = vld [vmem:[%s284 + $0x2b08] sm:$0xff]
        %v2944 = vld [vmem:[%s284 + $0x2b10] sm:$0xff]
        %v2945 = vld [vmem:[%s284 + $0x2b18] sm:$0xff]
        %v2946 = vld [vmem:[%s284 + $0x2b20] sm:$0xff]
        %v2947 = vld [vmem:[%s284 + $0x2b28] sm:$0xff]
        %v2948 = vld [vmem:[%s284 + $0x2b30] sm:$0xff]
        %v2949 = vld [vmem:[%s284 + $0x2b38] sm:$0xff]
        %v2950 = vld [vmem:[%s284 + $0x2b40] sm:$0xff]
        %v2951 = vld [vmem:[%s284 + $0x2b48] sm:$0xf]
        %v2952 = vld [vmem:[%s284 + $0x2b4c] sm:$0xff]
        %v2953 = vld [vmem:[%s284 + $0x2b54] sm:$0xff]
        %v2954 = vld [vmem:[%s284 + $0x2b5c] sm:$0xff]
        %v2955 = vld [vmem:[%s284 + $0x2b64] sm:$0xff]
        %v2956 = vld [vmem:[%s284 + $0x2b6c] sm:$0xff]
        %v2957 = vld [vmem:[%s284 + $0x2b74] sm:$0xff]
        %v2958 = vld [vmem:[%s284 + $0x2b7c] sm:$0xff]
        %v2959 = vld [vmem:[%s284 + $0x2b84] sm:$0xff]
        %v2960 = vld [vmem:[%s284 + $0x2b8c] sm:$0xf]
        %v2961 = vld [vmem:[%s284 + $0x2b90] sm:$0xff]
        %v2962 = vld [vmem:[%s284 + $0x2b98] sm:$0xff]
        %v2963 = vld [vmem:[%s284 + $0x2ba0] sm:$0xff]
        %v2964 = vld [vmem:[%s284 + $0x2ba8] sm:$0xff]
        %v2965 = vld [vmem:[%s284 + $0x2bb0] sm:$0xff]
        %v2966 = vld [vmem:[%s284 + $0x2bb8] sm:$0xff]
        %v2967 = vld [vmem:[%s284 + $0x2bc0] sm:$0xff]
        %v2968 = vld [vmem:[%s284 + $0x2bc8] sm:$0xff]
        %v2969 = vld [vmem:[%s284 + $0x2bd0] sm:$0xf]
        %v2970 = vld [vmem:[%s284 + $0x2bd4] sm:$0xff]
        %v2971 = vld [vmem:[%s284 + $0x2bdc] sm:$0xff]
        %v2972 = vld [vmem:[%s284 + $0x2be4] sm:$0xff]
        %v2973 = vld [vmem:[%s284 + $0x2bec] sm:$0xff]
        %v2974 = vld [vmem:[%s284 + $0x2bf4] sm:$0xff]
        %v2975 = vld [vmem:[%s284 + $0x2bfc] sm:$0xff]
        %v2976 = vld [vmem:[%s284 + $0x2c04] sm:$0xff]
        %v2977 = vld [vmem:[%s284 + $0x2c0c] sm:$0xff]
        %v2978 = vld [vmem:[%s284 + $0x2c14] sm:$0xf]
        %v2979 = vld [vmem:[%s284 + $0x2c18] sm:$0xff]
        %v2980 = vld [vmem:[%s284 + $0x2c20] sm:$0xff]
        %v2981 = vld [vmem:[%s284 + $0x2c28] sm:$0xff]
        %v2982 = vld [vmem:[%s284 + $0x2c30] sm:$0xff]
        %v2983 = vld [vmem:[%s284 + $0x2c38] sm:$0xff]
        %v2984 = vld [vmem:[%s284 + $0x2c40] sm:$0xff]
        %v2985 = vld [vmem:[%s284 + $0x2c48] sm:$0xff]
        %v2986 = vld [vmem:[%s284 + $0x2c50] sm:$0xff]
        %v2987 = vld [vmem:[%s284 + $0x2c58] sm:$0xf]
        %v2988 = vld [vmem:[%s284 + $0x2c5c] sm:$0xff]
        %v2989 = vld [vmem:[%s284 + $0x2c64] sm:$0xff]
        %v2990 = vld [vmem:[%s284 + $0x2c6c] sm:$0xff]
        %v2991 = vld [vmem:[%s284 + $0x2c74] sm:$0xff]
        %v2992 = vld [vmem:[%s284 + $0x2c7c] sm:$0xff]
        %v2993 = vld [vmem:[%s284 + $0x2c84] sm:$0xff]
        %v2994 = vld [vmem:[%s284 + $0x2c8c] sm:$0xff]
        %v2995 = vld [vmem:[%s284 + $0x2c94] sm:$0xff]
        %v2996 = vld [vmem:[%s284 + $0x2c9c] sm:$0xf]
        %v2997 = vld [vmem:[%s284 + $0x2ca0] sm:$0xff]
        %v2998 = vld [vmem:[%s284 + $0x2ca8] sm:$0xff]
        %v2999 = vld [vmem:[%s284 + $0x2cb0] sm:$0xff]
        %v3000 = vld [vmem:[%s284 + $0x2cb8] sm:$0xff]
        %v3001 = vld [vmem:[%s284 + $0x2cc0] sm:$0xff]
        %v3002 = vld [vmem:[%s284 + $0x2cc8] sm:$0xff]
        %v3003 = vld [vmem:[%s284 + $0x2cd0] sm:$0xff]
        %v3004 = vld [vmem:[%s284 + $0x2cd8] sm:$0xff]
        %v3005 = vld [vmem:[%s284 + $0x2ce0] sm:$0xf]
        %v3006 = vld [vmem:[%s284 + $0x2ce4] sm:$0xff]
        %v3007 = vld [vmem:[%s284 + $0x2cec] sm:$0xff]
        %v3008 = vld [vmem:[%s284 + $0x2cf4] sm:$0xff]
        %v3009 = vld [vmem:[%s284 + $0x2cfc] sm:$0xff]
        %v3010 = vld [vmem:[%s284 + $0x2d04] sm:$0xff]
        %v3011 = vld [vmem:[%s284 + $0x2d0c] sm:$0xff]
        %v3012 = vld [vmem:[%s284 + $0x2d14] sm:$0xff]
        %v3013 = vld [vmem:[%s284 + $0x2d1c] sm:$0xff]
        %v3014 = vld [vmem:[%s284 + $0x2d24] sm:$0xf]
        %v3015 = vld [vmem:[%s284 + $0x2d28] sm:$0xff]
        %v3016 = vld [vmem:[%s284 + $0x2d30] sm:$0xff]
        %v3017 = vld [vmem:[%s284 + $0x2d38] sm:$0xff]
        %v3018 = vld [vmem:[%s284 + $0x2d40] sm:$0xff]
        %v3019 = vld [vmem:[%s284 + $0x2d48] sm:$0xff]
        %v3020 = vld [vmem:[%s284 + $0x2d50] sm:$0xff]
        %v3021 = vld [vmem:[%s284 + $0x2d58] sm:$0xff]
        %v3022 = vld [vmem:[%s284 + $0x2d60] sm:$0xff]
        %v3023 = vld [vmem:[%s284 + $0x2d68] sm:$0xf]
        %v3024 = vld [vmem:[%s284 + $0x2d6c] sm:$0xff]
        %v3025 = vld [vmem:[%s284 + $0x2d74] sm:$0xff]
        %v3026 = vld [vmem:[%s284 + $0x2d7c] sm:$0xff]
        %v3027 = vld [vmem:[%s284 + $0x2d84] sm:$0xff]
        %v3028 = vld [vmem:[%s284 + $0x2d8c] sm:$0xff]
        %v3029 = vld [vmem:[%s284 + $0x2d94] sm:$0xff]
        %v3030 = vld [vmem:[%s284 + $0x2d9c] sm:$0xff]
        %v3031 = vld [vmem:[%s284 + $0x2da4] sm:$0xff]
        %v3032 = vld [vmem:[%s284 + $0x2dac] sm:$0xf]
        %v3033 = vld [vmem:[%s284 + $0x2db0] sm:$0xff]
        %v3034 = vld [vmem:[%s284 + $0x2db8] sm:$0xff]
        %v3035 = vld [vmem:[%s284 + $0x2dc0] sm:$0xff]
        %v3036 = vld [vmem:[%s284 + $0x2dc8] sm:$0xff]
        %v3037 = vld [vmem:[%s284 + $0x2dd0] sm:$0xff]
        %v3038 = vld [vmem:[%s284 + $0x2dd8] sm:$0xff]
        %v3039 = vld [vmem:[%s284 + $0x2de0] sm:$0xff]
        %v3040 = vld [vmem:[%s284 + $0x2de8] sm:$0xff]
        %v3041 = vld [vmem:[%s284 + $0x2df0] sm:$0xf]
        %v3042 = vld [vmem:[%s284 + $0x2df4] sm:$0xff]
        %v3043 = vld [vmem:[%s284 + $0x2dfc] sm:$0xff]
        %v3044 = vld [vmem:[%s284 + $0x2e04] sm:$0xff]
        %v3045 = vld [vmem:[%s284 + $0x2e0c] sm:$0xff]
        %v3046 = vld [vmem:[%s284 + $0x2e14] sm:$0xff]
        %v3047 = vld [vmem:[%s284 + $0x2e1c] sm:$0xff]
        %v3048 = vld [vmem:[%s284 + $0x2e24] sm:$0xff]
        %v3049 = vld [vmem:[%s284 + $0x2e2c] sm:$0xff]
        %v3050 = vld [vmem:[%s284 + $0x2e34] sm:$0xf]
        %v3051 = vld [vmem:[%s284 + $0x2e38] sm:$0xff]
        %v3052 = vld [vmem:[%s284 + $0x2e40] sm:$0xff]
        %v3053 = vld [vmem:[%s284 + $0x2e48] sm:$0xff]
        %v3054 = vld [vmem:[%s284 + $0x2e50] sm:$0xff]
        %v3055 = vld [vmem:[%s284 + $0x2e58] sm:$0xff]
        %v3056 = vld [vmem:[%s284 + $0x2e60] sm:$0xff]
        %v3057 = vld [vmem:[%s284 + $0x2e68] sm:$0xff]
        %v3058 = vld [vmem:[%s284 + $0x2e70] sm:$0xff]
        %v3059 = vld [vmem:[%s284 + $0x2e78] sm:$0xf]
        %v3060 = vld [vmem:[%s284 + $0x2e7c] sm:$0xff]
        %v3061 = vld [vmem:[%s284 + $0x2e84] sm:$0xff]
        %v3062 = vld [vmem:[%s284 + $0x2e8c] sm:$0xff]
        %v3063 = vld [vmem:[%s284 + $0x2e94] sm:$0xff]
        %v3064 = vld [vmem:[%s284 + $0x2e9c] sm:$0xff]
        %v3065 = vld [vmem:[%s284 + $0x2ea4] sm:$0xff]
        %v3066 = vld [vmem:[%s284 + $0x2eac] sm:$0xff]
        %v3067 = vld [vmem:[%s284 + $0x2eb4] sm:$0xff]
        %v3068 = vld [vmem:[%s284 + $0x2ebc] sm:$0xf]
        %v3069 = vld [vmem:[%s284 + $0x2ec0] sm:$0xff]
        %v3070 = vld [vmem:[%s284 + $0x2ec8] sm:$0xff]
        %v3071 = vld [vmem:[%s284 + $0x2ed0] sm:$0xff]
        %v3072 = vld [vmem:[%s284 + $0x2ed8] sm:$0xff]
        %v3073 = vld [vmem:[%s284 + $0x2ee0] sm:$0xff]
        %v3074 = vld [vmem:[%s284 + $0x2ee8] sm:$0xff]
        %v3075 = vld [vmem:[%s284 + $0x2ef0] sm:$0xff]
        %v3076 = vld [vmem:[%s284 + $0x2ef8] sm:$0xff]
        %v3077 = vld [vmem:[%s284 + $0x2f00] sm:$0xf]
        %v3078 = vld [vmem:[%s284 + $0x2f04] sm:$0xff]
        %v3079 = vld [vmem:[%s284 + $0x2f0c] sm:$0xff]
        %v3080 = vld [vmem:[%s284 + $0x2f14] sm:$0xff]
        %v3081 = vld [vmem:[%s284 + $0x2f1c] sm:$0xff]
        %v3082 = vld [vmem:[%s284 + $0x2f24] sm:$0xff]
        %v3083 = vld [vmem:[%s284 + $0x2f2c] sm:$0xff]
        %v3084 = vld [vmem:[%s284 + $0x2f34] sm:$0xff]
        %v3085 = vld [vmem:[%s284 + $0x2f3c] sm:$0xff]
        %v3086 = vld [vmem:[%s284 + $0x2f44] sm:$0xf]
        %v3087 = vld [vmem:[%s284 + $0x2f48] sm:$0xff]
        %v3088 = vld [vmem:[%s284 + $0x2f50] sm:$0xff]
        %v3089 = vld [vmem:[%s284 + $0x2f58] sm:$0xff]
        %v3090 = vld [vmem:[%s284 + $0x2f60] sm:$0xff]
        %v3091 = vld [vmem:[%s284 + $0x2f68] sm:$0xff]
        %v3092 = vld [vmem:[%s284 + $0x2f70] sm:$0xff]
        %v3093 = vld [vmem:[%s284 + $0x2f78] sm:$0xff]
        %v3094 = vld [vmem:[%s284 + $0x2f80] sm:$0xff]
        %v3095 = vld [vmem:[%s284 + $0x2f88] sm:$0xf]
        %v3096 = vld [vmem:[%s284 + $0x2f8c] sm:$0xff]
        %v3097 = vld [vmem:[%s284 + $0x2f94] sm:$0xff]
        %v3098 = vld [vmem:[%s284 + $0x2f9c] sm:$0xff]
        %v3099 = vld [vmem:[%s284 + $0x2fa4] sm:$0xff]
        %v3100 = vld [vmem:[%s284 + $0x2fac] sm:$0xff]
        %v3101 = vld [vmem:[%s284 + $0x2fb4] sm:$0xff]
        %v3102 = vld [vmem:[%s284 + $0x2fbc] sm:$0xff]
        %v3103 = vld [vmem:[%s284 + $0x2fc4] sm:$0xff]
        %v3104 = vld [vmem:[%s284 + $0x2fcc] sm:$0xf]
        %v3105 = vld [vmem:[%s284 + $0x2fd0] sm:$0xff]
        %v3106 = vld [vmem:[%s284 + $0x2fd8] sm:$0xff]
        %v3107 = vld [vmem:[%s284 + $0x2fe0] sm:$0xff]
        %v3108 = vld [vmem:[%s284 + $0x2fe8] sm:$0xff]
        %v3109 = vld [vmem:[%s284 + $0x2ff0] sm:$0xff]
        %v3110 = vld [vmem:[%s284 + $0x2ff8] sm:$0xff]
        %v3111 = vld [vmem:[%s284 + $0x3000] sm:$0xff]
        %v3112 = vld [vmem:[%s284 + $0x3008] sm:$0xff]
        %v3113 = vld [vmem:[%s284 + $0x3010] sm:$0xf]
        %v3114 = vld [vmem:[%s284 + $0x3014] sm:$0xff]
        %v3115 = vld [vmem:[%s284 + $0x301c] sm:$0xff]
        %v3116 = vld [vmem:[%s284 + $0x3024] sm:$0xff]
        %v3117 = vld [vmem:[%s284 + $0x302c] sm:$0xff]
        %v3118 = vld [vmem:[%s284 + $0x3034] sm:$0xff]
        %v3119 = vld [vmem:[%s284 + $0x303c] sm:$0xff]
        %v3120 = vld [vmem:[%s284 + $0x3044] sm:$0xff]
        %v3121 = vld [vmem:[%s284 + $0x304c] sm:$0xff]
        %v3122 = vld [vmem:[%s284 + $0x3054] sm:$0xf]
        %v3123 = vld [vmem:[%s284 + $0x3058] sm:$0xff]
        %v3124 = vld [vmem:[%s284 + $0x3060] sm:$0xff]
        %v3125 = vld [vmem:[%s284 + $0x3068] sm:$0xff]
        %v3126 = vld [vmem:[%s284 + $0x3070] sm:$0xff]
        %v3127 = vld [vmem:[%s284 + $0x3078] sm:$0xff]
        %v3128 = vld [vmem:[%s284 + $0x3080] sm:$0xff]
        %v3129 = vld [vmem:[%s284 + $0x3088] sm:$0xff]
        %v3130 = vld [vmem:[%s284 + $0x3090] sm:$0xff]
        %v3131 = vld [vmem:[%s284 + $0x3098] sm:$0xf]
        %v3132 = vld [vmem:[%s284 + $0x309c] sm:$0xff]
        %v3133 = vld [vmem:[%s284 + $0x30a4] sm:$0xff]
        %v3134 = vld [vmem:[%s284 + $0x30ac] sm:$0xff]
        %v3135 = vld [vmem:[%s284 + $0x30b4] sm:$0xff]
        %v3136 = vld [vmem:[%s284 + $0x30bc] sm:$0xff]
        %v3137 = vld [vmem:[%s284 + $0x30c4] sm:$0xff]
        %v3138 = vld [vmem:[%s284 + $0x30cc] sm:$0xff]
        %v3139 = vld [vmem:[%s284 + $0x30d4] sm:$0xff]
        %v3140 = vld [vmem:[%s284 + $0x30dc] sm:$0xf]
        %v3141 = vld [vmem:[%s284 + $0x30e0] sm:$0xff]
        %v3142 = vld [vmem:[%s284 + $0x30e8] sm:$0xff]
        %v3143 = vld [vmem:[%s284 + $0x30f0] sm:$0xff]
        %v3144 = vld [vmem:[%s284 + $0x30f8] sm:$0xff]
        %v3145 = vld [vmem:[%s284 + $0x3100] sm:$0xff]
        %v3146 = vld [vmem:[%s284 + $0x3108] sm:$0xff]
        %v3147 = vld [vmem:[%s284 + $0x3110] sm:$0xff]
        %v3148 = vld [vmem:[%s284 + $0x3118] sm:$0xff]
        %v3149 = vld [vmem:[%s284 + $0x3120] sm:$0xf]
        %v3150 = vld [vmem:[%s284 + $0x3124] sm:$0xff]
        %v3151 = vld [vmem:[%s284 + $0x312c] sm:$0xff]
        %v3152 = vld [vmem:[%s284 + $0x3134] sm:$0xff]
        %v3153 = vld [vmem:[%s284 + $0x313c] sm:$0xff]
        %v3154 = vld [vmem:[%s284 + $0x3144] sm:$0xff]
        %v3155 = vld [vmem:[%s284 + $0x314c] sm:$0xff]
        %v3156 = vld [vmem:[%s284 + $0x3154] sm:$0xff]
        %v3157 = vld [vmem:[%s284 + $0x315c] sm:$0xff]
        %v3158 = vld [vmem:[%s284 + $0x3164] sm:$0xf]
        %v3159 = vld [vmem:[%s284 + $0x3168] sm:$0xff]
        %v3160 = vld [vmem:[%s284 + $0x3170] sm:$0xff]
        %v3161 = vld [vmem:[%s284 + $0x3178] sm:$0xff]
        %v3162 = vld [vmem:[%s284 + $0x3180] sm:$0xff]
        %v3163 = vld [vmem:[%s284 + $0x3188] sm:$0xff]
        %v3164 = vld [vmem:[%s284 + $0x3190] sm:$0xff]
        %v3165 = vld [vmem:[%s284 + $0x3198] sm:$0xff]
        %v3166 = vld [vmem:[%s284 + $0x31a0] sm:$0xff]
        %v3167 = vld [vmem:[%s284 + $0x31a8] sm:$0xf]
        %v3168 = vld [vmem:[%s284 + $0x31ac] sm:$0xff]
        %v3169 = vld [vmem:[%s284 + $0x31b4] sm:$0xff]
        %v3170 = vld [vmem:[%s284 + $0x31bc] sm:$0xff]
        %v3171 = vld [vmem:[%s284 + $0x31c4] sm:$0xff]
        %v3172 = vld [vmem:[%s284 + $0x31cc] sm:$0xff]
        %v3173 = vld [vmem:[%s284 + $0x31d4] sm:$0xff]
        %v3174 = vld [vmem:[%s284 + $0x31dc] sm:$0xff]
        %v3175 = vld [vmem:[%s284 + $0x31e4] sm:$0xff]
        %v3176 = vld [vmem:[%s284 + $0x31ec] sm:$0xf]
        %v3177 = vld [vmem:[%s284 + $0x31f0] sm:$0xff]
        %v3178 = vld [vmem:[%s284 + $0x31f8] sm:$0xff]
        %v3179 = vld [vmem:[%s284 + $0x3200] sm:$0xff]
        %v3180 = vld [vmem:[%s284 + $0x3208] sm:$0xff]
        %v3181 = vld [vmem:[%s284 + $0x3210] sm:$0xff]
        %v3182 = vld [vmem:[%s284 + $0x3218] sm:$0xff]
        %v3183 = vld [vmem:[%s284 + $0x3220] sm:$0xff]
        %v3184 = vld [vmem:[%s284 + $0x3228] sm:$0xff]
        %v3185 = vld [vmem:[%s284 + $0x3230] sm:$0xf]
        %v3186 = vld [vmem:[%s284 + $0x3234] sm:$0xff]
        %v3187 = vld [vmem:[%s284 + $0x323c] sm:$0xff]
        %v3188 = vld [vmem:[%s284 + $0x3244] sm:$0xff]
        %v3189 = vld [vmem:[%s284 + $0x324c] sm:$0xff]
        %v3190 = vld [vmem:[%s284 + $0x3254] sm:$0xff]
        %v3191 = vld [vmem:[%s284 + $0x325c] sm:$0xff]
        %v3192 = vld [vmem:[%s284 + $0x3264] sm:$0xff]
        %v3193 = vld [vmem:[%s284 + $0x326c] sm:$0xff]
        %v3194 = vld [vmem:[%s284 + $0x3274] sm:$0xf]
        %v3195 = vld [vmem:[%s284 + $0x3278] sm:$0xff]
        %v3196 = vld [vmem:[%s284 + $0x3280] sm:$0xff]
        %v3197 = vld [vmem:[%s284 + $0x3288] sm:$0xff]
        %v3198 = vld [vmem:[%s284 + $0x3290] sm:$0xff]
        %v3199 = vld [vmem:[%s284 + $0x3298] sm:$0xff]
        %v3200 = vld [vmem:[%s284 + $0x32a0] sm:$0xff]
        %v3201 = vld [vmem:[%s284 + $0x32a8] sm:$0xff]
        %v3202 = vld [vmem:[%s284 + $0x32b0] sm:$0xff]
        %v3203 = vld [vmem:[%s284 + $0x32b8] sm:$0xf]
        %v3204 = vld [vmem:[%s284 + $0x32bc] sm:$0xff]
        %v3205 = vld [vmem:[%s284 + $0x32c4] sm:$0xff]
        %v3206 = vld [vmem:[%s284 + $0x32cc] sm:$0xff]
        %v3207 = vld [vmem:[%s284 + $0x32d4] sm:$0xff]
        %v3208 = vld [vmem:[%s284 + $0x32dc] sm:$0xff]
        %v3209 = vld [vmem:[%s284 + $0x32e4] sm:$0xff]
        %v3210 = vld [vmem:[%s284 + $0x32ec] sm:$0xff]
        %v3211 = vld [vmem:[%s284 + $0x32f4] sm:$0xff]
        %v3212 = vld [vmem:[%s284 + $0x32fc] sm:$0xf]
        %v3219 = vunpack.c.l.b16 %v1462
        %v3220 = vunpack.c.h.b16 %v1462
        %v3221 = vunpack.c.l.b16 %v1463
        %v3222 = vunpack.c.h.b16 %v1463
        %v3223 = vunpack.c.l.b16 %v1464
        %v3224 = vunpack.c.h.b16 %v1464
        %v3225 = vunpack.c.l.b16 %v1465
        %v3226 = vunpack.c.h.b16 %v1465
        %v3227 = vunpack.c.l.b16 %v1466
        %v3228 = vunpack.c.h.b16 %v1466
        %v3229 = vunpack.c.l.b16 %v1467
        %v3230 = vunpack.c.h.b16 %v1467
        %v3231 = vpack.c.b16 %v3219, %v3219
        %v3232 = vpack.c.b16 %v3220, %v3220
        %v3233 = vpack.c.b16 %v3221, %v3221
        %v3234 = vpack.c.b16 %v3222, %v3222
        %v3235 = vpack.c.b16 %v3223, %v3223
        %v3236 = vpack.c.b16 %v3224, %v3224
        %v3237 = vpack.c.b16 %v3225, %v3225
        %v3238 = vpack.c.b16 %v3226, %v3226
        %v3239 = vpack.c.b16 %v3227, %v3227
        %v3240 = vpack.c.b16 %v3228, %v3228
        %v3241 = vpack.c.b16 %v3229, %v3229
        %v3242 = vpack.c.b16 %v3230, %v3230
        %v4983 = vunpack.c.l.b16 %v1485
        %v4984 = vunpack.c.h.b16 %v1485
        %v4985 = vunpack.c.l.b16 %v1486
        %v4986 = vunpack.c.h.b16 %v1486
        %v4987 = vunpack.c.l.b16 %v1487
        %v4988 = vunpack.c.h.b16 %v1487
        %v4989 = vunpack.c.l.b16 %v1488
        %v4990 = vunpack.c.h.b16 %v1488
        %v4991 = vunpack.c.l.b16 %v1489
        %v4992 = vunpack.c.h.b16 %v1489
        %v4993 = vunpack.c.l.b16 %v1490
        %v4994 = vunpack.c.h.b16 %v1490
        %v4995 = vunpack.c.l.b16 %v1491
        %v4996 = vunpack.c.h.b16 %v1491
        %v4997 = vunpack.c.l.b16 %v1492
        %v4998 = vunpack.c.h.b16 %v1492
        %v4999 = vunpack.c.l.b16 %v1493
        %v5000 = vunpack.c.l.b16 %v1494
        %v5001 = vunpack.c.h.b16 %v1494
        %v5002 = vunpack.c.l.b16 %v1495
        %v5003 = vunpack.c.h.b16 %v1495
        %v5004 = vunpack.c.l.b16 %v1496
        %v5005 = vunpack.c.h.b16 %v1496
        %v5006 = vunpack.c.l.b16 %v1497
        %v5007 = vunpack.c.h.b16 %v1497
        %v5008 = vunpack.c.l.b16 %v1498
        %v5009 = vunpack.c.h.b16 %v1498
        %v5010 = vunpack.c.l.b16 %v1499
        %v5011 = vunpack.c.h.b16 %v1499
        %v5012 = vunpack.c.l.b16 %v1500
        %v5013 = vunpack.c.h.b16 %v1500
        %v5014 = vunpack.c.l.b16 %v1501
        %v5015 = vunpack.c.h.b16 %v1501
        %v5016 = vunpack.c.l.b16 %v1502
        %v5017 = vunpack.c.l.b16 %v1503
        %v5018 = vunpack.c.h.b16 %v1503
        %v5019 = vunpack.c.l.b16 %v1504
        %v5020 = vunpack.c.h.b16 %v1504
        %v5021 = vunpack.c.l.b16 %v1505
        %v5022 = vunpack.c.h.b16 %v1505
        %v5023 = vunpack.c.l.b16 %v1506
        %v5024 = vunpack.c.h.b16 %v1506
        %v5025 = vunpack.c.l.b16 %v1507
        %v5026 = vunpack.c.h.b16 %v1507
        %v5027 = vunpack.c.l.b16 %v1508
        %v5028 = vunpack.c.h.b16 %v1508
        %v5029 = vunpack.c.l.b16 %v1509
        %v5030 = vunpack.c.h.b16 %v1509
        %v5031 = vunpack.c.l.b16 %v1510
        %v5032 = vunpack.c.h.b16 %v1510
        %v5033 = vunpack.c.l.b16 %v1511
        %v5034 = vunpack.c.l.b16 %v1512
        %v5035 = vunpack.c.h.b16 %v1512
        %v5036 = vunpack.c.l.b16 %v1513
        %v5037 = vunpack.c.h.b16 %v1513
        %v5038 = vunpack.c.l.b16 %v1514
        %v5039 = vunpack.c.h.b16 %v1514
        %v5040 = vunpack.c.l.b16 %v1515
        %v5041 = vunpack.c.h.b16 %v1515
        %v5042 = vunpack.c.l.b16 %v1516
        %v5043 = vunpack.c.h.b16 %v1516
        %v5044 = vunpack.c.l.b16 %v1517
        %v5045 = vunpack.c.h.b16 %v1517
        %v5046 = vunpack.c.l.b16 %v1518
        %v5047 = vunpack.c.h.b16 %v1518
        %v5048 = vunpack.c.l.b16 %v1519
        %v5049 = vunpack.c.h.b16 %v1519
        %v5050 = vunpack.c.l.b16 %v1520
        %v5051 = vunpack.c.l.b16 %v1521
        %v5052 = vunpack.c.h.b16 %v1521
        %v5053 = vunpack.c.l.b16 %v1522
        %v5054 = vunpack.c.h.b16 %v1522
        %v5055 = vunpack.c.l.b16 %v1523
        %v5056 = vunpack.c.h.b16 %v1523
        %v5057 = vunpack.c.l.b16 %v1524
        %v5058 = vunpack.c.h.b16 %v1524
        %v5059 = vunpack.c.l.b16 %v1525
        %v5060 = vunpack.c.h.b16 %v1525
        %v5061 = vunpack.c.l.b16 %v1526
        %v5062 = vunpack.c.h.b16 %v1526
        %v5063 = vunpack.c.l.b16 %v1527
        %v5064 = vunpack.c.h.b16 %v1527
        %v5065 = vunpack.c.l.b16 %v1528
        %v5066 = vunpack.c.h.b16 %v1528
        %v5067 = vunpack.c.l.b16 %v1529
        %v5068 = vunpack.c.l.b16 %v1530
        %v5069 = vunpack.c.h.b16 %v1530
        %v5070 = vunpack.c.l.b16 %v1531
        %v5071 = vunpack.c.h.b16 %v1531
        %v5072 = vunpack.c.l.b16 %v1532
        %v5073 = vunpack.c.h.b16 %v1532
        %v5074 = vunpack.c.l.b16 %v1533
        %v5075 = vunpack.c.h.b16 %v1533
        %v5076 = vunpack.c.l.b16 %v1534
        %v5077 = vunpack.c.h.b16 %v1534
        %v5078 = vunpack.c.l.b16 %v1535
        %v5079 = vunpack.c.h.b16 %v1535
        %v5080 = vunpack.c.l.b16 %v1536
        %v5081 = vunpack.c.h.b16 %v1536
        %v5082 = vunpack.c.l.b16 %v1537
        %v5083 = vunpack.c.h.b16 %v1537
        %v5084 = vunpack.c.l.b16 %v1538
        %v5085 = vunpack.c.l.b16 %v1539
        %v5086 = vunpack.c.h.b16 %v1539
        %v5087 = vunpack.c.l.b16 %v1540
        %v5088 = vunpack.c.h.b16 %v1540
        %v5089 = vunpack.c.l.b16 %v1541
        %v5090 = vunpack.c.h.b16 %v1541
        %v5091 = vunpack.c.l.b16 %v1542
        %v5092 = vunpack.c.h.b16 %v1542
        %v5093 = vunpack.c.l.b16 %v1543
        %v5094 = vunpack.c.h.b16 %v1543
        %v5095 = vunpack.c.l.b16 %v1544
        %v5096 = vunpack.c.h.b16 %v1544
        %v5097 = vunpack.c.l.b16 %v1545
        %v5098 = vunpack.c.h.b16 %v1545
        %v5099 = vunpack.c.l.b16 %v1546
        %v5100 = vunpack.c.h.b16 %v1546
        %v5101 = vunpack.c.l.b16 %v1547
        %v5102 = vunpack.c.l.b16 %v1548
        %v5103 = vunpack.c.h.b16 %v1548
        %v5104 = vunpack.c.l.b16 %v1549
        %v5105 = vunpack.c.h.b16 %v1549
        %v5106 = vunpack.c.l.b16 %v1550
        %v5107 = vunpack.c.h.b16 %v1550
        %v5108 = vunpack.c.l.b16 %v1551
        %v5109 = vunpack.c.h.b16 %v1551
        %v5110 = vunpack.c.l.b16 %v1552
        %v5111 = vunpack.c.h.b16 %v1552
        %v5112 = vunpack.c.l.b16 %v1553
        %v5113 = vunpack.c.h.b16 %v1553
        %v5114 = vunpack.c.l.b16 %v1554
        %v5115 = vunpack.c.h.b16 %v1554
        %v5116 = vunpack.c.l.b16 %v1555
        %v5117 = vunpack.c.h.b16 %v1555
        %v5118 = vunpack.c.l.b16 %v1556
        %v5119 = vunpack.c.l.b16 %v1557
        %v5120 = vunpack.c.h.b16 %v1557
        %v5121 = vunpack.c.l.b16 %v1558
        %v5122 = vunpack.c.h.b16 %v1558
        %v5123 = vunpack.c.l.b16 %v1559
        %v5124 = vunpack.c.h.b16 %v1559
        %v5125 = vunpack.c.l.b16 %v1560
        %v5126 = vunpack.c.h.b16 %v1560
        %v5127 = vunpack.c.l.b16 %v1561
        %v5128 = vunpack.c.h.b16 %v1561
        %v5129 = vunpack.c.l.b16 %v1562
        %v5130 = vunpack.c.h.b16 %v1562
        %v5131 = vunpack.c.l.b16 %v1563
        %v5132 = vunpack.c.h.b16 %v1563
        %v5133 = vunpack.c.l.b16 %v1564
        %v5134 = vunpack.c.h.b16 %v1564
        %v5135 = vunpack.c.l.b16 %v1565
        %v5136 = vunpack.c.l.b16 %v1566
        %v5137 = vunpack.c.h.b16 %v1566
        %v5138 = vunpack.c.l.b16 %v1567
        %v5139 = vunpack.c.h.b16 %v1567
        %v5140 = vunpack.c.l.b16 %v1568
        %v5141 = vunpack.c.h.b16 %v1568
        %v5142 = vunpack.c.l.b16 %v1569
        %v5143 = vunpack.c.h.b16 %v1569
        %v5144 = vunpack.c.l.b16 %v1570
        %v5145 = vunpack.c.h.b16 %v1570
        %v5146 = vunpack.c.l.b16 %v1571
        %v5147 = vunpack.c.h.b16 %v1571
        %v5148 = vunpack.c.l.b16 %v1572
        %v5149 = vunpack.c.h.b16 %v1572
        %v5150 = vunpack.c.l.b16 %v1573
        %v5151 = vunpack.c.h.b16 %v1573
        %v5152 = vunpack.c.l.b16 %v1574
        %v5153 = vunpack.c.l.b16 %v1575
        %v5154 = vunpack.c.h.b16 %v1575
        %v5155 = vunpack.c.l.b16 %v1576
        %v5156 = vunpack.c.h.b16 %v1576
        %v5157 = vunpack.c.l.b16 %v1577
        %v5158 = vunpack.c.h.b16 %v1577
        %v5159 = vunpack.c.l.b16 %v1578
        %v5160 = vunpack.c.h.b16 %v1578
        %v5161 = vunpack.c.l.b16 %v1579
        %v5162 = vunpack.c.h.b16 %v1579
        %v5163 = vunpack.c.l.b16 %v1580
        %v5164 = vunpack.c.h.b16 %v1580
        %v5165 = vunpack.c.l.b16 %v1581
        %v5166 = vunpack.c.h.b16 %v1581
        %v5167 = vunpack.c.l.b16 %v1582
        %v5168 = vunpack.c.h.b16 %v1582
        %v5169 = vunpack.c.l.b16 %v1583
        %v5170 = vunpack.c.l.b16 %v1584
        %v5171 = vunpack.c.h.b16 %v1584
        %v5172 = vunpack.c.l.b16 %v1585
        %v5173 = vunpack.c.h.b16 %v1585
        %v5174 = vunpack.c.l.b16 %v1586
        %v5175 = vunpack.c.h.b16 %v1586
        %v5176 = vunpack.c.l.b16 %v1587
        %v5177 = vunpack.c.h.b16 %v1587
        %v5178 = vunpack.c.l.b16 %v1588
        %v5179 = vunpack.c.h.b16 %v1588
        %v5180 = vunpack.c.l.b16 %v1589
        %v5181 = vunpack.c.h.b16 %v1589
        %v5182 = vunpack.c.l.b16 %v1590
        %v5183 = vunpack.c.h.b16 %v1590
        %v5184 = vunpack.c.l.b16 %v1591
        %v5185 = vunpack.c.h.b16 %v1591
        %v5186 = vunpack.c.l.b16 %v1592
        %v5187 = vunpack.c.l.b16 %v1593
        %v5188 = vunpack.c.h.b16 %v1593
        %v5189 = vunpack.c.l.b16 %v1594
        %v5190 = vunpack.c.h.b16 %v1594
        %v5191 = vunpack.c.l.b16 %v1595
        %v5192 = vunpack.c.h.b16 %v1595
        %v5193 = vunpack.c.l.b16 %v1596
        %v5194 = vunpack.c.h.b16 %v1596
        %v5195 = vunpack.c.l.b16 %v1597
        %v5196 = vunpack.c.h.b16 %v1597
        %v5197 = vunpack.c.l.b16 %v1598
        %v5198 = vunpack.c.h.b16 %v1598
        %v5199 = vunpack.c.l.b16 %v1599
        %v5200 = vunpack.c.h.b16 %v1599
        %v5201 = vunpack.c.l.b16 %v1600
        %v5202 = vunpack.c.h.b16 %v1600
        %v5203 = vunpack.c.l.b16 %v1601
        %v5204 = vunpack.c.l.b16 %v1602
        %v5205 = vunpack.c.h.b16 %v1602
        %v5206 = vunpack.c.l.b16 %v1603
        %v5207 = vunpack.c.h.b16 %v1603
        %v5208 = vunpack.c.l.b16 %v1604
        %v5209 = vunpack.c.h.b16 %v1604
        %v5210 = vunpack.c.l.b16 %v1605
        %v5211 = vunpack.c.h.b16 %v1605
        %v5212 = vunpack.c.l.b16 %v1606
        %v5213 = vunpack.c.h.b16 %v1606
        %v5214 = vunpack.c.l.b16 %v1607
        %v5215 = vunpack.c.h.b16 %v1607
        %v5216 = vunpack.c.l.b16 %v1608
        %v5217 = vunpack.c.h.b16 %v1608
        %v5218 = vunpack.c.l.b16 %v1609
        %v5219 = vunpack.c.h.b16 %v1609
        %v5220 = vunpack.c.l.b16 %v1610
        %v5221 = vunpack.c.l.b16 %v1611
        %v5222 = vunpack.c.h.b16 %v1611
        %v5223 = vunpack.c.l.b16 %v1612
        %v5224 = vunpack.c.h.b16 %v1612
        %v5225 = vunpack.c.l.b16 %v1613
        %v5226 = vunpack.c.h.b16 %v1613
        %v5227 = vunpack.c.l.b16 %v1614
        %v5228 = vunpack.c.h.b16 %v1614
        %v5229 = vunpack.c.l.b16 %v1615
        %v5230 = vunpack.c.h.b16 %v1615
        %v5231 = vunpack.c.l.b16 %v1616
        %v5232 = vunpack.c.h.b16 %v1616
        %v5233 = vunpack.c.l.b16 %v1617
        %v5234 = vunpack.c.h.b16 %v1617
        %v5235 = vunpack.c.l.b16 %v1618
        %v5236 = vunpack.c.h.b16 %v1618
        %v5237 = vunpack.c.l.b16 %v1619
        %v5238 = vunpack.c.l.b16 %v1620
        %v5239 = vunpack.c.h.b16 %v1620
        %v5240 = vunpack.c.l.b16 %v1621
        %v5241 = vunpack.c.h.b16 %v1621
        %v5242 = vunpack.c.l.b16 %v1622
        %v5243 = vunpack.c.h.b16 %v1622
        %v5244 = vunpack.c.l.b16 %v1623
        %v5245 = vunpack.c.h.b16 %v1623
        %v5246 = vunpack.c.l.b16 %v1624
        %v5247 = vunpack.c.h.b16 %v1624
        %v5248 = vunpack.c.l.b16 %v1625
        %v5249 = vunpack.c.h.b16 %v1625
        %v5250 = vunpack.c.l.b16 %v1626
        %v5251 = vunpack.c.h.b16 %v1626
        %v5252 = vunpack.c.l.b16 %v1627
        %v5253 = vunpack.c.h.b16 %v1627
        %v5254 = vunpack.c.l.b16 %v1628
        %v5255 = vunpack.c.l.b16 %v1629
        %v5256 = vunpack.c.h.b16 %v1629
        %v5257 = vunpack.c.l.b16 %v1630
        %v5258 = vunpack.c.h.b16 %v1630
        %v5259 = vunpack.c.l.b16 %v1631
        %v5260 = vunpack.c.h.b16 %v1631
        %v5261 = vunpack.c.l.b16 %v1632
        %v5262 = vunpack.c.h.b16 %v1632
        %v5263 = vunpack.c.l.b16 %v1633
        %v5264 = vunpack.c.h.b16 %v1633
        %v5265 = vunpack.c.l.b16 %v1634
        %v5266 = vunpack.c.h.b16 %v1634
        %v5267 = vunpack.c.l.b16 %v1635
        %v5268 = vunpack.c.h.b16 %v1635
        %v5269 = vunpack.c.l.b16 %v1636
        %v5270 = vunpack.c.h.b16 %v1636
        %v5271 = vunpack.c.l.b16 %v1637
        %v5272 = vunpack.c.l.b16 %v1638
        %v5273 = vunpack.c.h.b16 %v1638
        %v5274 = vunpack.c.l.b16 %v1639
        %v5275 = vunpack.c.h.b16 %v1639
        %v5276 = vunpack.c.l.b16 %v1640
        %v5277 = vunpack.c.h.b16 %v1640
        %v5278 = vunpack.c.l.b16 %v1641
        %v5279 = vunpack.c.h.b16 %v1641
        %v5280 = vunpack.c.l.b16 %v1642
        %v5281 = vunpack.c.h.b16 %v1642
        %v5282 = vunpack.c.l.b16 %v1643
        %v5283 = vunpack.c.h.b16 %v1643
        %v5284 = vunpack.c.l.b16 %v1644
        %v5285 = vunpack.c.h.b16 %v1644
        %v5286 = vunpack.c.l.b16 %v1645
        %v5287 = vunpack.c.h.b16 %v1645
        %v5288 = vunpack.c.l.b16 %v1646
        %v5289 = vunpack.c.l.b16 %v1647
        %v5290 = vunpack.c.h.b16 %v1647
        %v5291 = vunpack.c.l.b16 %v1648
        %v5292 = vunpack.c.h.b16 %v1648
        %v5293 = vunpack.c.l.b16 %v1649
        %v5294 = vunpack.c.h.b16 %v1649
        %v5295 = vunpack.c.l.b16 %v1650
        %v5296 = vunpack.c.h.b16 %v1650
        %v5297 = vunpack.c.l.b16 %v1651
        %v5298 = vunpack.c.h.b16 %v1651
        %v5299 = vunpack.c.l.b16 %v1652
        %v5300 = vunpack.c.h.b16 %v1652
        %v5301 = vunpack.c.l.b16 %v1653
        %v5302 = vunpack.c.h.b16 %v1653
        %v5303 = vunpack.c.l.b16 %v1654
        %v5304 = vunpack.c.h.b16 %v1654
        %v5305 = vunpack.c.l.b16 %v1655
        %v5306 = vunpack.c.l.b16 %v1656
        %v5307 = vunpack.c.h.b16 %v1656
        %v5308 = vunpack.c.l.b16 %v1657
        %v5309 = vunpack.c.h.b16 %v1657
        %v5310 = vunpack.c.l.b16 %v1658
        %v5311 = vunpack.c.h.b16 %v1658
        %v5312 = vunpack.c.l.b16 %v1659
        %v5313 = vunpack.c.h.b16 %v1659
        %v5314 = vunpack.c.l.b16 %v1660
        %v5315 = vunpack.c.h.b16 %v1660
        %v5316 = vunpack.c.l.b16 %v1661
        %v5317 = vunpack.c.h.b16 %v1661
        %v5318 = vunpack.c.l.b16 %v1662
        %v5319 = vunpack.c.h.b16 %v1662
        %v5320 = vunpack.c.l.b16 %v1663
        %v5321 = vunpack.c.h.b16 %v1663
        %v5322 = vunpack.c.l.b16 %v1664
        %v5323 = vunpack.c.l.b16 %v1665
        %v5324 = vunpack.c.h.b16 %v1665
        %v5325 = vunpack.c.l.b16 %v1666
        %v5326 = vunpack.c.h.b16 %v1666
        %v5327 = vunpack.c.l.b16 %v1667
        %v5328 = vunpack.c.h.b16 %v1667
        %v5329 = vunpack.c.l.b16 %v1668
        %v5330 = vunpack.c.h.b16 %v1668
        %v5331 = vunpack.c.l.b16 %v1669
        %v5332 = vunpack.c.h.b16 %v1669
        %v5333 = vunpack.c.l.b16 %v1670
        %v5334 = vunpack.c.h.b16 %v1670
        %v5335 = vunpack.c.l.b16 %v1671
        %v5336 = vunpack.c.h.b16 %v1671
        %v5337 = vunpack.c.l.b16 %v1672
        %v5338 = vunpack.c.h.b16 %v1672
        %v5339 = vunpack.c.l.b16 %v1673
        %v5340 = vunpack.c.l.b16 %v1674
        %v5341 = vunpack.c.h.b16 %v1674
        %v5342 = vunpack.c.l.b16 %v1675
        %v5343 = vunpack.c.h.b16 %v1675
        %v5344 = vunpack.c.l.b16 %v1676
        %v5345 = vunpack.c.h.b16 %v1676
        %v5346 = vunpack.c.l.b16 %v1677
        %v5347 = vunpack.c.h.b16 %v1677
        %v5348 = vunpack.c.l.b16 %v1678
        %v5349 = vunpack.c.h.b16 %v1678
        %v5350 = vunpack.c.l.b16 %v1679
        %v5351 = vunpack.c.h.b16 %v1679
        %v5352 = vunpack.c.l.b16 %v1680
        %v5353 = vunpack.c.h.b16 %v1680
        %v5354 = vunpack.c.l.b16 %v1681
        %v5355 = vunpack.c.h.b16 %v1681
        %v5356 = vunpack.c.l.b16 %v1682
        %v5357 = vunpack.c.l.b16 %v1683
        %v5358 = vunpack.c.h.b16 %v1683
        %v5359 = vunpack.c.l.b16 %v1684
        %v5360 = vunpack.c.h.b16 %v1684
        %v5361 = vunpack.c.l.b16 %v1685
        %v5362 = vunpack.c.h.b16 %v1685
        %v5363 = vunpack.c.l.b16 %v1686
        %v5364 = vunpack.c.h.b16 %v1686
        %v5365 = vunpack.c.l.b16 %v1687
        %v5366 = vunpack.c.h.b16 %v1687
        %v5367 = vunpack.c.l.b16 %v1688
        %v5368 = vunpack.c.h.b16 %v1688
        %v5369 = vunpack.c.l.b16 %v1689
        %v5370 = vunpack.c.h.b16 %v1689
        %v5371 = vunpack.c.l.b16 %v1690
        %v5372 = vunpack.c.h.b16 %v1690
        %v5373 = vunpack.c.l.b16 %v1691
        %v5374 = vunpack.c.l.b16 %v1692
        %v5375 = vunpack.c.h.b16 %v1692
        %v5376 = vunpack.c.l.b16 %v1693
        %v5377 = vunpack.c.h.b16 %v1693
        %v5378 = vunpack.c.l.b16 %v1694
        %v5379 = vunpack.c.h.b16 %v1694
        %v5380 = vunpack.c.l.b16 %v1695
        %v5381 = vunpack.c.h.b16 %v1695
        %v5382 = vunpack.c.l.b16 %v1696
        %v5383 = vunpack.c.h.b16 %v1696
        %v5384 = vunpack.c.l.b16 %v1697
        %v5385 = vunpack.c.h.b16 %v1697
        %v5386 = vunpack.c.l.b16 %v1698
        %v5387 = vunpack.c.h.b16 %v1698
        %v5388 = vunpack.c.l.b16 %v1699
        %v5389 = vunpack.c.h.b16 %v1699
        %v5390 = vunpack.c.l.b16 %v1700
        %v5391 = vunpack.c.l.b16 %v1701
        %v5392 = vunpack.c.h.b16 %v1701
        %v5393 = vunpack.c.l.b16 %v1702
        %v5394 = vunpack.c.h.b16 %v1702
        %v5395 = vunpack.c.l.b16 %v1703
        %v5396 = vunpack.c.h.b16 %v1703
        %v5397 = vunpack.c.l.b16 %v1704
        %v5398 = vunpack.c.h.b16 %v1704
        %v5399 = vunpack.c.l.b16 %v1705
        %v5400 = vunpack.c.h.b16 %v1705
        %v5401 = vunpack.c.l.b16 %v1706
        %v5402 = vunpack.c.h.b16 %v1706
        %v5403 = vunpack.c.l.b16 %v1707
        %v5404 = vunpack.c.h.b16 %v1707
        %v5405 = vunpack.c.l.b16 %v1708
        %v5406 = vunpack.c.h.b16 %v1708
        %v5407 = vunpack.c.l.b16 %v1709
        %v5408 = vunpack.c.l.b16 %v1710
        %v5409 = vunpack.c.h.b16 %v1710
        %v5410 = vunpack.c.l.b16 %v1711
        %v5411 = vunpack.c.h.b16 %v1711
        %v5412 = vunpack.c.l.b16 %v1712
        %v5413 = vunpack.c.h.b16 %v1712
        %v5414 = vunpack.c.l.b16 %v1713
        %v5415 = vunpack.c.h.b16 %v1713
        %v5416 = vunpack.c.l.b16 %v1714
        %v5417 = vunpack.c.h.b16 %v1714
        %v5418 = vunpack.c.l.b16 %v1715
        %v5419 = vunpack.c.h.b16 %v1715
        %v5420 = vunpack.c.l.b16 %v1716
        %v5421 = vunpack.c.h.b16 %v1716
        %v5422 = vunpack.c.l.b16 %v1717
        %v5423 = vunpack.c.h.b16 %v1717
        %v5424 = vunpack.c.l.b16 %v1718
        %v5425 = vunpack.c.l.b16 %v1719
        %v5426 = vunpack.c.h.b16 %v1719
        %v5427 = vunpack.c.l.b16 %v1720
        %v5428 = vunpack.c.h.b16 %v1720
        %v5429 = vunpack.c.l.b16 %v1721
        %v5430 = vunpack.c.h.b16 %v1721
        %v5431 = vunpack.c.l.b16 %v1722
        %v5432 = vunpack.c.h.b16 %v1722
        %v5433 = vunpack.c.l.b16 %v1723
        %v5434 = vunpack.c.h.b16 %v1723
        %v5435 = vunpack.c.l.b16 %v1724
        %v5436 = vunpack.c.h.b16 %v1724
        %v5437 = vunpack.c.l.b16 %v1725
        %v5438 = vunpack.c.h.b16 %v1725
        %v5439 = vunpack.c.l.b16 %v1726
        %v5440 = vunpack.c.h.b16 %v1726
        %v5441 = vunpack.c.l.b16 %v1727
        %v5442 = vunpack.c.l.b16 %v1728
        %v5443 = vunpack.c.h.b16 %v1728
        %v5444 = vunpack.c.l.b16 %v1729
        %v5445 = vunpack.c.h.b16 %v1729
        %v5446 = vunpack.c.l.b16 %v1730
        %v5447 = vunpack.c.h.b16 %v1730
        %v5448 = vunpack.c.l.b16 %v1731
        %v5449 = vunpack.c.h.b16 %v1731
        %v5450 = vunpack.c.l.b16 %v1732
        %v5451 = vunpack.c.h.b16 %v1732
        %v5452 = vunpack.c.l.b16 %v1733
        %v5453 = vunpack.c.h.b16 %v1733
        %v5454 = vunpack.c.l.b16 %v1734
        %v5455 = vunpack.c.h.b16 %v1734
        %v5456 = vunpack.c.l.b16 %v1735
        %v5457 = vunpack.c.h.b16 %v1735
        %v5458 = vunpack.c.l.b16 %v1736
        %v5459 = vunpack.c.l.b16 %v1737
        %v5460 = vunpack.c.h.b16 %v1737
        %v5461 = vunpack.c.l.b16 %v1738
        %v5462 = vunpack.c.h.b16 %v1738
        %v5463 = vunpack.c.l.b16 %v1739
        %v5464 = vunpack.c.h.b16 %v1739
        %v5465 = vunpack.c.l.b16 %v1740
        %v5466 = vunpack.c.h.b16 %v1740
        %v5467 = vunpack.c.l.b16 %v1741
        %v5468 = vunpack.c.h.b16 %v1741
        %v5469 = vunpack.c.l.b16 %v1742
        %v5470 = vunpack.c.h.b16 %v1742
        %v5471 = vunpack.c.l.b16 %v1743
        %v5472 = vunpack.c.h.b16 %v1743
        %v5473 = vunpack.c.l.b16 %v1744
        %v5474 = vunpack.c.h.b16 %v1744
        %v5475 = vunpack.c.l.b16 %v1745
        %v5476 = vunpack.c.l.b16 %v1746
        %v5477 = vunpack.c.h.b16 %v1746
        %v5478 = vunpack.c.l.b16 %v1747
        %v5479 = vunpack.c.h.b16 %v1747
        %v5480 = vunpack.c.l.b16 %v1748
        %v5481 = vunpack.c.h.b16 %v1748
        %v5482 = vunpack.c.l.b16 %v1749
        %v5483 = vunpack.c.h.b16 %v1749
        %v5484 = vunpack.c.l.b16 %v1750
        %v5485 = vunpack.c.h.b16 %v1750
        %v5486 = vunpack.c.l.b16 %v1751
        %v5487 = vunpack.c.h.b16 %v1751
        %v5488 = vunpack.c.l.b16 %v1752
        %v5489 = vunpack.c.h.b16 %v1752
        %v5490 = vunpack.c.l.b16 %v1753
        %v5491 = vunpack.c.h.b16 %v1753
        %v5492 = vunpack.c.l.b16 %v1754
        %v5493 = vunpack.c.l.b16 %v1755
        %v5494 = vunpack.c.h.b16 %v1755
        %v5495 = vunpack.c.l.b16 %v1756
        %v5496 = vunpack.c.h.b16 %v1756
        %v5497 = vunpack.c.l.b16 %v1757
        %v5498 = vunpack.c.h.b16 %v1757
        %v5499 = vunpack.c.l.b16 %v1758
        %v5500 = vunpack.c.h.b16 %v1758
        %v5501 = vunpack.c.l.b16 %v1759
        %v5502 = vunpack.c.h.b16 %v1759
        %v5503 = vunpack.c.l.b16 %v1760
        %v5504 = vunpack.c.h.b16 %v1760
        %v5505 = vunpack.c.l.b16 %v1761
        %v5506 = vunpack.c.h.b16 %v1761
        %v5507 = vunpack.c.l.b16 %v1762
        %v5508 = vunpack.c.h.b16 %v1762
        %v5509 = vunpack.c.l.b16 %v1763
        %v5510 = vunpack.c.l.b16 %v1764
        %v5511 = vunpack.c.h.b16 %v1764
        %v5512 = vunpack.c.l.b16 %v1765
        %v5513 = vunpack.c.h.b16 %v1765
        %v5514 = vunpack.c.l.b16 %v1766
        %v5515 = vunpack.c.h.b16 %v1766
        %v5516 = vunpack.c.l.b16 %v1767
        %v5517 = vunpack.c.h.b16 %v1767
        %v5518 = vunpack.c.l.b16 %v1768
        %v5519 = vunpack.c.h.b16 %v1768
        %v5520 = vunpack.c.l.b16 %v1769
        %v5521 = vunpack.c.h.b16 %v1769
        %v5522 = vunpack.c.l.b16 %v1770
        %v5523 = vunpack.c.h.b16 %v1770
        %v5524 = vunpack.c.l.b16 %v1771
        %v5525 = vunpack.c.h.b16 %v1771
        %v5526 = vunpack.c.l.b16 %v1772
        %v5527 = vunpack.c.l.b16 %v1773
        %v5528 = vunpack.c.h.b16 %v1773
        %v5529 = vunpack.c.l.b16 %v1774
        %v5530 = vunpack.c.h.b16 %v1774
        %v5531 = vunpack.c.l.b16 %v1775
        %v5532 = vunpack.c.h.b16 %v1775
        %v5533 = vunpack.c.l.b16 %v1776
        %v5534 = vunpack.c.h.b16 %v1776
        %v5535 = vunpack.c.l.b16 %v1777
        %v5536 = vunpack.c.h.b16 %v1777
        %v5537 = vunpack.c.l.b16 %v1778
        %v5538 = vunpack.c.h.b16 %v1778
        %v5539 = vunpack.c.l.b16 %v1779
        %v5540 = vunpack.c.h.b16 %v1779
        %v5541 = vunpack.c.l.b16 %v1780
        %v5542 = vunpack.c.h.b16 %v1780
        %v5543 = vunpack.c.l.b16 %v1781
        %v5544 = vunpack.c.l.b16 %v1782
        %v5545 = vunpack.c.h.b16 %v1782
        %v5546 = vunpack.c.l.b16 %v1783
        %v5547 = vunpack.c.h.b16 %v1783
        %v5548 = vunpack.c.l.b16 %v1784
        %v5549 = vunpack.c.h.b16 %v1784
        %v5550 = vunpack.c.l.b16 %v1785
        %v5551 = vunpack.c.h.b16 %v1785
        %v5552 = vunpack.c.l.b16 %v1786
        %v5553 = vunpack.c.h.b16 %v1786
        %v5554 = vunpack.c.l.b16 %v1787
        %v5555 = vunpack.c.h.b16 %v1787
        %v5556 = vunpack.c.l.b16 %v1788
        %v5557 = vunpack.c.h.b16 %v1788
        %v5558 = vunpack.c.l.b16 %v1789
        %v5559 = vunpack.c.h.b16 %v1789
        %v5560 = vunpack.c.l.b16 %v1790
        %v5561 = vunpack.c.l.b16 %v1791
        %v5562 = vunpack.c.h.b16 %v1791
        %v5563 = vunpack.c.l.b16 %v1792
        %v5564 = vunpack.c.h.b16 %v1792
        %v5565 = vunpack.c.l.b16 %v1793
        %v5566 = vunpack.c.h.b16 %v1793
        %v5567 = vunpack.c.l.b16 %v1794
        %v5568 = vunpack.c.h.b16 %v1794
        %v5569 = vunpack.c.l.b16 %v1795
        %v5570 = vunpack.c.h.b16 %v1795
        %v5571 = vunpack.c.l.b16 %v1796
        %v5572 = vunpack.c.h.b16 %v1796
        %v5573 = vunpack.c.l.b16 %v1797
        %v5574 = vunpack.c.h.b16 %v1797
        %v5575 = vunpack.c.l.b16 %v1798
        %v5576 = vunpack.c.h.b16 %v1798
        %v5577 = vunpack.c.l.b16 %v1799
        %v5578 = vunpack.c.l.b16 %v1800
        %v5579 = vunpack.c.h.b16 %v1800
        %v5580 = vunpack.c.l.b16 %v1801
        %v5581 = vunpack.c.h.b16 %v1801
        %v5582 = vunpack.c.l.b16 %v1802
        %v5583 = vunpack.c.h.b16 %v1802
        %v5584 = vunpack.c.l.b16 %v1803
        %v5585 = vunpack.c.h.b16 %v1803
        %v5586 = vunpack.c.l.b16 %v1804
        %v5587 = vunpack.c.h.b16 %v1804
        %v5588 = vunpack.c.l.b16 %v1805
        %v5589 = vunpack.c.h.b16 %v1805
        %v5590 = vunpack.c.l.b16 %v1806
        %v5591 = vunpack.c.h.b16 %v1806
        %v5592 = vunpack.c.l.b16 %v1807
        %v5593 = vunpack.c.h.b16 %v1807
        %v5594 = vunpack.c.l.b16 %v1808
        %v5595 = vunpack.c.l.b16 %v1809
        %v5596 = vunpack.c.h.b16 %v1809
        %v5597 = vunpack.c.l.b16 %v1810
        %v5598 = vunpack.c.h.b16 %v1810
        %v5599 = vunpack.c.l.b16 %v1811
        %v5600 = vunpack.c.h.b16 %v1811
        %v5601 = vunpack.c.l.b16 %v1812
        %v5602 = vunpack.c.h.b16 %v1812
        %v5603 = vunpack.c.l.b16 %v1813
        %v5604 = vunpack.c.h.b16 %v1813
        %v5605 = vunpack.c.l.b16 %v1814
        %v5606 = vunpack.c.h.b16 %v1814
        %v5607 = vunpack.c.l.b16 %v1815
        %v5608 = vunpack.c.h.b16 %v1815
        %v5609 = vunpack.c.l.b16 %v1816
        %v5610 = vunpack.c.h.b16 %v1816
        %v5611 = vunpack.c.l.b16 %v1817
        %v5612 = vunpack.c.l.b16 %v1818
        %v5613 = vunpack.c.h.b16 %v1818
        %v5614 = vunpack.c.l.b16 %v1819
        %v5615 = vunpack.c.h.b16 %v1819
        %v5616 = vunpack.c.l.b16 %v1820
        %v5617 = vunpack.c.h.b16 %v1820
        %v5618 = vunpack.c.l.b16 %v1821
        %v5619 = vunpack.c.h.b16 %v1821
        %v5620 = vunpack.c.l.b16 %v1822
        %v5621 = vunpack.c.h.b16 %v1822
        %v5622 = vunpack.c.l.b16 %v1823
        %v5623 = vunpack.c.h.b16 %v1823
        %v5624 = vunpack.c.l.b16 %v1824
        %v5625 = vunpack.c.h.b16 %v1824
        %v5626 = vunpack.c.l.b16 %v1825
        %v5627 = vunpack.c.h.b16 %v1825
        %v5628 = vunpack.c.l.b16 %v1826
        %v5629 = vunpack.c.l.b16 %v1827
        %v5630 = vunpack.c.h.b16 %v1827
        %v5631 = vunpack.c.l.b16 %v1828
        %v5632 = vunpack.c.h.b16 %v1828
        %v5633 = vunpack.c.l.b16 %v1829
        %v5634 = vunpack.c.h.b16 %v1829
        %v5635 = vunpack.c.l.b16 %v1830
        %v5636 = vunpack.c.h.b16 %v1830
        %v5637 = vunpack.c.l.b16 %v1831
        %v5638 = vunpack.c.h.b16 %v1831
        %v5639 = vunpack.c.l.b16 %v1832
        %v5640 = vunpack.c.h.b16 %v1832
        %v5641 = vunpack.c.l.b16 %v1833
        %v5642 = vunpack.c.h.b16 %v1833
        %v5643 = vunpack.c.l.b16 %v1834
        %v5644 = vunpack.c.h.b16 %v1834
        %v5645 = vunpack.c.l.b16 %v1835
        %v5646 = vunpack.c.l.b16 %v1836
        %v5647 = vunpack.c.h.b16 %v1836
        %v5648 = vunpack.c.l.b16 %v1837
        %v5649 = vunpack.c.h.b16 %v1837
        %v5650 = vunpack.c.l.b16 %v1838
        %v5651 = vunpack.c.h.b16 %v1838
        %v5652 = vunpack.c.l.b16 %v1839
        %v5653 = vunpack.c.h.b16 %v1839
        %v5654 = vunpack.c.l.b16 %v1840
        %v5655 = vunpack.c.h.b16 %v1840
        %v5656 = vunpack.c.l.b16 %v1841
        %v5657 = vunpack.c.h.b16 %v1841
        %v5658 = vunpack.c.l.b16 %v1842
        %v5659 = vunpack.c.h.b16 %v1842
        %v5660 = vunpack.c.l.b16 %v1843
        %v5661 = vunpack.c.h.b16 %v1843
        %v5662 = vunpack.c.l.b16 %v1844
        %v5663 = vunpack.c.l.b16 %v1845
        %v5664 = vunpack.c.h.b16 %v1845
        %v5665 = vunpack.c.l.b16 %v1846
        %v5666 = vunpack.c.h.b16 %v1846
        %v5667 = vunpack.c.l.b16 %v1847
        %v5668 = vunpack.c.h.b16 %v1847
        %v5669 = vunpack.c.l.b16 %v1848
        %v5670 = vunpack.c.h.b16 %v1848
        %v5671 = vunpack.c.l.b16 %v1849
        %v5672 = vunpack.c.h.b16 %v1849
        %v5673 = vunpack.c.l.b16 %v1850
        %v5674 = vunpack.c.h.b16 %v1850
        %v5675 = vunpack.c.l.b16 %v1851
        %v5676 = vunpack.c.h.b16 %v1851
        %v5677 = vunpack.c.l.b16 %v1852
        %v5678 = vunpack.c.h.b16 %v1852
        %v5679 = vunpack.c.l.b16 %v1853
        %v5680 = vunpack.c.l.b16 %v1854
        %v5681 = vunpack.c.h.b16 %v1854
        %v5682 = vunpack.c.l.b16 %v1855
        %v5683 = vunpack.c.h.b16 %v1855
        %v5684 = vunpack.c.l.b16 %v1856
        %v5685 = vunpack.c.h.b16 %v1856
        %v5686 = vunpack.c.l.b16 %v1857
        %v5687 = vunpack.c.h.b16 %v1857
        %v5688 = vunpack.c.l.b16 %v1858
        %v5689 = vunpack.c.h.b16 %v1858
        %v5690 = vunpack.c.l.b16 %v1859
        %v5691 = vunpack.c.h.b16 %v1859
        %v5692 = vunpack.c.l.b16 %v1860
        %v5693 = vunpack.c.h.b16 %v1860
        %v5694 = vunpack.c.l.b16 %v1861
        %v5695 = vunpack.c.h.b16 %v1861
        %v5696 = vunpack.c.l.b16 %v1862
        %v5697 = vunpack.c.l.b16 %v1863
        %v5698 = vunpack.c.h.b16 %v1863
        %v5699 = vunpack.c.l.b16 %v1864
        %v5700 = vunpack.c.h.b16 %v1864
        %v5701 = vunpack.c.l.b16 %v1865
        %v5702 = vunpack.c.h.b16 %v1865
        %v5703 = vunpack.c.l.b16 %v1866
        %v5704 = vunpack.c.h.b16 %v1866
        %v5705 = vunpack.c.l.b16 %v1867
        %v5706 = vunpack.c.h.b16 %v1867
        %v5707 = vunpack.c.l.b16 %v1868
        %v5708 = vunpack.c.h.b16 %v1868
        %v5709 = vunpack.c.l.b16 %v1869
        %v5710 = vunpack.c.h.b16 %v1869
        %v5711 = vunpack.c.l.b16 %v1870
        %v5712 = vunpack.c.h.b16 %v1870
        %v5713 = vunpack.c.l.b16 %v1871
        %v5714 = vunpack.c.l.b16 %v1872
        %v5715 = vunpack.c.h.b16 %v1872
        %v5716 = vunpack.c.l.b16 %v1873
        %v5717 = vunpack.c.h.b16 %v1873
        %v5718 = vunpack.c.l.b16 %v1874
        %v5719 = vunpack.c.h.b16 %v1874
        %v5720 = vunpack.c.l.b16 %v1875
        %v5721 = vunpack.c.h.b16 %v1875
        %v5722 = vunpack.c.l.b16 %v1876
        %v5723 = vunpack.c.h.b16 %v1876
        %v5724 = vunpack.c.l.b16 %v1877
        %v5725 = vunpack.c.h.b16 %v1877
        %v5726 = vunpack.c.l.b16 %v1878
        %v5727 = vunpack.c.h.b16 %v1878
        %v5728 = vunpack.c.l.b16 %v1879
        %v5729 = vunpack.c.h.b16 %v1879
        %v5730 = vunpack.c.l.b16 %v1880
        %v5731 = vunpack.c.l.b16 %v1881
        %v5732 = vunpack.c.h.b16 %v1881
        %v5733 = vunpack.c.l.b16 %v1882
        %v5734 = vunpack.c.h.b16 %v1882
        %v5735 = vunpack.c.l.b16 %v1883
        %v5736 = vunpack.c.h.b16 %v1883
        %v5737 = vunpack.c.l.b16 %v1884
        %v5738 = vunpack.c.h.b16 %v1884
        %v5739 = vunpack.c.l.b16 %v1885
        %v5740 = vunpack.c.h.b16 %v1885
        %v5741 = vunpack.c.l.b16 %v1886
        %v5742 = vunpack.c.h.b16 %v1886
        %v5743 = vunpack.c.l.b16 %v1887
        %v5744 = vunpack.c.h.b16 %v1887
        %v5745 = vunpack.c.l.b16 %v1888
        %v5746 = vunpack.c.h.b16 %v1888
        %v5747 = vunpack.c.l.b16 %v1889
        %v5748 = vunpack.c.l.b16 %v1890
        %v5749 = vunpack.c.h.b16 %v1890
        %v5750 = vunpack.c.l.b16 %v1891
        %v5751 = vunpack.c.h.b16 %v1891
        %v5752 = vunpack.c.l.b16 %v1892
        %v5753 = vunpack.c.h.b16 %v1892
        %v5754 = vunpack.c.l.b16 %v1893
        %v5755 = vunpack.c.h.b16 %v1893
        %v5756 = vunpack.c.l.b16 %v1894
        %v5757 = vunpack.c.h.b16 %v1894
        %v5758 = vunpack.c.l.b16 %v1895
        %v5759 = vunpack.c.h.b16 %v1895
        %v5760 = vunpack.c.l.b16 %v1896
        %v5761 = vunpack.c.h.b16 %v1896
        %v5762 = vunpack.c.l.b16 %v1897
        %v5763 = vunpack.c.h.b16 %v1897
        %v5764 = vunpack.c.l.b16 %v1898
        %v5765 = vunpack.c.l.b16 %v1899
        %v5766 = vunpack.c.h.b16 %v1899
        %v5767 = vunpack.c.l.b16 %v1900
        %v5768 = vunpack.c.h.b16 %v1900
        %v5769 = vunpack.c.l.b16 %v1901
        %v5770 = vunpack.c.h.b16 %v1901
        %v5771 = vunpack.c.l.b16 %v1902
        %v5772 = vunpack.c.h.b16 %v1902
        %v5773 = vunpack.c.l.b16 %v1903
        %v5774 = vunpack.c.h.b16 %v1903
        %v5775 = vunpack.c.l.b16 %v1904
        %v5776 = vunpack.c.h.b16 %v1904
        %v5777 = vunpack.c.l.b16 %v1905
        %v5778 = vunpack.c.h.b16 %v1905
        %v5779 = vunpack.c.l.b16 %v1906
        %v5780 = vunpack.c.h.b16 %v1906
        %v5781 = vunpack.c.l.b16 %v1907
        %v5782 = vunpack.c.l.b16 %v1908
        %v5783 = vunpack.c.h.b16 %v1908
        %v5784 = vunpack.c.l.b16 %v1909
        %v5785 = vunpack.c.h.b16 %v1909
        %v5786 = vunpack.c.l.b16 %v1910
        %v5787 = vunpack.c.h.b16 %v1910
        %v5788 = vunpack.c.l.b16 %v1911
        %v5789 = vunpack.c.h.b16 %v1911
        %v5790 = vunpack.c.l.b16 %v1912
        %v5791 = vunpack.c.h.b16 %v1912
        %v5792 = vunpack.c.l.b16 %v1913
        %v5793 = vunpack.c.h.b16 %v1913
        %v5794 = vunpack.c.l.b16 %v1914
        %v5795 = vunpack.c.h.b16 %v1914
        %v5796 = vunpack.c.l.b16 %v1915
        %v5797 = vunpack.c.h.b16 %v1915
        %v5798 = vunpack.c.l.b16 %v1916
        %v5799 = vunpack.c.l.b16 %v1917
        %v5800 = vunpack.c.h.b16 %v1917
        %v5801 = vunpack.c.l.b16 %v1918
        %v5802 = vunpack.c.h.b16 %v1918
        %v5803 = vunpack.c.l.b16 %v1919
        %v5804 = vunpack.c.h.b16 %v1919
        %v5805 = vunpack.c.l.b16 %v1920
        %v5806 = vunpack.c.h.b16 %v1920
        %v5807 = vunpack.c.l.b16 %v1921
        %v5808 = vunpack.c.h.b16 %v1921
        %v5809 = vunpack.c.l.b16 %v1922
        %v5810 = vunpack.c.h.b16 %v1922
        %v5811 = vunpack.c.l.b16 %v1923
        %v5812 = vunpack.c.h.b16 %v1923
        %v5813 = vunpack.c.l.b16 %v1924
        %v5814 = vunpack.c.h.b16 %v1924
        %v5815 = vunpack.c.l.b16 %v1925
        %v5816 = vunpack.c.l.b16 %v1926
        %v5817 = vunpack.c.h.b16 %v1926
        %v5818 = vunpack.c.l.b16 %v1927
        %v5819 = vunpack.c.h.b16 %v1927
        %v5820 = vunpack.c.l.b16 %v1928
        %v5821 = vunpack.c.h.b16 %v1928
        %v5822 = vunpack.c.l.b16 %v1929
        %v5823 = vunpack.c.h.b16 %v1929
        %v5824 = vunpack.c.l.b16 %v1930
        %v5825 = vunpack.c.h.b16 %v1930
        %v5826 = vunpack.c.l.b16 %v1931
        %v5827 = vunpack.c.h.b16 %v1931
        %v5828 = vunpack.c.l.b16 %v1932
        %v5829 = vunpack.c.h.b16 %v1932
        %v5830 = vunpack.c.l.b16 %v1933
        %v5831 = vunpack.c.h.b16 %v1933
        %v5832 = vunpack.c.l.b16 %v1934
        %v5833 = vunpack.c.l.b16 %v1935
        %v5834 = vunpack.c.h.b16 %v1935
        %v5835 = vunpack.c.l.b16 %v1936
        %v5836 = vunpack.c.h.b16 %v1936
        %v5837 = vunpack.c.l.b16 %v1937
        %v5838 = vunpack.c.h.b16 %v1937
        %v5839 = vunpack.c.l.b16 %v1938
        %v5840 = vunpack.c.h.b16 %v1938
        %v5841 = vunpack.c.l.b16 %v1939
        %v5842 = vunpack.c.h.b16 %v1939
        %v5843 = vunpack.c.l.b16 %v1940
        %v5844 = vunpack.c.h.b16 %v1940
        %v5845 = vunpack.c.l.b16 %v1941
        %v5846 = vunpack.c.h.b16 %v1941
        %v5847 = vunpack.c.l.b16 %v1942
        %v5848 = vunpack.c.h.b16 %v1942
        %v5849 = vunpack.c.l.b16 %v1943
        %v5850 = vunpack.c.l.b16 %v1944
        %v5851 = vunpack.c.h.b16 %v1944
        %v5852 = vunpack.c.l.b16 %v1945
        %v5853 = vunpack.c.h.b16 %v1945
        %v5854 = vunpack.c.l.b16 %v1946
        %v5855 = vunpack.c.h.b16 %v1946
        %v5856 = vunpack.c.l.b16 %v1947
        %v5857 = vunpack.c.h.b16 %v1947
        %v5858 = vunpack.c.l.b16 %v1948
        %v5859 = vunpack.c.h.b16 %v1948
        %v5860 = vunpack.c.l.b16 %v1949
        %v5861 = vunpack.c.h.b16 %v1949
        %v5862 = vunpack.c.l.b16 %v1950
        %v5863 = vunpack.c.h.b16 %v1950
        %v5864 = vunpack.c.l.b16 %v1951
        %v5865 = vunpack.c.h.b16 %v1951
        %v5866 = vunpack.c.l.b16 %v1952
        %v5867 = vunpack.c.l.b16 %v1953
        %v5868 = vunpack.c.h.b16 %v1953
        %v5869 = vunpack.c.l.b16 %v1954
        %v5870 = vunpack.c.h.b16 %v1954
        %v5871 = vunpack.c.l.b16 %v1955
        %v5872 = vunpack.c.h.b16 %v1955
        %v5873 = vunpack.c.l.b16 %v1956
        %v5874 = vunpack.c.h.b16 %v1956
        %v5875 = vunpack.c.l.b16 %v1957
        %v5876 = vunpack.c.h.b16 %v1957
        %v5877 = vunpack.c.l.b16 %v1958
        %v5878 = vunpack.c.h.b16 %v1958
        %v5879 = vunpack.c.l.b16 %v1959
        %v5880 = vunpack.c.h.b16 %v1959
        %v5881 = vunpack.c.l.b16 %v1960
        %v5882 = vunpack.c.h.b16 %v1960
        %v5883 = vunpack.c.l.b16 %v1961
        %v5884 = vunpack.c.l.b16 %v1962
        %v5885 = vunpack.c.h.b16 %v1962
        %v5886 = vunpack.c.l.b16 %v1963
        %v5887 = vunpack.c.h.b16 %v1963
        %v5888 = vunpack.c.l.b16 %v1964
        %v5889 = vunpack.c.h.b16 %v1964
        %v5890 = vunpack.c.l.b16 %v1965
        %v5891 = vunpack.c.h.b16 %v1965
        %v5892 = vunpack.c.l.b16 %v1966
        %v5893 = vunpack.c.h.b16 %v1966
        %v5894 = vunpack.c.l.b16 %v1967
        %v5895 = vunpack.c.h.b16 %v1967
        %v5896 = vunpack.c.l.b16 %v1968
        %v5897 = vunpack.c.h.b16 %v1968
        %v5898 = vunpack.c.l.b16 %v1969
        %v5899 = vunpack.c.h.b16 %v1969
        %v5900 = vunpack.c.l.b16 %v1970
        %v5901 = vunpack.c.l.b16 %v1971
        %v5902 = vunpack.c.h.b16 %v1971
        %v5903 = vunpack.c.l.b16 %v1972
        %v5904 = vunpack.c.h.b16 %v1972
        %v5905 = vunpack.c.l.b16 %v1973
        %v5906 = vunpack.c.h.b16 %v1973
        %v5907 = vunpack.c.l.b16 %v1974
        %v5908 = vunpack.c.h.b16 %v1974
        %v5909 = vunpack.c.l.b16 %v1975
        %v5910 = vunpack.c.h.b16 %v1975
        %v5911 = vunpack.c.l.b16 %v1976
        %v5912 = vunpack.c.h.b16 %v1976
        %v5913 = vunpack.c.l.b16 %v1977
        %v5914 = vunpack.c.h.b16 %v1977
        %v5915 = vunpack.c.l.b16 %v1978
        %v5916 = vunpack.c.h.b16 %v1978
        %v5917 = vunpack.c.l.b16 %v1979
        %v5918 = vunpack.c.l.b16 %v1980
        %v5919 = vunpack.c.h.b16 %v1980
        %v5920 = vunpack.c.l.b16 %v1981
        %v5921 = vunpack.c.h.b16 %v1981
        %v5922 = vunpack.c.l.b16 %v1982
        %v5923 = vunpack.c.h.b16 %v1982
        %v5924 = vunpack.c.l.b16 %v1983
        %v5925 = vunpack.c.h.b16 %v1983
        %v5926 = vunpack.c.l.b16 %v1984
        %v5927 = vunpack.c.h.b16 %v1984
        %v5928 = vunpack.c.l.b16 %v1985
        %v5929 = vunpack.c.h.b16 %v1985
        %v5930 = vunpack.c.l.b16 %v1986
        %v5931 = vunpack.c.h.b16 %v1986
        %v5932 = vunpack.c.l.b16 %v1987
        %v5933 = vunpack.c.h.b16 %v1987
        %v5934 = vunpack.c.l.b16 %v1988
        %v5935 = vunpack.c.l.b16 %v1989
        %v5936 = vunpack.c.h.b16 %v1989
        %v5937 = vunpack.c.l.b16 %v1990
        %v5938 = vunpack.c.h.b16 %v1990
        %v5939 = vunpack.c.l.b16 %v1991
        %v5940 = vunpack.c.h.b16 %v1991
        %v5941 = vunpack.c.l.b16 %v1992
        %v5942 = vunpack.c.h.b16 %v1992
        %v5943 = vunpack.c.l.b16 %v1993
        %v5944 = vunpack.c.h.b16 %v1993
        %v5945 = vunpack.c.l.b16 %v1994
        %v5946 = vunpack.c.h.b16 %v1994
        %v5947 = vunpack.c.l.b16 %v1995
        %v5948 = vunpack.c.h.b16 %v1995
        %v5949 = vunpack.c.l.b16 %v1996
        %v5950 = vunpack.c.h.b16 %v1996
        %v5951 = vunpack.c.l.b16 %v1997
        %v5952 = vunpack.c.l.b16 %v1998
        %v5953 = vunpack.c.h.b16 %v1998
        %v5954 = vunpack.c.l.b16 %v1999
        %v5955 = vunpack.c.h.b16 %v1999
        %v5956 = vunpack.c.l.b16 %v2000
        %v5957 = vunpack.c.h.b16 %v2000
        %v5958 = vunpack.c.l.b16 %v2001
        %v5959 = vunpack.c.h.b16 %v2001
        %v5960 = vunpack.c.l.b16 %v2002
        %v5961 = vunpack.c.h.b16 %v2002
        %v5962 = vunpack.c.l.b16 %v2003
        %v5963 = vunpack.c.h.b16 %v2003
        %v5964 = vunpack.c.l.b16 %v2004
        %v5965 = vunpack.c.h.b16 %v2004
        %v5966 = vunpack.c.l.b16 %v2005
        %v5967 = vunpack.c.h.b16 %v2005
        %v5968 = vunpack.c.l.b16 %v2006
        %v5969 = vunpack.c.l.b16 %v2007
        %v5970 = vunpack.c.h.b16 %v2007
        %v5971 = vunpack.c.l.b16 %v2008
        %v5972 = vunpack.c.h.b16 %v2008
        %v5973 = vunpack.c.l.b16 %v2009
        %v5974 = vunpack.c.h.b16 %v2009
        %v5975 = vunpack.c.l.b16 %v2010
        %v5976 = vunpack.c.h.b16 %v2010
        %v5977 = vunpack.c.l.b16 %v2011
        %v5978 = vunpack.c.h.b16 %v2011
        %v5979 = vunpack.c.l.b16 %v2012
        %v5980 = vunpack.c.h.b16 %v2012
        %v5981 = vunpack.c.l.b16 %v2013
        %v5982 = vunpack.c.h.b16 %v2013
        %v5983 = vunpack.c.l.b16 %v2014
        %v5984 = vunpack.c.h.b16 %v2014
        %v5985 = vunpack.c.l.b16 %v2015
        %v5986 = vunpack.c.l.b16 %v2016
        %v5987 = vunpack.c.h.b16 %v2016
        %v5988 = vunpack.c.l.b16 %v2017
        %v5989 = vunpack.c.h.b16 %v2017
        %v5990 = vunpack.c.l.b16 %v2018
        %v5991 = vunpack.c.h.b16 %v2018
        %v5992 = vunpack.c.l.b16 %v2019
        %v5993 = vunpack.c.h.b16 %v2019
        %v5994 = vunpack.c.l.b16 %v2020
        %v5995 = vunpack.c.h.b16 %v2020
        %v5996 = vunpack.c.l.b16 %v2021
        %v5997 = vunpack.c.h.b16 %v2021
        %v5998 = vunpack.c.l.b16 %v2022
        %v5999 = vunpack.c.h.b16 %v2022
        %v6000 = vunpack.c.l.b16 %v2023
        %v6001 = vunpack.c.h.b16 %v2023
        %v6002 = vunpack.c.l.b16 %v2024
        %v6003 = vunpack.c.l.b16 %v2025
        %v6004 = vunpack.c.h.b16 %v2025
        %v6005 = vunpack.c.l.b16 %v2026
        %v6006 = vunpack.c.h.b16 %v2026
        %v6007 = vunpack.c.l.b16 %v2027
        %v6008 = vunpack.c.h.b16 %v2027
        %v6009 = vunpack.c.l.b16 %v2028
        %v6010 = vunpack.c.h.b16 %v2028
        %v6011 = vunpack.c.l.b16 %v2029
        %v6012 = vunpack.c.h.b16 %v2029
        %v6013 = vunpack.c.l.b16 %v2030
        %v6014 = vunpack.c.h.b16 %v2030
        %v6015 = vunpack.c.l.b16 %v2031
        %v6016 = vunpack.c.h.b16 %v2031
        %v6017 = vunpack.c.l.b16 %v2032
        %v6018 = vunpack.c.h.b16 %v2032
        %v6019 = vunpack.c.l.b16 %v2033
        %v6020 = vunpack.c.l.b16 %v2034
        %v6021 = vunpack.c.h.b16 %v2034
        %v6022 = vunpack.c.l.b16 %v2035
        %v6023 = vunpack.c.h.b16 %v2035
        %v6024 = vunpack.c.l.b16 %v2036
        %v6025 = vunpack.c.h.b16 %v2036
        %v6026 = vunpack.c.l.b16 %v2037
        %v6027 = vunpack.c.h.b16 %v2037
        %v6028 = vunpack.c.l.b16 %v2038
        %v6029 = vunpack.c.h.b16 %v2038
        %v6030 = vunpack.c.l.b16 %v2039
        %v6031 = vunpack.c.h.b16 %v2039
        %v6032 = vunpack.c.l.b16 %v2040
        %v6033 = vunpack.c.h.b16 %v2040
        %v6034 = vunpack.c.l.b16 %v2041
        %v6035 = vunpack.c.h.b16 %v2041
        %v6036 = vunpack.c.l.b16 %v2042
        %v6037 = vunpack.c.l.b16 %v2043
        %v6038 = vunpack.c.h.b16 %v2043
        %v6039 = vunpack.c.l.b16 %v2044
        %v6040 = vunpack.c.h.b16 %v2044
        %v6041 = vunpack.c.l.b16 %v2045
        %v6042 = vunpack.c.h.b16 %v2045
        %v6043 = vunpack.c.l.b16 %v2046
        %v6044 = vunpack.c.h.b16 %v2046
        %v6045 = vunpack.c.l.b16 %v2047
        %v6046 = vunpack.c.h.b16 %v2047
        %v6047 = vunpack.c.l.b16 %v2048
        %v6048 = vunpack.c.h.b16 %v2048
        %v6049 = vunpack.c.l.b16 %v2049
        %v6050 = vunpack.c.h.b16 %v2049
        %v6051 = vunpack.c.l.b16 %v2050
        %v6052 = vunpack.c.h.b16 %v2050
        %v6053 = vunpack.c.l.b16 %v2051
        %v6054 = vunpack.c.l.b16 %v2052
        %v6055 = vunpack.c.h.b16 %v2052
        %v6056 = vunpack.c.l.b16 %v2053
        %v6057 = vunpack.c.h.b16 %v2053
        %v6058 = vunpack.c.l.b16 %v2054
        %v6059 = vunpack.c.h.b16 %v2054
        %v6060 = vunpack.c.l.b16 %v2055
        %v6061 = vunpack.c.h.b16 %v2055
        %v6062 = vunpack.c.l.b16 %v2056
        %v6063 = vunpack.c.h.b16 %v2056
        %v6064 = vunpack.c.l.b16 %v2057
        %v6065 = vunpack.c.h.b16 %v2057
        %v6066 = vunpack.c.l.b16 %v2058
        %v6067 = vunpack.c.h.b16 %v2058
        %v6068 = vunpack.c.l.b16 %v2059
        %v6069 = vunpack.c.h.b16 %v2059
        %v6070 = vunpack.c.l.b16 %v2060
        %v6071 = vunpack.c.l.b16 %v2061
        %v6072 = vunpack.c.h.b16 %v2061
        %v6073 = vunpack.c.l.b16 %v2062
        %v6074 = vunpack.c.h.b16 %v2062
        %v6075 = vunpack.c.l.b16 %v2063
        %v6076 = vunpack.c.h.b16 %v2063
        %v6077 = vunpack.c.l.b16 %v2064
        %v6078 = vunpack.c.h.b16 %v2064
        %v6079 = vunpack.c.l.b16 %v2065
        %v6080 = vunpack.c.h.b16 %v2065
        %v6081 = vunpack.c.l.b16 %v2066
        %v6082 = vunpack.c.h.b16 %v2066
        %v6083 = vunpack.c.l.b16 %v2067
        %v6084 = vunpack.c.h.b16 %v2067
        %v6085 = vunpack.c.l.b16 %v2068
        %v6086 = vunpack.c.h.b16 %v2068
        %v6087 = vunpack.c.l.b16 %v2069
        %v6088 = vunpack.c.l.b16 %v2070
        %v6089 = vunpack.c.h.b16 %v2070
        %v6090 = vunpack.c.l.b16 %v2071
        %v6091 = vunpack.c.h.b16 %v2071
        %v6092 = vunpack.c.l.b16 %v2072
        %v6093 = vunpack.c.h.b16 %v2072
        %v6094 = vunpack.c.l.b16 %v2073
        %v6095 = vunpack.c.h.b16 %v2073
        %v6096 = vunpack.c.l.b16 %v2074
        %v6097 = vunpack.c.h.b16 %v2074
        %v6098 = vunpack.c.l.b16 %v2075
        %v6099 = vunpack.c.h.b16 %v2075
        %v6100 = vunpack.c.l.b16 %v2076
        %v6101 = vunpack.c.h.b16 %v2076
        %v6102 = vunpack.c.l.b16 %v2077
        %v6103 = vunpack.c.h.b16 %v2077
        %v6104 = vunpack.c.l.b16 %v2078
        %v6105 = vunpack.c.l.b16 %v2079
        %v6106 = vunpack.c.h.b16 %v2079
        %v6107 = vunpack.c.l.b16 %v2080
        %v6108 = vunpack.c.h.b16 %v2080
        %v6109 = vunpack.c.l.b16 %v2081
        %v6110 = vunpack.c.h.b16 %v2081
        %v6111 = vunpack.c.l.b16 %v2082
        %v6112 = vunpack.c.h.b16 %v2082
        %v6113 = vunpack.c.l.b16 %v2083
        %v6114 = vunpack.c.h.b16 %v2083
        %v6115 = vunpack.c.l.b16 %v2084
        %v6116 = vunpack.c.h.b16 %v2084
        %v6117 = vunpack.c.l.b16 %v2085
        %v6118 = vunpack.c.h.b16 %v2085
        %v6119 = vunpack.c.l.b16 %v2086
        %v6120 = vunpack.c.h.b16 %v2086
        %v6121 = vunpack.c.l.b16 %v2087
        %v6122 = vunpack.c.l.b16 %v2088
        %v6123 = vunpack.c.h.b16 %v2088
        %v6124 = vunpack.c.l.b16 %v2089
        %v6125 = vunpack.c.h.b16 %v2089
        %v6126 = vunpack.c.l.b16 %v2090
        %v6127 = vunpack.c.h.b16 %v2090
        %v6128 = vunpack.c.l.b16 %v2091
        %v6129 = vunpack.c.h.b16 %v2091
        %v6130 = vunpack.c.l.b16 %v2092
        %v6131 = vunpack.c.h.b16 %v2092
        %v6132 = vunpack.c.l.b16 %v2093
        %v6133 = vunpack.c.h.b16 %v2093
        %v6134 = vunpack.c.l.b16 %v2094
        %v6135 = vunpack.c.h.b16 %v2094
        %v6136 = vunpack.c.l.b16 %v2095
        %v6137 = vunpack.c.h.b16 %v2095
        %v6138 = vunpack.c.l.b16 %v2096
        %v6139 = vunpack.c.l.b16 %v2097
        %v6140 = vunpack.c.h.b16 %v2097
        %v6141 = vunpack.c.l.b16 %v2098
        %v6142 = vunpack.c.h.b16 %v2098
        %v6143 = vunpack.c.l.b16 %v2099
        %v6144 = vunpack.c.h.b16 %v2099
        %v6145 = vunpack.c.l.b16 %v2100
        %v6146 = vunpack.c.h.b16 %v2100
        %v6147 = vunpack.c.l.b16 %v2101
        %v6148 = vunpack.c.h.b16 %v2101
        %v6149 = vunpack.c.l.b16 %v2102
        %v6150 = vunpack.c.h.b16 %v2102
        %v6151 = vunpack.c.l.b16 %v2103
        %v6152 = vunpack.c.h.b16 %v2103
        %v6153 = vunpack.c.l.b16 %v2104
        %v6154 = vunpack.c.h.b16 %v2104
        %v6155 = vunpack.c.l.b16 %v2105
        %v6156 = vunpack.c.l.b16 %v2106
        %v6157 = vunpack.c.h.b16 %v2106
        %v6158 = vunpack.c.l.b16 %v2107
        %v6159 = vunpack.c.h.b16 %v2107
        %v6160 = vunpack.c.l.b16 %v2108
        %v6161 = vunpack.c.h.b16 %v2108
        %v6162 = vunpack.c.l.b16 %v2109
        %v6163 = vunpack.c.h.b16 %v2109
        %v6164 = vunpack.c.l.b16 %v2110
        %v6165 = vunpack.c.h.b16 %v2110
        %v6166 = vunpack.c.l.b16 %v2111
        %v6167 = vunpack.c.h.b16 %v2111
        %v6168 = vunpack.c.l.b16 %v2112
        %v6169 = vunpack.c.h.b16 %v2112
        %v6170 = vunpack.c.l.b16 %v2113
        %v6171 = vunpack.c.h.b16 %v2113
        %v6172 = vunpack.c.l.b16 %v2114
        %v6173 = vunpack.c.l.b16 %v2115
        %v6174 = vunpack.c.h.b16 %v2115
        %v6175 = vunpack.c.l.b16 %v2116
        %v6176 = vunpack.c.h.b16 %v2116
        %v6177 = vunpack.c.l.b16 %v2117
        %v6178 = vunpack.c.h.b16 %v2117
        %v6179 = vunpack.c.l.b16 %v2118
        %v6180 = vunpack.c.h.b16 %v2118
        %v6181 = vunpack.c.l.b16 %v2119
        %v6182 = vunpack.c.h.b16 %v2119
        %v6183 = vunpack.c.l.b16 %v2120
        %v6184 = vunpack.c.h.b16 %v2120
        %v6185 = vunpack.c.l.b16 %v2121
        %v6186 = vunpack.c.h.b16 %v2121
        %v6187 = vunpack.c.l.b16 %v2122
        %v6188 = vunpack.c.h.b16 %v2122
        %v6189 = vunpack.c.l.b16 %v2123
        %v6190 = vunpack.c.l.b16 %v2124
        %v6191 = vunpack.c.h.b16 %v2124
        %v6192 = vunpack.c.l.b16 %v2125
        %v6193 = vunpack.c.h.b16 %v2125
        %v6194 = vunpack.c.l.b16 %v2126
        %v6195 = vunpack.c.h.b16 %v2126
        %v6196 = vunpack.c.l.b16 %v2127
        %v6197 = vunpack.c.h.b16 %v2127
        %v6198 = vunpack.c.l.b16 %v2128
        %v6199 = vunpack.c.h.b16 %v2128
        %v6200 = vunpack.c.l.b16 %v2129
        %v6201 = vunpack.c.h.b16 %v2129
        %v6202 = vunpack.c.l.b16 %v2130
        %v6203 = vunpack.c.h.b16 %v2130
        %v6204 = vunpack.c.l.b16 %v2131
        %v6205 = vunpack.c.h.b16 %v2131
        %v6206 = vunpack.c.l.b16 %v2132
        %v6207 = vunpack.c.l.b16 %v2133
        %v6208 = vunpack.c.h.b16 %v2133
        %v6209 = vunpack.c.l.b16 %v2134
        %v6210 = vunpack.c.h.b16 %v2134
        %v6211 = vunpack.c.l.b16 %v2135
        %v6212 = vunpack.c.h.b16 %v2135
        %v6213 = vunpack.c.l.b16 %v2136
        %v6214 = vunpack.c.h.b16 %v2136
        %v6215 = vunpack.c.l.b16 %v2137
        %v6216 = vunpack.c.h.b16 %v2137
        %v6217 = vunpack.c.l.b16 %v2138
        %v6218 = vunpack.c.h.b16 %v2138
        %v6219 = vunpack.c.l.b16 %v2139
        %v6220 = vunpack.c.h.b16 %v2139
        %v6221 = vunpack.c.l.b16 %v2140
        %v6222 = vunpack.c.h.b16 %v2140
        %v6223 = vunpack.c.l.b16 %v2141
        %v6224 = vunpack.c.l.b16 %v2142
        %v6225 = vunpack.c.h.b16 %v2142
        %v6226 = vunpack.c.l.b16 %v2143
        %v6227 = vunpack.c.h.b16 %v2143
        %v6228 = vunpack.c.l.b16 %v2144
        %v6229 = vunpack.c.h.b16 %v2144
        %v6230 = vunpack.c.l.b16 %v2145
        %v6231 = vunpack.c.h.b16 %v2145
        %v6232 = vunpack.c.l.b16 %v2146
        %v6233 = vunpack.c.h.b16 %v2146
        %v6234 = vunpack.c.l.b16 %v2147
        %v6235 = vunpack.c.h.b16 %v2147
        %v6236 = vunpack.c.l.b16 %v2148
        %v6237 = vunpack.c.h.b16 %v2148
        %v6238 = vunpack.c.l.b16 %v2149
        %v6239 = vunpack.c.h.b16 %v2149
        %v6240 = vunpack.c.l.b16 %v2150
        %v6241 = vunpack.c.l.b16 %v2151
        %v6242 = vunpack.c.h.b16 %v2151
        %v6243 = vunpack.c.l.b16 %v2152
        %v6244 = vunpack.c.h.b16 %v2152
        %v6245 = vunpack.c.l.b16 %v2153
        %v6246 = vunpack.c.h.b16 %v2153
        %v6247 = vunpack.c.l.b16 %v2154
        %v6248 = vunpack.c.h.b16 %v2154
        %v6249 = vunpack.c.l.b16 %v2155
        %v6250 = vunpack.c.h.b16 %v2155
        %v6251 = vunpack.c.l.b16 %v2156
        %v6252 = vunpack.c.h.b16 %v2156
        %v6253 = vunpack.c.l.b16 %v2157
        %v6254 = vunpack.c.h.b16 %v2157
        %v6255 = vunpack.c.l.b16 %v2158
        %v6256 = vunpack.c.h.b16 %v2158
        %v6257 = vunpack.c.l.b16 %v2159
        %v6258 = vunpack.c.l.b16 %v2160
        %v6259 = vunpack.c.h.b16 %v2160
        %v6260 = vunpack.c.l.b16 %v2161
        %v6261 = vunpack.c.h.b16 %v2161
        %v6262 = vunpack.c.l.b16 %v2162
        %v6263 = vunpack.c.h.b16 %v2162
        %v6264 = vunpack.c.l.b16 %v2163
        %v6265 = vunpack.c.h.b16 %v2163
        %v6266 = vunpack.c.l.b16 %v2164
        %v6267 = vunpack.c.h.b16 %v2164
        %v6268 = vunpack.c.l.b16 %v2165
        %v6269 = vunpack.c.h.b16 %v2165
        %v6270 = vunpack.c.l.b16 %v2166
        %v6271 = vunpack.c.h.b16 %v2166
        %v6272 = vunpack.c.l.b16 %v2167
        %v6273 = vunpack.c.h.b16 %v2167
        %v6274 = vunpack.c.l.b16 %v2168
        %v6275 = vunpack.c.l.b16 %v2169
        %v6276 = vunpack.c.h.b16 %v2169
        %v6277 = vunpack.c.l.b16 %v2170
        %v6278 = vunpack.c.h.b16 %v2170
        %v6279 = vunpack.c.l.b16 %v2171
        %v6280 = vunpack.c.h.b16 %v2171
        %v6281 = vunpack.c.l.b16 %v2172
        %v6282 = vunpack.c.h.b16 %v2172
        %v6283 = vunpack.c.l.b16 %v2173
        %v6284 = vunpack.c.h.b16 %v2173
        %v6285 = vunpack.c.l.b16 %v2174
        %v6286 = vunpack.c.h.b16 %v2174
        %v6287 = vunpack.c.l.b16 %v2175
        %v6288 = vunpack.c.h.b16 %v2175
        %v6289 = vunpack.c.l.b16 %v2176
        %v6290 = vunpack.c.h.b16 %v2176
        %v6291 = vunpack.c.l.b16 %v2177
        %v6292 = vunpack.c.l.b16 %v2178
        %v6293 = vunpack.c.h.b16 %v2178
        %v6294 = vunpack.c.l.b16 %v2179
        %v6295 = vunpack.c.h.b16 %v2179
        %v6296 = vunpack.c.l.b16 %v2180
        %v6297 = vunpack.c.h.b16 %v2180
        %v6298 = vunpack.c.l.b16 %v2181
        %v6299 = vunpack.c.h.b16 %v2181
        %v6300 = vunpack.c.l.b16 %v2182
        %v6301 = vunpack.c.h.b16 %v2182
        %v6302 = vunpack.c.l.b16 %v2183
        %v6303 = vunpack.c.h.b16 %v2183
        %v6304 = vunpack.c.l.b16 %v2184
        %v6305 = vunpack.c.h.b16 %v2184
        %v6306 = vunpack.c.l.b16 %v2185
        %v6307 = vunpack.c.h.b16 %v2185
        %v6308 = vunpack.c.l.b16 %v2186
        %v6309 = vunpack.c.l.b16 %v2187
        %v6310 = vunpack.c.h.b16 %v2187
        %v6311 = vunpack.c.l.b16 %v2188
        %v6312 = vunpack.c.h.b16 %v2188
        %v6313 = vunpack.c.l.b16 %v2189
        %v6314 = vunpack.c.h.b16 %v2189
        %v6315 = vunpack.c.l.b16 %v2190
        %v6316 = vunpack.c.h.b16 %v2190
        %v6317 = vunpack.c.l.b16 %v2191
        %v6318 = vunpack.c.h.b16 %v2191
        %v6319 = vunpack.c.l.b16 %v2192
        %v6320 = vunpack.c.h.b16 %v2192
        %v6321 = vunpack.c.l.b16 %v2193
        %v6322 = vunpack.c.h.b16 %v2193
        %v6323 = vunpack.c.l.b16 %v2194
        %v6324 = vunpack.c.h.b16 %v2194
        %v6325 = vunpack.c.l.b16 %v2195
        %v6326 = vunpack.c.l.b16 %v2196
        %v6327 = vunpack.c.h.b16 %v2196
        %v6328 = vunpack.c.l.b16 %v2197
        %v6329 = vunpack.c.h.b16 %v2197
        %v6330 = vunpack.c.l.b16 %v2198
        %v6331 = vunpack.c.h.b16 %v2198
        %v6332 = vunpack.c.l.b16 %v2199
        %v6333 = vunpack.c.h.b16 %v2199
        %v6334 = vunpack.c.l.b16 %v2200
        %v6335 = vunpack.c.h.b16 %v2200
        %v6336 = vunpack.c.l.b16 %v2201
        %v6337 = vunpack.c.h.b16 %v2201
        %v6338 = vunpack.c.l.b16 %v2202
        %v6339 = vunpack.c.h.b16 %v2202
        %v6340 = vunpack.c.l.b16 %v2203
        %v6341 = vunpack.c.h.b16 %v2203
        %v6342 = vunpack.c.l.b16 %v2204
        %v6343 = vunpack.c.l.b16 %v2205
        %v6344 = vunpack.c.h.b16 %v2205
        %v6345 = vunpack.c.l.b16 %v2206
        %v6346 = vunpack.c.h.b16 %v2206
        %v6347 = vunpack.c.l.b16 %v2207
        %v6348 = vunpack.c.h.b16 %v2207
        %v6349 = vunpack.c.l.b16 %v2208
        %v6350 = vunpack.c.h.b16 %v2208
        %v6351 = vunpack.c.l.b16 %v2209
        %v6352 = vunpack.c.h.b16 %v2209
        %v6353 = vunpack.c.l.b16 %v2210
        %v6354 = vunpack.c.h.b16 %v2210
        %v6355 = vunpack.c.l.b16 %v2211
        %v6356 = vunpack.c.h.b16 %v2211
        %v6357 = vunpack.c.l.b16 %v2212
        %v6358 = vunpack.c.h.b16 %v2212
        %v6359 = vunpack.c.l.b16 %v2213
        %v6360 = vunpack.c.l.b16 %v2214
        %v6361 = vunpack.c.h.b16 %v2214
        %v6362 = vunpack.c.l.b16 %v2215
        %v6363 = vunpack.c.h.b16 %v2215
        %v6364 = vunpack.c.l.b16 %v2216
        %v6365 = vunpack.c.h.b16 %v2216
        %v6366 = vunpack.c.l.b16 %v2217
        %v6367 = vunpack.c.h.b16 %v2217
        %v6368 = vunpack.c.l.b16 %v2218
        %v6369 = vunpack.c.h.b16 %v2218
        %v6370 = vunpack.c.l.b16 %v2219
        %v6371 = vunpack.c.h.b16 %v2219
        %v6372 = vunpack.c.l.b16 %v2220
        %v6373 = vunpack.c.h.b16 %v2220
        %v6374 = vunpack.c.l.b16 %v2221
        %v6375 = vunpack.c.h.b16 %v2221
        %v6376 = vunpack.c.l.b16 %v2222
        %v6377 = vunpack.c.l.b16 %v2223
        %v6378 = vunpack.c.h.b16 %v2223
        %v6379 = vunpack.c.l.b16 %v2224
        %v6380 = vunpack.c.h.b16 %v2224
        %v6381 = vunpack.c.l.b16 %v2225
        %v6382 = vunpack.c.h.b16 %v2225
        %v6383 = vunpack.c.l.b16 %v2226
        %v6384 = vunpack.c.h.b16 %v2226
        %v6385 = vunpack.c.l.b16 %v2227
        %v6386 = vunpack.c.h.b16 %v2227
        %v6387 = vunpack.c.l.b16 %v2228
        %v6388 = vunpack.c.h.b16 %v2228
        %v6389 = vunpack.c.l.b16 %v2229
        %v6390 = vunpack.c.h.b16 %v2229
        %v6391 = vunpack.c.l.b16 %v2230
        %v6392 = vunpack.c.h.b16 %v2230
        %v6393 = vunpack.c.l.b16 %v2231
        %v6394 = vunpack.c.l.b16 %v2232
        %v6395 = vunpack.c.h.b16 %v2232
        %v6396 = vunpack.c.l.b16 %v2233
        %v6397 = vunpack.c.h.b16 %v2233
        %v6398 = vunpack.c.l.b16 %v2234
        %v6399 = vunpack.c.h.b16 %v2234
        %v6400 = vunpack.c.l.b16 %v2235
        %v6401 = vunpack.c.h.b16 %v2235
        %v6402 = vunpack.c.l.b16 %v2236
        %v6403 = vunpack.c.h.b16 %v2236
        %v6404 = vunpack.c.l.b16 %v2237
        %v6405 = vunpack.c.h.b16 %v2237
        %v6406 = vunpack.c.l.b16 %v2238
        %v6407 = vunpack.c.h.b16 %v2238
        %v6408 = vunpack.c.l.b16 %v2239
        %v6409 = vunpack.c.h.b16 %v2239
        %v6410 = vunpack.c.l.b16 %v2240
        %v6411 = vunpack.c.l.b16 %v2241
        %v6412 = vunpack.c.h.b16 %v2241
        %v6413 = vunpack.c.l.b16 %v2242
        %v6414 = vunpack.c.h.b16 %v2242
        %v6415 = vunpack.c.l.b16 %v2243
        %v6416 = vunpack.c.h.b16 %v2243
        %v6417 = vunpack.c.l.b16 %v2244
        %v6418 = vunpack.c.h.b16 %v2244
        %v6419 = vunpack.c.l.b16 %v2245
        %v6420 = vunpack.c.h.b16 %v2245
        %v6421 = vunpack.c.l.b16 %v2246
        %v6422 = vunpack.c.h.b16 %v2246
        %v6423 = vunpack.c.l.b16 %v2247
        %v6424 = vunpack.c.h.b16 %v2247
        %v6425 = vunpack.c.l.b16 %v2248
        %v6426 = vunpack.c.h.b16 %v2248
        %v6427 = vunpack.c.l.b16 %v2249
        %v6428 = vunpack.c.l.b16 %v2250
        %v6429 = vunpack.c.h.b16 %v2250
        %v6430 = vunpack.c.l.b16 %v2251
        %v6431 = vunpack.c.h.b16 %v2251
        %v6432 = vunpack.c.l.b16 %v2252
        %v6433 = vunpack.c.h.b16 %v2252
        %v6434 = vunpack.c.l.b16 %v2253
        %v6435 = vunpack.c.h.b16 %v2253
        %v6436 = vunpack.c.l.b16 %v2254
        %v6437 = vunpack.c.h.b16 %v2254
        %v6438 = vunpack.c.l.b16 %v2255
        %v6439 = vunpack.c.h.b16 %v2255
        %v6440 = vunpack.c.l.b16 %v2256
        %v6441 = vunpack.c.h.b16 %v2256
        %v6442 = vunpack.c.l.b16 %v2257
        %v6443 = vunpack.c.h.b16 %v2257
        %v6444 = vunpack.c.l.b16 %v2258
        %v6445 = vunpack.c.l.b16 %v2259
        %v6446 = vunpack.c.h.b16 %v2259
        %v6447 = vunpack.c.l.b16 %v2260
        %v6448 = vunpack.c.h.b16 %v2260
        %v6449 = vunpack.c.l.b16 %v2261
        %v6450 = vunpack.c.h.b16 %v2261
        %v6451 = vunpack.c.l.b16 %v2262
        %v6452 = vunpack.c.h.b16 %v2262
        %v6453 = vunpack.c.l.b16 %v2263
        %v6454 = vunpack.c.h.b16 %v2263
        %v6455 = vunpack.c.l.b16 %v2264
        %v6456 = vunpack.c.h.b16 %v2264
        %v6457 = vunpack.c.l.b16 %v2265
        %v6458 = vunpack.c.h.b16 %v2265
        %v6459 = vunpack.c.l.b16 %v2266
        %v6460 = vunpack.c.h.b16 %v2266
        %v6461 = vunpack.c.l.b16 %v2267
        %v6462 = vunpack.c.l.b16 %v2268
        %v6463 = vunpack.c.h.b16 %v2268
        %v6464 = vunpack.c.l.b16 %v2269
        %v6465 = vunpack.c.h.b16 %v2269
        %v6466 = vunpack.c.l.b16 %v2270
        %v6467 = vunpack.c.h.b16 %v2270
        %v6468 = vunpack.c.l.b16 %v2271
        %v6469 = vunpack.c.h.b16 %v2271
        %v6470 = vunpack.c.l.b16 %v2272
        %v6471 = vunpack.c.h.b16 %v2272
        %v6472 = vunpack.c.l.b16 %v2273
        %v6473 = vunpack.c.h.b16 %v2273
        %v6474 = vunpack.c.l.b16 %v2274
        %v6475 = vunpack.c.h.b16 %v2274
        %v6476 = vunpack.c.l.b16 %v2275
        %v6477 = vunpack.c.h.b16 %v2275
        %v6478 = vunpack.c.l.b16 %v2276
        %v6479 = vunpack.c.l.b16 %v2277
        %v6480 = vunpack.c.h.b16 %v2277
        %v6481 = vunpack.c.l.b16 %v2278
        %v6482 = vunpack.c.h.b16 %v2278
        %v6483 = vunpack.c.l.b16 %v2279
        %v6484 = vunpack.c.h.b16 %v2279
        %v6485 = vunpack.c.l.b16 %v2280
        %v6486 = vunpack.c.h.b16 %v2280
        %v6487 = vunpack.c.l.b16 %v2281
        %v6488 = vunpack.c.h.b16 %v2281
        %v6489 = vunpack.c.l.b16 %v2282
        %v6490 = vunpack.c.h.b16 %v2282
        %v6491 = vunpack.c.l.b16 %v2283
        %v6492 = vunpack.c.h.b16 %v2283
        %v6493 = vunpack.c.l.b16 %v2284
        %v6494 = vunpack.c.h.b16 %v2284
        %v6495 = vunpack.c.l.b16 %v2285
        %v6496 = vunpack.c.l.b16 %v2286
        %v6497 = vunpack.c.h.b16 %v2286
        %v6498 = vunpack.c.l.b16 %v2287
        %v6499 = vunpack.c.h.b16 %v2287
        %v6500 = vunpack.c.l.b16 %v2288
        %v6501 = vunpack.c.h.b16 %v2288
        %v6502 = vunpack.c.l.b16 %v2289
        %v6503 = vunpack.c.h.b16 %v2289
        %v6504 = vunpack.c.l.b16 %v2290
        %v6505 = vunpack.c.h.b16 %v2290
        %v6506 = vunpack.c.l.b16 %v2291
        %v6507 = vunpack.c.h.b16 %v2291
        %v6508 = vunpack.c.l.b16 %v2292
        %v6509 = vunpack.c.h.b16 %v2292
        %v6510 = vunpack.c.l.b16 %v2293
        %v6511 = vunpack.c.h.b16 %v2293
        %v6512 = vunpack.c.l.b16 %v2294
        %v6513 = vunpack.c.l.b16 %v2295
        %v6514 = vunpack.c.h.b16 %v2295
        %v6515 = vunpack.c.l.b16 %v2296
        %v6516 = vunpack.c.h.b16 %v2296
        %v6517 = vunpack.c.l.b16 %v2297
        %v6518 = vunpack.c.h.b16 %v2297
        %v6519 = vunpack.c.l.b16 %v2298
        %v6520 = vunpack.c.h.b16 %v2298
        %v6521 = vunpack.c.l.b16 %v2299
        %v6522 = vunpack.c.h.b16 %v2299
        %v6523 = vunpack.c.l.b16 %v2300
        %v6524 = vunpack.c.h.b16 %v2300
        %v6525 = vunpack.c.l.b16 %v2301
        %v6526 = vunpack.c.h.b16 %v2301
        %v6527 = vunpack.c.l.b16 %v2302
        %v6528 = vunpack.c.h.b16 %v2302
        %v6529 = vunpack.c.l.b16 %v2303
        %v6530 = vunpack.c.l.b16 %v2304
        %v6531 = vunpack.c.h.b16 %v2304
        %v6532 = vunpack.c.l.b16 %v2305
        %v6533 = vunpack.c.h.b16 %v2305
        %v6534 = vunpack.c.l.b16 %v2306
        %v6535 = vunpack.c.h.b16 %v2306
        %v6536 = vunpack.c.l.b16 %v2307
        %v6537 = vunpack.c.h.b16 %v2307
        %v6538 = vunpack.c.l.b16 %v2308
        %v6539 = vunpack.c.h.b16 %v2308
        %v6540 = vunpack.c.l.b16 %v2309
        %v6541 = vunpack.c.h.b16 %v2309
        %v6542 = vunpack.c.l.b16 %v2310
        %v6543 = vunpack.c.h.b16 %v2310
        %v6544 = vunpack.c.l.b16 %v2311
        %v6545 = vunpack.c.h.b16 %v2311
        %v6546 = vunpack.c.l.b16 %v2312
        %v6547 = vunpack.c.l.b16 %v2313
        %v6548 = vunpack.c.h.b16 %v2313
        %v6549 = vunpack.c.l.b16 %v2314
        %v6550 = vunpack.c.h.b16 %v2314
        %v6551 = vunpack.c.l.b16 %v2315
        %v6552 = vunpack.c.h.b16 %v2315
        %v6553 = vunpack.c.l.b16 %v2316
        %v6554 = vunpack.c.h.b16 %v2316
        %v6555 = vunpack.c.l.b16 %v2317
        %v6556 = vunpack.c.h.b16 %v2317
        %v6557 = vunpack.c.l.b16 %v2318
        %v6558 = vunpack.c.h.b16 %v2318
        %v6559 = vunpack.c.l.b16 %v2319
        %v6560 = vunpack.c.h.b16 %v2319
        %v6561 = vunpack.c.l.b16 %v2320
        %v6562 = vunpack.c.h.b16 %v2320
        %v6563 = vunpack.c.l.b16 %v2321
        %v6564 = vunpack.c.l.b16 %v2322
        %v6565 = vunpack.c.h.b16 %v2322
        %v6566 = vunpack.c.l.b16 %v2323
        %v6567 = vunpack.c.h.b16 %v2323
        %v6568 = vunpack.c.l.b16 %v2324
        %v6569 = vunpack.c.h.b16 %v2324
        %v6570 = vunpack.c.l.b16 %v2325
        %v6571 = vunpack.c.h.b16 %v2325
        %v6572 = vunpack.c.l.b16 %v2326
        %v6573 = vunpack.c.h.b16 %v2326
        %v6574 = vunpack.c.l.b16 %v2327
        %v6575 = vunpack.c.h.b16 %v2327
        %v6576 = vunpack.c.l.b16 %v2328
        %v6577 = vunpack.c.h.b16 %v2328
        %v6578 = vunpack.c.l.b16 %v2329
        %v6579 = vunpack.c.h.b16 %v2329
        %v6580 = vunpack.c.l.b16 %v2330
        %v6581 = vunpack.c.l.b16 %v2331
        %v6582 = vunpack.c.h.b16 %v2331
        %v6583 = vunpack.c.l.b16 %v2332
        %v6584 = vunpack.c.h.b16 %v2332
        %v6585 = vunpack.c.l.b16 %v2333
        %v6586 = vunpack.c.h.b16 %v2333
        %v6587 = vunpack.c.l.b16 %v2334
        %v6588 = vunpack.c.h.b16 %v2334
        %v6589 = vunpack.c.l.b16 %v2335
        %v6590 = vunpack.c.h.b16 %v2335
        %v6591 = vunpack.c.l.b16 %v2336
        %v6592 = vunpack.c.h.b16 %v2336
        %v6593 = vunpack.c.l.b16 %v2337
        %v6594 = vunpack.c.h.b16 %v2337
        %v6595 = vunpack.c.l.b16 %v2338
        %v6596 = vunpack.c.h.b16 %v2338
        %v6597 = vunpack.c.l.b16 %v2339
        %v6598 = vunpack.c.l.b16 %v2340
        %v6599 = vunpack.c.h.b16 %v2340
        %v6600 = vunpack.c.l.b16 %v2341
        %v6601 = vunpack.c.h.b16 %v2341
        %v6602 = vunpack.c.l.b16 %v2342
        %v6603 = vunpack.c.h.b16 %v2342
        %v6604 = vunpack.c.l.b16 %v2343
        %v6605 = vunpack.c.h.b16 %v2343
        %v6606 = vunpack.c.l.b16 %v2344
        %v6607 = vunpack.c.h.b16 %v2344
        %v6608 = vunpack.c.l.b16 %v2345
        %v6609 = vunpack.c.h.b16 %v2345
        %v6610 = vunpack.c.l.b16 %v2346
        %v6611 = vunpack.c.h.b16 %v2346
        %v6612 = vunpack.c.l.b16 %v2347
        %v6613 = vunpack.c.h.b16 %v2347
        %v6614 = vunpack.c.l.b16 %v2348
        %v6615 = vunpack.c.l.b16 %v2349
        %v6616 = vunpack.c.h.b16 %v2349
        %v6617 = vunpack.c.l.b16 %v2350
        %v6618 = vunpack.c.h.b16 %v2350
        %v6619 = vunpack.c.l.b16 %v2351
        %v6620 = vunpack.c.h.b16 %v2351
        %v6621 = vunpack.c.l.b16 %v2352
        %v6622 = vunpack.c.h.b16 %v2352
        %v6623 = vunpack.c.l.b16 %v2353
        %v6624 = vunpack.c.h.b16 %v2353
        %v6625 = vunpack.c.l.b16 %v2354
        %v6626 = vunpack.c.h.b16 %v2354
        %v6627 = vunpack.c.l.b16 %v2355
        %v6628 = vunpack.c.h.b16 %v2355
        %v6629 = vunpack.c.l.b16 %v2356
        %v6630 = vunpack.c.h.b16 %v2356
        %v6631 = vunpack.c.l.b16 %v2357
        %v6632 = vunpack.c.l.b16 %v2358
        %v6633 = vunpack.c.h.b16 %v2358
        %v6634 = vunpack.c.l.b16 %v2359
        %v6635 = vunpack.c.h.b16 %v2359
        %v6636 = vunpack.c.l.b16 %v2360
        %v6637 = vunpack.c.h.b16 %v2360
        %v6638 = vunpack.c.l.b16 %v2361
        %v6639 = vunpack.c.h.b16 %v2361
        %v6640 = vunpack.c.l.b16 %v2362
        %v6641 = vunpack.c.h.b16 %v2362
        %v6642 = vunpack.c.l.b16 %v2363
        %v6643 = vunpack.c.h.b16 %v2363
        %v6644 = vunpack.c.l.b16 %v2364
        %v6645 = vunpack.c.h.b16 %v2364
        %v6646 = vunpack.c.l.b16 %v2365
        %v6647 = vunpack.c.h.b16 %v2365
        %v6648 = vunpack.c.l.b16 %v2366
        %v6649 = vunpack.c.l.b16 %v2367
        %v6650 = vunpack.c.h.b16 %v2367
        %v6651 = vunpack.c.l.b16 %v2368
        %v6652 = vunpack.c.h.b16 %v2368
        %v6653 = vunpack.c.l.b16 %v2369
        %v6654 = vunpack.c.h.b16 %v2369
        %v6655 = vunpack.c.l.b16 %v2370
        %v6656 = vunpack.c.h.b16 %v2370
        %v6657 = vunpack.c.l.b16 %v2371
        %v6658 = vunpack.c.h.b16 %v2371
        %v6659 = vunpack.c.l.b16 %v2372
        %v6660 = vunpack.c.h.b16 %v2372
        %v6661 = vunpack.c.l.b16 %v2373
        %v6662 = vunpack.c.h.b16 %v2373
        %v6663 = vunpack.c.l.b16 %v2374
        %v6664 = vunpack.c.h.b16 %v2374
        %v6665 = vunpack.c.l.b16 %v2375
        %v6666 = vunpack.c.l.b16 %v2376
        %v6667 = vunpack.c.h.b16 %v2376
        %v6668 = vunpack.c.l.b16 %v2377
        %v6669 = vunpack.c.h.b16 %v2377
        %v6670 = vunpack.c.l.b16 %v2378
        %v6671 = vunpack.c.h.b16 %v2378
        %v6672 = vunpack.c.l.b16 %v2379
        %v6673 = vunpack.c.h.b16 %v2379
        %v6674 = vunpack.c.l.b16 %v2380
        %v6675 = vunpack.c.h.b16 %v2380
        %v6676 = vunpack.c.l.b16 %v2381
        %v6677 = vunpack.c.h.b16 %v2381
        %v6678 = vunpack.c.l.b16 %v2382
        %v6679 = vunpack.c.h.b16 %v2382
        %v6680 = vunpack.c.l.b16 %v2383
        %v6681 = vunpack.c.h.b16 %v2383
        %v6682 = vunpack.c.l.b16 %v2384
        %v6683 = vunpack.c.l.b16 %v2385
        %v6684 = vunpack.c.h.b16 %v2385
        %v6685 = vunpack.c.l.b16 %v2386
        %v6686 = vunpack.c.h.b16 %v2386
        %v6687 = vunpack.c.l.b16 %v2387
        %v6688 = vunpack.c.h.b16 %v2387
        %v6689 = vunpack.c.l.b16 %v2388
        %v6690 = vunpack.c.h.b16 %v2388
        %v6691 = vunpack.c.l.b16 %v2389
        %v6692 = vunpack.c.h.b16 %v2389
        %v6693 = vunpack.c.l.b16 %v2390
        %v6694 = vunpack.c.h.b16 %v2390
        %v6695 = vunpack.c.l.b16 %v2391
        %v6696 = vunpack.c.h.b16 %v2391
        %v6697 = vunpack.c.l.b16 %v2392
        %v6698 = vunpack.c.h.b16 %v2392
        %v6699 = vunpack.c.l.b16 %v2393
        %v6700 = vunpack.c.l.b16 %v2394
        %v6701 = vunpack.c.h.b16 %v2394
        %v6702 = vunpack.c.l.b16 %v2395
        %v6703 = vunpack.c.h.b16 %v2395
        %v6704 = vunpack.c.l.b16 %v2396
        %v6705 = vunpack.c.h.b16 %v2396
        %v6706 = vunpack.c.l.b16 %v2397
        %v6707 = vunpack.c.h.b16 %v2397
        %v6708 = vunpack.c.l.b16 %v2398
        %v6709 = vunpack.c.h.b16 %v2398
        %v6710 = vunpack.c.l.b16 %v2399
        %v6711 = vunpack.c.h.b16 %v2399
        %v6712 = vunpack.c.l.b16 %v2400
        %v6713 = vunpack.c.h.b16 %v2400
        %v6714 = vunpack.c.l.b16 %v2401
        %v6715 = vunpack.c.h.b16 %v2401
        %v6716 = vunpack.c.l.b16 %v2402
        %v6717 = vunpack.c.l.b16 %v2403
        %v6718 = vunpack.c.h.b16 %v2403
        %v6719 = vunpack.c.l.b16 %v2404
        %v6720 = vunpack.c.h.b16 %v2404
        %v6721 = vunpack.c.l.b16 %v2405
        %v6722 = vunpack.c.h.b16 %v2405
        %v6723 = vunpack.c.l.b16 %v2406
        %v6724 = vunpack.c.h.b16 %v2406
        %v6725 = vunpack.c.l.b16 %v2407
        %v6726 = vunpack.c.h.b16 %v2407
        %v6727 = vunpack.c.l.b16 %v2408
        %v6728 = vunpack.c.h.b16 %v2408
        %v6729 = vunpack.c.l.b16 %v2409
        %v6730 = vunpack.c.h.b16 %v2409
        %v6731 = vunpack.c.l.b16 %v2410
        %v6732 = vunpack.c.h.b16 %v2410
        %v6733 = vunpack.c.l.b16 %v2411
        %v6734 = vunpack.c.l.b16 %v2412
        %v6735 = vunpack.c.h.b16 %v2412
        %v6736 = vunpack.c.l.b16 %v2413
        %v6737 = vunpack.c.h.b16 %v2413
        %v6738 = vunpack.c.l.b16 %v2414
        %v6739 = vunpack.c.h.b16 %v2414
        %v6740 = vunpack.c.l.b16 %v2415
        %v6741 = vunpack.c.h.b16 %v2415
        %v6742 = vunpack.c.l.b16 %v2416
        %v6743 = vunpack.c.h.b16 %v2416
        %v6744 = vunpack.c.l.b16 %v2417
        %v6745 = vunpack.c.h.b16 %v2417
        %v6746 = vunpack.c.l.b16 %v2418
        %v6747 = vunpack.c.h.b16 %v2418
        %v6748 = vunpack.c.l.b16 %v2419
        %v6749 = vunpack.c.h.b16 %v2419
        %v6750 = vunpack.c.l.b16 %v2420
        %v6751 = vunpack.c.l.b16 %v2421
        %v6752 = vunpack.c.h.b16 %v2421
        %v6753 = vunpack.c.l.b16 %v2422
        %v6754 = vunpack.c.h.b16 %v2422
        %v6755 = vunpack.c.l.b16 %v2423
        %v6756 = vunpack.c.h.b16 %v2423
        %v6757 = vunpack.c.l.b16 %v2424
        %v6758 = vunpack.c.h.b16 %v2424
        %v6759 = vunpack.c.l.b16 %v2425
        %v6760 = vunpack.c.h.b16 %v2425
        %v6761 = vunpack.c.l.b16 %v2426
        %v6762 = vunpack.c.h.b16 %v2426
        %v6763 = vunpack.c.l.b16 %v2427
        %v6764 = vunpack.c.h.b16 %v2427
        %v6765 = vunpack.c.l.b16 %v2428
        %v6766 = vunpack.c.h.b16 %v2428
        %v6767 = vunpack.c.l.b16 %v2429
        %v6768 = vunpack.c.l.b16 %v2430
        %v6769 = vunpack.c.h.b16 %v2430
        %v6770 = vunpack.c.l.b16 %v2431
        %v6771 = vunpack.c.h.b16 %v2431
        %v6772 = vunpack.c.l.b16 %v2432
        %v6773 = vunpack.c.h.b16 %v2432
        %v6774 = vunpack.c.l.b16 %v2433
        %v6775 = vunpack.c.h.b16 %v2433
        %v6776 = vunpack.c.l.b16 %v2434
        %v6777 = vunpack.c.h.b16 %v2434
        %v6778 = vunpack.c.l.b16 %v2435
        %v6779 = vunpack.c.h.b16 %v2435
        %v6780 = vunpack.c.l.b16 %v2436
        %v6781 = vunpack.c.h.b16 %v2436
        %v6782 = vunpack.c.l.b16 %v2437
        %v6783 = vunpack.c.h.b16 %v2437
        %v6784 = vunpack.c.l.b16 %v2438
        %v6785 = vunpack.c.l.b16 %v2439
        %v6786 = vunpack.c.h.b16 %v2439
        %v6787 = vunpack.c.l.b16 %v2440
        %v6788 = vunpack.c.h.b16 %v2440
        %v6789 = vunpack.c.l.b16 %v2441
        %v6790 = vunpack.c.h.b16 %v2441
        %v6791 = vunpack.c.l.b16 %v2442
        %v6792 = vunpack.c.h.b16 %v2442
        %v6793 = vunpack.c.l.b16 %v2443
        %v6794 = vunpack.c.h.b16 %v2443
        %v6795 = vunpack.c.l.b16 %v2444
        %v6796 = vunpack.c.h.b16 %v2444
        %v6797 = vunpack.c.l.b16 %v2445
        %v6798 = vunpack.c.h.b16 %v2445
        %v6799 = vunpack.c.l.b16 %v2446
        %v6800 = vunpack.c.h.b16 %v2446
        %v6801 = vunpack.c.l.b16 %v2447
        %v6802 = vunpack.c.l.b16 %v2448
        %v6803 = vunpack.c.h.b16 %v2448
        %v6804 = vunpack.c.l.b16 %v2449
        %v6805 = vunpack.c.h.b16 %v2449
        %v6806 = vunpack.c.l.b16 %v2450
        %v6807 = vunpack.c.h.b16 %v2450
        %v6808 = vunpack.c.l.b16 %v2451
        %v6809 = vunpack.c.h.b16 %v2451
        %v6810 = vunpack.c.l.b16 %v2452
        %v6811 = vunpack.c.h.b16 %v2452
        %v6812 = vunpack.c.l.b16 %v2453
        %v6813 = vunpack.c.h.b16 %v2453
        %v6814 = vunpack.c.l.b16 %v2454
        %v6815 = vunpack.c.h.b16 %v2454
        %v6816 = vunpack.c.l.b16 %v2455
        %v6817 = vunpack.c.h.b16 %v2455
        %v6818 = vunpack.c.l.b16 %v2456
        %v6819 = vunpack.c.l.b16 %v2457
        %v6820 = vunpack.c.h.b16 %v2457
        %v6821 = vunpack.c.l.b16 %v2458
        %v6822 = vunpack.c.h.b16 %v2458
        %v6823 = vunpack.c.l.b16 %v2459
        %v6824 = vunpack.c.h.b16 %v2459
        %v6825 = vunpack.c.l.b16 %v2460
        %v6826 = vunpack.c.h.b16 %v2460
        %v6827 = vunpack.c.l.b16 %v2461
        %v6828 = vunpack.c.h.b16 %v2461
        %v6829 = vunpack.c.l.b16 %v2462
        %v6830 = vunpack.c.h.b16 %v2462
        %v6831 = vunpack.c.l.b16 %v2463
        %v6832 = vunpack.c.h.b16 %v2463
        %v6833 = vunpack.c.l.b16 %v2464
        %v6834 = vunpack.c.h.b16 %v2464
        %v6835 = vunpack.c.l.b16 %v2465
        %v6836 = vunpack.c.l.b16 %v2466
        %v6837 = vunpack.c.h.b16 %v2466
        %v6838 = vunpack.c.l.b16 %v2467
        %v6839 = vunpack.c.h.b16 %v2467
        %v6840 = vunpack.c.l.b16 %v2468
        %v6841 = vunpack.c.h.b16 %v2468
        %v6842 = vunpack.c.l.b16 %v2469
        %v6843 = vunpack.c.h.b16 %v2469
        %v6844 = vunpack.c.l.b16 %v2470
        %v6845 = vunpack.c.h.b16 %v2470
        %v6846 = vunpack.c.l.b16 %v2471
        %v6847 = vunpack.c.h.b16 %v2471
        %v6848 = vunpack.c.l.b16 %v2472
        %v6849 = vunpack.c.h.b16 %v2472
        %v6850 = vunpack.c.l.b16 %v2473
        %v6851 = vunpack.c.h.b16 %v2473
        %v6852 = vunpack.c.l.b16 %v2474
        %v6853 = vunpack.c.l.b16 %v2475
        %v6854 = vunpack.c.h.b16 %v2475
        %v6855 = vunpack.c.l.b16 %v2476
        %v6856 = vunpack.c.h.b16 %v2476
        %v6857 = vunpack.c.l.b16 %v2477
        %v6858 = vunpack.c.h.b16 %v2477
        %v6859 = vunpack.c.l.b16 %v2478
        %v6860 = vunpack.c.h.b16 %v2478
        %v6861 = vunpack.c.l.b16 %v2479
        %v6862 = vunpack.c.h.b16 %v2479
        %v6863 = vunpack.c.l.b16 %v2480
        %v6864 = vunpack.c.h.b16 %v2480
        %v6865 = vunpack.c.l.b16 %v2481
        %v6866 = vunpack.c.h.b16 %v2481
        %v6867 = vunpack.c.l.b16 %v2482
        %v6868 = vunpack.c.h.b16 %v2482
        %v6869 = vunpack.c.l.b16 %v2483
        %v6870 = vunpack.c.l.b16 %v2484
        %v6871 = vunpack.c.h.b16 %v2484
        %v6872 = vunpack.c.l.b16 %v2485
        %v6873 = vunpack.c.h.b16 %v2485
        %v6874 = vunpack.c.l.b16 %v2486
        %v6875 = vunpack.c.h.b16 %v2486
        %v6876 = vunpack.c.l.b16 %v2487
        %v6877 = vunpack.c.h.b16 %v2487
        %v6878 = vunpack.c.l.b16 %v2488
        %v6879 = vunpack.c.h.b16 %v2488
        %v6880 = vunpack.c.l.b16 %v2489
        %v6881 = vunpack.c.h.b16 %v2489
        %v6882 = vunpack.c.l.b16 %v2490
        %v6883 = vunpack.c.h.b16 %v2490
        %v6884 = vunpack.c.l.b16 %v2491
        %v6885 = vunpack.c.h.b16 %v2491
        %v6886 = vunpack.c.l.b16 %v2492
        %v6887 = vunpack.c.l.b16 %v2493
        %v6888 = vunpack.c.h.b16 %v2493
        %v6889 = vunpack.c.l.b16 %v2494
        %v6890 = vunpack.c.h.b16 %v2494
        %v6891 = vunpack.c.l.b16 %v2495
        %v6892 = vunpack.c.h.b16 %v2495
        %v6893 = vunpack.c.l.b16 %v2496
        %v6894 = vunpack.c.h.b16 %v2496
        %v6895 = vunpack.c.l.b16 %v2497
        %v6896 = vunpack.c.h.b16 %v2497
        %v6897 = vunpack.c.l.b16 %v2498
        %v6898 = vunpack.c.h.b16 %v2498
        %v6899 = vunpack.c.l.b16 %v2499
        %v6900 = vunpack.c.h.b16 %v2499
        %v6901 = vunpack.c.l.b16 %v2500
        %v6902 = vunpack.c.h.b16 %v2500
        %v6903 = vunpack.c.l.b16 %v2501
        %v6904 = vunpack.c.l.b16 %v2502
        %v6905 = vunpack.c.h.b16 %v2502
        %v6906 = vunpack.c.l.b16 %v2503
        %v6907 = vunpack.c.h.b16 %v2503
        %v6908 = vunpack.c.l.b16 %v2504
        %v6909 = vunpack.c.h.b16 %v2504
        %v6910 = vunpack.c.l.b16 %v2505
        %v6911 = vunpack.c.h.b16 %v2505
        %v6912 = vunpack.c.l.b16 %v2506
        %v6913 = vunpack.c.h.b16 %v2506
        %v6914 = vunpack.c.l.b16 %v2507
        %v6915 = vunpack.c.h.b16 %v2507
        %v6916 = vunpack.c.l.b16 %v2508
        %v6917 = vunpack.c.h.b16 %v2508
        %v6918 = vunpack.c.l.b16 %v2509
        %v6919 = vunpack.c.h.b16 %v2509
        %v6920 = vunpack.c.l.b16 %v2510
        %v6921 = vunpack.c.l.b16 %v2511
        %v6922 = vunpack.c.h.b16 %v2511
        %v6923 = vunpack.c.l.b16 %v2512
        %v6924 = vunpack.c.h.b16 %v2512
        %v6925 = vunpack.c.l.b16 %v2513
        %v6926 = vunpack.c.h.b16 %v2513
        %v6927 = vunpack.c.l.b16 %v2514
        %v6928 = vunpack.c.h.b16 %v2514
        %v6929 = vunpack.c.l.b16 %v2515
        %v6930 = vunpack.c.h.b16 %v2515
        %v6931 = vunpack.c.l.b16 %v2516
        %v6932 = vunpack.c.h.b16 %v2516
        %v6933 = vunpack.c.l.b16 %v2517
        %v6934 = vunpack.c.h.b16 %v2517
        %v6935 = vunpack.c.l.b16 %v2518
        %v6936 = vunpack.c.h.b16 %v2518
        %v6937 = vunpack.c.l.b16 %v2519
        %v6938 = vunpack.c.l.b16 %v2520
        %v6939 = vunpack.c.h.b16 %v2520
        %v6940 = vunpack.c.l.b16 %v2521
        %v6941 = vunpack.c.h.b16 %v2521
        %v6942 = vunpack.c.l.b16 %v2522
        %v6943 = vunpack.c.h.b16 %v2522
        %v6944 = vunpack.c.l.b16 %v2523
        %v6945 = vunpack.c.h.b16 %v2523
        %v6946 = vunpack.c.l.b16 %v2524
        %v6947 = vunpack.c.h.b16 %v2524
        %v6948 = vunpack.c.l.b16 %v2525
        %v6949 = vunpack.c.h.b16 %v2525
        %v6950 = vunpack.c.l.b16 %v2526
        %v6951 = vunpack.c.h.b16 %v2526
        %v6952 = vunpack.c.l.b16 %v2527
        %v6953 = vunpack.c.h.b16 %v2527
        %v6954 = vunpack.c.l.b16 %v2528
        %v6955 = vunpack.c.l.b16 %v2529
        %v6956 = vunpack.c.h.b16 %v2529
        %v6957 = vunpack.c.l.b16 %v2530
        %v6958 = vunpack.c.h.b16 %v2530
        %v6959 = vunpack.c.l.b16 %v2531
        %v6960 = vunpack.c.h.b16 %v2531
        %v6961 = vunpack.c.l.b16 %v2532
        %v6962 = vunpack.c.h.b16 %v2532
        %v6963 = vunpack.c.l.b16 %v2533
        %v6964 = vunpack.c.h.b16 %v2533
        %v6965 = vunpack.c.l.b16 %v2534
        %v6966 = vunpack.c.h.b16 %v2534
        %v6967 = vunpack.c.l.b16 %v2535
        %v6968 = vunpack.c.h.b16 %v2535
        %v6969 = vunpack.c.l.b16 %v2536
        %v6970 = vunpack.c.h.b16 %v2536
        %v6971 = vunpack.c.l.b16 %v2537
        %v6972 = vunpack.c.l.b16 %v2538
        %v6973 = vunpack.c.h.b16 %v2538
        %v6974 = vunpack.c.l.b16 %v2539
        %v6975 = vunpack.c.h.b16 %v2539
        %v6976 = vunpack.c.l.b16 %v2540
        %v6977 = vunpack.c.h.b16 %v2540
        %v6978 = vunpack.c.l.b16 %v2541
        %v6979 = vunpack.c.h.b16 %v2541
        %v6980 = vunpack.c.l.b16 %v2542
        %v6981 = vunpack.c.h.b16 %v2542
        %v6982 = vunpack.c.l.b16 %v2543
        %v6983 = vunpack.c.h.b16 %v2543
        %v6984 = vunpack.c.l.b16 %v2544
        %v6985 = vunpack.c.h.b16 %v2544
        %v6986 = vunpack.c.l.b16 %v2545
        %v6987 = vunpack.c.h.b16 %v2545
        %v6988 = vunpack.c.l.b16 %v2546
        %v6989 = vunpack.c.l.b16 %v2547
        %v6990 = vunpack.c.h.b16 %v2547
        %v6991 = vunpack.c.l.b16 %v2548
        %v6992 = vunpack.c.h.b16 %v2548
        %v6993 = vunpack.c.l.b16 %v2549
        %v6994 = vunpack.c.h.b16 %v2549
        %v6995 = vunpack.c.l.b16 %v2550
        %v6996 = vunpack.c.h.b16 %v2550
        %v6997 = vunpack.c.l.b16 %v2551
        %v6998 = vunpack.c.h.b16 %v2551
        %v6999 = vunpack.c.l.b16 %v2552
        %v7000 = vunpack.c.h.b16 %v2552
        %v7001 = vunpack.c.l.b16 %v2553
        %v7002 = vunpack.c.h.b16 %v2553
        %v7003 = vunpack.c.l.b16 %v2554
        %v7004 = vunpack.c.h.b16 %v2554
        %v7005 = vunpack.c.l.b16 %v2555
        %v7006 = vunpack.c.l.b16 %v2556
        %v7007 = vunpack.c.h.b16 %v2556
        %v7008 = vunpack.c.l.b16 %v2557
        %v7009 = vunpack.c.h.b16 %v2557
        %v7010 = vunpack.c.l.b16 %v2558
        %v7011 = vunpack.c.h.b16 %v2558
        %v7012 = vunpack.c.l.b16 %v2559
        %v7013 = vunpack.c.h.b16 %v2559
        %v7014 = vunpack.c.l.b16 %v2560
        %v7015 = vunpack.c.h.b16 %v2560
        %v7016 = vunpack.c.l.b16 %v2561
        %v7017 = vunpack.c.h.b16 %v2561
        %v7018 = vunpack.c.l.b16 %v2562
        %v7019 = vunpack.c.h.b16 %v2562
        %v7020 = vunpack.c.l.b16 %v2563
        %v7021 = vunpack.c.h.b16 %v2563
        %v7022 = vunpack.c.l.b16 %v2564
        %v7023 = vunpack.c.l.b16 %v2565
        %v7024 = vunpack.c.h.b16 %v2565
        %v7025 = vunpack.c.l.b16 %v2566
        %v7026 = vunpack.c.h.b16 %v2566
        %v7027 = vunpack.c.l.b16 %v2567
        %v7028 = vunpack.c.h.b16 %v2567
        %v7029 = vunpack.c.l.b16 %v2568
        %v7030 = vunpack.c.h.b16 %v2568
        %v7031 = vunpack.c.l.b16 %v2569
        %v7032 = vunpack.c.h.b16 %v2569
        %v7033 = vunpack.c.l.b16 %v2570
        %v7034 = vunpack.c.h.b16 %v2570
        %v7035 = vunpack.c.l.b16 %v2571
        %v7036 = vunpack.c.h.b16 %v2571
        %v7037 = vunpack.c.l.b16 %v2572
        %v7038 = vunpack.c.h.b16 %v2572
        %v7039 = vunpack.c.l.b16 %v2573
        %v7040 = vunpack.c.l.b16 %v2574
        %v7041 = vunpack.c.h.b16 %v2574
        %v7042 = vunpack.c.l.b16 %v2575
        %v7043 = vunpack.c.h.b16 %v2575
        %v7044 = vunpack.c.l.b16 %v2576
        %v7045 = vunpack.c.h.b16 %v2576
        %v7046 = vunpack.c.l.b16 %v2577
        %v7047 = vunpack.c.h.b16 %v2577
        %v7048 = vunpack.c.l.b16 %v2578
        %v7049 = vunpack.c.h.b16 %v2578
        %v7050 = vunpack.c.l.b16 %v2579
        %v7051 = vunpack.c.h.b16 %v2579
        %v7052 = vunpack.c.l.b16 %v2580
        %v7053 = vunpack.c.h.b16 %v2580
        %v7054 = vunpack.c.l.b16 %v2581
        %v7055 = vunpack.c.h.b16 %v2581
        %v7056 = vunpack.c.l.b16 %v2582
        %v7057 = vunpack.c.l.b16 %v2583
        %v7058 = vunpack.c.h.b16 %v2583
        %v7059 = vunpack.c.l.b16 %v2584
        %v7060 = vunpack.c.h.b16 %v2584
        %v7061 = vunpack.c.l.b16 %v2585
        %v7062 = vunpack.c.h.b16 %v2585
        %v7063 = vunpack.c.l.b16 %v2586
        %v7064 = vunpack.c.h.b16 %v2586
        %v7065 = vunpack.c.l.b16 %v2587
        %v7066 = vunpack.c.h.b16 %v2587
        %v7067 = vunpack.c.l.b16 %v2588
        %v7068 = vunpack.c.h.b16 %v2588
        %v7069 = vunpack.c.l.b16 %v2589
        %v7070 = vunpack.c.h.b16 %v2589
        %v7071 = vunpack.c.l.b16 %v2590
        %v7072 = vunpack.c.h.b16 %v2590
        %v7073 = vunpack.c.l.b16 %v2591
        %v7074 = vunpack.c.l.b16 %v2592
        %v7075 = vunpack.c.h.b16 %v2592
        %v7076 = vunpack.c.l.b16 %v2593
        %v7077 = vunpack.c.h.b16 %v2593
        %v7078 = vunpack.c.l.b16 %v2594
        %v7079 = vunpack.c.h.b16 %v2594
        %v7080 = vunpack.c.l.b16 %v2595
        %v7081 = vunpack.c.h.b16 %v2595
        %v7082 = vunpack.c.l.b16 %v2596
        %v7083 = vunpack.c.h.b16 %v2596
        %v7084 = vunpack.c.l.b16 %v2597
        %v7085 = vunpack.c.h.b16 %v2597
        %v7086 = vunpack.c.l.b16 %v2598
        %v7087 = vunpack.c.h.b16 %v2598
        %v7088 = vunpack.c.l.b16 %v2599
        %v7089 = vunpack.c.h.b16 %v2599
        %v7090 = vunpack.c.l.b16 %v2600
        %v7091 = vunpack.c.l.b16 %v2601
        %v7092 = vunpack.c.h.b16 %v2601
        %v7093 = vunpack.c.l.b16 %v2602
        %v7094 = vunpack.c.h.b16 %v2602
        %v7095 = vunpack.c.l.b16 %v2603
        %v7096 = vunpack.c.h.b16 %v2603
        %v7097 = vunpack.c.l.b16 %v2604
        %v7098 = vunpack.c.h.b16 %v2604
        %v7099 = vunpack.c.l.b16 %v2605
        %v7100 = vunpack.c.h.b16 %v2605
        %v7101 = vunpack.c.l.b16 %v2606
        %v7102 = vunpack.c.h.b16 %v2606
        %v7103 = vunpack.c.l.b16 %v2607
        %v7104 = vunpack.c.h.b16 %v2607
        %v7105 = vunpack.c.l.b16 %v2608
        %v7106 = vunpack.c.h.b16 %v2608
        %v7107 = vunpack.c.l.b16 %v2609
        %v7108 = vunpack.c.l.b16 %v2610
        %v7109 = vunpack.c.h.b16 %v2610
        %v7110 = vunpack.c.l.b16 %v2611
        %v7111 = vunpack.c.h.b16 %v2611
        %v7112 = vunpack.c.l.b16 %v2612
        %v7113 = vunpack.c.h.b16 %v2612
        %v7114 = vunpack.c.l.b16 %v2613
        %v7115 = vunpack.c.h.b16 %v2613
        %v7116 = vunpack.c.l.b16 %v2614
        %v7117 = vunpack.c.h.b16 %v2614
        %v7118 = vunpack.c.l.b16 %v2615
        %v7119 = vunpack.c.h.b16 %v2615
        %v7120 = vunpack.c.l.b16 %v2616
        %v7121 = vunpack.c.h.b16 %v2616
        %v7122 = vunpack.c.l.b16 %v2617
        %v7123 = vunpack.c.h.b16 %v2617
        %v7124 = vunpack.c.l.b16 %v2618
        %v7125 = vunpack.c.l.b16 %v2619
        %v7126 = vunpack.c.h.b16 %v2619
        %v7127 = vunpack.c.l.b16 %v2620
        %v7128 = vunpack.c.h.b16 %v2620
        %v7129 = vunpack.c.l.b16 %v2621
        %v7130 = vunpack.c.h.b16 %v2621
        %v7131 = vunpack.c.l.b16 %v2622
        %v7132 = vunpack.c.h.b16 %v2622
        %v7133 = vunpack.c.l.b16 %v2623
        %v7134 = vunpack.c.h.b16 %v2623
        %v7135 = vunpack.c.l.b16 %v2624
        %v7136 = vunpack.c.h.b16 %v2624
        %v7137 = vunpack.c.l.b16 %v2625
        %v7138 = vunpack.c.h.b16 %v2625
        %v7139 = vunpack.c.l.b16 %v2626
        %v7140 = vunpack.c.h.b16 %v2626
        %v7141 = vunpack.c.l.b16 %v2627
        %v7142 = vunpack.c.l.b16 %v2628
        %v7143 = vunpack.c.h.b16 %v2628
        %v7144 = vunpack.c.l.b16 %v2629
        %v7145 = vunpack.c.h.b16 %v2629
        %v7146 = vunpack.c.l.b16 %v2630
        %v7147 = vunpack.c.h.b16 %v2630
        %v7148 = vunpack.c.l.b16 %v2631
        %v7149 = vunpack.c.h.b16 %v2631
        %v7150 = vunpack.c.l.b16 %v2632
        %v7151 = vunpack.c.h.b16 %v2632
        %v7152 = vunpack.c.l.b16 %v2633
        %v7153 = vunpack.c.h.b16 %v2633
        %v7154 = vunpack.c.l.b16 %v2634
        %v7155 = vunpack.c.h.b16 %v2634
        %v7156 = vunpack.c.l.b16 %v2635
        %v7157 = vunpack.c.h.b16 %v2635
        %v7158 = vunpack.c.l.b16 %v2636
        %v7159 = vunpack.c.l.b16 %v2637
        %v7160 = vunpack.c.h.b16 %v2637
        %v7161 = vunpack.c.l.b16 %v2638
        %v7162 = vunpack.c.h.b16 %v2638
        %v7163 = vunpack.c.l.b16 %v2639
        %v7164 = vunpack.c.h.b16 %v2639
        %v7165 = vunpack.c.l.b16 %v2640
        %v7166 = vunpack.c.h.b16 %v2640
        %v7167 = vunpack.c.l.b16 %v2641
        %v7168 = vunpack.c.h.b16 %v2641
        %v7169 = vunpack.c.l.b16 %v2642
        %v7170 = vunpack.c.h.b16 %v2642
        %v7171 = vunpack.c.l.b16 %v2643
        %v7172 = vunpack.c.h.b16 %v2643
        %v7173 = vunpack.c.l.b16 %v2644
        %v7174 = vunpack.c.h.b16 %v2644
        %v7175 = vunpack.c.l.b16 %v2645
        %v7176 = vunpack.c.l.b16 %v2646
        %v7177 = vunpack.c.h.b16 %v2646
        %v7178 = vunpack.c.l.b16 %v2647
        %v7179 = vunpack.c.h.b16 %v2647
        %v7180 = vunpack.c.l.b16 %v2648
        %v7181 = vunpack.c.h.b16 %v2648
        %v7182 = vunpack.c.l.b16 %v2649
        %v7183 = vunpack.c.h.b16 %v2649
        %v7184 = vunpack.c.l.b16 %v2650
        %v7185 = vunpack.c.h.b16 %v2650
        %v7186 = vunpack.c.l.b16 %v2651
        %v7187 = vunpack.c.h.b16 %v2651
        %v7188 = vunpack.c.l.b16 %v2652
        %v7189 = vunpack.c.h.b16 %v2652
        %v7190 = vunpack.c.l.b16 %v2653
        %v7191 = vunpack.c.h.b16 %v2653
        %v7192 = vunpack.c.l.b16 %v2654
        %v7193 = vunpack.c.l.b16 %v2655
        %v7194 = vunpack.c.h.b16 %v2655
        %v7195 = vunpack.c.l.b16 %v2656
        %v7196 = vunpack.c.h.b16 %v2656
        %v7197 = vunpack.c.l.b16 %v2657
        %v7198 = vunpack.c.h.b16 %v2657
        %v7199 = vunpack.c.l.b16 %v2658
        %v7200 = vunpack.c.h.b16 %v2658
        %v7201 = vunpack.c.l.b16 %v2659
        %v7202 = vunpack.c.h.b16 %v2659
        %v7203 = vunpack.c.l.b16 %v2660
        %v7204 = vunpack.c.h.b16 %v2660
        %v7205 = vunpack.c.l.b16 %v2661
        %v7206 = vunpack.c.h.b16 %v2661
        %v7207 = vunpack.c.l.b16 %v2662
        %v7208 = vunpack.c.h.b16 %v2662
        %v7209 = vunpack.c.l.b16 %v2663
        %v7210 = vunpack.c.l.b16 %v2664
        %v7211 = vunpack.c.h.b16 %v2664
        %v7212 = vunpack.c.l.b16 %v2665
        %v7213 = vunpack.c.h.b16 %v2665
        %v7214 = vunpack.c.l.b16 %v2666
        %v7215 = vunpack.c.h.b16 %v2666
        %v7216 = vunpack.c.l.b16 %v2667
        %v7217 = vunpack.c.h.b16 %v2667
        %v7218 = vunpack.c.l.b16 %v2668
        %v7219 = vunpack.c.h.b16 %v2668
        %v7220 = vunpack.c.l.b16 %v2669
        %v7221 = vunpack.c.h.b16 %v2669
        %v7222 = vunpack.c.l.b16 %v2670
        %v7223 = vunpack.c.h.b16 %v2670
        %v7224 = vunpack.c.l.b16 %v2671
        %v7225 = vunpack.c.h.b16 %v2671
        %v7226 = vunpack.c.l.b16 %v2672
        %v7227 = vunpack.c.l.b16 %v2673
        %v7228 = vunpack.c.h.b16 %v2673
        %v7229 = vunpack.c.l.b16 %v2674
        %v7230 = vunpack.c.h.b16 %v2674
        %v7231 = vunpack.c.l.b16 %v2675
        %v7232 = vunpack.c.h.b16 %v2675
        %v7233 = vunpack.c.l.b16 %v2676
        %v7234 = vunpack.c.h.b16 %v2676
        %v7235 = vunpack.c.l.b16 %v2677
        %v7236 = vunpack.c.h.b16 %v2677
        %v7237 = vunpack.c.l.b16 %v2678
        %v7238 = vunpack.c.h.b16 %v2678
        %v7239 = vunpack.c.l.b16 %v2679
        %v7240 = vunpack.c.h.b16 %v2679
        %v7241 = vunpack.c.l.b16 %v2680
        %v7242 = vunpack.c.h.b16 %v2680
        %v7243 = vunpack.c.l.b16 %v2681
        %v7244 = vunpack.c.l.b16 %v2682
        %v7245 = vunpack.c.h.b16 %v2682
        %v7246 = vunpack.c.l.b16 %v2683
        %v7247 = vunpack.c.h.b16 %v2683
        %v7248 = vunpack.c.l.b16 %v2684
        %v7249 = vunpack.c.h.b16 %v2684
        %v7250 = vunpack.c.l.b16 %v2685
        %v7251 = vunpack.c.h.b16 %v2685
        %v7252 = vunpack.c.l.b16 %v2686
        %v7253 = vunpack.c.h.b16 %v2686
        %v7254 = vunpack.c.l.b16 %v2687
        %v7255 = vunpack.c.h.b16 %v2687
        %v7256 = vunpack.c.l.b16 %v2688
        %v7257 = vunpack.c.h.b16 %v2688
        %v7258 = vunpack.c.l.b16 %v2689
        %v7259 = vunpack.c.h.b16 %v2689
        %v7260 = vunpack.c.l.b16 %v2690
        %v7261 = vunpack.c.l.b16 %v2691
        %v7262 = vunpack.c.h.b16 %v2691
        %v7263 = vunpack.c.l.b16 %v2692
        %v7264 = vunpack.c.h.b16 %v2692
        %v7265 = vunpack.c.l.b16 %v2693
        %v7266 = vunpack.c.h.b16 %v2693
        %v7267 = vunpack.c.l.b16 %v2694
        %v7268 = vunpack.c.h.b16 %v2694
        %v7269 = vunpack.c.l.b16 %v2695
        %v7270 = vunpack.c.h.b16 %v2695
        %v7271 = vunpack.c.l.b16 %v2696
        %v7272 = vunpack.c.h.b16 %v2696
        %v7273 = vunpack.c.l.b16 %v2697
        %v7274 = vunpack.c.h.b16 %v2697
        %v7275 = vunpack.c.l.b16 %v2698
        %v7276 = vunpack.c.h.b16 %v2698
        %v7277 = vunpack.c.l.b16 %v2699
        %v7278 = vunpack.c.l.b16 %v2700
        %v7279 = vunpack.c.h.b16 %v2700
        %v7280 = vunpack.c.l.b16 %v2701
        %v7281 = vunpack.c.h.b16 %v2701
        %v7282 = vunpack.c.l.b16 %v2702
        %v7283 = vunpack.c.h.b16 %v2702
        %v7284 = vunpack.c.l.b16 %v2703
        %v7285 = vunpack.c.h.b16 %v2703
        %v7286 = vunpack.c.l.b16 %v2704
        %v7287 = vunpack.c.h.b16 %v2704
        %v7288 = vunpack.c.l.b16 %v2705
        %v7289 = vunpack.c.h.b16 %v2705
        %v7290 = vunpack.c.l.b16 %v2706
        %v7291 = vunpack.c.h.b16 %v2706
        %v7292 = vunpack.c.l.b16 %v2707
        %v7293 = vunpack.c.h.b16 %v2707
        %v7294 = vunpack.c.l.b16 %v2708
        %v7295 = vunpack.c.l.b16 %v2709
        %v7296 = vunpack.c.h.b16 %v2709
        %v7297 = vunpack.c.l.b16 %v2710
        %v7298 = vunpack.c.h.b16 %v2710
        %v7299 = vunpack.c.l.b16 %v2711
        %v7300 = vunpack.c.h.b16 %v2711
        %v7301 = vunpack.c.l.b16 %v2712
        %v7302 = vunpack.c.h.b16 %v2712
        %v7303 = vunpack.c.l.b16 %v2713
        %v7304 = vunpack.c.h.b16 %v2713
        %v7305 = vunpack.c.l.b16 %v2714
        %v7306 = vunpack.c.h.b16 %v2714
        %v7307 = vunpack.c.l.b16 %v2715
        %v7308 = vunpack.c.h.b16 %v2715
        %v7309 = vunpack.c.l.b16 %v2716
        %v7310 = vunpack.c.h.b16 %v2716
        %v7311 = vunpack.c.l.b16 %v2717
        %v7312 = vunpack.c.l.b16 %v2718
        %v7313 = vunpack.c.h.b16 %v2718
        %v7314 = vunpack.c.l.b16 %v2719
        %v7315 = vunpack.c.h.b16 %v2719
        %v7316 = vunpack.c.l.b16 %v2720
        %v7317 = vunpack.c.h.b16 %v2720
        %v7318 = vunpack.c.l.b16 %v2721
        %v7319 = vunpack.c.h.b16 %v2721
        %v7320 = vunpack.c.l.b16 %v2722
        %v7321 = vunpack.c.h.b16 %v2722
        %v7322 = vunpack.c.l.b16 %v2723
        %v7323 = vunpack.c.h.b16 %v2723
        %v7324 = vunpack.c.l.b16 %v2724
        %v7325 = vunpack.c.h.b16 %v2724
        %v7326 = vunpack.c.l.b16 %v2725
        %v7327 = vunpack.c.h.b16 %v2725
        %v7328 = vunpack.c.l.b16 %v2726
        %v7329 = vunpack.c.l.b16 %v2727
        %v7330 = vunpack.c.h.b16 %v2727
        %v7331 = vunpack.c.l.b16 %v2728
        %v7332 = vunpack.c.h.b16 %v2728
        %v7333 = vunpack.c.l.b16 %v2729
        %v7334 = vunpack.c.h.b16 %v2729
        %v7335 = vunpack.c.l.b16 %v2730
        %v7336 = vunpack.c.h.b16 %v2730
        %v7337 = vunpack.c.l.b16 %v2731
        %v7338 = vunpack.c.h.b16 %v2731
        %v7339 = vunpack.c.l.b16 %v2732
        %v7340 = vunpack.c.h.b16 %v2732
        %v7341 = vunpack.c.l.b16 %v2733
        %v7342 = vunpack.c.h.b16 %v2733
        %v7343 = vunpack.c.l.b16 %v2734
        %v7344 = vunpack.c.h.b16 %v2734
        %v7345 = vunpack.c.l.b16 %v2735
        %v7346 = vunpack.c.l.b16 %v2736
        %v7347 = vunpack.c.h.b16 %v2736
        %v7348 = vunpack.c.l.b16 %v2737
        %v7349 = vunpack.c.h.b16 %v2737
        %v7350 = vunpack.c.l.b16 %v2738
        %v7351 = vunpack.c.h.b16 %v2738
        %v7352 = vunpack.c.l.b16 %v2739
        %v7353 = vunpack.c.h.b16 %v2739
        %v7354 = vunpack.c.l.b16 %v2740
        %v7355 = vunpack.c.h.b16 %v2740
        %v7356 = vunpack.c.l.b16 %v2741
        %v7357 = vunpack.c.h.b16 %v2741
        %v7358 = vunpack.c.l.b16 %v2742
        %v7359 = vunpack.c.h.b16 %v2742
        %v7360 = vunpack.c.l.b16 %v2743
        %v7361 = vunpack.c.h.b16 %v2743
        %v7362 = vunpack.c.l.b16 %v2744
        %v7363 = vunpack.c.l.b16 %v2745
        %v7364 = vunpack.c.h.b16 %v2745
        %v7365 = vunpack.c.l.b16 %v2746
        %v7366 = vunpack.c.h.b16 %v2746
        %v7367 = vunpack.c.l.b16 %v2747
        %v7368 = vunpack.c.h.b16 %v2747
        %v7369 = vunpack.c.l.b16 %v2748
        %v7370 = vunpack.c.h.b16 %v2748
        %v7371 = vunpack.c.l.b16 %v2749
        %v7372 = vunpack.c.h.b16 %v2749
        %v7373 = vunpack.c.l.b16 %v2750
        %v7374 = vunpack.c.h.b16 %v2750
        %v7375 = vunpack.c.l.b16 %v2751
        %v7376 = vunpack.c.h.b16 %v2751
        %v7377 = vunpack.c.l.b16 %v2752
        %v7378 = vunpack.c.h.b16 %v2752
        %v7379 = vunpack.c.l.b16 %v2753
        %v7380 = vunpack.c.l.b16 %v2754
        %v7381 = vunpack.c.h.b16 %v2754
        %v7382 = vunpack.c.l.b16 %v2755
        %v7383 = vunpack.c.h.b16 %v2755
        %v7384 = vunpack.c.l.b16 %v2756
        %v7385 = vunpack.c.h.b16 %v2756
        %v7386 = vunpack.c.l.b16 %v2757
        %v7387 = vunpack.c.h.b16 %v2757
        %v7388 = vunpack.c.l.b16 %v2758
        %v7389 = vunpack.c.h.b16 %v2758
        %v7390 = vunpack.c.l.b16 %v2759
        %v7391 = vunpack.c.h.b16 %v2759
        %v7392 = vunpack.c.l.b16 %v2760
        %v7393 = vunpack.c.h.b16 %v2760
        %v7394 = vunpack.c.l.b16 %v2761
        %v7395 = vunpack.c.h.b16 %v2761
        %v7396 = vunpack.c.l.b16 %v2762
        %v7397 = vunpack.c.l.b16 %v2763
        %v7398 = vunpack.c.h.b16 %v2763
        %v7399 = vunpack.c.l.b16 %v2764
        %v7400 = vunpack.c.h.b16 %v2764
        %v7401 = vunpack.c.l.b16 %v2765
        %v7402 = vunpack.c.h.b16 %v2765
        %v7403 = vunpack.c.l.b16 %v2766
        %v7404 = vunpack.c.h.b16 %v2766
        %v7405 = vunpack.c.l.b16 %v2767
        %v7406 = vunpack.c.h.b16 %v2767
        %v7407 = vunpack.c.l.b16 %v2768
        %v7408 = vunpack.c.h.b16 %v2768
        %v7409 = vunpack.c.l.b16 %v2769
        %v7410 = vunpack.c.h.b16 %v2769
        %v7411 = vunpack.c.l.b16 %v2770
        %v7412 = vunpack.c.h.b16 %v2770
        %v7413 = vunpack.c.l.b16 %v2771
        %v7414 = vunpack.c.l.b16 %v2772
        %v7415 = vunpack.c.h.b16 %v2772
        %v7416 = vunpack.c.l.b16 %v2773
        %v7417 = vunpack.c.h.b16 %v2773
        %v7418 = vunpack.c.l.b16 %v2774
        %v7419 = vunpack.c.h.b16 %v2774
        %v7420 = vunpack.c.l.b16 %v2775
        %v7421 = vunpack.c.h.b16 %v2775
        %v7422 = vunpack.c.l.b16 %v2776
        %v7423 = vunpack.c.h.b16 %v2776
        %v7424 = vunpack.c.l.b16 %v2777
        %v7425 = vunpack.c.h.b16 %v2777
        %v7426 = vunpack.c.l.b16 %v2778
        %v7427 = vunpack.c.h.b16 %v2778
        %v7428 = vunpack.c.l.b16 %v2779
        %v7429 = vunpack.c.h.b16 %v2779
        %v7430 = vunpack.c.l.b16 %v2780
        %v7431 = vunpack.c.l.b16 %v2781
        %v7432 = vunpack.c.h.b16 %v2781
        %v7433 = vunpack.c.l.b16 %v2782
        %v7434 = vunpack.c.h.b16 %v2782
        %v7435 = vunpack.c.l.b16 %v2783
        %v7436 = vunpack.c.h.b16 %v2783
        %v7437 = vunpack.c.l.b16 %v2784
        %v7438 = vunpack.c.h.b16 %v2784
        %v7439 = vunpack.c.l.b16 %v2785
        %v7440 = vunpack.c.h.b16 %v2785
        %v7441 = vunpack.c.l.b16 %v2786
        %v7442 = vunpack.c.h.b16 %v2786
        %v7443 = vunpack.c.l.b16 %v2787
        %v7444 = vunpack.c.h.b16 %v2787
        %v7445 = vunpack.c.l.b16 %v2788
        %v7446 = vunpack.c.h.b16 %v2788
        %v7447 = vunpack.c.l.b16 %v2789
        %v7448 = vunpack.c.l.b16 %v2790
        %v7449 = vunpack.c.h.b16 %v2790
        %v7450 = vunpack.c.l.b16 %v2791
        %v7451 = vunpack.c.h.b16 %v2791
        %v7452 = vunpack.c.l.b16 %v2792
        %v7453 = vunpack.c.h.b16 %v2792
        %v7454 = vunpack.c.l.b16 %v2793
        %v7455 = vunpack.c.h.b16 %v2793
        %v7456 = vunpack.c.l.b16 %v2794
        %v7457 = vunpack.c.h.b16 %v2794
        %v7458 = vunpack.c.l.b16 %v2795
        %v7459 = vunpack.c.h.b16 %v2795
        %v7460 = vunpack.c.l.b16 %v2796
        %v7461 = vunpack.c.h.b16 %v2796
        %v7462 = vunpack.c.l.b16 %v2797
        %v7463 = vunpack.c.h.b16 %v2797
        %v7464 = vunpack.c.l.b16 %v2798
        %v7465 = vunpack.c.l.b16 %v2799
        %v7466 = vunpack.c.h.b16 %v2799
        %v7467 = vunpack.c.l.b16 %v2800
        %v7468 = vunpack.c.h.b16 %v2800
        %v7469 = vunpack.c.l.b16 %v2801
        %v7470 = vunpack.c.h.b16 %v2801
        %v7471 = vunpack.c.l.b16 %v2802
        %v7472 = vunpack.c.h.b16 %v2802
        %v7473 = vunpack.c.l.b16 %v2803
        %v7474 = vunpack.c.h.b16 %v2803
        %v7475 = vunpack.c.l.b16 %v2804
        %v7476 = vunpack.c.h.b16 %v2804
        %v7477 = vunpack.c.l.b16 %v2805
        %v7478 = vunpack.c.h.b16 %v2805
        %v7479 = vunpack.c.l.b16 %v2806
        %v7480 = vunpack.c.h.b16 %v2806
        %v7481 = vunpack.c.l.b16 %v2807
        %v7482 = vunpack.c.l.b16 %v2808
        %v7483 = vunpack.c.h.b16 %v2808
        %v7484 = vunpack.c.l.b16 %v2809
        %v7485 = vunpack.c.h.b16 %v2809
        %v7486 = vunpack.c.l.b16 %v2810
        %v7487 = vunpack.c.h.b16 %v2810
        %v7488 = vunpack.c.l.b16 %v2811
        %v7489 = vunpack.c.h.b16 %v2811
        %v7490 = vunpack.c.l.b16 %v2812
        %v7491 = vunpack.c.h.b16 %v2812
        %v7492 = vunpack.c.l.b16 %v2813
        %v7493 = vunpack.c.h.b16 %v2813
        %v7494 = vunpack.c.l.b16 %v2814
        %v7495 = vunpack.c.h.b16 %v2814
        %v7496 = vunpack.c.l.b16 %v2815
        %v7497 = vunpack.c.h.b16 %v2815
        %v7498 = vunpack.c.l.b16 %v2816
        %v7499 = vunpack.c.l.b16 %v2817
        %v7500 = vunpack.c.h.b16 %v2817
        %v7501 = vunpack.c.l.b16 %v2818
        %v7502 = vunpack.c.h.b16 %v2818
        %v7503 = vunpack.c.l.b16 %v2819
        %v7504 = vunpack.c.h.b16 %v2819
        %v7505 = vunpack.c.l.b16 %v2820
        %v7506 = vunpack.c.h.b16 %v2820
        %v7507 = vunpack.c.l.b16 %v2821
        %v7508 = vunpack.c.h.b16 %v2821
        %v7509 = vunpack.c.l.b16 %v2822
        %v7510 = vunpack.c.h.b16 %v2822
        %v7511 = vunpack.c.l.b16 %v2823
        %v7512 = vunpack.c.h.b16 %v2823
        %v7513 = vunpack.c.l.b16 %v2824
        %v7514 = vunpack.c.h.b16 %v2824
        %v7515 = vunpack.c.l.b16 %v2825
        %v7516 = vunpack.c.l.b16 %v2826
        %v7517 = vunpack.c.h.b16 %v2826
        %v7518 = vunpack.c.l.b16 %v2827
        %v7519 = vunpack.c.h.b16 %v2827
        %v7520 = vunpack.c.l.b16 %v2828
        %v7521 = vunpack.c.h.b16 %v2828
        %v7522 = vunpack.c.l.b16 %v2829
        %v7523 = vunpack.c.h.b16 %v2829
        %v7524 = vunpack.c.l.b16 %v2830
        %v7525 = vunpack.c.h.b16 %v2830
        %v7526 = vunpack.c.l.b16 %v2831
        %v7527 = vunpack.c.h.b16 %v2831
        %v7528 = vunpack.c.l.b16 %v2832
        %v7529 = vunpack.c.h.b16 %v2832
        %v7530 = vunpack.c.l.b16 %v2833
        %v7531 = vunpack.c.h.b16 %v2833
        %v7532 = vunpack.c.l.b16 %v2834
        %v7533 = vunpack.c.l.b16 %v2835
        %v7534 = vunpack.c.h.b16 %v2835
        %v7535 = vunpack.c.l.b16 %v2836
        %v7536 = vunpack.c.h.b16 %v2836
        %v7537 = vunpack.c.l.b16 %v2837
        %v7538 = vunpack.c.h.b16 %v2837
        %v7539 = vunpack.c.l.b16 %v2838
        %v7540 = vunpack.c.h.b16 %v2838
        %v7541 = vunpack.c.l.b16 %v2839
        %v7542 = vunpack.c.h.b16 %v2839
        %v7543 = vunpack.c.l.b16 %v2840
        %v7544 = vunpack.c.h.b16 %v2840
        %v7545 = vunpack.c.l.b16 %v2841
        %v7546 = vunpack.c.h.b16 %v2841
        %v7547 = vunpack.c.l.b16 %v2842
        %v7548 = vunpack.c.h.b16 %v2842
        %v7549 = vunpack.c.l.b16 %v2843
        %v7550 = vunpack.c.l.b16 %v2844
        %v7551 = vunpack.c.h.b16 %v2844
        %v7552 = vunpack.c.l.b16 %v2845
        %v7553 = vunpack.c.h.b16 %v2845
        %v7554 = vunpack.c.l.b16 %v2846
        %v7555 = vunpack.c.h.b16 %v2846
        %v7556 = vunpack.c.l.b16 %v2847
        %v7557 = vunpack.c.h.b16 %v2847
        %v7558 = vunpack.c.l.b16 %v2848
        %v7559 = vunpack.c.h.b16 %v2848
        %v7560 = vunpack.c.l.b16 %v2849
        %v7561 = vunpack.c.h.b16 %v2849
        %v7562 = vunpack.c.l.b16 %v2850
        %v7563 = vunpack.c.h.b16 %v2850
        %v7564 = vunpack.c.l.b16 %v2851
        %v7565 = vunpack.c.h.b16 %v2851
        %v7566 = vunpack.c.l.b16 %v2852
        %v7567 = vunpack.c.l.b16 %v2853
        %v7568 = vunpack.c.h.b16 %v2853
        %v7569 = vunpack.c.l.b16 %v2854
        %v7570 = vunpack.c.h.b16 %v2854
        %v7571 = vunpack.c.l.b16 %v2855
        %v7572 = vunpack.c.h.b16 %v2855
        %v7573 = vunpack.c.l.b16 %v2856
        %v7574 = vunpack.c.h.b16 %v2856
        %v7575 = vunpack.c.l.b16 %v2857
        %v7576 = vunpack.c.h.b16 %v2857
        %v7577 = vunpack.c.l.b16 %v2858
        %v7578 = vunpack.c.h.b16 %v2858
        %v7579 = vunpack.c.l.b16 %v2859
        %v7580 = vunpack.c.h.b16 %v2859
        %v7581 = vunpack.c.l.b16 %v2860
        %v7582 = vunpack.c.h.b16 %v2860
        %v7583 = vunpack.c.l.b16 %v2861
        %v7584 = vunpack.c.l.b16 %v2862
        %v7585 = vunpack.c.h.b16 %v2862
        %v7586 = vunpack.c.l.b16 %v2863
        %v7587 = vunpack.c.h.b16 %v2863
        %v7588 = vunpack.c.l.b16 %v2864
        %v7589 = vunpack.c.h.b16 %v2864
        %v7590 = vunpack.c.l.b16 %v2865
        %v7591 = vunpack.c.h.b16 %v2865
        %v7592 = vunpack.c.l.b16 %v2866
        %v7593 = vunpack.c.h.b16 %v2866
        %v7594 = vunpack.c.l.b16 %v2867
        %v7595 = vunpack.c.h.b16 %v2867
        %v7596 = vunpack.c.l.b16 %v2868
        %v7597 = vunpack.c.h.b16 %v2868
        %v7598 = vunpack.c.l.b16 %v2869
        %v7599 = vunpack.c.h.b16 %v2869
        %v7600 = vunpack.c.l.b16 %v2870
        %v7601 = vunpack.c.l.b16 %v2871
        %v7602 = vunpack.c.h.b16 %v2871
        %v7603 = vunpack.c.l.b16 %v2872
        %v7604 = vunpack.c.h.b16 %v2872
        %v7605 = vunpack.c.l.b16 %v2873
        %v7606 = vunpack.c.h.b16 %v2873
        %v7607 = vunpack.c.l.b16 %v2874
        %v7608 = vunpack.c.h.b16 %v2874
        %v7609 = vunpack.c.l.b16 %v2875
        %v7610 = vunpack.c.h.b16 %v2875
        %v7611 = vunpack.c.l.b16 %v2876
        %v7612 = vunpack.c.h.b16 %v2876
        %v7613 = vunpack.c.l.b16 %v2877
        %v7614 = vunpack.c.h.b16 %v2877
        %v7615 = vunpack.c.l.b16 %v2878
        %v7616 = vunpack.c.h.b16 %v2878
        %v7617 = vunpack.c.l.b16 %v2879
        %v7618 = vunpack.c.l.b16 %v2880
        %v7619 = vunpack.c.h.b16 %v2880
        %v7620 = vunpack.c.l.b16 %v2881
        %v7621 = vunpack.c.h.b16 %v2881
        %v7622 = vunpack.c.l.b16 %v2882
        %v7623 = vunpack.c.h.b16 %v2882
        %v7624 = vunpack.c.l.b16 %v2883
        %v7625 = vunpack.c.h.b16 %v2883
        %v7626 = vunpack.c.l.b16 %v2884
        %v7627 = vunpack.c.h.b16 %v2884
        %v7628 = vunpack.c.l.b16 %v2885
        %v7629 = vunpack.c.h.b16 %v2885
        %v7630 = vunpack.c.l.b16 %v2886
        %v7631 = vunpack.c.h.b16 %v2886
        %v7632 = vunpack.c.l.b16 %v2887
        %v7633 = vunpack.c.h.b16 %v2887
        %v7634 = vunpack.c.l.b16 %v2888
        %v7635 = vunpack.c.l.b16 %v2889
        %v7636 = vunpack.c.h.b16 %v2889
        %v7637 = vunpack.c.l.b16 %v2890
        %v7638 = vunpack.c.h.b16 %v2890
        %v7639 = vunpack.c.l.b16 %v2891
        %v7640 = vunpack.c.h.b16 %v2891
        %v7641 = vunpack.c.l.b16 %v2892
        %v7642 = vunpack.c.h.b16 %v2892
        %v7643 = vunpack.c.l.b16 %v2893
        %v7644 = vunpack.c.h.b16 %v2893
        %v7645 = vunpack.c.l.b16 %v2894
        %v7646 = vunpack.c.h.b16 %v2894
        %v7647 = vunpack.c.l.b16 %v2895
        %v7648 = vunpack.c.h.b16 %v2895
        %v7649 = vunpack.c.l.b16 %v2896
        %v7650 = vunpack.c.h.b16 %v2896
        %v7651 = vunpack.c.l.b16 %v2897
        %v7652 = vunpack.c.l.b16 %v2898
        %v7653 = vunpack.c.h.b16 %v2898
        %v7654 = vunpack.c.l.b16 %v2899
        %v7655 = vunpack.c.h.b16 %v2899
        %v7656 = vunpack.c.l.b16 %v2900
        %v7657 = vunpack.c.h.b16 %v2900
        %v7658 = vunpack.c.l.b16 %v2901
        %v7659 = vunpack.c.h.b16 %v2901
        %v7660 = vunpack.c.l.b16 %v2902
        %v7661 = vunpack.c.h.b16 %v2902
        %v7662 = vunpack.c.l.b16 %v2903
        %v7663 = vunpack.c.h.b16 %v2903
        %v7664 = vunpack.c.l.b16 %v2904
        %v7665 = vunpack.c.h.b16 %v2904
        %v7666 = vunpack.c.l.b16 %v2905
        %v7667 = vunpack.c.h.b16 %v2905
        %v7668 = vunpack.c.l.b16 %v2906
        %v7669 = vunpack.c.l.b16 %v2907
        %v7670 = vunpack.c.h.b16 %v2907
        %v7671 = vunpack.c.l.b16 %v2908
        %v7672 = vunpack.c.h.b16 %v2908
        %v7673 = vunpack.c.l.b16 %v2909
        %v7674 = vunpack.c.h.b16 %v2909
        %v7675 = vunpack.c.l.b16 %v2910
        %v7676 = vunpack.c.h.b16 %v2910
        %v7677 = vunpack.c.l.b16 %v2911
        %v7678 = vunpack.c.h.b16 %v2911
        %v7679 = vunpack.c.l.b16 %v2912
        %v7680 = vunpack.c.h.b16 %v2912
        %v7681 = vunpack.c.l.b16 %v2913
        %v7682 = vunpack.c.h.b16 %v2913
        %v7683 = vunpack.c.l.b16 %v2914
        %v7684 = vunpack.c.h.b16 %v2914
        %v7685 = vunpack.c.l.b16 %v2915
        %v7686 = vunpack.c.l.b16 %v2916
        %v7687 = vunpack.c.h.b16 %v2916
        %v7688 = vunpack.c.l.b16 %v2917
        %v7689 = vunpack.c.h.b16 %v2917
        %v7690 = vunpack.c.l.b16 %v2918
        %v7691 = vunpack.c.h.b16 %v2918
        %v7692 = vunpack.c.l.b16 %v2919
        %v7693 = vunpack.c.h.b16 %v2919
        %v7694 = vunpack.c.l.b16 %v2920
        %v7695 = vunpack.c.h.b16 %v2920
        %v7696 = vunpack.c.l.b16 %v2921
        %v7697 = vunpack.c.h.b16 %v2921
        %v7698 = vunpack.c.l.b16 %v2922
        %v7699 = vunpack.c.h.b16 %v2922
        %v7700 = vunpack.c.l.b16 %v2923
        %v7701 = vunpack.c.h.b16 %v2923
        %v7702 = vunpack.c.l.b16 %v2924
        %v7703 = vunpack.c.l.b16 %v2925
        %v7704 = vunpack.c.h.b16 %v2925
        %v7705 = vunpack.c.l.b16 %v2926
        %v7706 = vunpack.c.h.b16 %v2926
        %v7707 = vunpack.c.l.b16 %v2927
        %v7708 = vunpack.c.h.b16 %v2927
        %v7709 = vunpack.c.l.b16 %v2928
        %v7710 = vunpack.c.h.b16 %v2928
        %v7711 = vunpack.c.l.b16 %v2929
        %v7712 = vunpack.c.h.b16 %v2929
        %v7713 = vunpack.c.l.b16 %v2930
        %v7714 = vunpack.c.h.b16 %v2930
        %v7715 = vunpack.c.l.b16 %v2931
        %v7716 = vunpack.c.h.b16 %v2931
        %v7717 = vunpack.c.l.b16 %v2932
        %v7718 = vunpack.c.h.b16 %v2932
        %v7719 = vunpack.c.l.b16 %v2933
        %v7720 = vunpack.c.l.b16 %v2934
        %v7721 = vunpack.c.h.b16 %v2934
        %v7722 = vunpack.c.l.b16 %v2935
        %v7723 = vunpack.c.h.b16 %v2935
        %v7724 = vunpack.c.l.b16 %v2936
        %v7725 = vunpack.c.h.b16 %v2936
        %v7726 = vunpack.c.l.b16 %v2937
        %v7727 = vunpack.c.h.b16 %v2937
        %v7728 = vunpack.c.l.b16 %v2938
        %v7729 = vunpack.c.h.b16 %v2938
        %v7730 = vunpack.c.l.b16 %v2939
        %v7731 = vunpack.c.h.b16 %v2939
        %v7732 = vunpack.c.l.b16 %v2940
        %v7733 = vunpack.c.h.b16 %v2940
        %v7734 = vunpack.c.l.b16 %v2941
        %v7735 = vunpack.c.h.b16 %v2941
        %v7736 = vunpack.c.l.b16 %v2942
        %v7737 = vunpack.c.l.b16 %v2943
        %v7738 = vunpack.c.h.b16 %v2943
        %v7739 = vunpack.c.l.b16 %v2944
        %v7740 = vunpack.c.h.b16 %v2944
        %v7741 = vunpack.c.l.b16 %v2945
        %v7742 = vunpack.c.h.b16 %v2945
        %v7743 = vunpack.c.l.b16 %v2946
        %v7744 = vunpack.c.h.b16 %v2946
        %v7745 = vunpack.c.l.b16 %v2947
        %v7746 = vunpack.c.h.b16 %v2947
        %v7747 = vunpack.c.l.b16 %v2948
        %v7748 = vunpack.c.h.b16 %v2948
        %v7749 = vunpack.c.l.b16 %v2949
        %v7750 = vunpack.c.h.b16 %v2949
        %v7751 = vunpack.c.l.b16 %v2950
        %v7752 = vunpack.c.h.b16 %v2950
        %v7753 = vunpack.c.l.b16 %v2951
        %v7754 = vunpack.c.l.b16 %v2952
        %v7755 = vunpack.c.h.b16 %v2952
        %v7756 = vunpack.c.l.b16 %v2953
        %v7757 = vunpack.c.h.b16 %v2953
        %v7758 = vunpack.c.l.b16 %v2954
        %v7759 = vunpack.c.h.b16 %v2954
        %v7760 = vunpack.c.l.b16 %v2955
        %v7761 = vunpack.c.h.b16 %v2955
        %v7762 = vunpack.c.l.b16 %v2956
        %v7763 = vunpack.c.h.b16 %v2956
        %v7764 = vunpack.c.l.b16 %v2957
        %v7765 = vunpack.c.h.b16 %v2957
        %v7766 = vunpack.c.l.b16 %v2958
        %v7767 = vunpack.c.h.b16 %v2958
        %v7768 = vunpack.c.l.b16 %v2959
        %v7769 = vunpack.c.h.b16 %v2959
        %v7770 = vunpack.c.l.b16 %v2960
        %v7771 = vunpack.c.l.b16 %v2961
        %v7772 = vunpack.c.h.b16 %v2961
        %v7773 = vunpack.c.l.b16 %v2962
        %v7774 = vunpack.c.h.b16 %v2962
        %v7775 = vunpack.c.l.b16 %v2963
        %v7776 = vunpack.c.h.b16 %v2963
        %v7777 = vunpack.c.l.b16 %v2964
        %v7778 = vunpack.c.h.b16 %v2964
        %v7779 = vunpack.c.l.b16 %v2965
        %v7780 = vunpack.c.h.b16 %v2965
        %v7781 = vunpack.c.l.b16 %v2966
        %v7782 = vunpack.c.h.b16 %v2966
        %v7783 = vunpack.c.l.b16 %v2967
        %v7784 = vunpack.c.h.b16 %v2967
        %v7785 = vunpack.c.l.b16 %v2968
        %v7786 = vunpack.c.h.b16 %v2968
        %v7787 = vunpack.c.l.b16 %v2969
        %v7788 = vunpack.c.l.b16 %v2970
        %v7789 = vunpack.c.h.b16 %v2970
        %v7790 = vunpack.c.l.b16 %v2971
        %v7791 = vunpack.c.h.b16 %v2971
        %v7792 = vunpack.c.l.b16 %v2972
        %v7793 = vunpack.c.h.b16 %v2972
        %v7794 = vunpack.c.l.b16 %v2973
        %v7795 = vunpack.c.h.b16 %v2973
        %v7796 = vunpack.c.l.b16 %v2974
        %v7797 = vunpack.c.h.b16 %v2974
        %v7798 = vunpack.c.l.b16 %v2975
        %v7799 = vunpack.c.h.b16 %v2975
        %v7800 = vunpack.c.l.b16 %v2976
        %v7801 = vunpack.c.h.b16 %v2976
        %v7802 = vunpack.c.l.b16 %v2977
        %v7803 = vunpack.c.h.b16 %v2977
        %v7804 = vunpack.c.l.b16 %v2978
        %v7805 = vunpack.c.l.b16 %v2979
        %v7806 = vunpack.c.h.b16 %v2979
        %v7807 = vunpack.c.l.b16 %v2980
        %v7808 = vunpack.c.h.b16 %v2980
        %v7809 = vunpack.c.l.b16 %v2981
        %v7810 = vunpack.c.h.b16 %v2981
        %v7811 = vunpack.c.l.b16 %v2982
        %v7812 = vunpack.c.h.b16 %v2982
        %v7813 = vunpack.c.l.b16 %v2983
        %v7814 = vunpack.c.h.b16 %v2983
        %v7815 = vunpack.c.l.b16 %v2984
        %v7816 = vunpack.c.h.b16 %v2984
        %v7817 = vunpack.c.l.b16 %v2985
        %v7818 = vunpack.c.h.b16 %v2985
        %v7819 = vunpack.c.l.b16 %v2986
        %v7820 = vunpack.c.h.b16 %v2986
        %v7821 = vunpack.c.l.b16 %v2987
        %v7822 = vunpack.c.l.b16 %v2988
        %v7823 = vunpack.c.h.b16 %v2988
        %v7824 = vunpack.c.l.b16 %v2989
        %v7825 = vunpack.c.h.b16 %v2989
        %v7826 = vunpack.c.l.b16 %v2990
        %v7827 = vunpack.c.h.b16 %v2990
        %v7828 = vunpack.c.l.b16 %v2991
        %v7829 = vunpack.c.h.b16 %v2991
        %v7830 = vunpack.c.l.b16 %v2992
        %v7831 = vunpack.c.h.b16 %v2992
        %v7832 = vunpack.c.l.b16 %v2993
        %v7833 = vunpack.c.h.b16 %v2993
        %v7834 = vunpack.c.l.b16 %v2994
        %v7835 = vunpack.c.h.b16 %v2994
        %v7836 = vunpack.c.l.b16 %v2995
        %v7837 = vunpack.c.h.b16 %v2995
        %v7838 = vunpack.c.l.b16 %v2996
        %v7839 = vunpack.c.l.b16 %v2997
        %v7840 = vunpack.c.h.b16 %v2997
        %v7841 = vunpack.c.l.b16 %v2998
        %v7842 = vunpack.c.h.b16 %v2998
        %v7843 = vunpack.c.l.b16 %v2999
        %v7844 = vunpack.c.h.b16 %v2999
        %v7845 = vunpack.c.l.b16 %v3000
        %v7846 = vunpack.c.h.b16 %v3000
        %v7847 = vunpack.c.l.b16 %v3001
        %v7848 = vunpack.c.h.b16 %v3001
        %v7849 = vunpack.c.l.b16 %v3002
        %v7850 = vunpack.c.h.b16 %v3002
        %v7851 = vunpack.c.l.b16 %v3003
        %v7852 = vunpack.c.h.b16 %v3003
        %v7853 = vunpack.c.l.b16 %v3004
        %v7854 = vunpack.c.h.b16 %v3004
        %v7855 = vunpack.c.l.b16 %v3005
        %v7856 = vunpack.c.l.b16 %v3006
        %v7857 = vunpack.c.h.b16 %v3006
        %v7858 = vunpack.c.l.b16 %v3007
        %v7859 = vunpack.c.h.b16 %v3007
        %v7860 = vunpack.c.l.b16 %v3008
        %v7861 = vunpack.c.h.b16 %v3008
        %v7862 = vunpack.c.l.b16 %v3009
        %v7863 = vunpack.c.h.b16 %v3009
        %v7864 = vunpack.c.l.b16 %v3010
        %v7865 = vunpack.c.h.b16 %v3010
        %v7866 = vunpack.c.l.b16 %v3011
        %v7867 = vunpack.c.h.b16 %v3011
        %v7868 = vunpack.c.l.b16 %v3012
        %v7869 = vunpack.c.h.b16 %v3012
        %v7870 = vunpack.c.l.b16 %v3013
        %v7871 = vunpack.c.h.b16 %v3013
        %v7872 = vunpack.c.l.b16 %v3014
        %v7873 = vunpack.c.l.b16 %v3015
        %v7874 = vunpack.c.h.b16 %v3015
        %v7875 = vunpack.c.l.b16 %v3016
        %v7876 = vunpack.c.h.b16 %v3016
        %v7877 = vunpack.c.l.b16 %v3017
        %v7878 = vunpack.c.h.b16 %v3017
        %v7879 = vunpack.c.l.b16 %v3018
        %v7880 = vunpack.c.h.b16 %v3018
        %v7881 = vunpack.c.l.b16 %v3019
        %v7882 = vunpack.c.h.b16 %v3019
        %v7883 = vunpack.c.l.b16 %v3020
        %v7884 = vunpack.c.h.b16 %v3020
        %v7885 = vunpack.c.l.b16 %v3021
        %v7886 = vunpack.c.h.b16 %v3021
        %v7887 = vunpack.c.l.b16 %v3022
        %v7888 = vunpack.c.h.b16 %v3022
        %v7889 = vunpack.c.l.b16 %v3023
        %v7890 = vunpack.c.l.b16 %v3024
        %v7891 = vunpack.c.h.b16 %v3024
        %v7892 = vunpack.c.l.b16 %v3025
        %v7893 = vunpack.c.h.b16 %v3025
        %v7894 = vunpack.c.l.b16 %v3026
        %v7895 = vunpack.c.h.b16 %v3026
        %v7896 = vunpack.c.l.b16 %v3027
        %v7897 = vunpack.c.h.b16 %v3027
        %v7898 = vunpack.c.l.b16 %v3028
        %v7899 = vunpack.c.h.b16 %v3028
        %v7900 = vunpack.c.l.b16 %v3029
        %v7901 = vunpack.c.h.b16 %v3029
        %v7902 = vunpack.c.l.b16 %v3030
        %v7903 = vunpack.c.h.b16 %v3030
        %v7904 = vunpack.c.l.b16 %v3031
        %v7905 = vunpack.c.h.b16 %v3031
        %v7906 = vunpack.c.l.b16 %v3032
        %v7907 = vunpack.c.l.b16 %v3033
        %v7908 = vunpack.c.h.b16 %v3033
        %v7909 = vunpack.c.l.b16 %v3034
        %v7910 = vunpack.c.h.b16 %v3034
        %v7911 = vunpack.c.l.b16 %v3035
        %v7912 = vunpack.c.h.b16 %v3035
        %v7913 = vunpack.c.l.b16 %v3036
        %v7914 = vunpack.c.h.b16 %v3036
        %v7915 = vunpack.c.l.b16 %v3037
        %v7916 = vunpack.c.h.b16 %v3037
        %v7917 = vunpack.c.l.b16 %v3038
        %v7918 = vunpack.c.h.b16 %v3038
        %v7919 = vunpack.c.l.b16 %v3039
        %v7920 = vunpack.c.h.b16 %v3039
        %v7921 = vunpack.c.l.b16 %v3040
        %v7922 = vunpack.c.h.b16 %v3040
        %v7923 = vunpack.c.l.b16 %v3041
        %v7924 = vunpack.c.l.b16 %v3042
        %v7925 = vunpack.c.h.b16 %v3042
        %v7926 = vunpack.c.l.b16 %v3043
        %v7927 = vunpack.c.h.b16 %v3043
        %v7928 = vunpack.c.l.b16 %v3044
        %v7929 = vunpack.c.h.b16 %v3044
        %v7930 = vunpack.c.l.b16 %v3045
        %v7931 = vunpack.c.h.b16 %v3045
        %v7932 = vunpack.c.l.b16 %v3046
        %v7933 = vunpack.c.h.b16 %v3046
        %v7934 = vunpack.c.l.b16 %v3047
        %v7935 = vunpack.c.h.b16 %v3047
        %v7936 = vunpack.c.l.b16 %v3048
        %v7937 = vunpack.c.h.b16 %v3048
        %v7938 = vunpack.c.l.b16 %v3049
        %v7939 = vunpack.c.h.b16 %v3049
        %v7940 = vunpack.c.l.b16 %v3050
        %v7941 = vunpack.c.l.b16 %v3051
        %v7942 = vunpack.c.h.b16 %v3051
        %v7943 = vunpack.c.l.b16 %v3052
        %v7944 = vunpack.c.h.b16 %v3052
        %v7945 = vunpack.c.l.b16 %v3053
        %v7946 = vunpack.c.h.b16 %v3053
        %v7947 = vunpack.c.l.b16 %v3054
        %v7948 = vunpack.c.h.b16 %v3054
        %v7949 = vunpack.c.l.b16 %v3055
        %v7950 = vunpack.c.h.b16 %v3055
        %v7951 = vunpack.c.l.b16 %v3056
        %v7952 = vunpack.c.h.b16 %v3056
        %v7953 = vunpack.c.l.b16 %v3057
        %v7954 = vunpack.c.h.b16 %v3057
        %v7955 = vunpack.c.l.b16 %v3058
        %v7956 = vunpack.c.h.b16 %v3058
        %v7957 = vunpack.c.l.b16 %v3059
        %v7958 = vunpack.c.l.b16 %v3060
        %v7959 = vunpack.c.h.b16 %v3060
        %v7960 = vunpack.c.l.b16 %v3061
        %v7961 = vunpack.c.h.b16 %v3061
        %v7962 = vunpack.c.l.b16 %v3062
        %v7963 = vunpack.c.h.b16 %v3062
        %v7964 = vunpack.c.l.b16 %v3063
        %v7965 = vunpack.c.h.b16 %v3063
        %v7966 = vunpack.c.l.b16 %v3064
        %v7967 = vunpack.c.h.b16 %v3064
        %v7968 = vunpack.c.l.b16 %v3065
        %v7969 = vunpack.c.h.b16 %v3065
        %v7970 = vunpack.c.l.b16 %v3066
        %v7971 = vunpack.c.h.b16 %v3066
        %v7972 = vunpack.c.l.b16 %v3067
        %v7973 = vunpack.c.h.b16 %v3067
        %v7974 = vunpack.c.l.b16 %v3068
        %v7975 = vunpack.c.l.b16 %v3069
        %v7976 = vunpack.c.h.b16 %v3069
        %v7977 = vunpack.c.l.b16 %v3070
        %v7978 = vunpack.c.h.b16 %v3070
        %v7979 = vunpack.c.l.b16 %v3071
        %v7980 = vunpack.c.h.b16 %v3071
        %v7981 = vunpack.c.l.b16 %v3072
        %v7982 = vunpack.c.h.b16 %v3072
        %v7983 = vunpack.c.l.b16 %v3073
        %v7984 = vunpack.c.h.b16 %v3073
        %v7985 = vunpack.c.l.b16 %v3074
        %v7986 = vunpack.c.h.b16 %v3074
        %v7987 = vunpack.c.l.b16 %v3075
        %v7988 = vunpack.c.h.b16 %v3075
        %v7989 = vunpack.c.l.b16 %v3076
        %v7990 = vunpack.c.h.b16 %v3076
        %v7991 = vunpack.c.l.b16 %v3077
        %v7992 = vunpack.c.l.b16 %v3078
        %v7993 = vunpack.c.h.b16 %v3078
        %v7994 = vunpack.c.l.b16 %v3079
        %v7995 = vunpack.c.h.b16 %v3079
        %v7996 = vunpack.c.l.b16 %v3080
        %v7997 = vunpack.c.h.b16 %v3080
        %v7998 = vunpack.c.l.b16 %v3081
        %v7999 = vunpack.c.h.b16 %v3081
        %v8000 = vunpack.c.l.b16 %v3082
        %v8001 = vunpack.c.h.b16 %v3082
        %v8002 = vunpack.c.l.b16 %v3083
        %v8003 = vunpack.c.h.b16 %v3083
        %v8004 = vunpack.c.l.b16 %v3084
        %v8005 = vunpack.c.h.b16 %v3084
        %v8006 = vunpack.c.l.b16 %v3085
        %v8007 = vunpack.c.h.b16 %v3085
        %v8008 = vunpack.c.l.b16 %v3086
        %v8009 = vunpack.c.l.b16 %v3087
        %v8010 = vunpack.c.h.b16 %v3087
        %v8011 = vunpack.c.l.b16 %v3088
        %v8012 = vunpack.c.h.b16 %v3088
        %v8013 = vunpack.c.l.b16 %v3089
        %v8014 = vunpack.c.h.b16 %v3089
        %v8015 = vunpack.c.l.b16 %v3090
        %v8016 = vunpack.c.h.b16 %v3090
        %v8017 = vunpack.c.l.b16 %v3091
        %v8018 = vunpack.c.h.b16 %v3091
        %v8019 = vunpack.c.l.b16 %v3092
        %v8020 = vunpack.c.h.b16 %v3092
        %v8021 = vunpack.c.l.b16 %v3093
        %v8022 = vunpack.c.h.b16 %v3093
        %v8023 = vunpack.c.l.b16 %v3094
        %v8024 = vunpack.c.h.b16 %v3094
        %v8025 = vunpack.c.l.b16 %v3095
        %v8026 = vunpack.c.l.b16 %v3096
        %v8027 = vunpack.c.h.b16 %v3096
        %v8028 = vunpack.c.l.b16 %v3097
        %v8029 = vunpack.c.h.b16 %v3097
        %v8030 = vunpack.c.l.b16 %v3098
        %v8031 = vunpack.c.h.b16 %v3098
        %v8032 = vunpack.c.l.b16 %v3099
        %v8033 = vunpack.c.h.b16 %v3099
        %v8034 = vunpack.c.l.b16 %v3100
        %v8035 = vunpack.c.h.b16 %v3100
        %v8036 = vunpack.c.l.b16 %v3101
        %v8037 = vunpack.c.h.b16 %v3101
        %v8038 = vunpack.c.l.b16 %v3102
        %v8039 = vunpack.c.h.b16 %v3102
        %v8040 = vunpack.c.l.b16 %v3103
        %v8041 = vunpack.c.h.b16 %v3103
        %v8042 = vunpack.c.l.b16 %v3104
        %v8043 = vunpack.c.l.b16 %v3105
        %v8044 = vunpack.c.h.b16 %v3105
        %v8045 = vunpack.c.l.b16 %v3106
        %v8046 = vunpack.c.h.b16 %v3106
        %v8047 = vunpack.c.l.b16 %v3107
        %v8048 = vunpack.c.h.b16 %v3107
        %v8049 = vunpack.c.l.b16 %v3108
        %v8050 = vunpack.c.h.b16 %v3108
        %v8051 = vunpack.c.l.b16 %v3109
        %v8052 = vunpack.c.h.b16 %v3109
        %v8053 = vunpack.c.l.b16 %v3110
        %v8054 = vunpack.c.h.b16 %v3110
        %v8055 = vunpack.c.l.b16 %v3111
        %v8056 = vunpack.c.h.b16 %v3111
        %v8057 = vunpack.c.l.b16 %v3112
        %v8058 = vunpack.c.h.b16 %v3112
        %v8059 = vunpack.c.l.b16 %v3113
        %v8060 = vunpack.c.l.b16 %v3114
        %v8061 = vunpack.c.h.b16 %v3114
        %v8062 = vunpack.c.l.b16 %v3115
        %v8063 = vunpack.c.h.b16 %v3115
        %v8064 = vunpack.c.l.b16 %v3116
        %v8065 = vunpack.c.h.b16 %v3116
        %v8066 = vunpack.c.l.b16 %v3117
        %v8067 = vunpack.c.h.b16 %v3117
        %v8068 = vunpack.c.l.b16 %v3118
        %v8069 = vunpack.c.h.b16 %v3118
        %v8070 = vunpack.c.l.b16 %v3119
        %v8071 = vunpack.c.h.b16 %v3119
        %v8072 = vunpack.c.l.b16 %v3120
        %v8073 = vunpack.c.h.b16 %v3120
        %v8074 = vunpack.c.l.b16 %v3121
        %v8075 = vunpack.c.h.b16 %v3121
        %v8076 = vunpack.c.l.b16 %v3122
        %v8077 = vunpack.c.l.b16 %v3123
        %v8078 = vunpack.c.h.b16 %v3123
        %v8079 = vunpack.c.l.b16 %v3124
        %v8080 = vunpack.c.h.b16 %v3124
        %v8081 = vunpack.c.l.b16 %v3125
        %v8082 = vunpack.c.h.b16 %v3125
        %v8083 = vunpack.c.l.b16 %v3126
        %v8084 = vunpack.c.h.b16 %v3126
        %v8085 = vunpack.c.l.b16 %v3127
        %v8086 = vunpack.c.h.b16 %v3127
        %v8087 = vunpack.c.l.b16 %v3128
        %v8088 = vunpack.c.h.b16 %v3128
        %v8089 = vunpack.c.l.b16 %v3129
        %v8090 = vunpack.c.h.b16 %v3129
        %v8091 = vunpack.c.l.b16 %v3130
        %v8092 = vunpack.c.h.b16 %v3130
        %v8093 = vunpack.c.l.b16 %v3131
        %v8094 = vunpack.c.l.b16 %v3132
        %v8095 = vunpack.c.h.b16 %v3132
        %v8096 = vunpack.c.l.b16 %v3133
        %v8097 = vunpack.c.h.b16 %v3133
        %v8098 = vunpack.c.l.b16 %v3134
        %v8099 = vunpack.c.h.b16 %v3134
        %v8100 = vunpack.c.l.b16 %v3135
        %v8101 = vunpack.c.h.b16 %v3135
        %v8102 = vunpack.c.l.b16 %v3136
        %v8103 = vunpack.c.h.b16 %v3136
        %v8104 = vunpack.c.l.b16 %v3137
        %v8105 = vunpack.c.h.b16 %v3137
        %v8106 = vunpack.c.l.b16 %v3138
        %v8107 = vunpack.c.h.b16 %v3138
        %v8108 = vunpack.c.l.b16 %v3139
        %v8109 = vunpack.c.h.b16 %v3139
        %v8110 = vunpack.c.l.b16 %v3140
        %v8111 = vunpack.c.l.b16 %v3141
        %v8112 = vunpack.c.h.b16 %v3141
        %v8113 = vunpack.c.l.b16 %v3142
        %v8114 = vunpack.c.h.b16 %v3142
        %v8115 = vunpack.c.l.b16 %v3143
        %v8116 = vunpack.c.h.b16 %v3143
        %v8117 = vunpack.c.l.b16 %v3144
        %v8118 = vunpack.c.h.b16 %v3144
        %v8119 = vunpack.c.l.b16 %v3145
        %v8120 = vunpack.c.h.b16 %v3145
        %v8121 = vunpack.c.l.b16 %v3146
        %v8122 = vunpack.c.h.b16 %v3146
        %v8123 = vunpack.c.l.b16 %v3147
        %v8124 = vunpack.c.h.b16 %v3147
        %v8125 = vunpack.c.l.b16 %v3148
        %v8126 = vunpack.c.h.b16 %v3148
        %v8127 = vunpack.c.l.b16 %v3149
        %v8128 = vunpack.c.l.b16 %v3150
        %v8129 = vunpack.c.h.b16 %v3150
        %v8130 = vunpack.c.l.b16 %v3151
        %v8131 = vunpack.c.h.b16 %v3151
        %v8132 = vunpack.c.l.b16 %v3152
        %v8133 = vunpack.c.h.b16 %v3152
        %v8134 = vunpack.c.l.b16 %v3153
        %v8135 = vunpack.c.h.b16 %v3153
        %v8136 = vunpack.c.l.b16 %v3154
        %v8137 = vunpack.c.h.b16 %v3154
        %v8138 = vunpack.c.l.b16 %v3155
        %v8139 = vunpack.c.h.b16 %v3155
        %v8140 = vunpack.c.l.b16 %v3156
        %v8141 = vunpack.c.h.b16 %v3156
        %v8142 = vunpack.c.l.b16 %v3157
        %v8143 = vunpack.c.h.b16 %v3157
        %v8144 = vunpack.c.l.b16 %v3158
        %v8145 = vunpack.c.l.b16 %v3159
        %v8146 = vunpack.c.h.b16 %v3159
        %v8147 = vunpack.c.l.b16 %v3160
        %v8148 = vunpack.c.h.b16 %v3160
        %v8149 = vunpack.c.l.b16 %v3161
        %v8150 = vunpack.c.h.b16 %v3161
        %v8151 = vunpack.c.l.b16 %v3162
        %v8152 = vunpack.c.h.b16 %v3162
        %v8153 = vunpack.c.l.b16 %v3163
        %v8154 = vunpack.c.h.b16 %v3163
        %v8155 = vunpack.c.l.b16 %v3164
        %v8156 = vunpack.c.h.b16 %v3164
        %v8157 = vunpack.c.l.b16 %v3165
        %v8158 = vunpack.c.h.b16 %v3165
        %v8159 = vunpack.c.l.b16 %v3166
        %v8160 = vunpack.c.h.b16 %v3166
        %v8161 = vunpack.c.l.b16 %v3167
        %v8162 = vunpack.c.l.b16 %v3168
        %v8163 = vunpack.c.h.b16 %v3168
        %v8164 = vunpack.c.l.b16 %v3169
        %v8165 = vunpack.c.h.b16 %v3169
        %v8166 = vunpack.c.l.b16 %v3170
        %v8167 = vunpack.c.h.b16 %v3170
        %v8168 = vunpack.c.l.b16 %v3171
        %v8169 = vunpack.c.h.b16 %v3171
        %v8170 = vunpack.c.l.b16 %v3172
        %v8171 = vunpack.c.h.b16 %v3172
        %v8172 = vunpack.c.l.b16 %v3173
        %v8173 = vunpack.c.h.b16 %v3173
        %v8174 = vunpack.c.l.b16 %v3174
        %v8175 = vunpack.c.h.b16 %v3174
        %v8176 = vunpack.c.l.b16 %v3175
        %v8177 = vunpack.c.h.b16 %v3175
        %v8178 = vunpack.c.l.b16 %v3176
        %v8179 = vunpack.c.l.b16 %v3177
        %v8180 = vunpack.c.h.b16 %v3177
        %v8181 = vunpack.c.l.b16 %v3178
        %v8182 = vunpack.c.h.b16 %v3178
        %v8183 = vunpack.c.l.b16 %v3179
        %v8184 = vunpack.c.h.b16 %v3179
        %v8185 = vunpack.c.l.b16 %v3180
        %v8186 = vunpack.c.h.b16 %v3180
        %v8187 = vunpack.c.l.b16 %v3181
        %v8188 = vunpack.c.h.b16 %v3181
        %v8189 = vunpack.c.l.b16 %v3182
        %v8190 = vunpack.c.h.b16 %v3182
        %v8191 = vunpack.c.l.b16 %v3183
        %v8192 = vunpack.c.h.b16 %v3183
        %v8193 = vunpack.c.l.b16 %v3184
        %v8194 = vunpack.c.h.b16 %v3184
        %v8195 = vunpack.c.l.b16 %v3185
        %v8196 = vunpack.c.l.b16 %v3186
        %v8197 = vunpack.c.h.b16 %v3186
        %v8198 = vunpack.c.l.b16 %v3187
        %v8199 = vunpack.c.h.b16 %v3187
        %v8200 = vunpack.c.l.b16 %v3188
        %v8201 = vunpack.c.h.b16 %v3188
        %v8202 = vunpack.c.l.b16 %v3189
        %v8203 = vunpack.c.h.b16 %v3189
        %v8204 = vunpack.c.l.b16 %v3190
        %v8205 = vunpack.c.h.b16 %v3190
        %v8206 = vunpack.c.l.b16 %v3191
        %v8207 = vunpack.c.h.b16 %v3191
        %v8208 = vunpack.c.l.b16 %v3192
        %v8209 = vunpack.c.h.b16 %v3192
        %v8210 = vunpack.c.l.b16 %v3193
        %v8211 = vunpack.c.h.b16 %v3193
        %v8212 = vunpack.c.l.b16 %v3194
        %v8213 = vunpack.c.l.b16 %v3195
        %v8214 = vunpack.c.h.b16 %v3195
        %v8215 = vunpack.c.l.b16 %v3196
        %v8216 = vunpack.c.h.b16 %v3196
        %v8217 = vunpack.c.l.b16 %v3197
        %v8218 = vunpack.c.h.b16 %v3197
        %v8219 = vunpack.c.l.b16 %v3198
        %v8220 = vunpack.c.h.b16 %v3198
        %v8221 = vunpack.c.l.b16 %v3199
        %v8222 = vunpack.c.h.b16 %v3199
        %v8223 = vunpack.c.l.b16 %v3200
        %v8224 = vunpack.c.h.b16 %v3200
        %v8225 = vunpack.c.l.b16 %v3201
        %v8226 = vunpack.c.h.b16 %v3201
        %v8227 = vunpack.c.l.b16 %v3202
        %v8228 = vunpack.c.h.b16 %v3202
        %v8229 = vunpack.c.l.b16 %v3203
        %v8230 = vunpack.c.l.b16 %v3204
        %v8231 = vunpack.c.h.b16 %v3204
        %v8232 = vunpack.c.l.b16 %v3205
        %v8233 = vunpack.c.h.b16 %v3205
        %v8234 = vunpack.c.l.b16 %v3206
        %v8235 = vunpack.c.h.b16 %v3206
        %v8236 = vunpack.c.l.b16 %v3207
        %v8237 = vunpack.c.h.b16 %v3207
        %v8238 = vunpack.c.l.b16 %v3208
        %v8239 = vunpack.c.h.b16 %v3208
        %v8240 = vunpack.c.l.b16 %v3209
        %v8241 = vunpack.c.h.b16 %v3209
        %v8242 = vunpack.c.l.b16 %v3210
        %v8243 = vunpack.c.h.b16 %v3210
        %v8244 = vunpack.c.l.b16 %v3211
        %v8245 = vunpack.c.h.b16 %v3211
        %v8246 = vunpack.c.l.b16 %v3212
        %v8247 = vpack.c.b16 %v5000, %v4983
        %v8248 = vpack.c.b16 %v5001, %v4984
        %v8249 = vpack.c.b16 %v5002, %v4985
        %v8250 = vpack.c.b16 %v5003, %v4986
        %v8251 = vpack.c.b16 %v5004, %v4987
        %v8252 = vpack.c.b16 %v5005, %v4988
        %v8253 = vpack.c.b16 %v5006, %v4989
        %v8254 = vpack.c.b16 %v5007, %v4990
        %v8255 = vpack.c.b16 %v5008, %v4991
        %v8256 = vpack.c.b16 %v5009, %v4992
        %v8257 = vpack.c.b16 %v5010, %v4993
        %v8258 = vpack.c.b16 %v5011, %v4994
        %v8259 = vpack.c.b16 %v5012, %v4995
        %v8260 = vpack.c.b16 %v5013, %v4996
        %v8261 = vpack.c.b16 %v5014, %v4997
        %v8262 = vpack.c.b16 %v5015, %v4998
        %v8263 = vpack.c.b16 %v5016, %v4999
        %v8264 = vpack.c.b16 %v5034, %v5017
        %v8265 = vpack.c.b16 %v5035, %v5018
        %v8266 = vpack.c.b16 %v5036, %v5019
        %v8267 = vpack.c.b16 %v5037, %v5020
        %v8268 = vpack.c.b16 %v5038, %v5021
        %v8269 = vpack.c.b16 %v5039, %v5022
        %v8270 = vpack.c.b16 %v5040, %v5023
        %v8271 = vpack.c.b16 %v5041, %v5024
        %v8272 = vpack.c.b16 %v5042, %v5025
        %v8273 = vpack.c.b16 %v5043, %v5026
        %v8274 = vpack.c.b16 %v5044, %v5027
        %v8275 = vpack.c.b16 %v5045, %v5028
        %v8276 = vpack.c.b16 %v5046, %v5029
        %v8277 = vpack.c.b16 %v5047, %v5030
        %v8278 = vpack.c.b16 %v5048, %v5031
        %v8279 = vpack.c.b16 %v5049, %v5032
        %v8280 = vpack.c.b16 %v5050, %v5033
        %v8281 = vpack.c.b16 %v5068, %v5051
        %v8282 = vpack.c.b16 %v5069, %v5052
        %v8283 = vpack.c.b16 %v5070, %v5053
        %v8284 = vpack.c.b16 %v5071, %v5054
        %v8285 = vpack.c.b16 %v5072, %v5055
        %v8286 = vpack.c.b16 %v5073, %v5056
        %v8287 = vpack.c.b16 %v5074, %v5057
        %v8288 = vpack.c.b16 %v5075, %v5058
        %v8289 = vpack.c.b16 %v5076, %v5059
        %v8290 = vpack.c.b16 %v5077, %v5060
        %v8291 = vpack.c.b16 %v5078, %v5061
        %v8292 = vpack.c.b16 %v5079, %v5062
        %v8293 = vpack.c.b16 %v5080, %v5063
        %v8294 = vpack.c.b16 %v5081, %v5064
        %v8295 = vpack.c.b16 %v5082, %v5065
        %v8296 = vpack.c.b16 %v5083, %v5066
        %v8297 = vpack.c.b16 %v5084, %v5067
        %v8298 = vpack.c.b16 %v5102, %v5085
        %v8299 = vpack.c.b16 %v5103, %v5086
        %v8300 = vpack.c.b16 %v5104, %v5087
        %v8301 = vpack.c.b16 %v5105, %v5088
        %v8302 = vpack.c.b16 %v5106, %v5089
        %v8303 = vpack.c.b16 %v5107, %v5090
        %v8304 = vpack.c.b16 %v5108, %v5091
        %v8305 = vpack.c.b16 %v5109, %v5092
        %v8306 = vpack.c.b16 %v5110, %v5093
        %v8307 = vpack.c.b16 %v5111, %v5094
        %v8308 = vpack.c.b16 %v5112, %v5095
        %v8309 = vpack.c.b16 %v5113, %v5096
        %v8310 = vpack.c.b16 %v5114, %v5097
        %v8311 = vpack.c.b16 %v5115, %v5098
        %v8312 = vpack.c.b16 %v5116, %v5099
        %v8313 = vpack.c.b16 %v5117, %v5100
        %v8314 = vpack.c.b16 %v5118, %v5101
        %v8315 = vpack.c.b16 %v5136, %v5119
        %v8316 = vpack.c.b16 %v5137, %v5120
        %v8317 = vpack.c.b16 %v5138, %v5121
        %v8318 = vpack.c.b16 %v5139, %v5122
        %v8319 = vpack.c.b16 %v5140, %v5123
        %v8320 = vpack.c.b16 %v5141, %v5124
        %v8321 = vpack.c.b16 %v5142, %v5125
        %v8322 = vpack.c.b16 %v5143, %v5126
        %v8323 = vpack.c.b16 %v5144, %v5127
        %v8324 = vpack.c.b16 %v5145, %v5128
        %v8325 = vpack.c.b16 %v5146, %v5129
        %v8326 = vpack.c.b16 %v5147, %v5130
        %v8327 = vpack.c.b16 %v5148, %v5131
        %v8328 = vpack.c.b16 %v5149, %v5132
        %v8329 = vpack.c.b16 %v5150, %v5133
        %v8330 = vpack.c.b16 %v5151, %v5134
        %v8331 = vpack.c.b16 %v5152, %v5135
        %v8332 = vpack.c.b16 %v5170, %v5153
        %v8333 = vpack.c.b16 %v5171, %v5154
        %v8334 = vpack.c.b16 %v5172, %v5155
        %v8335 = vpack.c.b16 %v5173, %v5156
        %v8336 = vpack.c.b16 %v5174, %v5157
        %v8337 = vpack.c.b16 %v5175, %v5158
        %v8338 = vpack.c.b16 %v5176, %v5159
        %v8339 = vpack.c.b16 %v5177, %v5160
        %v8340 = vpack.c.b16 %v5178, %v5161
        %v8341 = vpack.c.b16 %v5179, %v5162
        %v8342 = vpack.c.b16 %v5180, %v5163
        %v8343 = vpack.c.b16 %v5181, %v5164
        %v8344 = vpack.c.b16 %v5182, %v5165
        %v8345 = vpack.c.b16 %v5183, %v5166
        %v8346 = vpack.c.b16 %v5184, %v5167
        %v8347 = vpack.c.b16 %v5185, %v5168
        %v8348 = vpack.c.b16 %v5186, %v5169
        %v8349 = vpack.c.b16 %v5204, %v5187
        %v8350 = vpack.c.b16 %v5205, %v5188
        %v8351 = vpack.c.b16 %v5206, %v5189
        %v8352 = vpack.c.b16 %v5207, %v5190
        %v8353 = vpack.c.b16 %v5208, %v5191
        %v8354 = vpack.c.b16 %v5209, %v5192
        %v8355 = vpack.c.b16 %v5210, %v5193
        %v8356 = vpack.c.b16 %v5211, %v5194
        %v8357 = vpack.c.b16 %v5212, %v5195
        %v8358 = vpack.c.b16 %v5213, %v5196
        %v8359 = vpack.c.b16 %v5214, %v5197
        %v8360 = vpack.c.b16 %v5215, %v5198
        %v8361 = vpack.c.b16 %v5216, %v5199
        %v8362 = vpack.c.b16 %v5217, %v5200
        %v8363 = vpack.c.b16 %v5218, %v5201
        %v8364 = vpack.c.b16 %v5219, %v5202
        %v8365 = vpack.c.b16 %v5220, %v5203
        %v8366 = vpack.c.b16 %v5238, %v5221
        %v8367 = vpack.c.b16 %v5239, %v5222
        %v8368 = vpack.c.b16 %v5240, %v5223
        %v8369 = vpack.c.b16 %v5241, %v5224
        %v8370 = vpack.c.b16 %v5242, %v5225
        %v8371 = vpack.c.b16 %v5243, %v5226
        %v8372 = vpack.c.b16 %v5244, %v5227
        %v8373 = vpack.c.b16 %v5245, %v5228
        %v8374 = vpack.c.b16 %v5246, %v5229
        %v8375 = vpack.c.b16 %v5247, %v5230
        %v8376 = vpack.c.b16 %v5248, %v5231
        %v8377 = vpack.c.b16 %v5249, %v5232
        %v8378 = vpack.c.b16 %v5250, %v5233
        %v8379 = vpack.c.b16 %v5251, %v5234
        %v8380 = vpack.c.b16 %v5252, %v5235
        %v8381 = vpack.c.b16 %v5253, %v5236
        %v8382 = vpack.c.b16 %v5254, %v5237
        %v8383 = vpack.c.b16 %v5272, %v5255
        %v8384 = vpack.c.b16 %v5273, %v5256
        %v8385 = vpack.c.b16 %v5274, %v5257
        %v8386 = vpack.c.b16 %v5275, %v5258
        %v8387 = vpack.c.b16 %v5276, %v5259
        %v8388 = vpack.c.b16 %v5277, %v5260
        %v8389 = vpack.c.b16 %v5278, %v5261
        %v8390 = vpack.c.b16 %v5279, %v5262
        %v8391 = vpack.c.b16 %v5280, %v5263
        %v8392 = vpack.c.b16 %v5281, %v5264
        %v8393 = vpack.c.b16 %v5282, %v5265
        %v8394 = vpack.c.b16 %v5283, %v5266
        %v8395 = vpack.c.b16 %v5284, %v5267
        %v8396 = vpack.c.b16 %v5285, %v5268
        %v8397 = vpack.c.b16 %v5286, %v5269
        %v8398 = vpack.c.b16 %v5287, %v5270
        %v8399 = vpack.c.b16 %v5288, %v5271
        %v8400 = vpack.c.b16 %v5306, %v5289
        %v8401 = vpack.c.b16 %v5307, %v5290
        %v8402 = vpack.c.b16 %v5308, %v5291
        %v8403 = vpack.c.b16 %v5309, %v5292
        %v8404 = vpack.c.b16 %v5310, %v5293
        %v8405 = vpack.c.b16 %v5311, %v5294
        %v8406 = vpack.c.b16 %v5312, %v5295
        %v8407 = vpack.c.b16 %v5313, %v5296
        %v8408 = vpack.c.b16 %v5314, %v5297
        %v8409 = vpack.c.b16 %v5315, %v5298
        %v8410 = vpack.c.b16 %v5316, %v5299
        %v8411 = vpack.c.b16 %v5317, %v5300
        %v8412 = vpack.c.b16 %v5318, %v5301
        %v8413 = vpack.c.b16 %v5319, %v5302
        %v8414 = vpack.c.b16 %v5320, %v5303
        %v8415 = vpack.c.b16 %v5321, %v5304
        %v8416 = vpack.c.b16 %v5322, %v5305
        %v8417 = vpack.c.b16 %v5340, %v5323
        %v8418 = vpack.c.b16 %v5341, %v5324
        %v8419 = vpack.c.b16 %v5342, %v5325
        %v8420 = vpack.c.b16 %v5343, %v5326
        %v8421 = vpack.c.b16 %v5344, %v5327
        %v8422 = vpack.c.b16 %v5345, %v5328
        %v8423 = vpack.c.b16 %v5346, %v5329
        %v8424 = vpack.c.b16 %v5347, %v5330
        %v8425 = vpack.c.b16 %v5348, %v5331
        %v8426 = vpack.c.b16 %v5349, %v5332
        %v8427 = vpack.c.b16 %v5350, %v5333
        %v8428 = vpack.c.b16 %v5351, %v5334
        %v8429 = vpack.c.b16 %v5352, %v5335
        %v8430 = vpack.c.b16 %v5353, %v5336
        %v8431 = vpack.c.b16 %v5354, %v5337
        %v8432 = vpack.c.b16 %v5355, %v5338
        %v8433 = vpack.c.b16 %v5356, %v5339
        %v8434 = vpack.c.b16 %v5374, %v5357
        %v8435 = vpack.c.b16 %v5375, %v5358
        %v8436 = vpack.c.b16 %v5376, %v5359
        %v8437 = vpack.c.b16 %v5377, %v5360
        %v8438 = vpack.c.b16 %v5378, %v5361
        %v8439 = vpack.c.b16 %v5379, %v5362
        %v8440 = vpack.c.b16 %v5380, %v5363
        %v8441 = vpack.c.b16 %v5381, %v5364
        %v8442 = vpack.c.b16 %v5382, %v5365
        %v8443 = vpack.c.b16 %v5383, %v5366
        %v8444 = vpack.c.b16 %v5384, %v5367
        %v8445 = vpack.c.b16 %v5385, %v5368
        %v8446 = vpack.c.b16 %v5386, %v5369
        %v8447 = vpack.c.b16 %v5387, %v5370
        %v8448 = vpack.c.b16 %v5388, %v5371
        %v8449 = vpack.c.b16 %v5389, %v5372
        %v8450 = vpack.c.b16 %v5390, %v5373
        %v8451 = vpack.c.b16 %v5408, %v5391
        %v8452 = vpack.c.b16 %v5409, %v5392
        %v8453 = vpack.c.b16 %v5410, %v5393
        %v8454 = vpack.c.b16 %v5411, %v5394
        %v8455 = vpack.c.b16 %v5412, %v5395
        %v8456 = vpack.c.b16 %v5413, %v5396
        %v8457 = vpack.c.b16 %v5414, %v5397
        %v8458 = vpack.c.b16 %v5415, %v5398
        %v8459 = vpack.c.b16 %v5416, %v5399
        %v8460 = vpack.c.b16 %v5417, %v5400
        %v8461 = vpack.c.b16 %v5418, %v5401
        %v8462 = vpack.c.b16 %v5419, %v5402
        %v8463 = vpack.c.b16 %v5420, %v5403
        %v8464 = vpack.c.b16 %v5421, %v5404
        %v8465 = vpack.c.b16 %v5422, %v5405
        %v8466 = vpack.c.b16 %v5423, %v5406
        %v8467 = vpack.c.b16 %v5424, %v5407
        %v8468 = vpack.c.b16 %v5442, %v5425
        %v8469 = vpack.c.b16 %v5443, %v5426
        %v8470 = vpack.c.b16 %v5444, %v5427
        %v8471 = vpack.c.b16 %v5445, %v5428
        %v8472 = vpack.c.b16 %v5446, %v5429
        %v8473 = vpack.c.b16 %v5447, %v5430
        %v8474 = vpack.c.b16 %v5448, %v5431
        %v8475 = vpack.c.b16 %v5449, %v5432
        %v8476 = vpack.c.b16 %v5450, %v5433
        %v8477 = vpack.c.b16 %v5451, %v5434
        %v8478 = vpack.c.b16 %v5452, %v5435
        %v8479 = vpack.c.b16 %v5453, %v5436
        %v8480 = vpack.c.b16 %v5454, %v5437
        %v8481 = vpack.c.b16 %v5455, %v5438
        %v8482 = vpack.c.b16 %v5456, %v5439
        %v8483 = vpack.c.b16 %v5457, %v5440
        %v8484 = vpack.c.b16 %v5458, %v5441
        %v8485 = vpack.c.b16 %v5476, %v5459
        %v8486 = vpack.c.b16 %v5477, %v5460
        %v8487 = vpack.c.b16 %v5478, %v5461
        %v8488 = vpack.c.b16 %v5479, %v5462
        %v8489 = vpack.c.b16 %v5480, %v5463
        %v8490 = vpack.c.b16 %v5481, %v5464
        %v8491 = vpack.c.b16 %v5482, %v5465
        %v8492 = vpack.c.b16 %v5483, %v5466
        %v8493 = vpack.c.b16 %v5484, %v5467
        %v8494 = vpack.c.b16 %v5485, %v5468
        %v8495 = vpack.c.b16 %v5486, %v5469
        %v8496 = vpack.c.b16 %v5487, %v5470
        %v8497 = vpack.c.b16 %v5488, %v5471
        %v8498 = vpack.c.b16 %v5489, %v5472
        %v8499 = vpack.c.b16 %v5490, %v5473
        %v8500 = vpack.c.b16 %v5491, %v5474
        %v8501 = vpack.c.b16 %v5492, %v5475
        %v8502 = vpack.c.b16 %v5510, %v5493
        %v8503 = vpack.c.b16 %v5511, %v5494
        %v8504 = vpack.c.b16 %v5512, %v5495
        %v8505 = vpack.c.b16 %v5513, %v5496
        %v8506 = vpack.c.b16 %v5514, %v5497
        %v8507 = vpack.c.b16 %v5515, %v5498
        %v8508 = vpack.c.b16 %v5516, %v5499
        %v8509 = vpack.c.b16 %v5517, %v5500
        %v8510 = vpack.c.b16 %v5518, %v5501
        %v8511 = vpack.c.b16 %v5519, %v5502
        %v8512 = vpack.c.b16 %v5520, %v5503
        %v8513 = vpack.c.b16 %v5521, %v5504
        %v8514 = vpack.c.b16 %v5522, %v5505
        %v8515 = vpack.c.b16 %v5523, %v5506
        %v8516 = vpack.c.b16 %v5524, %v5507
        %v8517 = vpack.c.b16 %v5525, %v5508
        %v8518 = vpack.c.b16 %v5526, %v5509
        %v8519 = vpack.c.b16 %v5544, %v5527
        %v8520 = vpack.c.b16 %v5545, %v5528
        %v8521 = vpack.c.b16 %v5546, %v5529
        %v8522 = vpack.c.b16 %v5547, %v5530
        %v8523 = vpack.c.b16 %v5548, %v5531
        %v8524 = vpack.c.b16 %v5549, %v5532
        %v8525 = vpack.c.b16 %v5550, %v5533
        %v8526 = vpack.c.b16 %v5551, %v5534
        %v8527 = vpack.c.b16 %v5552, %v5535
        %v8528 = vpack.c.b16 %v5553, %v5536
        %v8529 = vpack.c.b16 %v5554, %v5537
        %v8530 = vpack.c.b16 %v5555, %v5538
        %v8531 = vpack.c.b16 %v5556, %v5539
        %v8532 = vpack.c.b16 %v5557, %v5540
        %v8533 = vpack.c.b16 %v5558, %v5541
        %v8534 = vpack.c.b16 %v5559, %v5542
        %v8535 = vpack.c.b16 %v5560, %v5543
        %v8536 = vpack.c.b16 %v5578, %v5561
        %v8537 = vpack.c.b16 %v5579, %v5562
        %v8538 = vpack.c.b16 %v5580, %v5563
        %v8539 = vpack.c.b16 %v5581, %v5564
        %v8540 = vpack.c.b16 %v5582, %v5565
        %v8541 = vpack.c.b16 %v5583, %v5566
        %v8542 = vpack.c.b16 %v5584, %v5567
        %v8543 = vpack.c.b16 %v5585, %v5568
        %v8544 = vpack.c.b16 %v5586, %v5569
        %v8545 = vpack.c.b16 %v5587, %v5570
        %v8546 = vpack.c.b16 %v5588, %v5571
        %v8547 = vpack.c.b16 %v5589, %v5572
        %v8548 = vpack.c.b16 %v5590, %v5573
        %v8549 = vpack.c.b16 %v5591, %v5574
        %v8550 = vpack.c.b16 %v5592, %v5575
        %v8551 = vpack.c.b16 %v5593, %v5576
        %v8552 = vpack.c.b16 %v5594, %v5577
        %v8553 = vpack.c.b16 %v5612, %v5595
        %v8554 = vpack.c.b16 %v5613, %v5596
        %v8555 = vpack.c.b16 %v5614, %v5597
        %v8556 = vpack.c.b16 %v5615, %v5598
        %v8557 = vpack.c.b16 %v5616, %v5599
        %v8558 = vpack.c.b16 %v5617, %v5600
        %v8559 = vpack.c.b16 %v5618, %v5601
        %v8560 = vpack.c.b16 %v5619, %v5602
        %v8561 = vpack.c.b16 %v5620, %v5603
        %v8562 = vpack.c.b16 %v5621, %v5604
        %v8563 = vpack.c.b16 %v5622, %v5605
        %v8564 = vpack.c.b16 %v5623, %v5606
        %v8565 = vpack.c.b16 %v5624, %v5607
        %v8566 = vpack.c.b16 %v5625, %v5608
        %v8567 = vpack.c.b16 %v5626, %v5609
        %v8568 = vpack.c.b16 %v5627, %v5610
        %v8569 = vpack.c.b16 %v5628, %v5611
        %v8570 = vpack.c.b16 %v5646, %v5629
        %v8571 = vpack.c.b16 %v5647, %v5630
        %v8572 = vpack.c.b16 %v5648, %v5631
        %v8573 = vpack.c.b16 %v5649, %v5632
        %v8574 = vpack.c.b16 %v5650, %v5633
        %v8575 = vpack.c.b16 %v5651, %v5634
        %v8576 = vpack.c.b16 %v5652, %v5635
        %v8577 = vpack.c.b16 %v5653, %v5636
        %v8578 = vpack.c.b16 %v5654, %v5637
        %v8579 = vpack.c.b16 %v5655, %v5638
        %v8580 = vpack.c.b16 %v5656, %v5639
        %v8581 = vpack.c.b16 %v5657, %v5640
        %v8582 = vpack.c.b16 %v5658, %v5641
        %v8583 = vpack.c.b16 %v5659, %v5642
        %v8584 = vpack.c.b16 %v5660, %v5643
        %v8585 = vpack.c.b16 %v5661, %v5644
        %v8586 = vpack.c.b16 %v5662, %v5645
        %v8587 = vpack.c.b16 %v5680, %v5663
        %v8588 = vpack.c.b16 %v5681, %v5664
        %v8589 = vpack.c.b16 %v5682, %v5665
        %v8590 = vpack.c.b16 %v5683, %v5666
        %v8591 = vpack.c.b16 %v5684, %v5667
        %v8592 = vpack.c.b16 %v5685, %v5668
        %v8593 = vpack.c.b16 %v5686, %v5669
        %v8594 = vpack.c.b16 %v5687, %v5670
        %v8595 = vpack.c.b16 %v5688, %v5671
        %v8596 = vpack.c.b16 %v5689, %v5672
        %v8597 = vpack.c.b16 %v5690, %v5673
        %v8598 = vpack.c.b16 %v5691, %v5674
        %v8599 = vpack.c.b16 %v5692, %v5675
        %v8600 = vpack.c.b16 %v5693, %v5676
        %v8601 = vpack.c.b16 %v5694, %v5677
        %v8602 = vpack.c.b16 %v5695, %v5678
        %v8603 = vpack.c.b16 %v5696, %v5679
        %v8604 = vpack.c.b16 %v5714, %v5697
        %v8605 = vpack.c.b16 %v5715, %v5698
        %v8606 = vpack.c.b16 %v5716, %v5699
        %v8607 = vpack.c.b16 %v5717, %v5700
        %v8608 = vpack.c.b16 %v5718, %v5701
        %v8609 = vpack.c.b16 %v5719, %v5702
        %v8610 = vpack.c.b16 %v5720, %v5703
        %v8611 = vpack.c.b16 %v5721, %v5704
        %v8612 = vpack.c.b16 %v5722, %v5705
        %v8613 = vpack.c.b16 %v5723, %v5706
        %v8614 = vpack.c.b16 %v5724, %v5707
        %v8615 = vpack.c.b16 %v5725, %v5708
        %v8616 = vpack.c.b16 %v5726, %v5709
        %v8617 = vpack.c.b16 %v5727, %v5710
        %v8618 = vpack.c.b16 %v5728, %v5711
        %v8619 = vpack.c.b16 %v5729, %v5712
        %v8620 = vpack.c.b16 %v5730, %v5713
        %v8621 = vpack.c.b16 %v5748, %v5731
        %v8622 = vpack.c.b16 %v5749, %v5732
        %v8623 = vpack.c.b16 %v5750, %v5733
        %v8624 = vpack.c.b16 %v5751, %v5734
        %v8625 = vpack.c.b16 %v5752, %v5735
        %v8626 = vpack.c.b16 %v5753, %v5736
        %v8627 = vpack.c.b16 %v5754, %v5737
        %v8628 = vpack.c.b16 %v5755, %v5738
        %v8629 = vpack.c.b16 %v5756, %v5739
        %v8630 = vpack.c.b16 %v5757, %v5740
        %v8631 = vpack.c.b16 %v5758, %v5741
        %v8632 = vpack.c.b16 %v5759, %v5742
        %v8633 = vpack.c.b16 %v5760, %v5743
        %v8634 = vpack.c.b16 %v5761, %v5744
        %v8635 = vpack.c.b16 %v5762, %v5745
        %v8636 = vpack.c.b16 %v5763, %v5746
        %v8637 = vpack.c.b16 %v5764, %v5747
        %v8638 = vpack.c.b16 %v5782, %v5765
        %v8639 = vpack.c.b16 %v5783, %v5766
        %v8640 = vpack.c.b16 %v5784, %v5767
        %v8641 = vpack.c.b16 %v5785, %v5768
        %v8642 = vpack.c.b16 %v5786, %v5769
        %v8643 = vpack.c.b16 %v5787, %v5770
        %v8644 = vpack.c.b16 %v5788, %v5771
        %v8645 = vpack.c.b16 %v5789, %v5772
        %v8646 = vpack.c.b16 %v5790, %v5773
        %v8647 = vpack.c.b16 %v5791, %v5774
        %v8648 = vpack.c.b16 %v5792, %v5775
        %v8649 = vpack.c.b16 %v5793, %v5776
        %v8650 = vpack.c.b16 %v5794, %v5777
        %v8651 = vpack.c.b16 %v5795, %v5778
        %v8652 = vpack.c.b16 %v5796, %v5779
        %v8653 = vpack.c.b16 %v5797, %v5780
        %v8654 = vpack.c.b16 %v5798, %v5781
        %v8655 = vpack.c.b16 %v5816, %v5799
        %v8656 = vpack.c.b16 %v5817, %v5800
        %v8657 = vpack.c.b16 %v5818, %v5801
        %v8658 = vpack.c.b16 %v5819, %v5802
        %v8659 = vpack.c.b16 %v5820, %v5803
        %v8660 = vpack.c.b16 %v5821, %v5804
        %v8661 = vpack.c.b16 %v5822, %v5805
        %v8662 = vpack.c.b16 %v5823, %v5806
        %v8663 = vpack.c.b16 %v5824, %v5807
        %v8664 = vpack.c.b16 %v5825, %v5808
        %v8665 = vpack.c.b16 %v5826, %v5809
        %v8666 = vpack.c.b16 %v5827, %v5810
        %v8667 = vpack.c.b16 %v5828, %v5811
        %v8668 = vpack.c.b16 %v5829, %v5812
        %v8669 = vpack.c.b16 %v5830, %v5813
        %v8670 = vpack.c.b16 %v5831, %v5814
        %v8671 = vpack.c.b16 %v5832, %v5815
        %v8672 = vpack.c.b16 %v5850, %v5833
        %v8673 = vpack.c.b16 %v5851, %v5834
        %v8674 = vpack.c.b16 %v5852, %v5835
        %v8675 = vpack.c.b16 %v5853, %v5836
        %v8676 = vpack.c.b16 %v5854, %v5837
        %v8677 = vpack.c.b16 %v5855, %v5838
        %v8678 = vpack.c.b16 %v5856, %v5839
        %v8679 = vpack.c.b16 %v5857, %v5840
        %v8680 = vpack.c.b16 %v5858, %v5841
        %v8681 = vpack.c.b16 %v5859, %v5842
        %v8682 = vpack.c.b16 %v5860, %v5843
        %v8683 = vpack.c.b16 %v5861, %v5844
        %v8684 = vpack.c.b16 %v5862, %v5845
        %v8685 = vpack.c.b16 %v5863, %v5846
        %v8686 = vpack.c.b16 %v5864, %v5847
        %v8687 = vpack.c.b16 %v5865, %v5848
        %v8688 = vpack.c.b16 %v5866, %v5849
        %v8689 = vpack.c.b16 %v5884, %v5867
        %v8690 = vpack.c.b16 %v5885, %v5868
        %v8691 = vpack.c.b16 %v5886, %v5869
        %v8692 = vpack.c.b16 %v5887, %v5870
        %v8693 = vpack.c.b16 %v5888, %v5871
        %v8694 = vpack.c.b16 %v5889, %v5872
        %v8695 = vpack.c.b16 %v5890, %v5873
        %v8696 = vpack.c.b16 %v5891, %v5874
        %v8697 = vpack.c.b16 %v5892, %v5875
        %v8698 = vpack.c.b16 %v5893, %v5876
        %v8699 = vpack.c.b16 %v5894, %v5877
        %v8700 = vpack.c.b16 %v5895, %v5878
        %v8701 = vpack.c.b16 %v5896, %v5879
        %v8702 = vpack.c.b16 %v5897, %v5880
        %v8703 = vpack.c.b16 %v5898, %v5881
        %v8704 = vpack.c.b16 %v5899, %v5882
        %v8705 = vpack.c.b16 %v5900, %v5883
        %v8706 = vpack.c.b16 %v5918, %v5901
        %v8707 = vpack.c.b16 %v5919, %v5902
        %v8708 = vpack.c.b16 %v5920, %v5903
        %v8709 = vpack.c.b16 %v5921, %v5904
        %v8710 = vpack.c.b16 %v5922, %v5905
        %v8711 = vpack.c.b16 %v5923, %v5906
        %v8712 = vpack.c.b16 %v5924, %v5907
        %v8713 = vpack.c.b16 %v5925, %v5908
        %v8714 = vpack.c.b16 %v5926, %v5909
        %v8715 = vpack.c.b16 %v5927, %v5910
        %v8716 = vpack.c.b16 %v5928, %v5911
        %v8717 = vpack.c.b16 %v5929, %v5912
        %v8718 = vpack.c.b16 %v5930, %v5913
        %v8719 = vpack.c.b16 %v5931, %v5914
        %v8720 = vpack.c.b16 %v5932, %v5915
        %v8721 = vpack.c.b16 %v5933, %v5916
        %v8722 = vpack.c.b16 %v5934, %v5917
        %v8723 = vpack.c.b16 %v5952, %v5935
        %v8724 = vpack.c.b16 %v5953, %v5936
        %v8725 = vpack.c.b16 %v5954, %v5937
        %v8726 = vpack.c.b16 %v5955, %v5938
        %v8727 = vpack.c.b16 %v5956, %v5939
        %v8728 = vpack.c.b16 %v5957, %v5940
        %v8729 = vpack.c.b16 %v5958, %v5941
        %v8730 = vpack.c.b16 %v5959, %v5942
        %v8731 = vpack.c.b16 %v5960, %v5943
        %v8732 = vpack.c.b16 %v5961, %v5944
        %v8733 = vpack.c.b16 %v5962, %v5945
        %v8734 = vpack.c.b16 %v5963, %v5946
        %v8735 = vpack.c.b16 %v5964, %v5947
        %v8736 = vpack.c.b16 %v5965, %v5948
        %v8737 = vpack.c.b16 %v5966, %v5949
        %v8738 = vpack.c.b16 %v5967, %v5950
        %v8739 = vpack.c.b16 %v5968, %v5951
        %v8740 = vpack.c.b16 %v5986, %v5969
        %v8741 = vpack.c.b16 %v5987, %v5970
        %v8742 = vpack.c.b16 %v5988, %v5971
        %v8743 = vpack.c.b16 %v5989, %v5972
        %v8744 = vpack.c.b16 %v5990, %v5973
        %v8745 = vpack.c.b16 %v5991, %v5974
        %v8746 = vpack.c.b16 %v5992, %v5975
        %v8747 = vpack.c.b16 %v5993, %v5976
        %v8748 = vpack.c.b16 %v5994, %v5977
        %v8749 = vpack.c.b16 %v5995, %v5978
        %v8750 = vpack.c.b16 %v5996, %v5979
        %v8751 = vpack.c.b16 %v5997, %v5980
        %v8752 = vpack.c.b16 %v5998, %v5981
        %v8753 = vpack.c.b16 %v5999, %v5982
        %v8754 = vpack.c.b16 %v6000, %v5983
        %v8755 = vpack.c.b16 %v6001, %v5984
        %v8756 = vpack.c.b16 %v6002, %v5985
        %v8757 = vpack.c.b16 %v6020, %v6003
        %v8758 = vpack.c.b16 %v6021, %v6004
        %v8759 = vpack.c.b16 %v6022, %v6005
        %v8760 = vpack.c.b16 %v6023, %v6006
        %v8761 = vpack.c.b16 %v6024, %v6007
        %v8762 = vpack.c.b16 %v6025, %v6008
        %v8763 = vpack.c.b16 %v6026, %v6009
        %v8764 = vpack.c.b16 %v6027, %v6010
        %v8765 = vpack.c.b16 %v6028, %v6011
        %v8766 = vpack.c.b16 %v6029, %v6012
        %v8767 = vpack.c.b16 %v6030, %v6013
        %v8768 = vpack.c.b16 %v6031, %v6014
        %v8769 = vpack.c.b16 %v6032, %v6015
        %v8770 = vpack.c.b16 %v6033, %v6016
        %v8771 = vpack.c.b16 %v6034, %v6017
        %v8772 = vpack.c.b16 %v6035, %v6018
        %v8773 = vpack.c.b16 %v6036, %v6019
        %v8774 = vpack.c.b16 %v6054, %v6037
        %v8775 = vpack.c.b16 %v6055, %v6038
        %v8776 = vpack.c.b16 %v6056, %v6039
        %v8777 = vpack.c.b16 %v6057, %v6040
        %v8778 = vpack.c.b16 %v6058, %v6041
        %v8779 = vpack.c.b16 %v6059, %v6042
        %v8780 = vpack.c.b16 %v6060, %v6043
        %v8781 = vpack.c.b16 %v6061, %v6044
        %v8782 = vpack.c.b16 %v6062, %v6045
        %v8783 = vpack.c.b16 %v6063, %v6046
        %v8784 = vpack.c.b16 %v6064, %v6047
        %v8785 = vpack.c.b16 %v6065, %v6048
        %v8786 = vpack.c.b16 %v6066, %v6049
        %v8787 = vpack.c.b16 %v6067, %v6050
        %v8788 = vpack.c.b16 %v6068, %v6051
        %v8789 = vpack.c.b16 %v6069, %v6052
        %v8790 = vpack.c.b16 %v6070, %v6053
        %v8791 = vpack.c.b16 %v6088, %v6071
        %v8792 = vpack.c.b16 %v6089, %v6072
        %v8793 = vpack.c.b16 %v6090, %v6073
        %v8794 = vpack.c.b16 %v6091, %v6074
        %v8795 = vpack.c.b16 %v6092, %v6075
        %v8796 = vpack.c.b16 %v6093, %v6076
        %v8797 = vpack.c.b16 %v6094, %v6077
        %v8798 = vpack.c.b16 %v6095, %v6078
        %v8799 = vpack.c.b16 %v6096, %v6079
        %v8800 = vpack.c.b16 %v6097, %v6080
        %v8801 = vpack.c.b16 %v6098, %v6081
        %v8802 = vpack.c.b16 %v6099, %v6082
        %v8803 = vpack.c.b16 %v6100, %v6083
        %v8804 = vpack.c.b16 %v6101, %v6084
        %v8805 = vpack.c.b16 %v6102, %v6085
        %v8806 = vpack.c.b16 %v6103, %v6086
        %v8807 = vpack.c.b16 %v6104, %v6087
        %v8808 = vpack.c.b16 %v6122, %v6105
        %v8809 = vpack.c.b16 %v6123, %v6106
        %v8810 = vpack.c.b16 %v6124, %v6107
        %v8811 = vpack.c.b16 %v6125, %v6108
        %v8812 = vpack.c.b16 %v6126, %v6109
        %v8813 = vpack.c.b16 %v6127, %v6110
        %v8814 = vpack.c.b16 %v6128, %v6111
        %v8815 = vpack.c.b16 %v6129, %v6112
        %v8816 = vpack.c.b16 %v6130, %v6113
        %v8817 = vpack.c.b16 %v6131, %v6114
        %v8818 = vpack.c.b16 %v6132, %v6115
        %v8819 = vpack.c.b16 %v6133, %v6116
        %v8820 = vpack.c.b16 %v6134, %v6117
        %v8821 = vpack.c.b16 %v6135, %v6118
        %v8822 = vpack.c.b16 %v6136, %v6119
        %v8823 = vpack.c.b16 %v6137, %v6120
        %v8824 = vpack.c.b16 %v6138, %v6121
        %v8825 = vpack.c.b16 %v6156, %v6139
        %v8826 = vpack.c.b16 %v6157, %v6140
        %v8827 = vpack.c.b16 %v6158, %v6141
        %v8828 = vpack.c.b16 %v6159, %v6142
        %v8829 = vpack.c.b16 %v6160, %v6143
        %v8830 = vpack.c.b16 %v6161, %v6144
        %v8831 = vpack.c.b16 %v6162, %v6145
        %v8832 = vpack.c.b16 %v6163, %v6146
        %v8833 = vpack.c.b16 %v6164, %v6147
        %v8834 = vpack.c.b16 %v6165, %v6148
        %v8835 = vpack.c.b16 %v6166, %v6149
        %v8836 = vpack.c.b16 %v6167, %v6150
        %v8837 = vpack.c.b16 %v6168, %v6151
        %v8838 = vpack.c.b16 %v6169, %v6152
        %v8839 = vpack.c.b16 %v6170, %v6153
        %v8840 = vpack.c.b16 %v6171, %v6154
        %v8841 = vpack.c.b16 %v6172, %v6155
        %v8842 = vpack.c.b16 %v6190, %v6173
        %v8843 = vpack.c.b16 %v6191, %v6174
        %v8844 = vpack.c.b16 %v6192, %v6175
        %v8845 = vpack.c.b16 %v6193, %v6176
        %v8846 = vpack.c.b16 %v6194, %v6177
        %v8847 = vpack.c.b16 %v6195, %v6178
        %v8848 = vpack.c.b16 %v6196, %v6179
        %v8849 = vpack.c.b16 %v6197, %v6180
        %v8850 = vpack.c.b16 %v6198, %v6181
        %v8851 = vpack.c.b16 %v6199, %v6182
        %v8852 = vpack.c.b16 %v6200, %v6183
        %v8853 = vpack.c.b16 %v6201, %v6184
        %v8854 = vpack.c.b16 %v6202, %v6185
        %v8855 = vpack.c.b16 %v6203, %v6186
        %v8856 = vpack.c.b16 %v6204, %v6187
        %v8857 = vpack.c.b16 %v6205, %v6188
        %v8858 = vpack.c.b16 %v6206, %v6189
        %v8859 = vpack.c.b16 %v6224, %v6207
        %v8860 = vpack.c.b16 %v6225, %v6208
        %v8861 = vpack.c.b16 %v6226, %v6209
        %v8862 = vpack.c.b16 %v6227, %v6210
        %v8863 = vpack.c.b16 %v6228, %v6211
        %v8864 = vpack.c.b16 %v6229, %v6212
        %v8865 = vpack.c.b16 %v6230, %v6213
        %v8866 = vpack.c.b16 %v6231, %v6214
        %v8867 = vpack.c.b16 %v6232, %v6215
        %v8868 = vpack.c.b16 %v6233, %v6216
        %v8869 = vpack.c.b16 %v6234, %v6217
        %v8870 = vpack.c.b16 %v6235, %v6218
        %v8871 = vpack.c.b16 %v6236, %v6219
        %v8872 = vpack.c.b16 %v6237, %v6220
        %v8873 = vpack.c.b16 %v6238, %v6221
        %v8874 = vpack.c.b16 %v6239, %v6222
        %v8875 = vpack.c.b16 %v6240, %v6223
        %v8876 = vpack.c.b16 %v6258, %v6241
        %v8877 = vpack.c.b16 %v6259, %v6242
        %v8878 = vpack.c.b16 %v6260, %v6243
        %v8879 = vpack.c.b16 %v6261, %v6244
        %v8880 = vpack.c.b16 %v6262, %v6245
        %v8881 = vpack.c.b16 %v6263, %v6246
        %v8882 = vpack.c.b16 %v6264, %v6247
        %v8883 = vpack.c.b16 %v6265, %v6248
        %v8884 = vpack.c.b16 %v6266, %v6249
        %v8885 = vpack.c.b16 %v6267, %v6250
        %v8886 = vpack.c.b16 %v6268, %v6251
        %v8887 = vpack.c.b16 %v6269, %v6252
        %v8888 = vpack.c.b16 %v6270, %v6253
        %v8889 = vpack.c.b16 %v6271, %v6254
        %v8890 = vpack.c.b16 %v6272, %v6255
        %v8891 = vpack.c.b16 %v6273, %v6256
        %v8892 = vpack.c.b16 %v6274, %v6257
        %v8893 = vpack.c.b16 %v6292, %v6275
        %v8894 = vpack.c.b16 %v6293, %v6276
        %v8895 = vpack.c.b16 %v6294, %v6277
        %v8896 = vpack.c.b16 %v6295, %v6278
        %v8897 = vpack.c.b16 %v6296, %v6279
        %v8898 = vpack.c.b16 %v6297, %v6280
        %v8899 = vpack.c.b16 %v6298, %v6281
        %v8900 = vpack.c.b16 %v6299, %v6282
        %v8901 = vpack.c.b16 %v6300, %v6283
        %v8902 = vpack.c.b16 %v6301, %v6284
        %v8903 = vpack.c.b16 %v6302, %v6285
        %v8904 = vpack.c.b16 %v6303, %v6286
        %v8905 = vpack.c.b16 %v6304, %v6287
        %v8906 = vpack.c.b16 %v6305, %v6288
        %v8907 = vpack.c.b16 %v6306, %v6289
        %v8908 = vpack.c.b16 %v6307, %v6290
        %v8909 = vpack.c.b16 %v6308, %v6291
        %v8910 = vpack.c.b16 %v6326, %v6309
        %v8911 = vpack.c.b16 %v6327, %v6310
        %v8912 = vpack.c.b16 %v6328, %v6311
        %v8913 = vpack.c.b16 %v6329, %v6312
        %v8914 = vpack.c.b16 %v6330, %v6313
        %v8915 = vpack.c.b16 %v6331, %v6314
        %v8916 = vpack.c.b16 %v6332, %v6315
        %v8917 = vpack.c.b16 %v6333, %v6316
        %v8918 = vpack.c.b16 %v6334, %v6317
        %v8919 = vpack.c.b16 %v6335, %v6318
        %v8920 = vpack.c.b16 %v6336, %v6319
        %v8921 = vpack.c.b16 %v6337, %v6320
        %v8922 = vpack.c.b16 %v6338, %v6321
        %v8923 = vpack.c.b16 %v6339, %v6322
        %v8924 = vpack.c.b16 %v6340, %v6323
        %v8925 = vpack.c.b16 %v6341, %v6324
        %v8926 = vpack.c.b16 %v6342, %v6325
        %v8927 = vpack.c.b16 %v6360, %v6343
        %v8928 = vpack.c.b16 %v6361, %v6344
        %v8929 = vpack.c.b16 %v6362, %v6345
        %v8930 = vpack.c.b16 %v6363, %v6346
        %v8931 = vpack.c.b16 %v6364, %v6347
        %v8932 = vpack.c.b16 %v6365, %v6348
        %v8933 = vpack.c.b16 %v6366, %v6349
        %v8934 = vpack.c.b16 %v6367, %v6350
        %v8935 = vpack.c.b16 %v6368, %v6351
        %v8936 = vpack.c.b16 %v6369, %v6352
        %v8937 = vpack.c.b16 %v6370, %v6353
        %v8938 = vpack.c.b16 %v6371, %v6354
        %v8939 = vpack.c.b16 %v6372, %v6355
        %v8940 = vpack.c.b16 %v6373, %v6356
        %v8941 = vpack.c.b16 %v6374, %v6357
        %v8942 = vpack.c.b16 %v6375, %v6358
        %v8943 = vpack.c.b16 %v6376, %v6359
        %v8944 = vpack.c.b16 %v6394, %v6377
        %v8945 = vpack.c.b16 %v6395, %v6378
        %v8946 = vpack.c.b16 %v6396, %v6379
        %v8947 = vpack.c.b16 %v6397, %v6380
        %v8948 = vpack.c.b16 %v6398, %v6381
        %v8949 = vpack.c.b16 %v6399, %v6382
        %v8950 = vpack.c.b16 %v6400, %v6383
        %v8951 = vpack.c.b16 %v6401, %v6384
        %v8952 = vpack.c.b16 %v6402, %v6385
        %v8953 = vpack.c.b16 %v6403, %v6386
        %v8954 = vpack.c.b16 %v6404, %v6387
        %v8955 = vpack.c.b16 %v6405, %v6388
        %v8956 = vpack.c.b16 %v6406, %v6389
        %v8957 = vpack.c.b16 %v6407, %v6390
        %v8958 = vpack.c.b16 %v6408, %v6391
        %v8959 = vpack.c.b16 %v6409, %v6392
        %v8960 = vpack.c.b16 %v6410, %v6393
        %v8961 = vpack.c.b16 %v6428, %v6411
        %v8962 = vpack.c.b16 %v6429, %v6412
        %v8963 = vpack.c.b16 %v6430, %v6413
        %v8964 = vpack.c.b16 %v6431, %v6414
        %v8965 = vpack.c.b16 %v6432, %v6415
        %v8966 = vpack.c.b16 %v6433, %v6416
        %v8967 = vpack.c.b16 %v6434, %v6417
        %v8968 = vpack.c.b16 %v6435, %v6418
        %v8969 = vpack.c.b16 %v6436, %v6419
        %v8970 = vpack.c.b16 %v6437, %v6420
        %v8971 = vpack.c.b16 %v6438, %v6421
        %v8972 = vpack.c.b16 %v6439, %v6422
        %v8973 = vpack.c.b16 %v6440, %v6423
        %v8974 = vpack.c.b16 %v6441, %v6424
        %v8975 = vpack.c.b16 %v6442, %v6425
        %v8976 = vpack.c.b16 %v6443, %v6426
        %v8977 = vpack.c.b16 %v6444, %v6427
        %v8978 = vpack.c.b16 %v6462, %v6445
        %v8979 = vpack.c.b16 %v6463, %v6446
        %v8980 = vpack.c.b16 %v6464, %v6447
        %v8981 = vpack.c.b16 %v6465, %v6448
        %v8982 = vpack.c.b16 %v6466, %v6449
        %v8983 = vpack.c.b16 %v6467, %v6450
        %v8984 = vpack.c.b16 %v6468, %v6451
        %v8985 = vpack.c.b16 %v6469, %v6452
        %v8986 = vpack.c.b16 %v6470, %v6453
        %v8987 = vpack.c.b16 %v6471, %v6454
        %v8988 = vpack.c.b16 %v6472, %v6455
        %v8989 = vpack.c.b16 %v6473, %v6456
        %v8990 = vpack.c.b16 %v6474, %v6457
        %v8991 = vpack.c.b16 %v6475, %v6458
        %v8992 = vpack.c.b16 %v6476, %v6459
        %v8993 = vpack.c.b16 %v6477, %v6460
        %v8994 = vpack.c.b16 %v6478, %v6461
        %v8995 = vpack.c.b16 %v6496, %v6479
        %v8996 = vpack.c.b16 %v6497, %v6480
        %v8997 = vpack.c.b16 %v6498, %v6481
        %v8998 = vpack.c.b16 %v6499, %v6482
        %v8999 = vpack.c.b16 %v6500, %v6483
        %v9000 = vpack.c.b16 %v6501, %v6484
        %v9001 = vpack.c.b16 %v6502, %v6485
        %v9002 = vpack.c.b16 %v6503, %v6486
        %v9003 = vpack.c.b16 %v6504, %v6487
        %v9004 = vpack.c.b16 %v6505, %v6488
        %v9005 = vpack.c.b16 %v6506, %v6489
        %v9006 = vpack.c.b16 %v6507, %v6490
        %v9007 = vpack.c.b16 %v6508, %v6491
        %v9008 = vpack.c.b16 %v6509, %v6492
        %v9009 = vpack.c.b16 %v6510, %v6493
        %v9010 = vpack.c.b16 %v6511, %v6494
        %v9011 = vpack.c.b16 %v6512, %v6495
        %v9012 = vpack.c.b16 %v6530, %v6513
        %v9013 = vpack.c.b16 %v6531, %v6514
        %v9014 = vpack.c.b16 %v6532, %v6515
        %v9015 = vpack.c.b16 %v6533, %v6516
        %v9016 = vpack.c.b16 %v6534, %v6517
        %v9017 = vpack.c.b16 %v6535, %v6518
        %v9018 = vpack.c.b16 %v6536, %v6519
        %v9019 = vpack.c.b16 %v6537, %v6520
        %v9020 = vpack.c.b16 %v6538, %v6521
        %v9021 = vpack.c.b16 %v6539, %v6522
        %v9022 = vpack.c.b16 %v6540, %v6523
        %v9023 = vpack.c.b16 %v6541, %v6524
        %v9024 = vpack.c.b16 %v6542, %v6525
        %v9025 = vpack.c.b16 %v6543, %v6526
        %v9026 = vpack.c.b16 %v6544, %v6527
        %v9027 = vpack.c.b16 %v6545, %v6528
        %v9028 = vpack.c.b16 %v6546, %v6529
        %v9029 = vpack.c.b16 %v6564, %v6547
        %v9030 = vpack.c.b16 %v6565, %v6548
        %v9031 = vpack.c.b16 %v6566, %v6549
        %v9032 = vpack.c.b16 %v6567, %v6550
        %v9033 = vpack.c.b16 %v6568, %v6551
        %v9034 = vpack.c.b16 %v6569, %v6552
        %v9035 = vpack.c.b16 %v6570, %v6553
        %v9036 = vpack.c.b16 %v6571, %v6554
        %v9037 = vpack.c.b16 %v6572, %v6555
        %v9038 = vpack.c.b16 %v6573, %v6556
        %v9039 = vpack.c.b16 %v6574, %v6557
        %v9040 = vpack.c.b16 %v6575, %v6558
        %v9041 = vpack.c.b16 %v6576, %v6559
        %v9042 = vpack.c.b16 %v6577, %v6560
        %v9043 = vpack.c.b16 %v6578, %v6561
        %v9044 = vpack.c.b16 %v6579, %v6562
        %v9045 = vpack.c.b16 %v6580, %v6563
        %v9046 = vpack.c.b16 %v6598, %v6581
        %v9047 = vpack.c.b16 %v6599, %v6582
        %v9048 = vpack.c.b16 %v6600, %v6583
        %v9049 = vpack.c.b16 %v6601, %v6584
        %v9050 = vpack.c.b16 %v6602, %v6585
        %v9051 = vpack.c.b16 %v6603, %v6586
        %v9052 = vpack.c.b16 %v6604, %v6587
        %v9053 = vpack.c.b16 %v6605, %v6588
        %v9054 = vpack.c.b16 %v6606, %v6589
        %v9055 = vpack.c.b16 %v6607, %v6590
        %v9056 = vpack.c.b16 %v6608, %v6591
        %v9057 = vpack.c.b16 %v6609, %v6592
        %v9058 = vpack.c.b16 %v6610, %v6593
        %v9059 = vpack.c.b16 %v6611, %v6594
        %v9060 = vpack.c.b16 %v6612, %v6595
        %v9061 = vpack.c.b16 %v6613, %v6596
        %v9062 = vpack.c.b16 %v6614, %v6597
        %v9063 = vpack.c.b16 %v6632, %v6615
        %v9064 = vpack.c.b16 %v6633, %v6616
        %v9065 = vpack.c.b16 %v6634, %v6617
        %v9066 = vpack.c.b16 %v6635, %v6618
        %v9067 = vpack.c.b16 %v6636, %v6619
        %v9068 = vpack.c.b16 %v6637, %v6620
        %v9069 = vpack.c.b16 %v6638, %v6621
        %v9070 = vpack.c.b16 %v6639, %v6622
        %v9071 = vpack.c.b16 %v6640, %v6623
        %v9072 = vpack.c.b16 %v6641, %v6624
        %v9073 = vpack.c.b16 %v6642, %v6625
        %v9074 = vpack.c.b16 %v6643, %v6626
        %v9075 = vpack.c.b16 %v6644, %v6627
        %v9076 = vpack.c.b16 %v6645, %v6628
        %v9077 = vpack.c.b16 %v6646, %v6629
        %v9078 = vpack.c.b16 %v6647, %v6630
        %v9079 = vpack.c.b16 %v6648, %v6631
        %v9080 = vpack.c.b16 %v6666, %v6649
        %v9081 = vpack.c.b16 %v6667, %v6650
        %v9082 = vpack.c.b16 %v6668, %v6651
        %v9083 = vpack.c.b16 %v6669, %v6652
        %v9084 = vpack.c.b16 %v6670, %v6653
        %v9085 = vpack.c.b16 %v6671, %v6654
        %v9086 = vpack.c.b16 %v6672, %v6655
        %v9087 = vpack.c.b16 %v6673, %v6656
        %v9088 = vpack.c.b16 %v6674, %v6657
        %v9089 = vpack.c.b16 %v6675, %v6658
        %v9090 = vpack.c.b16 %v6676, %v6659
        %v9091 = vpack.c.b16 %v6677, %v6660
        %v9092 = vpack.c.b16 %v6678, %v6661
        %v9093 = vpack.c.b16 %v6679, %v6662
        %v9094 = vpack.c.b16 %v6680, %v6663
        %v9095 = vpack.c.b16 %v6681, %v6664
        %v9096 = vpack.c.b16 %v6682, %v6665
        %v9097 = vpack.c.b16 %v6700, %v6683
        %v9098 = vpack.c.b16 %v6701, %v6684
        %v9099 = vpack.c.b16 %v6702, %v6685
        %v9100 = vpack.c.b16 %v6703, %v6686
        %v9101 = vpack.c.b16 %v6704, %v6687
        %v9102 = vpack.c.b16 %v6705, %v6688
        %v9103 = vpack.c.b16 %v6706, %v6689
        %v9104 = vpack.c.b16 %v6707, %v6690
        %v9105 = vpack.c.b16 %v6708, %v6691
        %v9106 = vpack.c.b16 %v6709, %v6692
        %v9107 = vpack.c.b16 %v6710, %v6693
        %v9108 = vpack.c.b16 %v6711, %v6694
        %v9109 = vpack.c.b16 %v6712, %v6695
        %v9110 = vpack.c.b16 %v6713, %v6696
        %v9111 = vpack.c.b16 %v6714, %v6697
        %v9112 = vpack.c.b16 %v6715, %v6698
        %v9113 = vpack.c.b16 %v6716, %v6699
        %v9114 = vpack.c.b16 %v6734, %v6717
        %v9115 = vpack.c.b16 %v6735, %v6718
        %v9116 = vpack.c.b16 %v6736, %v6719
        %v9117 = vpack.c.b16 %v6737, %v6720
        %v9118 = vpack.c.b16 %v6738, %v6721
        %v9119 = vpack.c.b16 %v6739, %v6722
        %v9120 = vpack.c.b16 %v6740, %v6723
        %v9121 = vpack.c.b16 %v6741, %v6724
        %v9122 = vpack.c.b16 %v6742, %v6725
        %v9123 = vpack.c.b16 %v6743, %v6726
        %v9124 = vpack.c.b16 %v6744, %v6727
        %v9125 = vpack.c.b16 %v6745, %v6728
        %v9126 = vpack.c.b16 %v6746, %v6729
        %v9127 = vpack.c.b16 %v6747, %v6730
        %v9128 = vpack.c.b16 %v6748, %v6731
        %v9129 = vpack.c.b16 %v6749, %v6732
        %v9130 = vpack.c.b16 %v6750, %v6733
        %v9131 = vpack.c.b16 %v6768, %v6751
        %v9132 = vpack.c.b16 %v6769, %v6752
        %v9133 = vpack.c.b16 %v6770, %v6753
        %v9134 = vpack.c.b16 %v6771, %v6754
        %v9135 = vpack.c.b16 %v6772, %v6755
        %v9136 = vpack.c.b16 %v6773, %v6756
        %v9137 = vpack.c.b16 %v6774, %v6757
        %v9138 = vpack.c.b16 %v6775, %v6758
        %v9139 = vpack.c.b16 %v6776, %v6759
        %v9140 = vpack.c.b16 %v6777, %v6760
        %v9141 = vpack.c.b16 %v6778, %v6761
        %v9142 = vpack.c.b16 %v6779, %v6762
        %v9143 = vpack.c.b16 %v6780, %v6763
        %v9144 = vpack.c.b16 %v6781, %v6764
        %v9145 = vpack.c.b16 %v6782, %v6765
        %v9146 = vpack.c.b16 %v6783, %v6766
        %v9147 = vpack.c.b16 %v6784, %v6767
        %v9148 = vpack.c.b16 %v6802, %v6785
        %v9149 = vpack.c.b16 %v6803, %v6786
        %v9150 = vpack.c.b16 %v6804, %v6787
        %v9151 = vpack.c.b16 %v6805, %v6788
        %v9152 = vpack.c.b16 %v6806, %v6789
        %v9153 = vpack.c.b16 %v6807, %v6790
        %v9154 = vpack.c.b16 %v6808, %v6791
        %v9155 = vpack.c.b16 %v6809, %v6792
        %v9156 = vpack.c.b16 %v6810, %v6793
        %v9157 = vpack.c.b16 %v6811, %v6794
        %v9158 = vpack.c.b16 %v6812, %v6795
        %v9159 = vpack.c.b16 %v6813, %v6796
        %v9160 = vpack.c.b16 %v6814, %v6797
        %v9161 = vpack.c.b16 %v6815, %v6798
        %v9162 = vpack.c.b16 %v6816, %v6799
        %v9163 = vpack.c.b16 %v6817, %v6800
        %v9164 = vpack.c.b16 %v6818, %v6801
        %v9165 = vpack.c.b16 %v6836, %v6819
        %v9166 = vpack.c.b16 %v6837, %v6820
        %v9167 = vpack.c.b16 %v6838, %v6821
        %v9168 = vpack.c.b16 %v6839, %v6822
        %v9169 = vpack.c.b16 %v6840, %v6823
        %v9170 = vpack.c.b16 %v6841, %v6824
        %v9171 = vpack.c.b16 %v6842, %v6825
        %v9172 = vpack.c.b16 %v6843, %v6826
        %v9173 = vpack.c.b16 %v6844, %v6827
        %v9174 = vpack.c.b16 %v6845, %v6828
        %v9175 = vpack.c.b16 %v6846, %v6829
        %v9176 = vpack.c.b16 %v6847, %v6830
        %v9177 = vpack.c.b16 %v6848, %v6831
        %v9178 = vpack.c.b16 %v6849, %v6832
        %v9179 = vpack.c.b16 %v6850, %v6833
        %v9180 = vpack.c.b16 %v6851, %v6834
        %v9181 = vpack.c.b16 %v6852, %v6835
        %v9182 = vpack.c.b16 %v6870, %v6853
        %v9183 = vpack.c.b16 %v6871, %v6854
        %v9184 = vpack.c.b16 %v6872, %v6855
        %v9185 = vpack.c.b16 %v6873, %v6856
        %v9186 = vpack.c.b16 %v6874, %v6857
        %v9187 = vpack.c.b16 %v6875, %v6858
        %v9188 = vpack.c.b16 %v6876, %v6859
        %v9189 = vpack.c.b16 %v6877, %v6860
        %v9190 = vpack.c.b16 %v6878, %v6861
        %v9191 = vpack.c.b16 %v6879, %v6862
        %v9192 = vpack.c.b16 %v6880, %v6863
        %v9193 = vpack.c.b16 %v6881, %v6864
        %v9194 = vpack.c.b16 %v6882, %v6865
        %v9195 = vpack.c.b16 %v6883, %v6866
        %v9196 = vpack.c.b16 %v6884, %v6867
        %v9197 = vpack.c.b16 %v6885, %v6868
        %v9198 = vpack.c.b16 %v6886, %v6869
        %v9199 = vpack.c.b16 %v6904, %v6887
        %v9200 = vpack.c.b16 %v6905, %v6888
        %v9201 = vpack.c.b16 %v6906, %v6889
        %v9202 = vpack.c.b16 %v6907, %v6890
        %v9203 = vpack.c.b16 %v6908, %v6891
        %v9204 = vpack.c.b16 %v6909, %v6892
        %v9205 = vpack.c.b16 %v6910, %v6893
        %v9206 = vpack.c.b16 %v6911, %v6894
        %v9207 = vpack.c.b16 %v6912, %v6895
        %v9208 = vpack.c.b16 %v6913, %v6896
        %v9209 = vpack.c.b16 %v6914, %v6897
        %v9210 = vpack.c.b16 %v6915, %v6898
        %v9211 = vpack.c.b16 %v6916, %v6899
        %v9212 = vpack.c.b16 %v6917, %v6900
        %v9213 = vpack.c.b16 %v6918, %v6901
        %v9214 = vpack.c.b16 %v6919, %v6902
        %v9215 = vpack.c.b16 %v6920, %v6903
        %v9216 = vpack.c.b16 %v6938, %v6921
        %v9217 = vpack.c.b16 %v6939, %v6922
        %v9218 = vpack.c.b16 %v6940, %v6923
        %v9219 = vpack.c.b16 %v6941, %v6924
        %v9220 = vpack.c.b16 %v6942, %v6925
        %v9221 = vpack.c.b16 %v6943, %v6926
        %v9222 = vpack.c.b16 %v6944, %v6927
        %v9223 = vpack.c.b16 %v6945, %v6928
        %v9224 = vpack.c.b16 %v6946, %v6929
        %v9225 = vpack.c.b16 %v6947, %v6930
        %v9226 = vpack.c.b16 %v6948, %v6931
        %v9227 = vpack.c.b16 %v6949, %v6932
        %v9228 = vpack.c.b16 %v6950, %v6933
        %v9229 = vpack.c.b16 %v6951, %v6934
        %v9230 = vpack.c.b16 %v6952, %v6935
        %v9231 = vpack.c.b16 %v6953, %v6936
        %v9232 = vpack.c.b16 %v6954, %v6937
        %v9233 = vpack.c.b16 %v6972, %v6955
        %v9234 = vpack.c.b16 %v6973, %v6956
        %v9235 = vpack.c.b16 %v6974, %v6957
        %v9236 = vpack.c.b16 %v6975, %v6958
        %v9237 = vpack.c.b16 %v6976, %v6959
        %v9238 = vpack.c.b16 %v6977, %v6960
        %v9239 = vpack.c.b16 %v6978, %v6961
        %v9240 = vpack.c.b16 %v6979, %v6962
        %v9241 = vpack.c.b16 %v6980, %v6963
        %v9242 = vpack.c.b16 %v6981, %v6964
        %v9243 = vpack.c.b16 %v6982, %v6965
        %v9244 = vpack.c.b16 %v6983, %v6966
        %v9245 = vpack.c.b16 %v6984, %v6967
        %v9246 = vpack.c.b16 %v6985, %v6968
        %v9247 = vpack.c.b16 %v6986, %v6969
        %v9248 = vpack.c.b16 %v6987, %v6970
        %v9249 = vpack.c.b16 %v6988, %v6971
        %v9250 = vpack.c.b16 %v7006, %v6989
        %v9251 = vpack.c.b16 %v7007, %v6990
        %v9252 = vpack.c.b16 %v7008, %v6991
        %v9253 = vpack.c.b16 %v7009, %v6992
        %v9254 = vpack.c.b16 %v7010, %v6993
        %v9255 = vpack.c.b16 %v7011, %v6994
        %v9256 = vpack.c.b16 %v7012, %v6995
        %v9257 = vpack.c.b16 %v7013, %v6996
        %v9258 = vpack.c.b16 %v7014, %v6997
        %v9259 = vpack.c.b16 %v7015, %v6998
        %v9260 = vpack.c.b16 %v7016, %v6999
        %v9261 = vpack.c.b16 %v7017, %v7000
        %v9262 = vpack.c.b16 %v7018, %v7001
        %v9263 = vpack.c.b16 %v7019, %v7002
        %v9264 = vpack.c.b16 %v7020, %v7003
        %v9265 = vpack.c.b16 %v7021, %v7004
        %v9266 = vpack.c.b16 %v7022, %v7005
        %v9267 = vpack.c.b16 %v7040, %v7023
        %v9268 = vpack.c.b16 %v7041, %v7024
        %v9269 = vpack.c.b16 %v7042, %v7025
        %v9270 = vpack.c.b16 %v7043, %v7026
        %v9271 = vpack.c.b16 %v7044, %v7027
        %v9272 = vpack.c.b16 %v7045, %v7028
        %v9273 = vpack.c.b16 %v7046, %v7029
        %v9274 = vpack.c.b16 %v7047, %v7030
        %v9275 = vpack.c.b16 %v7048, %v7031
        %v9276 = vpack.c.b16 %v7049, %v7032
        %v9277 = vpack.c.b16 %v7050, %v7033
        %v9278 = vpack.c.b16 %v7051, %v7034
        %v9279 = vpack.c.b16 %v7052, %v7035
        %v9280 = vpack.c.b16 %v7053, %v7036
        %v9281 = vpack.c.b16 %v7054, %v7037
        %v9282 = vpack.c.b16 %v7055, %v7038
        %v9283 = vpack.c.b16 %v7056, %v7039
        %v9284 = vpack.c.b16 %v7074, %v7057
        %v9285 = vpack.c.b16 %v7075, %v7058
        %v9286 = vpack.c.b16 %v7076, %v7059
        %v9287 = vpack.c.b16 %v7077, %v7060
        %v9288 = vpack.c.b16 %v7078, %v7061
        %v9289 = vpack.c.b16 %v7079, %v7062
        %v9290 = vpack.c.b16 %v7080, %v7063
        %v9291 = vpack.c.b16 %v7081, %v7064
        %v9292 = vpack.c.b16 %v7082, %v7065
        %v9293 = vpack.c.b16 %v7083, %v7066
        %v9294 = vpack.c.b16 %v7084, %v7067
        %v9295 = vpack.c.b16 %v7085, %v7068
        %v9296 = vpack.c.b16 %v7086, %v7069
        %v9297 = vpack.c.b16 %v7087, %v7070
        %v9298 = vpack.c.b16 %v7088, %v7071
        %v9299 = vpack.c.b16 %v7089, %v7072
        %v9300 = vpack.c.b16 %v7090, %v7073
        %v9301 = vpack.c.b16 %v7108, %v7091
        %v9302 = vpack.c.b16 %v7109, %v7092
        %v9303 = vpack.c.b16 %v7110, %v7093
        %v9304 = vpack.c.b16 %v7111, %v7094
        %v9305 = vpack.c.b16 %v7112, %v7095
        %v9306 = vpack.c.b16 %v7113, %v7096
        %v9307 = vpack.c.b16 %v7114, %v7097
        %v9308 = vpack.c.b16 %v7115, %v7098
        %v9309 = vpack.c.b16 %v7116, %v7099
        %v9310 = vpack.c.b16 %v7117, %v7100
        %v9311 = vpack.c.b16 %v7118, %v7101
        %v9312 = vpack.c.b16 %v7119, %v7102
        %v9313 = vpack.c.b16 %v7120, %v7103
        %v9314 = vpack.c.b16 %v7121, %v7104
        %v9315 = vpack.c.b16 %v7122, %v7105
        %v9316 = vpack.c.b16 %v7123, %v7106
        %v9317 = vpack.c.b16 %v7124, %v7107
        %v9318 = vpack.c.b16 %v7142, %v7125
        %v9319 = vpack.c.b16 %v7143, %v7126
        %v9320 = vpack.c.b16 %v7144, %v7127
        %v9321 = vpack.c.b16 %v7145, %v7128
        %v9322 = vpack.c.b16 %v7146, %v7129
        %v9323 = vpack.c.b16 %v7147, %v7130
        %v9324 = vpack.c.b16 %v7148, %v7131
        %v9325 = vpack.c.b16 %v7149, %v7132
        %v9326 = vpack.c.b16 %v7150, %v7133
        %v9327 = vpack.c.b16 %v7151, %v7134
        %v9328 = vpack.c.b16 %v7152, %v7135
        %v9329 = vpack.c.b16 %v7153, %v7136
        %v9330 = vpack.c.b16 %v7154, %v7137
        %v9331 = vpack.c.b16 %v7155, %v7138
        %v9332 = vpack.c.b16 %v7156, %v7139
        %v9333 = vpack.c.b16 %v7157, %v7140
        %v9334 = vpack.c.b16 %v7158, %v7141
        %v9335 = vpack.c.b16 %v7176, %v7159
        %v9336 = vpack.c.b16 %v7177, %v7160
        %v9337 = vpack.c.b16 %v7178, %v7161
        %v9338 = vpack.c.b16 %v7179, %v7162
        %v9339 = vpack.c.b16 %v7180, %v7163
        %v9340 = vpack.c.b16 %v7181, %v7164
        %v9341 = vpack.c.b16 %v7182, %v7165
        %v9342 = vpack.c.b16 %v7183, %v7166
        %v9343 = vpack.c.b16 %v7184, %v7167
        %v9344 = vpack.c.b16 %v7185, %v7168
        %v9345 = vpack.c.b16 %v7186, %v7169
        %v9346 = vpack.c.b16 %v7187, %v7170
        %v9347 = vpack.c.b16 %v7188, %v7171
        %v9348 = vpack.c.b16 %v7189, %v7172
        %v9349 = vpack.c.b16 %v7190, %v7173
        %v9350 = vpack.c.b16 %v7191, %v7174
        %v9351 = vpack.c.b16 %v7192, %v7175
        %v9352 = vpack.c.b16 %v7210, %v7193
        %v9353 = vpack.c.b16 %v7211, %v7194
        %v9354 = vpack.c.b16 %v7212, %v7195
        %v9355 = vpack.c.b16 %v7213, %v7196
        %v9356 = vpack.c.b16 %v7214, %v7197
        %v9357 = vpack.c.b16 %v7215, %v7198
        %v9358 = vpack.c.b16 %v7216, %v7199
        %v9359 = vpack.c.b16 %v7217, %v7200
        %v9360 = vpack.c.b16 %v7218, %v7201
        %v9361 = vpack.c.b16 %v7219, %v7202
        %v9362 = vpack.c.b16 %v7220, %v7203
        %v9363 = vpack.c.b16 %v7221, %v7204
        %v9364 = vpack.c.b16 %v7222, %v7205
        %v9365 = vpack.c.b16 %v7223, %v7206
        %v9366 = vpack.c.b16 %v7224, %v7207
        %v9367 = vpack.c.b16 %v7225, %v7208
        %v9368 = vpack.c.b16 %v7226, %v7209
        %v9369 = vpack.c.b16 %v7244, %v7227
        %v9370 = vpack.c.b16 %v7245, %v7228
        %v9371 = vpack.c.b16 %v7246, %v7229
        %v9372 = vpack.c.b16 %v7247, %v7230
        %v9373 = vpack.c.b16 %v7248, %v7231
        %v9374 = vpack.c.b16 %v7249, %v7232
        %v9375 = vpack.c.b16 %v7250, %v7233
        %v9376 = vpack.c.b16 %v7251, %v7234
        %v9377 = vpack.c.b16 %v7252, %v7235
        %v9378 = vpack.c.b16 %v7253, %v7236
        %v9379 = vpack.c.b16 %v7254, %v7237
        %v9380 = vpack.c.b16 %v7255, %v7238
        %v9381 = vpack.c.b16 %v7256, %v7239
        %v9382 = vpack.c.b16 %v7257, %v7240
        %v9383 = vpack.c.b16 %v7258, %v7241
        %v9384 = vpack.c.b16 %v7259, %v7242
        %v9385 = vpack.c.b16 %v7260, %v7243
        %v9386 = vpack.c.b16 %v7278, %v7261
        %v9387 = vpack.c.b16 %v7279, %v7262
        %v9388 = vpack.c.b16 %v7280, %v7263
        %v9389 = vpack.c.b16 %v7281, %v7264
        %v9390 = vpack.c.b16 %v7282, %v7265
        %v9391 = vpack.c.b16 %v7283, %v7266
        %v9392 = vpack.c.b16 %v7284, %v7267
        %v9393 = vpack.c.b16 %v7285, %v7268
        %v9394 = vpack.c.b16 %v7286, %v7269
        %v9395 = vpack.c.b16 %v7287, %v7270
        %v9396 = vpack.c.b16 %v7288, %v7271
        %v9397 = vpack.c.b16 %v7289, %v7272
        %v9398 = vpack.c.b16 %v7290, %v7273
        %v9399 = vpack.c.b16 %v7291, %v7274
        %v9400 = vpack.c.b16 %v7292, %v7275
        %v9401 = vpack.c.b16 %v7293, %v7276
        %v9402 = vpack.c.b16 %v7294, %v7277
        %v9403 = vpack.c.b16 %v7312, %v7295
        %v9404 = vpack.c.b16 %v7313, %v7296
        %v9405 = vpack.c.b16 %v7314, %v7297
        %v9406 = vpack.c.b16 %v7315, %v7298
        %v9407 = vpack.c.b16 %v7316, %v7299
        %v9408 = vpack.c.b16 %v7317, %v7300
        %v9409 = vpack.c.b16 %v7318, %v7301
        %v9410 = vpack.c.b16 %v7319, %v7302
        %v9411 = vpack.c.b16 %v7320, %v7303
        %v9412 = vpack.c.b16 %v7321, %v7304
        %v9413 = vpack.c.b16 %v7322, %v7305
        %v9414 = vpack.c.b16 %v7323, %v7306
        %v9415 = vpack.c.b16 %v7324, %v7307
        %v9416 = vpack.c.b16 %v7325, %v7308
        %v9417 = vpack.c.b16 %v7326, %v7309
        %v9418 = vpack.c.b16 %v7327, %v7310
        %v9419 = vpack.c.b16 %v7328, %v7311
        %v9420 = vpack.c.b16 %v7346, %v7329
        %v9421 = vpack.c.b16 %v7347, %v7330
        %v9422 = vpack.c.b16 %v7348, %v7331
        %v9423 = vpack.c.b16 %v7349, %v7332
        %v9424 = vpack.c.b16 %v7350, %v7333
        %v9425 = vpack.c.b16 %v7351, %v7334
        %v9426 = vpack.c.b16 %v7352, %v7335
        %v9427 = vpack.c.b16 %v7353, %v7336
        %v9428 = vpack.c.b16 %v7354, %v7337
        %v9429 = vpack.c.b16 %v7355, %v7338
        %v9430 = vpack.c.b16 %v7356, %v7339
        %v9431 = vpack.c.b16 %v7357, %v7340
        %v9432 = vpack.c.b16 %v7358, %v7341
        %v9433 = vpack.c.b16 %v7359, %v7342
        %v9434 = vpack.c.b16 %v7360, %v7343
        %v9435 = vpack.c.b16 %v7361, %v7344
        %v9436 = vpack.c.b16 %v7362, %v7345
        %v9437 = vpack.c.b16 %v7380, %v7363
        %v9438 = vpack.c.b16 %v7381, %v7364
        %v9439 = vpack.c.b16 %v7382, %v7365
        %v9440 = vpack.c.b16 %v7383, %v7366
        %v9441 = vpack.c.b16 %v7384, %v7367
        %v9442 = vpack.c.b16 %v7385, %v7368
        %v9443 = vpack.c.b16 %v7386, %v7369
        %v9444 = vpack.c.b16 %v7387, %v7370
        %v9445 = vpack.c.b16 %v7388, %v7371
        %v9446 = vpack.c.b16 %v7389, %v7372
        %v9447 = vpack.c.b16 %v7390, %v7373
        %v9448 = vpack.c.b16 %v7391, %v7374
        %v9449 = vpack.c.b16 %v7392, %v7375
        %v9450 = vpack.c.b16 %v7393, %v7376
        %v9451 = vpack.c.b16 %v7394, %v7377
        %v9452 = vpack.c.b16 %v7395, %v7378
        %v9453 = vpack.c.b16 %v7396, %v7379
        %v9454 = vpack.c.b16 %v7414, %v7397
        %v9455 = vpack.c.b16 %v7415, %v7398
        %v9456 = vpack.c.b16 %v7416, %v7399
        %v9457 = vpack.c.b16 %v7417, %v7400
        %v9458 = vpack.c.b16 %v7418, %v7401
        %v9459 = vpack.c.b16 %v7419, %v7402
        %v9460 = vpack.c.b16 %v7420, %v7403
        %v9461 = vpack.c.b16 %v7421, %v7404
        %v9462 = vpack.c.b16 %v7422, %v7405
        %v9463 = vpack.c.b16 %v7423, %v7406
        %v9464 = vpack.c.b16 %v7424, %v7407
        %v9465 = vpack.c.b16 %v7425, %v7408
        %v9466 = vpack.c.b16 %v7426, %v7409
        %v9467 = vpack.c.b16 %v7427, %v7410
        %v9468 = vpack.c.b16 %v7428, %v7411
        %v9469 = vpack.c.b16 %v7429, %v7412
        %v9470 = vpack.c.b16 %v7430, %v7413
        %v9471 = vpack.c.b16 %v7448, %v7431
        %v9472 = vpack.c.b16 %v7449, %v7432
        %v9473 = vpack.c.b16 %v7450, %v7433
        %v9474 = vpack.c.b16 %v7451, %v7434
        %v9475 = vpack.c.b16 %v7452, %v7435
        %v9476 = vpack.c.b16 %v7453, %v7436
        %v9477 = vpack.c.b16 %v7454, %v7437
        %v9478 = vpack.c.b16 %v7455, %v7438
        %v9479 = vpack.c.b16 %v7456, %v7439
        %v9480 = vpack.c.b16 %v7457, %v7440
        %v9481 = vpack.c.b16 %v7458, %v7441
        %v9482 = vpack.c.b16 %v7459, %v7442
        %v9483 = vpack.c.b16 %v7460, %v7443
        %v9484 = vpack.c.b16 %v7461, %v7444
        %v9485 = vpack.c.b16 %v7462, %v7445
        %v9486 = vpack.c.b16 %v7463, %v7446
        %v9487 = vpack.c.b16 %v7464, %v7447
        %v9488 = vpack.c.b16 %v7482, %v7465
        %v9489 = vpack.c.b16 %v7483, %v7466
        %v9490 = vpack.c.b16 %v7484, %v7467
        %v9491 = vpack.c.b16 %v7485, %v7468
        %v9492 = vpack.c.b16 %v7486, %v7469
        %v9493 = vpack.c.b16 %v7487, %v7470
        %v9494 = vpack.c.b16 %v7488, %v7471
        %v9495 = vpack.c.b16 %v7489, %v7472
        %v9496 = vpack.c.b16 %v7490, %v7473
        %v9497 = vpack.c.b16 %v7491, %v7474
        %v9498 = vpack.c.b16 %v7492, %v7475
        %v9499 = vpack.c.b16 %v7493, %v7476
        %v9500 = vpack.c.b16 %v7494, %v7477
        %v9501 = vpack.c.b16 %v7495, %v7478
        %v9502 = vpack.c.b16 %v7496, %v7479
        %v9503 = vpack.c.b16 %v7497, %v7480
        %v9504 = vpack.c.b16 %v7498, %v7481
        %v9505 = vpack.c.b16 %v7516, %v7499
        %v9506 = vpack.c.b16 %v7517, %v7500
        %v9507 = vpack.c.b16 %v7518, %v7501
        %v9508 = vpack.c.b16 %v7519, %v7502
        %v9509 = vpack.c.b16 %v7520, %v7503
        %v9510 = vpack.c.b16 %v7521, %v7504
        %v9511 = vpack.c.b16 %v7522, %v7505
        %v9512 = vpack.c.b16 %v7523, %v7506
        %v9513 = vpack.c.b16 %v7524, %v7507
        %v9514 = vpack.c.b16 %v7525, %v7508
        %v9515 = vpack.c.b16 %v7526, %v7509
        %v9516 = vpack.c.b16 %v7527, %v7510
        %v9517 = vpack.c.b16 %v7528, %v7511
        %v9518 = vpack.c.b16 %v7529, %v7512
        %v9519 = vpack.c.b16 %v7530, %v7513
        %v9520 = vpack.c.b16 %v7531, %v7514
        %v9521 = vpack.c.b16 %v7532, %v7515
        %v9522 = vpack.c.b16 %v7550, %v7533
        %v9523 = vpack.c.b16 %v7551, %v7534
        %v9524 = vpack.c.b16 %v7552, %v7535
        %v9525 = vpack.c.b16 %v7553, %v7536
        %v9526 = vpack.c.b16 %v7554, %v7537
        %v9527 = vpack.c.b16 %v7555, %v7538
        %v9528 = vpack.c.b16 %v7556, %v7539
        %v9529 = vpack.c.b16 %v7557, %v7540
        %v9530 = vpack.c.b16 %v7558, %v7541
        %v9531 = vpack.c.b16 %v7559, %v7542
        %v9532 = vpack.c.b16 %v7560, %v7543
        %v9533 = vpack.c.b16 %v7561, %v7544
        %v9534 = vpack.c.b16 %v7562, %v7545
        %v9535 = vpack.c.b16 %v7563, %v7546
        %v9536 = vpack.c.b16 %v7564, %v7547
        %v9537 = vpack.c.b16 %v7565, %v7548
        %v9538 = vpack.c.b16 %v7566, %v7549
        %v9539 = vpack.c.b16 %v7584, %v7567
        %v9540 = vpack.c.b16 %v7585, %v7568
        %v9541 = vpack.c.b16 %v7586, %v7569
        %v9542 = vpack.c.b16 %v7587, %v7570
        %v9543 = vpack.c.b16 %v7588, %v7571
        %v9544 = vpack.c.b16 %v7589, %v7572
        %v9545 = vpack.c.b16 %v7590, %v7573
        %v9546 = vpack.c.b16 %v7591, %v7574
        %v9547 = vpack.c.b16 %v7592, %v7575
        %v9548 = vpack.c.b16 %v7593, %v7576
        %v9549 = vpack.c.b16 %v7594, %v7577
        %v9550 = vpack.c.b16 %v7595, %v7578
        %v9551 = vpack.c.b16 %v7596, %v7579
        %v9552 = vpack.c.b16 %v7597, %v7580
        %v9553 = vpack.c.b16 %v7598, %v7581
        %v9554 = vpack.c.b16 %v7599, %v7582
        %v9555 = vpack.c.b16 %v7600, %v7583
        %v9556 = vpack.c.b16 %v7618, %v7601
        %v9557 = vpack.c.b16 %v7619, %v7602
        %v9558 = vpack.c.b16 %v7620, %v7603
        %v9559 = vpack.c.b16 %v7621, %v7604
        %v9560 = vpack.c.b16 %v7622, %v7605
        %v9561 = vpack.c.b16 %v7623, %v7606
        %v9562 = vpack.c.b16 %v7624, %v7607
        %v9563 = vpack.c.b16 %v7625, %v7608
        %v9564 = vpack.c.b16 %v7626, %v7609
        %v9565 = vpack.c.b16 %v7627, %v7610
        %v9566 = vpack.c.b16 %v7628, %v7611
        %v9567 = vpack.c.b16 %v7629, %v7612
        %v9568 = vpack.c.b16 %v7630, %v7613
        %v9569 = vpack.c.b16 %v7631, %v7614
        %v9570 = vpack.c.b16 %v7632, %v7615
        %v9571 = vpack.c.b16 %v7633, %v7616
        %v9572 = vpack.c.b16 %v7634, %v7617
        %v9573 = vpack.c.b16 %v7652, %v7635
        %v9574 = vpack.c.b16 %v7653, %v7636
        %v9575 = vpack.c.b16 %v7654, %v7637
        %v9576 = vpack.c.b16 %v7655, %v7638
        %v9577 = vpack.c.b16 %v7656, %v7639
        %v9578 = vpack.c.b16 %v7657, %v7640
        %v9579 = vpack.c.b16 %v7658, %v7641
        %v9580 = vpack.c.b16 %v7659, %v7642
        %v9581 = vpack.c.b16 %v7660, %v7643
        %v9582 = vpack.c.b16 %v7661, %v7644
        %v9583 = vpack.c.b16 %v7662, %v7645
        %v9584 = vpack.c.b16 %v7663, %v7646
        %v9585 = vpack.c.b16 %v7664, %v7647
        %v9586 = vpack.c.b16 %v7665, %v7648
        %v9587 = vpack.c.b16 %v7666, %v7649
        %v9588 = vpack.c.b16 %v7667, %v7650
        %v9589 = vpack.c.b16 %v7668, %v7651
        %v9590 = vpack.c.b16 %v7686, %v7669
        %v9591 = vpack.c.b16 %v7687, %v7670
        %v9592 = vpack.c.b16 %v7688, %v7671
        %v9593 = vpack.c.b16 %v7689, %v7672
        %v9594 = vpack.c.b16 %v7690, %v7673
        %v9595 = vpack.c.b16 %v7691, %v7674
        %v9596 = vpack.c.b16 %v7692, %v7675
        %v9597 = vpack.c.b16 %v7693, %v7676
        %v9598 = vpack.c.b16 %v7694, %v7677
        %v9599 = vpack.c.b16 %v7695, %v7678
        %v9600 = vpack.c.b16 %v7696, %v7679
        %v9601 = vpack.c.b16 %v7697, %v7680
        %v9602 = vpack.c.b16 %v7698, %v7681
        %v9603 = vpack.c.b16 %v7699, %v7682
        %v9604 = vpack.c.b16 %v7700, %v7683
        %v9605 = vpack.c.b16 %v7701, %v7684
        %v9606 = vpack.c.b16 %v7702, %v7685
        %v9607 = vpack.c.b16 %v7720, %v7703
        %v9608 = vpack.c.b16 %v7721, %v7704
        %v9609 = vpack.c.b16 %v7722, %v7705
        %v9610 = vpack.c.b16 %v7723, %v7706
        %v9611 = vpack.c.b16 %v7724, %v7707
        %v9612 = vpack.c.b16 %v7725, %v7708
        %v9613 = vpack.c.b16 %v7726, %v7709
        %v9614 = vpack.c.b16 %v7727, %v7710
        %v9615 = vpack.c.b16 %v7728, %v7711
        %v9616 = vpack.c.b16 %v7729, %v7712
        %v9617 = vpack.c.b16 %v7730, %v7713
        %v9618 = vpack.c.b16 %v7731, %v7714
        %v9619 = vpack.c.b16 %v7732, %v7715
        %v9620 = vpack.c.b16 %v7733, %v7716
        %v9621 = vpack.c.b16 %v7734, %v7717
        %v9622 = vpack.c.b16 %v7735, %v7718
        %v9623 = vpack.c.b16 %v7736, %v7719
        %v9624 = vpack.c.b16 %v7754, %v7737
        %v9625 = vpack.c.b16 %v7755, %v7738
        %v9626 = vpack.c.b16 %v7756, %v7739
        %v9627 = vpack.c.b16 %v7757, %v7740
        %v9628 = vpack.c.b16 %v7758, %v7741
        %v9629 = vpack.c.b16 %v7759, %v7742
        %v9630 = vpack.c.b16 %v7760, %v7743
        %v9631 = vpack.c.b16 %v7761, %v7744
        %v9632 = vpack.c.b16 %v7762, %v7745
        %v9633 = vpack.c.b16 %v7763, %v7746
        %v9634 = vpack.c.b16 %v7764, %v7747
        %v9635 = vpack.c.b16 %v7765, %v7748
        %v9636 = vpack.c.b16 %v7766, %v7749
        %v9637 = vpack.c.b16 %v7767, %v7750
        %v9638 = vpack.c.b16 %v7768, %v7751
        %v9639 = vpack.c.b16 %v7769, %v7752
        %v9640 = vpack.c.b16 %v7770, %v7753
        %v9641 = vpack.c.b16 %v7788, %v7771
        %v9642 = vpack.c.b16 %v7789, %v7772
        %v9643 = vpack.c.b16 %v7790, %v7773
        %v9644 = vpack.c.b16 %v7791, %v7774
        %v9645 = vpack.c.b16 %v7792, %v7775
        %v9646 = vpack.c.b16 %v7793, %v7776
        %v9647 = vpack.c.b16 %v7794, %v7777
        %v9648 = vpack.c.b16 %v7795, %v7778
        %v9649 = vpack.c.b16 %v7796, %v7779
        %v9650 = vpack.c.b16 %v7797, %v7780
        %v9651 = vpack.c.b16 %v7798, %v7781
        %v9652 = vpack.c.b16 %v7799, %v7782
        %v9653 = vpack.c.b16 %v7800, %v7783
        %v9654 = vpack.c.b16 %v7801, %v7784
        %v9655 = vpack.c.b16 %v7802, %v7785
        %v9656 = vpack.c.b16 %v7803, %v7786
        %v9657 = vpack.c.b16 %v7804, %v7787
        %v9658 = vpack.c.b16 %v7822, %v7805
        %v9659 = vpack.c.b16 %v7823, %v7806
        %v9660 = vpack.c.b16 %v7824, %v7807
        %v9661 = vpack.c.b16 %v7825, %v7808
        %v9662 = vpack.c.b16 %v7826, %v7809
        %v9663 = vpack.c.b16 %v7827, %v7810
        %v9664 = vpack.c.b16 %v7828, %v7811
        %v9665 = vpack.c.b16 %v7829, %v7812
        %v9666 = vpack.c.b16 %v7830, %v7813
        %v9667 = vpack.c.b16 %v7831, %v7814
        %v9668 = vpack.c.b16 %v7832, %v7815
        %v9669 = vpack.c.b16 %v7833, %v7816
        %v9670 = vpack.c.b16 %v7834, %v7817
        %v9671 = vpack.c.b16 %v7835, %v7818
        %v9672 = vpack.c.b16 %v7836, %v7819
        %v9673 = vpack.c.b16 %v7837, %v7820
        %v9674 = vpack.c.b16 %v7838, %v7821
        %v9675 = vpack.c.b16 %v7856, %v7839
        %v9676 = vpack.c.b16 %v7857, %v7840
        %v9677 = vpack.c.b16 %v7858, %v7841
        %v9678 = vpack.c.b16 %v7859, %v7842
        %v9679 = vpack.c.b16 %v7860, %v7843
        %v9680 = vpack.c.b16 %v7861, %v7844
        %v9681 = vpack.c.b16 %v7862, %v7845
        %v9682 = vpack.c.b16 %v7863, %v7846
        %v9683 = vpack.c.b16 %v7864, %v7847
        %v9684 = vpack.c.b16 %v7865, %v7848
        %v9685 = vpack.c.b16 %v7866, %v7849
        %v9686 = vpack.c.b16 %v7867, %v7850
        %v9687 = vpack.c.b16 %v7868, %v7851
        %v9688 = vpack.c.b16 %v7869, %v7852
        %v9689 = vpack.c.b16 %v7870, %v7853
        %v9690 = vpack.c.b16 %v7871, %v7854
        %v9691 = vpack.c.b16 %v7872, %v7855
        %v9692 = vpack.c.b16 %v7890, %v7873
        %v9693 = vpack.c.b16 %v7891, %v7874
        %v9694 = vpack.c.b16 %v7892, %v7875
        %v9695 = vpack.c.b16 %v7893, %v7876
        %v9696 = vpack.c.b16 %v7894, %v7877
        %v9697 = vpack.c.b16 %v7895, %v7878
        %v9698 = vpack.c.b16 %v7896, %v7879
        %v9699 = vpack.c.b16 %v7897, %v7880
        %v9700 = vpack.c.b16 %v7898, %v7881
        %v9701 = vpack.c.b16 %v7899, %v7882
        %v9702 = vpack.c.b16 %v7900, %v7883
        %v9703 = vpack.c.b16 %v7901, %v7884
        %v9704 = vpack.c.b16 %v7902, %v7885
        %v9705 = vpack.c.b16 %v7903, %v7886
        %v9706 = vpack.c.b16 %v7904, %v7887
        %v9707 = vpack.c.b16 %v7905, %v7888
        %v9708 = vpack.c.b16 %v7906, %v7889
        %v9709 = vpack.c.b16 %v7924, %v7907
        %v9710 = vpack.c.b16 %v7925, %v7908
        %v9711 = vpack.c.b16 %v7926, %v7909
        %v9712 = vpack.c.b16 %v7927, %v7910
        %v9713 = vpack.c.b16 %v7928, %v7911
        %v9714 = vpack.c.b16 %v7929, %v7912
        %v9715 = vpack.c.b16 %v7930, %v7913
        %v9716 = vpack.c.b16 %v7931, %v7914
        %v9717 = vpack.c.b16 %v7932, %v7915
        %v9718 = vpack.c.b16 %v7933, %v7916
        %v9719 = vpack.c.b16 %v7934, %v7917
        %v9720 = vpack.c.b16 %v7935, %v7918
        %v9721 = vpack.c.b16 %v7936, %v7919
        %v9722 = vpack.c.b16 %v7937, %v7920
        %v9723 = vpack.c.b16 %v7938, %v7921
        %v9724 = vpack.c.b16 %v7939, %v7922
        %v9725 = vpack.c.b16 %v7940, %v7923
        %v9726 = vpack.c.b16 %v7958, %v7941
        %v9727 = vpack.c.b16 %v7959, %v7942
        %v9728 = vpack.c.b16 %v7960, %v7943
        %v9729 = vpack.c.b16 %v7961, %v7944
        %v9730 = vpack.c.b16 %v7962, %v7945
        %v9731 = vpack.c.b16 %v7963, %v7946
        %v9732 = vpack.c.b16 %v7964, %v7947
        %v9733 = vpack.c.b16 %v7965, %v7948
        %v9734 = vpack.c.b16 %v7966, %v7949
        %v9735 = vpack.c.b16 %v7967, %v7950
        %v9736 = vpack.c.b16 %v7968, %v7951
        %v9737 = vpack.c.b16 %v7969, %v7952
        %v9738 = vpack.c.b16 %v7970, %v7953
        %v9739 = vpack.c.b16 %v7971, %v7954
        %v9740 = vpack.c.b16 %v7972, %v7955
        %v9741 = vpack.c.b16 %v7973, %v7956
        %v9742 = vpack.c.b16 %v7974, %v7957
        %v9743 = vpack.c.b16 %v7992, %v7975
        %v9744 = vpack.c.b16 %v7993, %v7976
        %v9745 = vpack.c.b16 %v7994, %v7977
        %v9746 = vpack.c.b16 %v7995, %v7978
        %v9747 = vpack.c.b16 %v7996, %v7979
        %v9748 = vpack.c.b16 %v7997, %v7980
        %v9749 = vpack.c.b16 %v7998, %v7981
        %v9750 = vpack.c.b16 %v7999, %v7982
        %v9751 = vpack.c.b16 %v8000, %v7983
        %v9752 = vpack.c.b16 %v8001, %v7984
        %v9753 = vpack.c.b16 %v8002, %v7985
        %v9754 = vpack.c.b16 %v8003, %v7986
        %v9755 = vpack.c.b16 %v8004, %v7987
        %v9756 = vpack.c.b16 %v8005, %v7988
        %v9757 = vpack.c.b16 %v8006, %v7989
        %v9758 = vpack.c.b16 %v8007, %v7990
        %v9759 = vpack.c.b16 %v8008, %v7991
        %v9760 = vpack.c.b16 %v8026, %v8009
        %v9761 = vpack.c.b16 %v8027, %v8010
        %v9762 = vpack.c.b16 %v8028, %v8011
        %v9763 = vpack.c.b16 %v8029, %v8012
        %v9764 = vpack.c.b16 %v8030, %v8013
        %v9765 = vpack.c.b16 %v8031, %v8014
        %v9766 = vpack.c.b16 %v8032, %v8015
        %v9767 = vpack.c.b16 %v8033, %v8016
        %v9768 = vpack.c.b16 %v8034, %v8017
        %v9769 = vpack.c.b16 %v8035, %v8018
        %v9770 = vpack.c.b16 %v8036, %v8019
        %v9771 = vpack.c.b16 %v8037, %v8020
        %v9772 = vpack.c.b16 %v8038, %v8021
        %v9773 = vpack.c.b16 %v8039, %v8022
        %v9774 = vpack.c.b16 %v8040, %v8023
        %v9775 = vpack.c.b16 %v8041, %v8024
        %v9776 = vpack.c.b16 %v8042, %v8025
        %v9777 = vpack.c.b16 %v8060, %v8043
        %v9778 = vpack.c.b16 %v8061, %v8044
        %v9779 = vpack.c.b16 %v8062, %v8045
        %v9780 = vpack.c.b16 %v8063, %v8046
        %v9781 = vpack.c.b16 %v8064, %v8047
        %v9782 = vpack.c.b16 %v8065, %v8048
        %v9783 = vpack.c.b16 %v8066, %v8049
        %v9784 = vpack.c.b16 %v8067, %v8050
        %v9785 = vpack.c.b16 %v8068, %v8051
        %v9786 = vpack.c.b16 %v8069, %v8052
        %v9787 = vpack.c.b16 %v8070, %v8053
        %v9788 = vpack.c.b16 %v8071, %v8054
        %v9789 = vpack.c.b16 %v8072, %v8055
        %v9790 = vpack.c.b16 %v8073, %v8056
        %v9791 = vpack.c.b16 %v8074, %v8057
        %v9792 = vpack.c.b16 %v8075, %v8058
        %v9793 = vpack.c.b16 %v8076, %v8059
        %v9794 = vpack.c.b16 %v8094, %v8077
        %v9795 = vpack.c.b16 %v8095, %v8078
        %v9796 = vpack.c.b16 %v8096, %v8079
        %v9797 = vpack.c.b16 %v8097, %v8080
        %v9798 = vpack.c.b16 %v8098, %v8081
        %v9799 = vpack.c.b16 %v8099, %v8082
        %v9800 = vpack.c.b16 %v8100, %v8083
        %v9801 = vpack.c.b16 %v8101, %v8084
        %v9802 = vpack.c.b16 %v8102, %v8085
        %v9803 = vpack.c.b16 %v8103, %v8086
        %v9804 = vpack.c.b16 %v8104, %v8087
        %v9805 = vpack.c.b16 %v8105, %v8088
        %v9806 = vpack.c.b16 %v8106, %v8089
        %v9807 = vpack.c.b16 %v8107, %v8090
        %v9808 = vpack.c.b16 %v8108, %v8091
        %v9809 = vpack.c.b16 %v8109, %v8092
        %v9810 = vpack.c.b16 %v8110, %v8093
        %v9811 = vpack.c.b16 %v8128, %v8111
        %v9812 = vpack.c.b16 %v8129, %v8112
        %v9813 = vpack.c.b16 %v8130, %v8113
        %v9814 = vpack.c.b16 %v8131, %v8114
        %v9815 = vpack.c.b16 %v8132, %v8115
        %v9816 = vpack.c.b16 %v8133, %v8116
        %v9817 = vpack.c.b16 %v8134, %v8117
        %v9818 = vpack.c.b16 %v8135, %v8118
        %v9819 = vpack.c.b16 %v8136, %v8119
        %v9820 = vpack.c.b16 %v8137, %v8120
        %v9821 = vpack.c.b16 %v8138, %v8121
        %v9822 = vpack.c.b16 %v8139, %v8122
        %v9823 = vpack.c.b16 %v8140, %v8123
        %v9824 = vpack.c.b16 %v8141, %v8124
        %v9825 = vpack.c.b16 %v8142, %v8125
        %v9826 = vpack.c.b16 %v8143, %v8126
        %v9827 = vpack.c.b16 %v8144, %v8127
        %v9828 = vpack.c.b16 %v8162, %v8145
        %v9829 = vpack.c.b16 %v8163, %v8146
        %v9830 = vpack.c.b16 %v8164, %v8147
        %v9831 = vpack.c.b16 %v8165, %v8148
        %v9832 = vpack.c.b16 %v8166, %v8149
        %v9833 = vpack.c.b16 %v8167, %v8150
        %v9834 = vpack.c.b16 %v8168, %v8151
        %v9835 = vpack.c.b16 %v8169, %v8152
        %v9836 = vpack.c.b16 %v8170, %v8153
        %v9837 = vpack.c.b16 %v8171, %v8154
        %v9838 = vpack.c.b16 %v8172, %v8155
        %v9839 = vpack.c.b16 %v8173, %v8156
        %v9840 = vpack.c.b16 %v8174, %v8157
        %v9841 = vpack.c.b16 %v8175, %v8158
        %v9842 = vpack.c.b16 %v8176, %v8159
        %v9843 = vpack.c.b16 %v8177, %v8160
        %v9844 = vpack.c.b16 %v8178, %v8161
        %v9845 = vpack.c.b16 %v8196, %v8179
        %v9846 = vpack.c.b16 %v8197, %v8180
        %v9847 = vpack.c.b16 %v8198, %v8181
        %v9848 = vpack.c.b16 %v8199, %v8182
        %v9849 = vpack.c.b16 %v8200, %v8183
        %v9850 = vpack.c.b16 %v8201, %v8184
        %v9851 = vpack.c.b16 %v8202, %v8185
        %v9852 = vpack.c.b16 %v8203, %v8186
        %v9853 = vpack.c.b16 %v8204, %v8187
        %v9854 = vpack.c.b16 %v8205, %v8188
        %v9855 = vpack.c.b16 %v8206, %v8189
        %v9856 = vpack.c.b16 %v8207, %v8190
        %v9857 = vpack.c.b16 %v8208, %v8191
        %v9858 = vpack.c.b16 %v8209, %v8192
        %v9859 = vpack.c.b16 %v8210, %v8193
        %v9860 = vpack.c.b16 %v8211, %v8194
        %v9861 = vpack.c.b16 %v8212, %v8195
        %v9862 = vpack.c.b16 %v8230, %v8213
        %v9863 = vpack.c.b16 %v8231, %v8214
        %v9864 = vpack.c.b16 %v8232, %v8215
        %v9865 = vpack.c.b16 %v8233, %v8216
        %v9866 = vpack.c.b16 %v8234, %v8217
        %v9867 = vpack.c.b16 %v8235, %v8218
        %v9868 = vpack.c.b16 %v8236, %v8219
        %v9869 = vpack.c.b16 %v8237, %v8220
        %v9870 = vpack.c.b16 %v8238, %v8221
        %v9871 = vpack.c.b16 %v8239, %v8222
        %v9872 = vpack.c.b16 %v8240, %v8223
        %v9873 = vpack.c.b16 %v8241, %v8224
        %v9874 = vpack.c.b16 %v8242, %v8225
        %v9875 = vpack.c.b16 %v8243, %v8226
        %v9876 = vpack.c.b16 %v8244, %v8227
        %v9877 = vpack.c.b16 %v8245, %v8228
        %v9878 = vpack.c.b16 %v8246, %v8229
        %11511 = vmatprep.subr.bf16.mxu0 %v8248
        %11512 = vmatpush1.bf16.msra.mxu0 %v8247
        %11513 = vmatprep.subr.bf16.mxu0 %v8265
        %11514 = vmatpush1.bf16.msra.mxu0 %v8264
        %11515 = vmatprep.subr.bf16.mxu0 %v8282
        %11516 = vmatpush1.bf16.msra.mxu0 %v8281
        %11517 = vmatprep.subr.bf16.mxu0 %v8299
        %11518 = vmatpush1.bf16.msra.mxu0 %v8298
        %11519 = vmatprep.subr.bf16.mxu0 %v8316
        %11520 = vmatpush1.bf16.msra.mxu0 %v8315
        %11521 = vmatprep.subr.bf16.mxu0 %v8333
        %11522 = vmatpush1.bf16.msra.mxu0 %v8332
        %11523 = vmatprep.subr.bf16.mxu0 %v8350
        %11524 = vmatpush1.bf16.msra.mxu0 %v8349
        %11525 = vmatprep.subr.bf16.mxu0 %v8367
        %11526 = vmatpush1.bf16.msra.mxu0 %v8366
        %11527 = vmatprep.subr.bf16.mxu0 %v8384
        %11528 = vmatpush1.bf16.msra.mxu0 %v8383
        %11529 = vmatprep.subr.bf16.mxu0 %v8401
        %11530 = vmatpush1.bf16.msra.mxu0 %v8400
        %11531 = vmatprep.subr.bf16.mxu0 %v8418
        %11532 = vmatpush1.bf16.msra.mxu0 %v8417
        %11533 = vmatprep.subr.bf16.mxu0 %v8435
        %11534 = vmatpush1.bf16.msra.mxu0 %v8434
        %11535 = vmatprep.subr.bf16.mxu0 %v8452
        %11536 = vmatpush1.bf16.msra.mxu0 %v8451
        %11537 = vmatprep.subr.bf16.mxu0 %v8469
        %11538 = vmatpush1.bf16.msra.mxu0 %v8468
        %11539 = vmatprep.subr.bf16.mxu0 %v8486
        %11540 = vmatpush1.bf16.msra.mxu0 %v8485
        %11541 = vmatprep.subr.bf16.mxu0 %v8503
        %11542 = vmatpush1.bf16.msra.mxu0 %v8502
        %11543 = vmatprep.mubr.bf16.mxu0 %v3232
        %11544 = vmatmul.mubr.bf16.gmra.mrb[0].mxu0 %v3231
        %v11545 = vpop.f32.mrb[0].mxu0
        %v11546 = vadd.f32 0.0, %v11545
        %v11547 = vpop.f32.mrb[0].mxu0
        %v11548 = vadd.f32 0.0, %v11547
        %v11549 = vpop.f32.mrb[0].mxu0
        %v11550 = vpop.f32.mrb[0].mxu0
        %11551 = vdwg.mxu0
        %11552 = vmatprep.subr.bf16.mxu0 %v8520
        %11553 = vmatpush1.bf16.msra.mxu0 %v8519
        %11554 = vmatprep.subr.bf16.mxu0 %v8537
        %11555 = vmatpush1.bf16.msra.mxu0 %v8536
        %11556 = vmatprep.subr.bf16.mxu0 %v8554
        %11557 = vmatpush1.bf16.msra.mxu0 %v8553
        %11558 = vmatprep.subr.bf16.mxu0 %v8571
        %11559 = vmatpush1.bf16.msra.mxu0 %v8570
        %11560 = vmatprep.subr.bf16.mxu0 %v8588
        %11561 = vmatpush1.bf16.msra.mxu0 %v8587
        %11562 = vmatprep.subr.bf16.mxu0 %v8605
        %11563 = vmatpush1.bf16.msra.mxu0 %v8604
        %11564 = vmatprep.subr.bf16.mxu0 %v8622
        %11565 = vmatpush1.bf16.msra.mxu0 %v8621
        %11566 = vmatprep.subr.bf16.mxu0 %v8639
        %11567 = vmatpush1.bf16.msra.mxu0 %v8638
        %11568 = vmatprep.subr.bf16.mxu0 %v8656
        %11569 = vmatpush1.bf16.msra.mxu0 %v8655
        %11570 = vmatprep.subr.bf16.mxu0 %v8673
        %11571 = vmatpush1.bf16.msra.mxu0 %v8672
        %11572 = vmatprep.subr.bf16.mxu0 %v8690
        %11573 = vmatpush1.bf16.msra.mxu0 %v8689
        %11574 = vmatprep.subr.bf16.mxu0 %v8707
        %11575 = vmatpush1.bf16.msra.mxu0 %v8706
        %11576 = vmatprep.subr.bf16.mxu0 %v8724
        %11577 = vmatpush1.bf16.msra.mxu0 %v8723
        %11578 = vmatprep.subr.bf16.mxu0 %v8741
        %11579 = vmatpush1.bf16.msra.mxu0 %v8740
        %11580 = vmatprep.subr.bf16.mxu0 %v8758
        %11581 = vmatpush1.bf16.msra.mxu0 %v8757
        %11582 = vmatprep.subr.bf16.mxu0 %v8775
        %11583 = vmatpush1.bf16.msra.mxu0 %v8774
        %11584 = vmatprep.mubr.bf16.mxu0 %v3234
        %11585 = vmatmul.mubr.bf16.gmra.mrb[0].mxu0 %v3233
        %v11586 = vpop.f32.mrb[0].mxu0
        %v11587 = vadd.f32 %v11546, %v11586
        %v11588 = vpop.f32.mrb[0].mxu0
        %v11589 = vadd.f32 %v11548, %v11588
        %v11590 = vpop.f32.mrb[0].mxu0
        %v11591 = vpop.f32.mrb[0].mxu0
        %11592 = vdwg.mxu0
        %11593 = vmatprep.subr.bf16.mxu0 %v8792
        %11594 = vmatpush1.bf16.msra.mxu0 %v8791
        %11595 = vmatprep.subr.bf16.mxu0 %v8809
        %11596 = vmatpush1.bf16.msra.mxu0 %v8808
        %11597 = vmatprep.subr.bf16.mxu0 %v8826
        %11598 = vmatpush1.bf16.msra.mxu0 %v8825
        %11599 = vmatprep.subr.bf16.mxu0 %v8843
        %11600 = vmatpush1.bf16.msra.mxu0 %v8842
        %11601 = vmatprep.subr.bf16.mxu0 %v8860
        %11602 = vmatpush1.bf16.msra.mxu0 %v8859
        %11603 = vmatprep.subr.bf16.mxu0 %v8877
        %11604 = vmatpush1.bf16.msra.mxu0 %v8876
        %11605 = vmatprep.subr.bf16.mxu0 %v8894
        %11606 = vmatpush1.bf16.msra.mxu0 %v8893
        %11607 = vmatprep.subr.bf16.mxu0 %v8911
        %11608 = vmatpush1.bf16.msra.mxu0 %v8910
        %11609 = vmatprep.subr.bf16.mxu0 %v8928
        %11610 = vmatpush1.bf16.msra.mxu0 %v8927
        %11611 = vmatprep.subr.bf16.mxu0 %v8945
        %11612 = vmatpush1.bf16.msra.mxu0 %v8944
        %11613 = vmatprep.subr.bf16.mxu0 %v8962
        %11614 = vmatpush1.bf16.msra.mxu0 %v8961
        %11615 = vmatprep.subr.bf16.mxu0 %v8979
        %11616 = vmatpush1.bf16.msra.mxu0 %v8978
        %11617 = vmatprep.subr.bf16.mxu0 %v8996
        %11618 = vmatpush1.bf16.msra.mxu0 %v8995
        %11619 = vmatprep.subr.bf16.mxu0 %v9013
        %11620 = vmatpush1.bf16.msra.mxu0 %v9012
        %11621 = vmatprep.subr.bf16.mxu0 %v9030
        %11622 = vmatpush1.bf16.msra.mxu0 %v9029
        %11623 = vmatprep.subr.bf16.mxu0 %v9047
        %11624 = vmatpush1.bf16.msra.mxu0 %v9046
        %11625 = vmatprep.mubr.bf16.mxu0 %v3236
        %11626 = vmatmul.mubr.bf16.gmra.mrb[0].mxu0 %v3235
        %v11627 = vpop.f32.mrb[0].mxu0
        %v11628 = vadd.f32 %v11587, %v11627
        %v11629 = vpop.f32.mrb[0].mxu0
        %v11630 = vadd.f32 %v11589, %v11629
        %v11631 = vpop.f32.mrb[0].mxu0
        %v11632 = vpop.f32.mrb[0].mxu0
        %11633 = vdwg.mxu0
        %11634 = vmatprep.subr.bf16.mxu0 %v9064
        %11635 = vmatpush1.bf16.msra.mxu0 %v9063
        %11636 = vmatprep.subr.bf16.mxu0 %v9081
        %11637 = vmatpush1.bf16.msra.mxu0 %v9080
        %11638 = vmatprep.subr.bf16.mxu0 %v9098
        %11639 = vmatpush1.bf16.msra.mxu0 %v9097
        %11640 = vmatprep.subr.bf16.mxu0 %v9115
        %11641 = vmatpush1.bf16.msra.mxu0 %v9114
        %11642 = vmatprep.subr.bf16.mxu0 %v9132
        %11643 = vmatpush1.bf16.msra.mxu0 %v9131
        %11644 = vmatprep.subr.bf16.mxu0 %v9149
        %11645 = vmatpush1.bf16.msra.mxu0 %v9148
        %11646 = vmatprep.subr.bf16.mxu0 %v9166
        %11647 = vmatpush1.bf16.msra.mxu0 %v9165
        %11648 = vmatprep.subr.bf16.mxu0 %v9183
        %11649 = vmatpush1.bf16.msra.mxu0 %v9182
        %11650 = vmatprep.subr.bf16.mxu0 %v9200
        %11651 = vmatpush1.bf16.msra.mxu0 %v9199
        %11652 = vmatprep.subr.bf16.mxu0 %v9217
        %11653 = vmatpush1.bf16.msra.mxu0 %v9216
        %11654 = vmatprep.subr.bf16.mxu0 %v9234
        %11655 = vmatpush1.bf16.msra.mxu0 %v9233
        %11656 = vmatprep.subr.bf16.mxu0 %v9251
        %11657 = vmatpush1.bf16.msra.mxu0 %v9250
        %11658 = vmatprep.subr.bf16.mxu0 %v9268
        %11659 = vmatpush1.bf16.msra.mxu0 %v9267
        %11660 = vmatprep.subr.bf16.mxu0 %v9285
        %11661 = vmatpush1.bf16.msra.mxu0 %v9284
        %11662 = vmatprep.subr.bf16.mxu0 %v9302
        %11663 = vmatpush1.bf16.msra.mxu0 %v9301
        %11664 = vmatprep.subr.bf16.mxu0 %v9319
        %11665 = vmatpush1.bf16.msra.mxu0 %v9318
        %11666 = vmatprep.mubr.bf16.mxu0 %v3238
        %11667 = vmatmul.mubr.bf16.gmra.mrb[0].mxu0 %v3237
        %v11668 = vpop.f32.mrb[0].mxu0
        %v11669 = vadd.f32 %v11628, %v11668
        %v11670 = vpop.f32.mrb[0].mxu0
        %v11671 = vadd.f32 %v11630, %v11670
        %v11672 = vpop.f32.mrb[0].mxu0
        %v11673 = vpop.f32.mrb[0].mxu0
        %11674 = vdwg.mxu0
        %11675 = vmatprep.subr.bf16.mxu0 %v9336
        %11676 = vmatpush1.bf16.msra.mxu0 %v9335
        %11677 = vmatprep.subr.bf16.mxu0 %v9353
        %11678 = vmatpush1.bf16.msra.mxu0 %v9352
        %11679 = vmatprep.subr.bf16.mxu0 %v9370
        %11680 = vmatpush1.bf16.msra.mxu0 %v9369
        %11681 = vmatprep.subr.bf16.mxu0 %v9387
        %11682 = vmatpush1.bf16.msra.mxu0 %v9386
        %11683 = vmatprep.subr.bf16.mxu0 %v9404
        %11684 = vmatpush1.bf16.msra.mxu0 %v9403
        %11685 = vmatprep.subr.bf16.mxu0 %v9421
        %11686 = vmatpush1.bf16.msra.mxu0 %v9420
        %11687 = vmatprep.subr.bf16.mxu0 %v9438
        %11688 = vmatpush1.bf16.msra.mxu0 %v9437
        %11689 = vmatprep.subr.bf16.mxu0 %v9455
        %11690 = vmatpush1.bf16.msra.mxu0 %v9454
        %11691 = vmatprep.subr.bf16.mxu0 %v9472
        %11692 = vmatpush1.bf16.msra.mxu0 %v9471
        %11693 = vmatprep.subr.bf16.mxu0 %v9489
        %11694 = vmatpush1.bf16.msra.mxu0 %v9488
        %11695 = vmatprep.subr.bf16.mxu0 %v9506
        %11696 = vmatpush1.bf16.msra.mxu0 %v9505
        %11697 = vmatprep.subr.bf16.mxu0 %v9523
        %11698 = vmatpush1.bf16.msra.mxu0 %v9522
        %11699 = vmatprep.subr.bf16.mxu0 %v9540
        %11700 = vmatpush1.bf16.msra.mxu0 %v9539
        %11701 = vmatprep.subr.bf16.mxu0 %v9557
        %11702 = vmatpush1.bf16.msra.mxu0 %v9556
        %11703 = vmatprep.subr.bf16.mxu0 %v9574
        %11704 = vmatpush1.bf16.msra.mxu0 %v9573
        %11705 = vmatprep.subr.bf16.mxu0 %v9591
        %11706 = vmatpush1.bf16.msra.mxu0 %v9590
        %11707 = vmatprep.mubr.bf16.mxu0 %v3240
        %11708 = vmatmul.mubr.bf16.gmra.mrb[0].mxu0 %v3239
        %v11709 = vpop.f32.mrb[0].mxu0
        %v11710 = vadd.f32 %v11669, %v11709
        %v11711 = vpop.f32.mrb[0].mxu0
        %v11712 = vadd.f32 %v11671, %v11711
        %v11713 = vpop.f32.mrb[0].mxu0
        %v11714 = vpop.f32.mrb[0].mxu0
        %11715 = vdwg.mxu0
        %11716 = vmatprep.subr.bf16.mxu0 %v9608
        %11717 = vmatpush1.bf16.msra.mxu0 %v9607
        %11718 = vmatprep.subr.bf16.mxu0 %v9625
        %11719 = vmatpush1.bf16.msra.mxu0 %v9624
        %11720 = vmatprep.subr.bf16.mxu0 %v9642
        %11721 = vmatpush1.bf16.msra.mxu0 %v9641
        %11722 = vmatprep.subr.bf16.mxu0 %v9659
        %11723 = vmatpush1.bf16.msra.mxu0 %v9658
        %11724 = vmatprep.subr.bf16.mxu0 %v9676
        %11725 = vmatpush1.bf16.msra.mxu0 %v9675
        %11726 = vmatprep.subr.bf16.mxu0 %v9693
        %11727 = vmatpush1.bf16.msra.mxu0 %v9692
        %11728 = vmatprep.subr.bf16.mxu0 %v9710
        %11729 = vmatpush1.bf16.msra.mxu0 %v9709
        %11730 = vmatprep.subr.bf16.mxu0 %v9727
        %11731 = vmatpush1.bf16.msra.mxu0 %v9726
        %11732 = vmatprep.subr.bf16.mxu0 %v9744
        %11733 = vmatpush1.bf16.msra.mxu0 %v9743
        %11734 = vmatprep.subr.bf16.mxu0 %v9761
        %11735 = vmatpush1.bf16.msra.mxu0 %v9760
        %11736 = vmatprep.subr.bf16.mxu0 %v9778
        %11737 = vmatpush1.bf16.msra.mxu0 %v9777
        %11738 = vmatprep.subr.bf16.mxu0 %v9795
        %11739 = vmatpush1.bf16.msra.mxu0 %v9794
        %11740 = vmatprep.subr.bf16.mxu0 %v9812
        %11741 = vmatpush1.bf16.msra.mxu0 %v9811
        %11742 = vmatprep.subr.bf16.mxu0 %v9829
        %11743 = vmatpush1.bf16.msra.mxu0 %v9828
        %11744 = vmatprep.subr.bf16.mxu0 %v9846
        %11745 = vmatpush1.bf16.msra.mxu0 %v9845
        %11746 = vmatprep.subr.bf16.mxu0 %v9863
        %11747 = vmatpush1.bf16.msra.mxu0 %v9862
        %11748 = vmatprep.mubr.bf16.mxu0 %v3242
        %11749 = vmatmul.mubr.bf16.gmra.mrb[0].mxu0 %v3241
        %v11750 = vpop.f32.mrb[0].mxu0
        %v11751 = vadd.f32 %v11710, %v11750
        %v11752 = vpop.f32.mrb[0].mxu0
        %v11753 = vadd.f32 %v11712, %v11752
        %v11754 = vpop.f32.mrb[0].mxu0
        %v11755 = vpop.f32.mrb[0].mxu0
        %11756 = vdwg.mxu0
        %11757 = vmatprep.subr.bf16.mxu0 %v8250
        %11758 = vmatpush1.bf16.msra.mxu0 %v8249
        %11759 = vmatprep.subr.bf16.mxu0 %v8267
        %11760 = vmatpush1.bf16.msra.mxu0 %v8266
        %11761 = vmatprep.subr.bf16.mxu0 %v8284
        %11762 = vmatpush1.bf16.msra.mxu0 %v8283
        %11763 = vmatprep.subr.bf16.mxu0 %v8301
        %11764 = vmatpush1.bf16.msra.mxu0 %v8300
        %11765 = vmatprep.subr.bf16.mxu0 %v8318
        %11766 = vmatpush1.bf16.msra.mxu0 %v8317
        %11767 = vmatprep.subr.bf16.mxu0 %v8335
        %11768 = vmatpush1.bf16.msra.mxu0 %v8334
        %11769 = vmatprep.subr.bf16.mxu0 %v8352
        %11770 = vmatpush1.bf16.msra.mxu0 %v8351
        %11771 = vmatprep.subr.bf16.mxu0 %v8369
        %11772 = vmatpush1.bf16.msra.mxu0 %v8368
        %11773 = vmatprep.subr.bf16.mxu0 %v8386
        %11774 = vmatpush1.bf16.msra.mxu0 %v8385
        %11775 = vmatprep.subr.bf16.mxu0 %v8403
        %11776 = vmatpush1.bf16.msra.mxu0 %v8402
        %11777 = vmatprep.subr.bf16.mxu0 %v8420
        %11778 = vmatpush1.bf16.msra.mxu0 %v8419
        %11779 = vmatprep.subr.bf16.mxu0 %v8437
        %11780 = vmatpush1.bf16.msra.mxu0 %v8436
        %11781 = vmatprep.subr.bf16.mxu0 %v8454
        %11782 = vmatpush1.bf16.msra.mxu0 %v8453
        %11783 = vmatprep.subr.bf16.mxu0 %v8471
        %11784 = vmatpush1.bf16.msra.mxu0 %v8470
        %11785 = vmatprep.subr.bf16.mxu0 %v8488
        %11786 = vmatpush1.bf16.msra.mxu0 %v8487
        %11787 = vmatprep.subr.bf16.mxu0 %v8505
        %11788 = vmatpush1.bf16.msra.mxu0 %v8504
        %11789 = vmatprep.mubr.bf16.mxu0 %v3232
        %11790 = vmatmul.mubr.bf16.gmra.mrb[0].mxu0 %v3231
        %v11791 = vpop.f32.mrb[0].mxu0
        %v11792 = vadd.f32 0.0, %v11791
        %v11793 = vpop.f32.mrb[0].mxu0
        %v11794 = vadd.f32 0.0, %v11793
        %v11795 = vpop.f32.mrb[0].mxu0
        %v11796 = vpop.f32.mrb[0].mxu0
        %11797 = vdwg.mxu0
        %11798 = vmatprep.subr.bf16.mxu0 %v8522
        %11799 = vmatpush1.bf16.msra.mxu0 %v8521
        %11800 = vmatprep.subr.bf16.mxu0 %v8539
        %11801 = vmatpush1.bf16.msra.mxu0 %v8538
        %11802 = vmatprep.subr.bf16.mxu0 %v8556
        %11803 = vmatpush1.bf16.msra.mxu0 %v8555
        %11804 = vmatprep.subr.bf16.mxu0 %v8573
        %11805 = vmatpush1.bf16.msra.mxu0 %v8572
        %11806 = vmatprep.subr.bf16.mxu0 %v8590
        %11807 = vmatpush1.bf16.msra.mxu0 %v8589
        %11808 = vmatprep.subr.bf16.mxu0 %v8607
        %11809 = vmatpush1.bf16.msra.mxu0 %v8606
        %11810 = vmatprep.subr.bf16.mxu0 %v8624
        %11811 = vmatpush1.bf16.msra.mxu0 %v8623
        %11812 = vmatprep.subr.bf16.mxu0 %v8641
        %11813 = vmatpush1.bf16.msra.mxu0 %v8640
        %11814 = vmatprep.subr.bf16.mxu0 %v8658
        %11815 = vmatpush1.bf16.msra.mxu0 %v8657
        %11816 = vmatprep.subr.bf16.mxu0 %v8675
        %11817 = vmatpush1.bf16.msra.mxu0 %v8674
        %11818 = vmatprep.subr.bf16.mxu0 %v8692
        %11819 = vmatpush1.bf16.msra.mxu0 %v8691
        %11820 = vmatprep.subr.bf16.mxu0 %v8709
        %11821 = vmatpush1.bf16.msra.mxu0 %v8708
        %11822 = vmatprep.subr.bf16.mxu0 %v8726
        %11823 = vmatpush1.bf16.msra.mxu0 %v8725
        %11824 = vmatprep.subr.bf16.mxu0 %v8743
        %11825 = vmatpush1.bf16.msra.mxu0 %v8742
        %11826 = vmatprep.subr.bf16.mxu0 %v8760
        %11827 = vmatpush1.bf16.msra.mxu0 %v8759
        %11828 = vmatprep.subr.bf16.mxu0 %v8777
        %11829 = vmatpush1.bf16.msra.mxu0 %v8776
        %11830 = vmatprep.mubr.bf16.mxu0 %v3234
        %11831 = vmatmul.mubr.bf16.gmra.mrb[0].mxu0 %v3233
        %v11832 = vpop.f32.mrb[0].mxu0
        %v11833 = vadd.f32 %v11792, %v11832
        %v11834 = vpop.f32.mrb[0].mxu0
        %v11835 = vadd.f32 %v11794, %v11834
        %v11836 = vpop.f32.mrb[0].mxu0
        %v11837 = vpop.f32.mrb[0].mxu0
        %11838 = vdwg.mxu0
        %11839 = vmatprep.subr.bf16.mxu0 %v8794
        %11840 = vmatpush1.bf16.msra.mxu0 %v8793
        %11841 = vmatprep.subr.bf16.mxu0 %v8811
        %11842 = vmatpush1.bf16.msra.mxu0 %v8810
        %11843 = vmatprep.subr.bf16.mxu0 %v8828
        %11844 = vmatpush1.bf16.msra.mxu0 %v8827
        %11845 = vmatprep.subr.bf16.mxu0 %v8845
        %11846 = vmatpush1.bf16.msra.mxu0 %v8844
        %11847 = vmatprep.subr.bf16.mxu0 %v8862
        %11848 = vmatpush1.bf16.msra.mxu0 %v8861
        %11849 = vmatprep.subr.bf16.mxu0 %v8879
        %11850 = vmatpush1.bf16.msra.mxu0 %v8878
        %11851 = vmatprep.subr.bf16.mxu0 %v8896
        %11852 = vmatpush1.bf16.msra.mxu0 %v8895
        %11853 = vmatprep.subr.bf16.mxu0 %v8913
        %11854 = vmatpush1.bf16.msra.mxu0 %v8912
        %11855 = vmatprep.subr.bf16.mxu0 %v8930
        %11856 = vmatpush1.bf16.msra.mxu0 %v8929
        %11857 = vmatprep.subr.bf16.mxu0 %v8947
        %11858 = vmatpush1.bf16.msra.mxu0 %v8946
        %11859 = vmatprep.subr.bf16.mxu0 %v8964
        %11860 = vmatpush1.bf16.msra.mxu0 %v8963
        %11861 = vmatprep.subr.bf16.mxu0 %v8981
        %11862 = vmatpush1.bf16.msra.mxu0 %v8980
        %11863 = vmatprep.subr.bf16.mxu0 %v8998
        %11864 = vmatpush1.bf16.msra.mxu0 %v8997
        %11865 = vmatprep.subr.bf16.mxu0 %v9015
        %11866 = vmatpush1.bf16.msra.mxu0 %v9014
        %11867 = vmatprep.subr.bf16.mxu0 %v9032
        %11868 = vmatpush1.bf16.msra.mxu0 %v9031
        %11869 = vmatprep.subr.bf16.mxu0 %v9049
        %11870 = vmatpush1.bf16.msra.mxu0 %v9048
        %11871 = vmatprep.mubr.bf16.mxu0 %v3236
        %11872 = vmatmul.mubr.bf16.gmra.mrb[0].mxu0 %v3235
        %v11873 = vpop.f32.mrb[0].mxu0
        %v11874 = vadd.f32 %v11833, %v11873
        %v11875 = vpop.f32.mrb[0].mxu0
        %v11876 = vadd.f32 %v11835, %v11875
        %v11877 = vpop.f32.mrb[0].mxu0
        %v11878 = vpop.f32.mrb[0].mxu0
        %11879 = vdwg.mxu0
        %11880 = vmatprep.subr.bf16.mxu0 %v9066
        %11881 = vmatpush1.bf16.msra.mxu0 %v9065
        %11882 = vmatprep.subr.bf16.mxu0 %v9083
        %11883 = vmatpush1.bf16.msra.mxu0 %v9082
        %11884 = vmatprep.subr.bf16.mxu0 %v9100
        %11885 = vmatpush1.bf16.msra.mxu0 %v9099
        %11886 = vmatprep.subr.bf16.mxu0 %v9117
        %11887 = vmatpush1.bf16.msra.mxu0 %v9116
        %11888 = vmatprep.subr.bf16.mxu0 %v9134
        %11889 = vmatpush1.bf16.msra.mxu0 %v9133
        %11890 = vmatprep.subr.bf16.mxu0 %v9151
        %11891 = vmatpush1.bf16.msra.mxu0 %v9150
        %11892 = vmatprep.subr.bf16.mxu0 %v9168
        %11893 = vmatpush1.bf16.msra.mxu0 %v9167
        %11894 = vmatprep.subr.bf16.mxu0 %v9185
        %11895 = vmatpush1.bf16.msra.mxu0 %v9184
        %11896 = vmatprep.subr.bf16.mxu0 %v9202
        %11897 = vmatpush1.bf16.msra.mxu0 %v9201
        %11898 = vmatprep.subr.bf16.mxu0 %v9219
        %11899 = vmatpush1.bf16.msra.mxu0 %v9218
        %11900 = vmatprep.subr.bf16.mxu0 %v9236
        %11901 = vmatpush1.bf16.msra.mxu0 %v9235
        %11902 = vmatprep.subr.bf16.mxu0 %v9253
        %11903 = vmatpush1.bf16.msra.mxu0 %v9252
        %11904 = vmatprep.subr.bf16.mxu0 %v9270
        %11905 = vmatpush1.bf16.msra.mxu0 %v9269
        %11906 = vmatprep.subr.bf16.mxu0 %v9287
        %11907 = vmatpush1.bf16.msra.mxu0 %v9286
        %11908 = vmatprep.subr.bf16.mxu0 %v9304
        %11909 = vmatpush1.bf16.msra.mxu0 %v9303
        %11910 = vmatprep.subr.bf16.mxu0 %v9321
        %11911 = vmatpush1.bf16.msra.mxu0 %v9320
        %11912 = vmatprep.mubr.bf16.mxu0 %v3238
        %11913 = vmatmul.mubr.bf16.gmra.mrb[0].mxu0 %v3237
        %v11914 = vpop.f32.mrb[0].mxu0
        %v11915 = vadd.f32 %v11874, %v11914
        %v11916 = vpop.f32.mrb[0].mxu0
        %v11917 = vadd.f32 %v11876, %v11916
        %v11918 = vpop.f32.mrb[0].mxu0
        %v11919 = vpop.f32.mrb[0].mxu0
        %11920 = vdwg.mxu0
        %11921 = vmatprep.subr.bf16.mxu0 %v9338
        %11922 = vmatpush1.bf16.msra.mxu0 %v9337
        %11923 = vmatprep.subr.bf16.mxu0 %v9355
        %11924 = vmatpush1.bf16.msra.mxu0 %v9354
        %11925 = vmatprep.subr.bf16.mxu0 %v9372
        %11926 = vmatpush1.bf16.msra.mxu0 %v9371
        %11927 = vmatprep.subr.bf16.mxu0 %v9389
        %11928 = vmatpush1.bf16.msra.mxu0 %v9388
        %11929 = vmatprep.subr.bf16.mxu0 %v9406
        %11930 = vmatpush1.bf16.msra.mxu0 %v9405
        %11931 = vmatprep.subr.bf16.mxu0 %v9423
        %11932 = vmatpush1.bf16.msra.mxu0 %v9422
        %11933 = vmatprep.subr.bf16.mxu0 %v9440
        %11934 = vmatpush1.bf16.msra.mxu0 %v9439
        %11935 = vmatprep.subr.bf16.mxu0 %v9457
        %11936 = vmatpush1.bf16.msra.mxu0 %v9456
        %11937 = vmatprep.subr.bf16.mxu0 %v9474
        %11938 = vmatpush1.bf16.msra.mxu0 %v9473
        %11939 = vmatprep.subr.bf16.mxu0 %v9491
        %11940 = vmatpush1.bf16.msra.mxu0 %v9490
        %11941 = vmatprep.subr.bf16.mxu0 %v9508
        %11942 = vmatpush1.bf16.msra.mxu0 %v9507
        %11943 = vmatprep.subr.bf16.mxu0 %v9525
        %11944 = vmatpush1.bf16.msra.mxu0 %v9524
        %11945 = vmatprep.subr.bf16.mxu0 %v9542
        %11946 = vmatpush1.bf16.msra.mxu0 %v9541
        %11947 = vmatprep.subr.bf16.mxu0 %v9559
        %11948 = vmatpush1.bf16.msra.mxu0 %v9558
        %11949 = vmatprep.subr.bf16.mxu0 %v9576
        %11950 = vmatpush1.bf16.msra.mxu0 %v9575
        %11951 = vmatprep.subr.bf16.mxu0 %v9593
        %11952 = vmatpush1.bf16.msra.mxu0 %v9592
        %11953 = vmatprep.mubr.bf16.mxu0 %v3240
        %11954 = vmatmul.mubr.bf16.gmra.mrb[0].mxu0 %v3239
        %v11955 = vpop.f32.mrb[0].mxu0
        %v11956 = vadd.f32 %v11915, %v11955
        %v11957 = vpop.f32.mrb[0].mxu0
        %v11958 = vadd.f32 %v11917, %v11957
        %v11959 = vpop.f32.mrb[0].mxu0
        %v11960 = vpop.f32.mrb[0].mxu0
        %11961 = vdwg.mxu0
        %11962 = vmatprep.subr.bf16.mxu0 %v9610
        %11963 = vmatpush1.bf16.msra.mxu0 %v9609
        %11964 = vmatprep.subr.bf16.mxu0 %v9627
        %11965 = vmatpush1.bf16.msra.mxu0 %v9626
        %11966 = vmatprep.subr.bf16.mxu0 %v9644
        %11967 = vmatpush1.bf16.msra.mxu0 %v9643
        %11968 = vmatprep.subr.bf16.mxu0 %v9661
        %11969 = vmatpush1.bf16.msra.mxu0 %v9660
        %11970 = vmatprep.subr.bf16.mxu0 %v9678
        %11971 = vmatpush1.bf16.msra.mxu0 %v9677
        %11972 = vmatprep.subr.bf16.mxu0 %v9695
        %11973 = vmatpush1.bf16.msra.mxu0 %v9694
        %11974 = vmatprep.subr.bf16.mxu0 %v9712
        %11975 = vmatpush1.bf16.msra.mxu0 %v9711
        %11976 = vmatprep.subr.bf16.mxu0 %v9729
        %11977 = vmatpush1.bf16.msra.mxu0 %v9728
        %11978 = vmatprep.subr.bf16.mxu0 %v9746
        %11979 = vmatpush1.bf16.msra.mxu0 %v9745
        %11980 = vmatprep.subr.bf16.mxu0 %v9763
        %11981 = vmatpush1.bf16.msra.mxu0 %v9762
        %11982 = vmatprep.subr.bf16.mxu0 %v9780
        %11983 = vmatpush1.bf16.msra.mxu0 %v9779
        %11984 = vmatprep.subr.bf16.mxu0 %v9797
        %11985 = vmatpush1.bf16.msra.mxu0 %v9796
        %11986 = vmatprep.subr.bf16.mxu0 %v9814
        %11987 = vmatpush1.bf16.msra.mxu0 %v9813
        %11988 = vmatprep.subr.bf16.mxu0 %v9831
        %11989 = vmatpush1.bf16.msra.mxu0 %v9830
        %11990 = vmatprep.subr.bf16.mxu0 %v9848
        %11991 = vmatpush1.bf16.msra.mxu0 %v9847
        %11992 = vmatprep.subr.bf16.mxu0 %v9865
        %11993 = vmatpush1.bf16.msra.mxu0 %v9864
        %11994 = vmatprep.mubr.bf16.mxu0 %v3242
        %11995 = vmatmul.mubr.bf16.gmra.mrb[0].mxu0 %v3241
        %v11996 = vpop.f32.mrb[0].mxu0
        %v11997 = vadd.f32 %v11956, %v11996
        %v11998 = vpop.f32.mrb[0].mxu0
        %v11999 = vadd.f32 %v11958, %v11998
        %v12000 = vpop.f32.mrb[0].mxu0
        %v12001 = vpop.f32.mrb[0].mxu0
        %12002 = vdwg.mxu0
        %12003 = vmatprep.subr.bf16.mxu0 %v8252
        %12004 = vmatpush1.bf16.msra.mxu0 %v8251
        %12005 = vmatprep.subr.bf16.mxu0 %v8269
        %12006 = vmatpush1.bf16.msra.mxu0 %v8268
        %12007 = vmatprep.subr.bf16.mxu0 %v8286
        %12008 = vmatpush1.bf16.msra.mxu0 %v8285
        %12009 = vmatprep.subr.bf16.mxu0 %v8303
        %12010 = vmatpush1.bf16.msra.mxu0 %v8302
        %12011 = vmatprep.subr.bf16.mxu0 %v8320
        %12012 = vmatpush1.bf16.msra.mxu0 %v8319
        %12013 = vmatprep.subr.bf16.mxu0 %v8337
        %12014 = vmatpush1.bf16.msra.mxu0 %v8336
        %12015 = vmatprep.subr.bf16.mxu0 %v8354
        %12016 = vmatpush1.bf16.msra.mxu0 %v8353
        %12017 = vmatprep.subr.bf16.mxu0 %v8371
        %12018 = vmatpush1.bf16.msra.mxu0 %v8370
        %12019 = vmatprep.subr.bf16.mxu0 %v8388
        %12020 = vmatpush1.bf16.msra.mxu0 %v8387
        %12021 = vmatprep.subr.bf16.mxu0 %v8405
        %12022 = vmatpush1.bf16.msra.mxu0 %v8404
        %12023 = vmatprep.subr.bf16.mxu0 %v8422
        %12024 = vmatpush1.bf16.msra.mxu0 %v8421
        %12025 = vmatprep.subr.bf16.mxu0 %v8439
        %12026 = vmatpush1.bf16.msra.mxu0 %v8438
        %12027 = vmatprep.subr.bf16.mxu0 %v8456
        %12028 = vmatpush1.bf16.msra.mxu0 %v8455
        %12029 = vmatprep.subr.bf16.mxu0 %v8473
        %12030 = vmatpush1.bf16.msra.mxu0 %v8472
        %12031 = vmatprep.subr.bf16.mxu0 %v8490
        %12032 = vmatpush1.bf16.msra.mxu0 %v8489
        %12033 = vmatprep.subr.bf16.mxu0 %v8507
        %12034 = vmatpush1.bf16.msra.mxu0 %v8506
        %12035 = vmatprep.mubr.bf16.mxu0 %v3232
        %12036 = vmatmul.mubr.bf16.gmra.mrb[0].mxu0 %v3231
        %v12037 = vpop.f32.mrb[0].mxu0
        %v12038 = vadd.f32 0.0, %v12037
        %v12039 = vpop.f32.mrb[0].mxu0
        %v12040 = vadd.f32 0.0, %v12039
        %v12041 = vpop.f32.mrb[0].mxu0
        %v12042 = vpop.f32.mrb[0].mxu0
        %12043 = vdwg.mxu0
        %12044 = vmatprep.subr.bf16.mxu0 %v8524
        %12045 = vmatpush1.bf16.msra.mxu0 %v8523
        %12046 = vmatprep.subr.bf16.mxu0 %v8541
        %12047 = vmatpush1.bf16.msra.mxu0 %v8540
        %12048 = vmatprep.subr.bf16.mxu0 %v8558
        %12049 = vmatpush1.bf16.msra.mxu0 %v8557
        %12050 = vmatprep.subr.bf16.mxu0 %v8575
        %12051 = vmatpush1.bf16.msra.mxu0 %v8574
        %12052 = vmatprep.subr.bf16.mxu0 %v8592
        %12053 = vmatpush1.bf16.msra.mxu0 %v8591
        %12054 = vmatprep.subr.bf16.mxu0 %v8609
        %12055 = vmatpush1.bf16.msra.mxu0 %v8608
        %12056 = vmatprep.subr.bf16.mxu0 %v8626
        %12057 = vmatpush1.bf16.msra.mxu0 %v8625
        %12058 = vmatprep.subr.bf16.mxu0 %v8643
        %12059 = vmatpush1.bf16.msra.mxu0 %v8642
        %12060 = vmatprep.subr.bf16.mxu0 %v8660
        %12061 = vmatpush1.bf16.msra.mxu0 %v8659
        %12062 = vmatprep.subr.bf16.mxu0 %v8677
        %12063 = vmatpush1.bf16.msra.mxu0 %v8676
        %12064 = vmatprep.subr.bf16.mxu0 %v8694
        %12065 = vmatpush1.bf16.msra.mxu0 %v8693
        %12066 = vmatprep.subr.bf16.mxu0 %v8711
        %12067 = vmatpush1.bf16.msra.mxu0 %v8710
        %12068 = vmatprep.subr.bf16.mxu0 %v8728
        %12069 = vmatpush1.bf16.msra.mxu0 %v8727
        %12070 = vmatprep.subr.bf16.mxu0 %v8745
        %12071 = vmatpush1.bf16.msra.mxu0 %v8744
        %12072 = vmatprep.subr.bf16.mxu0 %v8762
        %12073 = vmatpush1.bf16.msra.mxu0 %v8761
        %12074 = vmatprep.subr.bf16.mxu0 %v8779
        %12075 = vmatpush1.bf16.msra.mxu0 %v8778
        %12076 = vmatprep.mubr.bf16.mxu0 %v3234
        %12077 = vmatmul.mubr.bf16.gmra.mrb[0].mxu0 %v3233
        %v12078 = vpop.f32.mrb[0].mxu0
        %v12079 = vadd.f32 %v12038, %v12078
        %v12080 = vpop.f32.mrb[0].mxu0
        %v12081 = vadd.f32 %v12040, %v12080
        %v12082 = vpop.f32.mrb[0].mxu0
        %v12083 = vpop.f32.mrb[0].mxu0
        %12084 = vdwg.mxu0
        %12085 = vmatprep.subr.bf16.mxu0 %v8796
        %12086 = vmatpush1.bf16.msra.mxu0 %v8795
        %12087 = vmatprep.subr.bf16.mxu0 %v8813
        %12088 = vmatpush1.bf16.msra.mxu0 %v8812
        %12089 = vmatprep.subr.bf16.mxu0 %v8830
        %12090 = vmatpush1.bf16.msra.mxu0 %v8829
        %12091 = vmatprep.subr.bf16.mxu0 %v8847
        %12092 = vmatpush1.bf16.msra.mxu0 %v8846
        %12093 = vmatprep.subr.bf16.mxu0 %v8864
        %12094 = vmatpush1.bf16.msra.mxu0 %v8863
        %12095 = vmatprep.subr.bf16.mxu0 %v8881
        %12096 = vmatpush1.bf16.msra.mxu0 %v8880
        %12097 = vmatprep.subr.bf16.mxu0 %v8898
        %12098 = vmatpush1.bf16.msra.mxu0 %v8897
        %12099 = vmatprep.subr.bf16.mxu0 %v8915
        %12100 = vmatpush1.bf16.msra.mxu0 %v8914
        %12101 = vmatprep.subr.bf16.mxu0 %v8932
        %12102 = vmatpush1.bf16.msra.mxu0 %v8931
        %12103 = vmatprep.subr.bf16.mxu0 %v8949
        %12104 = vmatpush1.bf16.msra.mxu0 %v8948
        %12105 = vmatprep.subr.bf16.mxu0 %v8966
        %12106 = vmatpush1.bf16.msra.mxu0 %v8965
        %12107 = vmatprep.subr.bf16.mxu0 %v8983
        %12108 = vmatpush1.bf16.msra.mxu0 %v8982
        %12109 = vmatprep.subr.bf16.mxu0 %v9000
        %12110 = vmatpush1.bf16.msra.mxu0 %v8999
        %12111 = vmatprep.subr.bf16.mxu0 %v9017
        %12112 = vmatpush1.bf16.msra.mxu0 %v9016
        %12113 = vmatprep.subr.bf16.mxu0 %v9034
        %12114 = vmatpush1.bf16.msra.mxu0 %v9033
        %12115 = vmatprep.subr.bf16.mxu0 %v9051
        %12116 = vmatpush1.bf16.msra.mxu0 %v9050
        %12117 = vmatprep.mubr.bf16.mxu0 %v3236
        %12118 = vmatmul.mubr.bf16.gmra.mrb[0].mxu0 %v3235
        %v12119 = vpop.f32.mrb[0].mxu0
        %v12120 = vadd.f32 %v12079, %v12119
        %v12121 = vpop.f32.mrb[0].mxu0
        %v12122 = vadd.f32 %v12081, %v12121
        %v12123 = vpop.f32.mrb[0].mxu0
        %v12124 = vpop.f32.mrb[0].mxu0
        %12125 = vdwg.mxu0
        %12126 = vmatprep.subr.bf16.mxu0 %v9068
        %12127 = vmatpush1.bf16.msra.mxu0 %v9067
        %12128 = vmatprep.subr.bf16.mxu0 %v9085
        %12129 = vmatpush1.bf16.msra.mxu0 %v9084
        %12130 = vmatprep.subr.bf16.mxu0 %v9102
        %12131 = vmatpush1.bf16.msra.mxu0 %v9101
        %12132 = vmatprep.subr.bf16.mxu0 %v9119
        %12133 = vmatpush1.bf16.msra.mxu0 %v9118
        %12134 = vmatprep.subr.bf16.mxu0 %v9136
        %12135 = vmatpush1.bf16.msra.mxu0 %v9135
        %12136 = vmatprep.subr.bf16.mxu0 %v9153
        %12137 = vmatpush1.bf16.msra.mxu0 %v9152
        %12138 = vmatprep.subr.bf16.mxu0 %v9170
        %12139 = vmatpush1.bf16.msra.mxu0 %v9169
        %12140 = vmatprep.subr.bf16.mxu0 %v9187
        %12141 = vmatpush1.bf16.msra.mxu0 %v9186
        %12142 = vmatprep.subr.bf16.mxu0 %v9204
        %12143 = vmatpush1.bf16.msra.mxu0 %v9203
        %12144 = vmatprep.subr.bf16.mxu0 %v9221
        %12145 = vmatpush1.bf16.msra.mxu0 %v9220
        %12146 = vmatprep.subr.bf16.mxu0 %v9238
        %12147 = vmatpush1.bf16.msra.mxu0 %v9237
        %12148 = vmatprep.subr.bf16.mxu0 %v9255
        %12149 = vmatpush1.bf16.msra.mxu0 %v9254
        %12150 = vmatprep.subr.bf16.mxu0 %v9272
        %12151 = vmatpush1.bf16.msra.mxu0 %v9271
        %12152 = vmatprep.subr.bf16.mxu0 %v9289
        %12153 = vmatpush1.bf16.msra.mxu0 %v9288
        %12154 = vmatprep.subr.bf16.mxu0 %v9306
        %12155 = vmatpush1.bf16.msra.mxu0 %v9305
        %12156 = vmatprep.subr.bf16.mxu0 %v9323
        %12157 = vmatpush1.bf16.msra.mxu0 %v9322
        %12158 = vmatprep.mubr.bf16.mxu0 %v3238
        %12159 = vmatmul.mubr.bf16.gmra.mrb[0].mxu0 %v3237
        %v12160 = vpop.f32.mrb[0].mxu0
        %v12161 = vadd.f32 %v12120, %v12160
        %v12162 = vpop.f32.mrb[0].mxu0
        %v12163 = vadd.f32 %v12122, %v12162
        %v12164 = vpop.f32.mrb[0].mxu0
        %v12165 = vpop.f32.mrb[0].mxu0
        %12166 = vdwg.mxu0
        %12167 = vmatprep.subr.bf16.mxu0 %v9340
        %12168 = vmatpush1.bf16.msra.mxu0 %v9339
        %12169 = vmatprep.subr.bf16.mxu0 %v9357
        %12170 = vmatpush1.bf16.msra.mxu0 %v9356
        %12171 = vmatprep.subr.bf16.mxu0 %v9374
        %12172 = vmatpush1.bf16.msra.mxu0 %v9373
        %12173 = vmatprep.subr.bf16.mxu0 %v9391
        %12174 = vmatpush1.bf16.msra.mxu0 %v9390
        %12175 = vmatprep.subr.bf16.mxu0 %v9408
        %12176 = vmatpush1.bf16.msra.mxu0 %v9407
        %12177 = vmatprep.subr.bf16.mxu0 %v9425
        %12178 = vmatpush1.bf16.msra.mxu0 %v9424
        %12179 = vmatprep.subr.bf16.mxu0 %v9442
        %12180 = vmatpush1.bf16.msra.mxu0 %v9441
        %12181 = vmatprep.subr.bf16.mxu0 %v9459
        %12182 = vmatpush1.bf16.msra.mxu0 %v9458
        %12183 = vmatprep.subr.bf16.mxu0 %v9476
        %12184 = vmatpush1.bf16.msra.mxu0 %v9475
        %12185 = vmatprep.subr.bf16.mxu0 %v9493
        %12186 = vmatpush1.bf16.msra.mxu0 %v9492
        %12187 = vmatprep.subr.bf16.mxu0 %v9510
        %12188 = vmatpush1.bf16.msra.mxu0 %v9509
        %12189 = vmatprep.subr.bf16.mxu0 %v9527
        %12190 = vmatpush1.bf16.msra.mxu0 %v9526
        %12191 = vmatprep.subr.bf16.mxu0 %v9544
        %12192 = vmatpush1.bf16.msra.mxu0 %v9543
        %12193 = vmatprep.subr.bf16.mxu0 %v9561
        %12194 = vmatpush1.bf16.msra.mxu0 %v9560
        %12195 = vmatprep.subr.bf16.mxu0 %v9578
        %12196 = vmatpush1.bf16.msra.mxu0 %v9577
        %12197 = vmatprep.subr.bf16.mxu0 %v9595
        %12198 = vmatpush1.bf16.msra.mxu0 %v9594
        %12199 = vmatprep.mubr.bf16.mxu0 %v3240
        %12200 = vmatmul.mubr.bf16.gmra.mrb[0].mxu0 %v3239
        %v12201 = vpop.f32.mrb[0].mxu0
        %v12202 = vadd.f32 %v12161, %v12201
        %v12203 = vpop.f32.mrb[0].mxu0
        %v12204 = vadd.f32 %v12163, %v12203
        %v12205 = vpop.f32.mrb[0].mxu0
        %v12206 = vpop.f32.mrb[0].mxu0
        %12207 = vdwg.mxu0
        %12208 = vmatprep.subr.bf16.mxu0 %v9612
        %12209 = vmatpush1.bf16.msra.mxu0 %v9611
        %12210 = vmatprep.subr.bf16.mxu0 %v9629
        %12211 = vmatpush1.bf16.msra.mxu0 %v9628
        %12212 = vmatprep.subr.bf16.mxu0 %v9646
        %12213 = vmatpush1.bf16.msra.mxu0 %v9645
        %12214 = vmatprep.subr.bf16.mxu0 %v9663
        %12215 = vmatpush1.bf16.msra.mxu0 %v9662
        %12216 = vmatprep.subr.bf16.mxu0 %v9680
        %12217 = vmatpush1.bf16.msra.mxu0 %v9679
        %12218 = vmatprep.subr.bf16.mxu0 %v9697
        %12219 = vmatpush1.bf16.msra.mxu0 %v9696
        %12220 = vmatprep.subr.bf16.mxu0 %v9714
        %12221 = vmatpush1.bf16.msra.mxu0 %v9713
        %12222 = vmatprep.subr.bf16.mxu0 %v9731
        %12223 = vmatpush1.bf16.msra.mxu0 %v9730
        %12224 = vmatprep.subr.bf16.mxu0 %v9748
        %12225 = vmatpush1.bf16.msra.mxu0 %v9747
        %12226 = vmatprep.subr.bf16.mxu0 %v9765
        %12227 = vmatpush1.bf16.msra.mxu0 %v9764
        %12228 = vmatprep.subr.bf16.mxu0 %v9782
        %12229 = vmatpush1.bf16.msra.mxu0 %v9781
        %12230 = vmatprep.subr.bf16.mxu0 %v9799
        %12231 = vmatpush1.bf16.msra.mxu0 %v9798
        %12232 = vmatprep.subr.bf16.mxu0 %v9816
        %12233 = vmatpush1.bf16.msra.mxu0 %v9815
        %12234 = vmatprep.subr.bf16.mxu0 %v9833
        %12235 = vmatpush1.bf16.msra.mxu0 %v9832
        %12236 = vmatprep.subr.bf16.mxu0 %v9850
        %12237 = vmatpush1.bf16.msra.mxu0 %v9849
        %12238 = vmatprep.subr.bf16.mxu0 %v9867
        %12239 = vmatpush1.bf16.msra.mxu0 %v9866
        %12240 = vmatprep.mubr.bf16.mxu0 %v3242
        %12241 = vmatmul.mubr.bf16.gmra.mrb[0].mxu0 %v3241
        %v12242 = vpop.f32.mrb[0].mxu0
        %v12243 = vadd.f32 %v12202, %v12242
        %v12244 = vpop.f32.mrb[0].mxu0
        %v12245 = vadd.f32 %v12204, %v12244
        %v12246 = vpop.f32.mrb[0].mxu0
        %v12247 = vpop.f32.mrb[0].mxu0
        %12248 = vdwg.mxu0
        %12249 = vmatprep.subr.bf16.mxu0 %v8254
        %12250 = vmatpush1.bf16.msra.mxu0 %v8253
        %12251 = vmatprep.subr.bf16.mxu0 %v8271
        %12252 = vmatpush1.bf16.msra.mxu0 %v8270
        %12253 = vmatprep.subr.bf16.mxu0 %v8288
        %12254 = vmatpush1.bf16.msra.mxu0 %v8287
        %12255 = vmatprep.subr.bf16.mxu0 %v8305
        %12256 = vmatpush1.bf16.msra.mxu0 %v8304
        %12257 = vmatprep.subr.bf16.mxu0 %v8322
        %12258 = vmatpush1.bf16.msra.mxu0 %v8321
        %12259 = vmatprep.subr.bf16.mxu0 %v8339
        %12260 = vmatpush1.bf16.msra.mxu0 %v8338
        %12261 = vmatprep.subr.bf16.mxu0 %v8356
        %12262 = vmatpush1.bf16.msra.mxu0 %v8355
        %12263 = vmatprep.subr.bf16.mxu0 %v8373
        %12264 = vmatpush1.bf16.msra.mxu0 %v8372
        %12265 = vmatprep.subr.bf16.mxu0 %v8390
        %12266 = vmatpush1.bf16.msra.mxu0 %v8389
        %12267 = vmatprep.subr.bf16.mxu0 %v8407
        %12268 = vmatpush1.bf16.msra.mxu0 %v8406
        %12269 = vmatprep.subr.bf16.mxu0 %v8424
        %12270 = vmatpush1.bf16.msra.mxu0 %v8423
        %12271 = vmatprep.subr.bf16.mxu0 %v8441
        %12272 = vmatpush1.bf16.msra.mxu0 %v8440
        %12273 = vmatprep.subr.bf16.mxu0 %v8458
        %12274 = vmatpush1.bf16.msra.mxu0 %v8457
        %12275 = vmatprep.subr.bf16.mxu0 %v8475
        %12276 = vmatpush1.bf16.msra.mxu0 %v8474
        %12277 = vmatprep.subr.bf16.mxu0 %v8492
        %12278 = vmatpush1.bf16.msra.mxu0 %v8491
        %12279 = vmatprep.subr.bf16.mxu0 %v8509
        %12280 = vmatpush1.bf16.msra.mxu0 %v8508
        %12281 = vmatprep.mubr.bf16.mxu0 %v3232
        %12282 = vmatmul.mubr.bf16.gmra.mrb[0].mxu0 %v3231
        %v12283 = vpop.f32.mrb[0].mxu0
        %v12284 = vadd.f32 0.0, %v12283
        %v12285 = vpop.f32.mrb[0].mxu0
        %v12286 = vadd.f32 0.0, %v12285
        %v12287 = vpop.f32.mrb[0].mxu0
        %v12288 = vpop.f32.mrb[0].mxu0
        %12289 = vdwg.mxu0
        %12290 = vmatprep.subr.bf16.mxu0 %v8526
        %12291 = vmatpush1.bf16.msra.mxu0 %v8525
        %12292 = vmatprep.subr.bf16.mxu0 %v8543
        %12293 = vmatpush1.bf16.msra.mxu0 %v8542
        %12294 = vmatprep.subr.bf16.mxu0 %v8560
        %12295 = vmatpush1.bf16.msra.mxu0 %v8559
        %12296 = vmatprep.subr.bf16.mxu0 %v8577
        %12297 = vmatpush1.bf16.msra.mxu0 %v8576
        %12298 = vmatprep.subr.bf16.mxu0 %v8594
        %12299 = vmatpush1.bf16.msra.mxu0 %v8593
        %12300 = vmatprep.subr.bf16.mxu0 %v8611
        %12301 = vmatpush1.bf16.msra.mxu0 %v8610
        %12302 = vmatprep.subr.bf16.mxu0 %v8628
        %12303 = vmatpush1.bf16.msra.mxu0 %v8627
        %12304 = vmatprep.subr.bf16.mxu0 %v8645
        %12305 = vmatpush1.bf16.msra.mxu0 %v8644
        %12306 = vmatprep.subr.bf16.mxu0 %v8662
        %12307 = vmatpush1.bf16.msra.mxu0 %v8661
        %12308 = vmatprep.subr.bf16.mxu0 %v8679
        %12309 = vmatpush1.bf16.msra.mxu0 %v8678
        %12310 = vmatprep.subr.bf16.mxu0 %v8696
        %12311 = vmatpush1.bf16.msra.mxu0 %v8695
        %12312 = vmatprep.subr.bf16.mxu0 %v8713
        %12313 = vmatpush1.bf16.msra.mxu0 %v8712
        %12314 = vmatprep.subr.bf16.mxu0 %v8730
        %12315 = vmatpush1.bf16.msra.mxu0 %v8729
        %12316 = vmatprep.subr.bf16.mxu0 %v8747
        %12317 = vmatpush1.bf16.msra.mxu0 %v8746
        %12318 = vmatprep.subr.bf16.mxu0 %v8764
        %12319 = vmatpush1.bf16.msra.mxu0 %v8763
        %12320 = vmatprep.subr.bf16.mxu0 %v8781
        %12321 = vmatpush1.bf16.msra.mxu0 %v8780
        %12322 = vmatprep.mubr.bf16.mxu0 %v3234
        %12323 = vmatmul.mubr.bf16.gmra.mrb[0].mxu0 %v3233
        %v12324 = vpop.f32.mrb[0].mxu0
        %v12325 = vadd.f32 %v12284, %v12324
        %v12326 = vpop.f32.mrb[0].mxu0
        %v12327 = vadd.f32 %v12286, %v12326
        %v12328 = vpop.f32.mrb[0].mxu0
        %v12329 = vpop.f32.mrb[0].mxu0
        %12330 = vdwg.mxu0
        %12331 = vmatprep.subr.bf16.mxu0 %v8798
        %12332 = vmatpush1.bf16.msra.mxu0 %v8797
        %12333 = vmatprep.subr.bf16.mxu0 %v8815
        %12334 = vmatpush1.bf16.msra.mxu0 %v8814
        %12335 = vmatprep.subr.bf16.mxu0 %v8832
        %12336 = vmatpush1.bf16.msra.mxu0 %v8831
        %12337 = vmatprep.subr.bf16.mxu0 %v8849
        %12338 = vmatpush1.bf16.msra.mxu0 %v8848
        %12339 = vmatprep.subr.bf16.mxu0 %v8866
        %12340 = vmatpush1.bf16.msra.mxu0 %v8865
        %12341 = vmatprep.subr.bf16.mxu0 %v8883
        %12342 = vmatpush1.bf16.msra.mxu0 %v8882
        %12343 = vmatprep.subr.bf16.mxu0 %v8900
        %12344 = vmatpush1.bf16.msra.mxu0 %v8899
        %12345 = vmatprep.subr.bf16.mxu0 %v8917
        %12346 = vmatpush1.bf16.msra.mxu0 %v8916
        %12347 = vmatprep.subr.bf16.mxu0 %v8934
        %12348 = vmatpush1.bf16.msra.mxu0 %v8933
        %12349 = vmatprep.subr.bf16.mxu0 %v8951
        %12350 = vmatpush1.bf16.msra.mxu0 %v8950
        %12351 = vmatprep.subr.bf16.mxu0 %v8968
        %12352 = vmatpush1.bf16.msra.mxu0 %v8967
        %12353 = vmatprep.subr.bf16.mxu0 %v8985
        %12354 = vmatpush1.bf16.msra.mxu0 %v8984
        %12355 = vmatprep.subr.bf16.mxu0 %v9002
        %12356 = vmatpush1.bf16.msra.mxu0 %v9001
        %12357 = vmatprep.subr.bf16.mxu0 %v9019
        %12358 = vmatpush1.bf16.msra.mxu0 %v9018
        %12359 = vmatprep.subr.bf16.mxu0 %v9036
        %12360 = vmatpush1.bf16.msra.mxu0 %v9035
        %12361 = vmatprep.subr.bf16.mxu0 %v9053
        %12362 = vmatpush1.bf16.msra.mxu0 %v9052
        %12363 = vmatprep.mubr.bf16.mxu0 %v3236
        %12364 = vmatmul.mubr.bf16.gmra.mrb[0].mxu0 %v3235
        %v12365 = vpop.f32.mrb[0].mxu0
        %v12366 = vadd.f32 %v12325, %v12365
        %v12367 = vpop.f32.mrb[0].mxu0
        %v12368 = vadd.f32 %v12327, %v12367
        %v12369 = vpop.f32.mrb[0].mxu0
        %v12370 = vpop.f32.mrb[0].mxu0
        %12371 = vdwg.mxu0
        %12372 = vmatprep.subr.bf16.mxu0 %v9070
        %12373 = vmatpush1.bf16.msra.mxu0 %v9069
        %12374 = vmatprep.subr.bf16.mxu0 %v9087
        %12375 = vmatpush1.bf16.msra.mxu0 %v9086
        %12376 = vmatprep.subr.bf16.mxu0 %v9104
        %12377 = vmatpush1.bf16.msra.mxu0 %v9103
        %12378 = vmatprep.subr.bf16.mxu0 %v9121
        %12379 = vmatpush1.bf16.msra.mxu0 %v9120
        %12380 = vmatprep.subr.bf16.mxu0 %v9138
        %12381 = vmatpush1.bf16.msra.mxu0 %v9137
        %12382 = vmatprep.subr.bf16.mxu0 %v9155
        %12383 = vmatpush1.bf16.msra.mxu0 %v9154
        %12384 = vmatprep.subr.bf16.mxu0 %v9172
        %12385 = vmatpush1.bf16.msra.mxu0 %v9171
        %12386 = vmatprep.subr.bf16.mxu0 %v9189
        %12387 = vmatpush1.bf16.msra.mxu0 %v9188
        %12388 = vmatprep.subr.bf16.mxu0 %v9206
        %12389 = vmatpush1.bf16.msra.mxu0 %v9205
        %12390 = vmatprep.subr.bf16.mxu0 %v9223
        %12391 = vmatpush1.bf16.msra.mxu0 %v9222
        %12392 = vmatprep.subr.bf16.mxu0 %v9240
        %12393 = vmatpush1.bf16.msra.mxu0 %v9239
        %12394 = vmatprep.subr.bf16.mxu0 %v9257
        %12395 = vmatpush1.bf16.msra.mxu0 %v9256
        %12396 = vmatprep.subr.bf16.mxu0 %v9274
        %12397 = vmatpush1.bf16.msra.mxu0 %v9273
        %12398 = vmatprep.subr.bf16.mxu0 %v9291
        %12399 = vmatpush1.bf16.msra.mxu0 %v9290
        %12400 = vmatprep.subr.bf16.mxu0 %v9308
        %12401 = vmatpush1.bf16.msra.mxu0 %v9307
        %12402 = vmatprep.subr.bf16.mxu0 %v9325
        %12403 = vmatpush1.bf16.msra.mxu0 %v9324
        %12404 = vmatprep.mubr.bf16.mxu0 %v3238
        %12405 = vmatmul.mubr.bf16.gmra.mrb[0].mxu0 %v3237
        %v12406 = vpop.f32.mrb[0].mxu0
        %v12407 = vadd.f32 %v12366, %v12406
        %v12408 = vpop.f32.mrb[0].mxu0
        %v12409 = vadd.f32 %v12368, %v12408
        %v12410 = vpop.f32.mrb[0].mxu0
        %v12411 = vpop.f32.mrb[0].mxu0
        %12412 = vdwg.mxu0
        %12413 = vmatprep.subr.bf16.mxu0 %v9342
        %12414 = vmatpush1.bf16.msra.mxu0 %v9341
        %12415 = vmatprep.subr.bf16.mxu0 %v9359
        %12416 = vmatpush1.bf16.msra.mxu0 %v9358
        %12417 = vmatprep.subr.bf16.mxu0 %v9376
        %12418 = vmatpush1.bf16.msra.mxu0 %v9375
        %12419 = vmatprep.subr.bf16.mxu0 %v9393
        %12420 = vmatpush1.bf16.msra.mxu0 %v9392
        %12421 = vmatprep.subr.bf16.mxu0 %v9410
        %12422 = vmatpush1.bf16.msra.mxu0 %v9409
        %12423 = vmatprep.subr.bf16.mxu0 %v9427
        %12424 = vmatpush1.bf16.msra.mxu0 %v9426
        %12425 = vmatprep.subr.bf16.mxu0 %v9444
        %12426 = vmatpush1.bf16.msra.mxu0 %v9443
        %12427 = vmatprep.subr.bf16.mxu0 %v9461
        %12428 = vmatpush1.bf16.msra.mxu0 %v9460
        %12429 = vmatprep.subr.bf16.mxu0 %v9478
        %12430 = vmatpush1.bf16.msra.mxu0 %v9477
        %12431 = vmatprep.subr.bf16.mxu0 %v9495
        %12432 = vmatpush1.bf16.msra.mxu0 %v9494
        %12433 = vmatprep.subr.bf16.mxu0 %v9512
        %12434 = vmatpush1.bf16.msra.mxu0 %v9511
        %12435 = vmatprep.subr.bf16.mxu0 %v9529
        %12436 = vmatpush1.bf16.msra.mxu0 %v9528
        %12437 = vmatprep.subr.bf16.mxu0 %v9546
        %12438 = vmatpush1.bf16.msra.mxu0 %v9545
        %12439 = vmatprep.subr.bf16.mxu0 %v9563
        %12440 = vmatpush1.bf16.msra.mxu0 %v9562
        %12441 = vmatprep.subr.bf16.mxu0 %v9580
        %12442 = vmatpush1.bf16.msra.mxu0 %v9579
        %12443 = vmatprep.subr.bf16.mxu0 %v9597
        %12444 = vmatpush1.bf16.msra.mxu0 %v9596
        %12445 = vmatprep.mubr.bf16.mxu0 %v3240
        %12446 = vmatmul.mubr.bf16.gmra.mrb[0].mxu0 %v3239
        %v12447 = vpop.f32.mrb[0].mxu0
        %v12448 = vadd.f32 %v12407, %v12447
        %v12449 = vpop.f32.mrb[0].mxu0
        %v12450 = vadd.f32 %v12409, %v12449
        %v12451 = vpop.f32.mrb[0].mxu0
        %v12452 = vpop.f32.mrb[0].mxu0
        %12453 = vdwg.mxu0
        %12454 = vmatprep.subr.bf16.mxu0 %v9614
        %12455 = vmatpush1.bf16.msra.mxu0 %v9613
        %12456 = vmatprep.subr.bf16.mxu0 %v9631
        %12457 = vmatpush1.bf16.msra.mxu0 %v9630
        %12458 = vmatprep.subr.bf16.mxu0 %v9648
        %12459 = vmatpush1.bf16.msra.mxu0 %v9647
        %12460 = vmatprep.subr.bf16.mxu0 %v9665
        %12461 = vmatpush1.bf16.msra.mxu0 %v9664
        %12462 = vmatprep.subr.bf16.mxu0 %v9682
        %12463 = vmatpush1.bf16.msra.mxu0 %v9681
        %12464 = vmatprep.subr.bf16.mxu0 %v9699
        %12465 = vmatpush1.bf16.msra.mxu0 %v9698
        %12466 = vmatprep.subr.bf16.mxu0 %v9716
        %12467 = vmatpush1.bf16.msra.mxu0 %v9715
        %12468 = vmatprep.subr.bf16.mxu0 %v9733
        %12469 = vmatpush1.bf16.msra.mxu0 %v9732
        %12470 = vmatprep.subr.bf16.mxu0 %v9750
        %12471 = vmatpush1.bf16.msra.mxu0 %v9749
        %12472 = vmatprep.subr.bf16.mxu0 %v9767
        %12473 = vmatpush1.bf16.msra.mxu0 %v9766
        %12474 = vmatprep.subr.bf16.mxu0 %v9784
        %12475 = vmatpush1.bf16.msra.mxu0 %v9783
        %12476 = vmatprep.subr.bf16.mxu0 %v9801
        %12477 = vmatpush1.bf16.msra.mxu0 %v9800
        %12478 = vmatprep.subr.bf16.mxu0 %v9818
        %12479 = vmatpush1.bf16.msra.mxu0 %v9817
        %12480 = vmatprep.subr.bf16.mxu0 %v9835
        %12481 = vmatpush1.bf16.msra.mxu0 %v9834
        %12482 = vmatprep.subr.bf16.mxu0 %v9852
        %12483 = vmatpush1.bf16.msra.mxu0 %v9851
        %12484 = vmatprep.subr.bf16.mxu0 %v9869
        %12485 = vmatpush1.bf16.msra.mxu0 %v9868
        %12486 = vmatprep.mubr.bf16.mxu0 %v3242
        %12487 = vmatmul.mubr.bf16.gmra.mrb[0].mxu0 %v3241
        %v12488 = vpop.f32.mrb[0].mxu0
        %v12489 = vadd.f32 %v12448, %v12488
        %v12490 = vpop.f32.mrb[0].mxu0
        %v12491 = vadd.f32 %v12450, %v12490
        %v12492 = vpop.f32.mrb[0].mxu0
        %v12493 = vpop.f32.mrb[0].mxu0
        %12494 = vdwg.mxu0
        %12495 = vmatprep.subr.bf16.mxu0 %v8256
        %12496 = vmatpush1.bf16.msra.mxu0 %v8255
        %12497 = vmatprep.subr.bf16.mxu0 %v8273
        %12498 = vmatpush1.bf16.msra.mxu0 %v8272
        %12499 = vmatprep.subr.bf16.mxu0 %v8290
        %12500 = vmatpush1.bf16.msra.mxu0 %v8289
        %12501 = vmatprep.subr.bf16.mxu0 %v8307
        %12502 = vmatpush1.bf16.msra.mxu0 %v8306
        %12503 = vmatprep.subr.bf16.mxu0 %v8324
        %12504 = vmatpush1.bf16.msra.mxu0 %v8323
        %12505 = vmatprep.subr.bf16.mxu0 %v8341
        %12506 = vmatpush1.bf16.msra.mxu0 %v8340
        %12507 = vmatprep.subr.bf16.mxu0 %v8358
        %12508 = vmatpush1.bf16.msra.mxu0 %v8357
        %12509 = vmatprep.subr.bf16.mxu0 %v8375
        %12510 = vmatpush1.bf16.msra.mxu0 %v8374
        %12511 = vmatprep.subr.bf16.mxu0 %v8392
        %12512 = vmatpush1.bf16.msra.mxu0 %v8391
        %12513 = vmatprep.subr.bf16.mxu0 %v8409
        %12514 = vmatpush1.bf16.msra.mxu0 %v8408
        %12515 = vmatprep.subr.bf16.mxu0 %v8426
        %12516 = vmatpush1.bf16.msra.mxu0 %v8425
        %12517 = vmatprep.subr.bf16.mxu0 %v8443
        %12518 = vmatpush1.bf16.msra.mxu0 %v8442
        %12519 = vmatprep.subr.bf16.mxu0 %v8460
        %12520 = vmatpush1.bf16.msra.mxu0 %v8459
        %12521 = vmatprep.subr.bf16.mxu0 %v8477
        %12522 = vmatpush1.bf16.msra.mxu0 %v8476
        %12523 = vmatprep.subr.bf16.mxu0 %v8494
        %12524 = vmatpush1.bf16.msra.mxu0 %v8493
        %12525 = vmatprep.subr.bf16.mxu0 %v8511
        %12526 = vmatpush1.bf16.msra.mxu0 %v8510
        %12527 = vmatprep.mubr.bf16.mxu0 %v3232
        %12528 = vmatmul.mubr.bf16.gmra.mrb[0].mxu0 %v3231
        %v12529 = vpop.f32.mrb[0].mxu0
        %v12530 = vadd.f32 0.0, %v12529
        %v12531 = vpop.f32.mrb[0].mxu0
        %v12532 = vadd.f32 0.0, %v12531
        %v12533 = vpop.f32.mrb[0].mxu0
        %v12534 = vpop.f32.mrb[0].mxu0
        %12535 = vdwg.mxu0
        %12536 = vmatprep.subr.bf16.mxu0 %v8528
        %12537 = vmatpush1.bf16.msra.mxu0 %v8527
        %12538 = vmatprep.subr.bf16.mxu0 %v8545
        %12539 = vmatpush1.bf16.msra.mxu0 %v8544
        %12540 = vmatprep.subr.bf16.mxu0 %v8562
        %12541 = vmatpush1.bf16.msra.mxu0 %v8561
        %12542 = vmatprep.subr.bf16.mxu0 %v8579
        %12543 = vmatpush1.bf16.msra.mxu0 %v8578
        %12544 = vmatprep.subr.bf16.mxu0 %v8596
        %12545 = vmatpush1.bf16.msra.mxu0 %v8595
        %12546 = vmatprep.subr.bf16.mxu0 %v8613
        %12547 = vmatpush1.bf16.msra.mxu0 %v8612
        %12548 = vmatprep.subr.bf16.mxu0 %v8630
        %12549 = vmatpush1.bf16.msra.mxu0 %v8629
        %12550 = vmatprep.subr.bf16.mxu0 %v8647
        %12551 = vmatpush1.bf16.msra.mxu0 %v8646
        %12552 = vmatprep.subr.bf16.mxu0 %v8664
        %12553 = vmatpush1.bf16.msra.mxu0 %v8663
        %12554 = vmatprep.subr.bf16.mxu0 %v8681
        %12555 = vmatpush1.bf16.msra.mxu0 %v8680
        %12556 = vmatprep.subr.bf16.mxu0 %v8698
        %12557 = vmatpush1.bf16.msra.mxu0 %v8697
        %12558 = vmatprep.subr.bf16.mxu0 %v8715
        %12559 = vmatpush1.bf16.msra.mxu0 %v8714
        %12560 = vmatprep.subr.bf16.mxu0 %v8732
        %12561 = vmatpush1.bf16.msra.mxu0 %v8731
        %12562 = vmatprep.subr.bf16.mxu0 %v8749
        %12563 = vmatpush1.bf16.msra.mxu0 %v8748
        %12564 = vmatprep.subr.bf16.mxu0 %v8766
        %12565 = vmatpush1.bf16.msra.mxu0 %v8765
        %12566 = vmatprep.subr.bf16.mxu0 %v8783
        %12567 = vmatpush1.bf16.msra.mxu0 %v8782
        %12568 = vmatprep.mubr.bf16.mxu0 %v3234
        %12569 = vmatmul.mubr.bf16.gmra.mrb[0].mxu0 %v3233
        %v12570 = vpop.f32.mrb[0].mxu0
        %v12571 = vadd.f32 %v12530, %v12570
        %v12572 = vpop.f32.mrb[0].mxu0
        %v12573 = vadd.f32 %v12532, %v12572
        %v12574 = vpop.f32.mrb[0].mxu0
        %v12575 = vpop.f32.mrb[0].mxu0
        %12576 = vdwg.mxu0
        %12577 = vmatprep.subr.bf16.mxu0 %v8800
        %12578 = vmatpush1.bf16.msra.mxu0 %v8799
        %12579 = vmatprep.subr.bf16.mxu0 %v8817
        %12580 = vmatpush1.bf16.msra.mxu0 %v8816
        %12581 = vmatprep.subr.bf16.mxu0 %v8834
        %12582 = vmatpush1.bf16.msra.mxu0 %v8833
        %12583 = vmatprep.subr.bf16.mxu0 %v8851
        %12584 = vmatpush1.bf16.msra.mxu0 %v8850
        %12585 = vmatprep.subr.bf16.mxu0 %v8868
        %12586 = vmatpush1.bf16.msra.mxu0 %v8867
        %12587 = vmatprep.subr.bf16.mxu0 %v8885
        %12588 = vmatpush1.bf16.msra.mxu0 %v8884
        %12589 = vmatprep.subr.bf16.mxu0 %v8902
        %12590 = vmatpush1.bf16.msra.mxu0 %v8901
        %12591 = vmatprep.subr.bf16.mxu0 %v8919
        %12592 = vmatpush1.bf16.msra.mxu0 %v8918
        %12593 = vmatprep.subr.bf16.mxu0 %v8936
        %12594 = vmatpush1.bf16.msra.mxu0 %v8935
        %12595 = vmatprep.subr.bf16.mxu0 %v8953
        %12596 = vmatpush1.bf16.msra.mxu0 %v8952
        %12597 = vmatprep.subr.bf16.mxu0 %v8970
        %12598 = vmatpush1.bf16.msra.mxu0 %v8969
        %12599 = vmatprep.subr.bf16.mxu0 %v8987
        %12600 = vmatpush1.bf16.msra.mxu0 %v8986
        %12601 = vmatprep.subr.bf16.mxu0 %v9004
        %12602 = vmatpush1.bf16.msra.mxu0 %v9003
        %12603 = vmatprep.subr.bf16.mxu0 %v9021
        %12604 = vmatpush1.bf16.msra.mxu0 %v9020
        %12605 = vmatprep.subr.bf16.mxu0 %v9038
        %12606 = vmatpush1.bf16.msra.mxu0 %v9037
        %12607 = vmatprep.subr.bf16.mxu0 %v9055
        %12608 = vmatpush1.bf16.msra.mxu0 %v9054
        %12609 = vmatprep.mubr.bf16.mxu0 %v3236
        %12610 = vmatmul.mubr.bf16.gmra.mrb[0].mxu0 %v3235
        %v12611 = vpop.f32.mrb[0].mxu0
        %v12612 = vadd.f32 %v12571, %v12611
        %v12613 = vpop.f32.mrb[0].mxu0
        %v12614 = vadd.f32 %v12573, %v12613
        %v12615 = vpop.f32.mrb[0].mxu0
        %v12616 = vpop.f32.mrb[0].mxu0
        %12617 = vdwg.mxu0
        %12618 = vmatprep.subr.bf16.mxu0 %v9072
        %12619 = vmatpush1.bf16.msra.mxu0 %v9071
        %12620 = vmatprep.subr.bf16.mxu0 %v9089
        %12621 = vmatpush1.bf16.msra.mxu0 %v9088
        %12622 = vmatprep.subr.bf16.mxu0 %v9106
        %12623 = vmatpush1.bf16.msra.mxu0 %v9105
        %12624 = vmatprep.subr.bf16.mxu0 %v9123
        %12625 = vmatpush1.bf16.msra.mxu0 %v9122
        %12626 = vmatprep.subr.bf16.mxu0 %v9140
        %12627 = vmatpush1.bf16.msra.mxu0 %v9139
        %12628 = vmatprep.subr.bf16.mxu0 %v9157
        %12629 = vmatpush1.bf16.msra.mxu0 %v9156
        %12630 = vmatprep.subr.bf16.mxu0 %v9174
        %12631 = vmatpush1.bf16.msra.mxu0 %v9173
        %12632 = vmatprep.subr.bf16.mxu0 %v9191
        %12633 = vmatpush1.bf16.msra.mxu0 %v9190
        %12634 = vmatprep.subr.bf16.mxu0 %v9208
        %12635 = vmatpush1.bf16.msra.mxu0 %v9207
        %12636 = vmatprep.subr.bf16.mxu0 %v9225
        %12637 = vmatpush1.bf16.msra.mxu0 %v9224
        %12638 = vmatprep.subr.bf16.mxu0 %v9242
        %12639 = vmatpush1.bf16.msra.mxu0 %v9241
        %12640 = vmatprep.subr.bf16.mxu0 %v9259
        %12641 = vmatpush1.bf16.msra.mxu0 %v9258
        %12642 = vmatprep.subr.bf16.mxu0 %v9276
        %12643 = vmatpush1.bf16.msra.mxu0 %v9275
        %12644 = vmatprep.subr.bf16.mxu0 %v9293
        %12645 = vmatpush1.bf16.msra.mxu0 %v9292
        %12646 = vmatprep.subr.bf16.mxu0 %v9310
        %12647 = vmatpush1.bf16.msra.mxu0 %v9309
        %12648 = vmatprep.subr.bf16.mxu0 %v9327
        %12649 = vmatpush1.bf16.msra.mxu0 %v9326
        %12650 = vmatprep.mubr.bf16.mxu0 %v3238
        %12651 = vmatmul.mubr.bf16.gmra.mrb[0].mxu0 %v3237
        %v12652 = vpop.f32.mrb[0].mxu0
        %v12653 = vadd.f32 %v12612, %v12652
        %v12654 = vpop.f32.mrb[0].mxu0
        %v12655 = vadd.f32 %v12614, %v12654
        %v12656 = vpop.f32.mrb[0].mxu0
        %v12657 = vpop.f32.mrb[0].mxu0
        %12658 = vdwg.mxu0
        %12659 = vmatprep.subr.bf16.mxu0 %v9344
        %12660 = vmatpush1.bf16.msra.mxu0 %v9343
        %12661 = vmatprep.subr.bf16.mxu0 %v9361
        %12662 = vmatpush1.bf16.msra.mxu0 %v9360
        %12663 = vmatprep.subr.bf16.mxu0 %v9378
        %12664 = vmatpush1.bf16.msra.mxu0 %v9377
        %12665 = vmatprep.subr.bf16.mxu0 %v9395
        %12666 = vmatpush1.bf16.msra.mxu0 %v9394
        %12667 = vmatprep.subr.bf16.mxu0 %v9412
        %12668 = vmatpush1.bf16.msra.mxu0 %v9411
        %12669 = vmatprep.subr.bf16.mxu0 %v9429
        %12670 = vmatpush1.bf16.msra.mxu0 %v9428
        %12671 = vmatprep.subr.bf16.mxu0 %v9446
        %12672 = vmatpush1.bf16.msra.mxu0 %v9445
        %12673 = vmatprep.subr.bf16.mxu0 %v9463
        %12674 = vmatpush1.bf16.msra.mxu0 %v9462
        %12675 = vmatprep.subr.bf16.mxu0 %v9480
        %12676 = vmatpush1.bf16.msra.mxu0 %v9479
        %12677 = vmatprep.subr.bf16.mxu0 %v9497
        %12678 = vmatpush1.bf16.msra.mxu0 %v9496
        %12679 = vmatprep.subr.bf16.mxu0 %v9514
        %12680 = vmatpush1.bf16.msra.mxu0 %v9513
        %12681 = vmatprep.subr.bf16.mxu0 %v9531
        %12682 = vmatpush1.bf16.msra.mxu0 %v9530
        %12683 = vmatprep.subr.bf16.mxu0 %v9548
        %12684 = vmatpush1.bf16.msra.mxu0 %v9547
        %12685 = vmatprep.subr.bf16.mxu0 %v9565
        %12686 = vmatpush1.bf16.msra.mxu0 %v9564
        %12687 = vmatprep.subr.bf16.mxu0 %v9582
        %12688 = vmatpush1.bf16.msra.mxu0 %v9581
        %12689 = vmatprep.subr.bf16.mxu0 %v9599
        %12690 = vmatpush1.bf16.msra.mxu0 %v9598
        %12691 = vmatprep.mubr.bf16.mxu0 %v3240
        %12692 = vmatmul.mubr.bf16.gmra.mrb[0].mxu0 %v3239
        %v12693 = vpop.f32.mrb[0].mxu0
        %v12694 = vadd.f32 %v12653, %v12693
        %v12695 = vpop.f32.mrb[0].mxu0
        %v12696 = vadd.f32 %v12655, %v12695
        %v12697 = vpop.f32.mrb[0].mxu0
        %v12698 = vpop.f32.mrb[0].mxu0
        %12699 = vdwg.mxu0
        %12700 = vmatprep.subr.bf16.mxu0 %v9616
        %12701 = vmatpush1.bf16.msra.mxu0 %v9615
        %12702 = vmatprep.subr.bf16.mxu0 %v9633
        %12703 = vmatpush1.bf16.msra.mxu0 %v9632
        %12704 = vmatprep.subr.bf16.mxu0 %v9650
        %12705 = vmatpush1.bf16.msra.mxu0 %v9649
        %12706 = vmatprep.subr.bf16.mxu0 %v9667
        %12707 = vmatpush1.bf16.msra.mxu0 %v9666
        %12708 = vmatprep.subr.bf16.mxu0 %v9684
        %12709 = vmatpush1.bf16.msra.mxu0 %v9683
        %12710 = vmatprep.subr.bf16.mxu0 %v9701
        %12711 = vmatpush1.bf16.msra.mxu0 %v9700
        %12712 = vmatprep.subr.bf16.mxu0 %v9718
        %12713 = vmatpush1.bf16.msra.mxu0 %v9717
        %12714 = vmatprep.subr.bf16.mxu0 %v9735
        %12715 = vmatpush1.bf16.msra.mxu0 %v9734
        %12716 = vmatprep.subr.bf16.mxu0 %v9752
        %12717 = vmatpush1.bf16.msra.mxu0 %v9751
        %12718 = vmatprep.subr.bf16.mxu0 %v9769
        %12719 = vmatpush1.bf16.msra.mxu0 %v9768
        %12720 = vmatprep.subr.bf16.mxu0 %v9786
        %12721 = vmatpush1.bf16.msra.mxu0 %v9785
        %12722 = vmatprep.subr.bf16.mxu0 %v9803
        %12723 = vmatpush1.bf16.msra.mxu0 %v9802
        %12724 = vmatprep.subr.bf16.mxu0 %v9820
        %12725 = vmatpush1.bf16.msra.mxu0 %v9819
        %12726 = vmatprep.subr.bf16.mxu0 %v9837
        %12727 = vmatpush1.bf16.msra.mxu0 %v9836
        %12728 = vmatprep.subr.bf16.mxu0 %v9854
        %12729 = vmatpush1.bf16.msra.mxu0 %v9853
        %12730 = vmatprep.subr.bf16.mxu0 %v9871
        %12731 = vmatpush1.bf16.msra.mxu0 %v9870
        %12732 = vmatprep.mubr.bf16.mxu0 %v3242
        %12733 = vmatmul.mubr.bf16.gmra.mrb[0].mxu0 %v3241
        %v12734 = vpop.f32.mrb[0].mxu0
        %v12735 = vadd.f32 %v12694, %v12734
        %v12736 = vpop.f32.mrb[0].mxu0
        %v12737 = vadd.f32 %v12696, %v12736
        %v12738 = vpop.f32.mrb[0].mxu0
        %v12739 = vpop.f32.mrb[0].mxu0
        %12740 = vdwg.mxu0
        %12741 = vmatprep.subr.bf16.mxu0 %v8258
        %12742 = vmatpush1.bf16.msra.mxu0 %v8257
        %12743 = vmatprep.subr.bf16.mxu0 %v8275
        %12744 = vmatpush1.bf16.msra.mxu0 %v8274
        %12745 = vmatprep.subr.bf16.mxu0 %v8292
        %12746 = vmatpush1.bf16.msra.mxu0 %v8291
        %12747 = vmatprep.subr.bf16.mxu0 %v8309
        %12748 = vmatpush1.bf16.msra.mxu0 %v8308
        %12749 = vmatprep.subr.bf16.mxu0 %v8326
        %12750 = vmatpush1.bf16.msra.mxu0 %v8325
        %12751 = vmatprep.subr.bf16.mxu0 %v8343
        %12752 = vmatpush1.bf16.msra.mxu0 %v8342
        %12753 = vmatprep.subr.bf16.mxu0 %v8360
        %12754 = vmatpush1.bf16.msra.mxu0 %v8359
        %12755 = vmatprep.subr.bf16.mxu0 %v8377
        %12756 = vmatpush1.bf16.msra.mxu0 %v8376
        %12757 = vmatprep.subr.bf16.mxu0 %v8394
        %12758 = vmatpush1.bf16.msra.mxu0 %v8393
        %12759 = vmatprep.subr.bf16.mxu0 %v8411
        %12760 = vmatpush1.bf16.msra.mxu0 %v8410
        %12761 = vmatprep.subr.bf16.mxu0 %v8428
        %12762 = vmatpush1.bf16.msra.mxu0 %v8427
        %12763 = vmatprep.subr.bf16.mxu0 %v8445
        %12764 = vmatpush1.bf16.msra.mxu0 %v8444
        %12765 = vmatprep.subr.bf16.mxu0 %v8462
        %12766 = vmatpush1.bf16.msra.mxu0 %v8461
        %12767 = vmatprep.subr.bf16.mxu0 %v8479
        %12768 = vmatpush1.bf16.msra.mxu0 %v8478
        %12769 = vmatprep.subr.bf16.mxu0 %v8496
        %12770 = vmatpush1.bf16.msra.mxu0 %v8495
        %12771 = vmatprep.subr.bf16.mxu0 %v8513
        %12772 = vmatpush1.bf16.msra.mxu0 %v8512
        %12773 = vmatprep.mubr.bf16.mxu0 %v3232
        %12774 = vmatmul.mubr.bf16.gmra.mrb[0].mxu0 %v3231
        %v12775 = vpop.f32.mrb[0].mxu0
        %v12776 = vadd.f32 0.0, %v12775
        %v12777 = vpop.f32.mrb[0].mxu0
        %v12778 = vadd.f32 0.0, %v12777
        %v12779 = vpop.f32.mrb[0].mxu0
        %v12780 = vpop.f32.mrb[0].mxu0
        %12781 = vdwg.mxu0
        %12782 = vmatprep.subr.bf16.mxu0 %v8530
        %12783 = vmatpush1.bf16.msra.mxu0 %v8529
        %12784 = vmatprep.subr.bf16.mxu0 %v8547
        %12785 = vmatpush1.bf16.msra.mxu0 %v8546
        %12786 = vmatprep.subr.bf16.mxu0 %v8564
        %12787 = vmatpush1.bf16.msra.mxu0 %v8563
        %12788 = vmatprep.subr.bf16.mxu0 %v8581
        %12789 = vmatpush1.bf16.msra.mxu0 %v8580
        %12790 = vmatprep.subr.bf16.mxu0 %v8598
        %12791 = vmatpush1.bf16.msra.mxu0 %v8597
        %12792 = vmatprep.subr.bf16.mxu0 %v8615
        %12793 = vmatpush1.bf16.msra.mxu0 %v8614
        %12794 = vmatprep.subr.bf16.mxu0 %v8632
        %12795 = vmatpush1.bf16.msra.mxu0 %v8631
        %12796 = vmatprep.subr.bf16.mxu0 %v8649
        %12797 = vmatpush1.bf16.msra.mxu0 %v8648
        %12798 = vmatprep.subr.bf16.mxu0 %v8666
        %12799 = vmatpush1.bf16.msra.mxu0 %v8665
        %12800 = vmatprep.subr.bf16.mxu0 %v8683
        %12801 = vmatpush1.bf16.msra.mxu0 %v8682
        %12802 = vmatprep.subr.bf16.mxu0 %v8700
        %12803 = vmatpush1.bf16.msra.mxu0 %v8699
        %12804 = vmatprep.subr.bf16.mxu0 %v8717
        %12805 = vmatpush1.bf16.msra.mxu0 %v8716
        %12806 = vmatprep.subr.bf16.mxu0 %v8734
        %12807 = vmatpush1.bf16.msra.mxu0 %v8733
        %12808 = vmatprep.subr.bf16.mxu0 %v8751
        %12809 = vmatpush1.bf16.msra.mxu0 %v8750
        %12810 = vmatprep.subr.bf16.mxu0 %v8768
        %12811 = vmatpush1.bf16.msra.mxu0 %v8767
        %12812 = vmatprep.subr.bf16.mxu0 %v8785
        %12813 = vmatpush1.bf16.msra.mxu0 %v8784
        %12814 = vmatprep.mubr.bf16.mxu0 %v3234
        %12815 = vmatmul.mubr.bf16.gmra.mrb[0].mxu0 %v3233
        %v12816 = vpop.f32.mrb[0].mxu0
        %v12817 = vadd.f32 %v12776, %v12816
        %v12818 = vpop.f32.mrb[0].mxu0
        %v12819 = vadd.f32 %v12778, %v12818
        %v12820 = vpop.f32.mrb[0].mxu0
        %v12821 = vpop.f32.mrb[0].mxu0
        %12822 = vdwg.mxu0
        %12823 = vmatprep.subr.bf16.mxu0 %v8802
        %12824 = vmatpush1.bf16.msra.mxu0 %v8801
        %12825 = vmatprep.subr.bf16.mxu0 %v8819
        %12826 = vmatpush1.bf16.msra.mxu0 %v8818
        %12827 = vmatprep.subr.bf16.mxu0 %v8836
        %12828 = vmatpush1.bf16.msra.mxu0 %v8835
        %12829 = vmatprep.subr.bf16.mxu0 %v8853
        %12830 = vmatpush1.bf16.msra.mxu0 %v8852
        %12831 = vmatprep.subr.bf16.mxu0 %v8870
        %12832 = vmatpush1.bf16.msra.mxu0 %v8869
        %12833 = vmatprep.subr.bf16.mxu0 %v8887
        %12834 = vmatpush1.bf16.msra.mxu0 %v8886
        %12835 = vmatprep.subr.bf16.mxu0 %v8904
        %12836 = vmatpush1.bf16.msra.mxu0 %v8903
        %12837 = vmatprep.subr.bf16.mxu0 %v8921
        %12838 = vmatpush1.bf16.msra.mxu0 %v8920
        %12839 = vmatprep.subr.bf16.mxu0 %v8938
        %12840 = vmatpush1.bf16.msra.mxu0 %v8937
        %12841 = vmatprep.subr.bf16.mxu0 %v8955
        %12842 = vmatpush1.bf16.msra.mxu0 %v8954
        %12843 = vmatprep.subr.bf16.mxu0 %v8972
        %12844 = vmatpush1.bf16.msra.mxu0 %v8971
        %12845 = vmatprep.subr.bf16.mxu0 %v8989
        %12846 = vmatpush1.bf16.msra.mxu0 %v8988
        %12847 = vmatprep.subr.bf16.mxu0 %v9006
        %12848 = vmatpush1.bf16.msra.mxu0 %v9005
        %12849 = vmatprep.subr.bf16.mxu0 %v9023
        %12850 = vmatpush1.bf16.msra.mxu0 %v9022
        %12851 = vmatprep.subr.bf16.mxu0 %v9040
        %12852 = vmatpush1.bf16.msra.mxu0 %v9039
        %12853 = vmatprep.subr.bf16.mxu0 %v9057
        %12854 = vmatpush1.bf16.msra.mxu0 %v9056
        %12855 = vmatprep.mubr.bf16.mxu0 %v3236
        %12856 = vmatmul.mubr.bf16.gmra.mrb[0].mxu0 %v3235
        %v12857 = vpop.f32.mrb[0].mxu0
        %v12858 = vadd.f32 %v12817, %v12857
        %v12859 = vpop.f32.mrb[0].mxu0
        %v12860 = vadd.f32 %v12819, %v12859
        %v12861 = vpop.f32.mrb[0].mxu0
        %v12862 = vpop.f32.mrb[0].mxu0
        %12863 = vdwg.mxu0
        %12864 = vmatprep.subr.bf16.mxu0 %v9074
        %12865 = vmatpush1.bf16.msra.mxu0 %v9073
        %12866 = vmatprep.subr.bf16.mxu0 %v9091
        %12867 = vmatpush1.bf16.msra.mxu0 %v9090
        %12868 = vmatprep.subr.bf16.mxu0 %v9108
        %12869 = vmatpush1.bf16.msra.mxu0 %v9107
        %12870 = vmatprep.subr.bf16.mxu0 %v9125
        %12871 = vmatpush1.bf16.msra.mxu0 %v9124
        %12872 = vmatprep.subr.bf16.mxu0 %v9142
        %12873 = vmatpush1.bf16.msra.mxu0 %v9141
        %12874 = vmatprep.subr.bf16.mxu0 %v9159
        %12875 = vmatpush1.bf16.msra.mxu0 %v9158
        %12876 = vmatprep.subr.bf16.mxu0 %v9176
        %12877 = vmatpush1.bf16.msra.mxu0 %v9175
        %12878 = vmatprep.subr.bf16.mxu0 %v9193
        %12879 = vmatpush1.bf16.msra.mxu0 %v9192
        %12880 = vmatprep.subr.bf16.mxu0 %v9210
        %12881 = vmatpush1.bf16.msra.mxu0 %v9209
        %12882 = vmatprep.subr.bf16.mxu0 %v9227
        %12883 = vmatpush1.bf16.msra.mxu0 %v9226
        %12884 = vmatprep.subr.bf16.mxu0 %v9244
        %12885 = vmatpush1.bf16.msra.mxu0 %v9243
        %12886 = vmatprep.subr.bf16.mxu0 %v9261
        %12887 = vmatpush1.bf16.msra.mxu0 %v9260
        %12888 = vmatprep.subr.bf16.mxu0 %v9278
        %12889 = vmatpush1.bf16.msra.mxu0 %v9277
        %12890 = vmatprep.subr.bf16.mxu0 %v9295
        %12891 = vmatpush1.bf16.msra.mxu0 %v9294
        %12892 = vmatprep.subr.bf16.mxu0 %v9312
        %12893 = vmatpush1.bf16.msra.mxu0 %v9311
        %12894 = vmatprep.subr.bf16.mxu0 %v9329
        %12895 = vmatpush1.bf16.msra.mxu0 %v9328
        %12896 = vmatprep.mubr.bf16.mxu0 %v3238
        %12897 = vmatmul.mubr.bf16.gmra.mrb[0].mxu0 %v3237
        %v12898 = vpop.f32.mrb[0].mxu0
        %v12899 = vadd.f32 %v12858, %v12898
        %v12900 = vpop.f32.mrb[0].mxu0
        %v12901 = vadd.f32 %v12860, %v12900
        %v12902 = vpop.f32.mrb[0].mxu0
        %v12903 = vpop.f32.mrb[0].mxu0
        %12904 = vdwg.mxu0
        %12905 = vmatprep.subr.bf16.mxu0 %v9346
        %12906 = vmatpush1.bf16.msra.mxu0 %v9345
        %12907 = vmatprep.subr.bf16.mxu0 %v9363
        %12908 = vmatpush1.bf16.msra.mxu0 %v9362
        %12909 = vmatprep.subr.bf16.mxu0 %v9380
        %12910 = vmatpush1.bf16.msra.mxu0 %v9379
        %12911 = vmatprep.subr.bf16.mxu0 %v9397
        %12912 = vmatpush1.bf16.msra.mxu0 %v9396
        %12913 = vmatprep.subr.bf16.mxu0 %v9414
        %12914 = vmatpush1.bf16.msra.mxu0 %v9413
        %12915 = vmatprep.subr.bf16.mxu0 %v9431
        %12916 = vmatpush1.bf16.msra.mxu0 %v9430
        %12917 = vmatprep.subr.bf16.mxu0 %v9448
        %12918 = vmatpush1.bf16.msra.mxu0 %v9447
        %12919 = vmatprep.subr.bf16.mxu0 %v9465
        %12920 = vmatpush1.bf16.msra.mxu0 %v9464
        %12921 = vmatprep.subr.bf16.mxu0 %v9482
        %12922 = vmatpush1.bf16.msra.mxu0 %v9481
        %12923 = vmatprep.subr.bf16.mxu0 %v9499
        %12924 = vmatpush1.bf16.msra.mxu0 %v9498
        %12925 = vmatprep.subr.bf16.mxu0 %v9516
        %12926 = vmatpush1.bf16.msra.mxu0 %v9515
        %12927 = vmatprep.subr.bf16.mxu0 %v9533
        %12928 = vmatpush1.bf16.msra.mxu0 %v9532
        %12929 = vmatprep.subr.bf16.mxu0 %v9550
        %12930 = vmatpush1.bf16.msra.mxu0 %v9549
        %12931 = vmatprep.subr.bf16.mxu0 %v9567
        %12932 = vmatpush1.bf16.msra.mxu0 %v9566
        %12933 = vmatprep.subr.bf16.mxu0 %v9584
        %12934 = vmatpush1.bf16.msra.mxu0 %v9583
        %12935 = vmatprep.subr.bf16.mxu0 %v9601
        %12936 = vmatpush1.bf16.msra.mxu0 %v9600
        %12937 = vmatprep.mubr.bf16.mxu0 %v3240
        %12938 = vmatmul.mubr.bf16.gmra.mrb[0].mxu0 %v3239
        %v12939 = vpop.f32.mrb[0].mxu0
        %v12940 = vadd.f32 %v12899, %v12939
        %v12941 = vpop.f32.mrb[0].mxu0
        %v12942 = vadd.f32 %v12901, %v12941
        %v12943 = vpop.f32.mrb[0].mxu0
        %v12944 = vpop.f32.mrb[0].mxu0
        %12945 = vdwg.mxu0
        %12946 = vmatprep.subr.bf16.mxu0 %v9618
        %12947 = vmatpush1.bf16.msra.mxu0 %v9617
        %12948 = vmatprep.subr.bf16.mxu0 %v9635
        %12949 = vmatpush1.bf16.msra.mxu0 %v9634
        %12950 = vmatprep.subr.bf16.mxu0 %v9652
        %12951 = vmatpush1.bf16.msra.mxu0 %v9651
        %12952 = vmatprep.subr.bf16.mxu0 %v9669
        %12953 = vmatpush1.bf16.msra.mxu0 %v9668
        %12954 = vmatprep.subr.bf16.mxu0 %v9686
        %12955 = vmatpush1.bf16.msra.mxu0 %v9685
        %12956 = vmatprep.subr.bf16.mxu0 %v9703
        %12957 = vmatpush1.bf16.msra.mxu0 %v9702
        %12958 = vmatprep.subr.bf16.mxu0 %v9720
        %12959 = vmatpush1.bf16.msra.mxu0 %v9719
        %12960 = vmatprep.subr.bf16.mxu0 %v9737
        %12961 = vmatpush1.bf16.msra.mxu0 %v9736
        %12962 = vmatprep.subr.bf16.mxu0 %v9754
        %12963 = vmatpush1.bf16.msra.mxu0 %v9753
        %12964 = vmatprep.subr.bf16.mxu0 %v9771
        %12965 = vmatpush1.bf16.msra.mxu0 %v9770
        %12966 = vmatprep.subr.bf16.mxu0 %v9788
        %12967 = vmatpush1.bf16.msra.mxu0 %v9787
        %12968 = vmatprep.subr.bf16.mxu0 %v9805
        %12969 = vmatpush1.bf16.msra.mxu0 %v9804
        %12970 = vmatprep.subr.bf16.mxu0 %v9822
        %12971 = vmatpush1.bf16.msra.mxu0 %v9821
        %12972 = vmatprep.subr.bf16.mxu0 %v9839
        %12973 = vmatpush1.bf16.msra.mxu0 %v9838
        %12974 = vmatprep.subr.bf16.mxu0 %v9856
        %12975 = vmatpush1.bf16.msra.mxu0 %v9855
        %12976 = vmatprep.subr.bf16.mxu0 %v9873
        %12977 = vmatpush1.bf16.msra.mxu0 %v9872
        %12978 = vmatprep.mubr.bf16.mxu0 %v3242
        %12979 = vmatmul.mubr.bf16.gmra.mrb[0].mxu0 %v3241
        %v12980 = vpop.f32.mrb[0].mxu0
        %v12981 = vadd.f32 %v12940, %v12980
        %v12982 = vpop.f32.mrb[0].mxu0
        %v12983 = vadd.f32 %v12942, %v12982
        %v12984 = vpop.f32.mrb[0].mxu0
        %v12985 = vpop.f32.mrb[0].mxu0
        %12986 = vdwg.mxu0
        %12987 = vmatprep.subr.bf16.mxu0 %v8260
        %12988 = vmatpush1.bf16.msra.mxu0 %v8259
        %12989 = vmatprep.subr.bf16.mxu0 %v8277
        %12990 = vmatpush1.bf16.msra.mxu0 %v8276
        %12991 = vmatprep.subr.bf16.mxu0 %v8294
        %12992 = vmatpush1.bf16.msra.mxu0 %v8293
        %12993 = vmatprep.subr.bf16.mxu0 %v8311
        %12994 = vmatpush1.bf16.msra.mxu0 %v8310
        %12995 = vmatprep.subr.bf16.mxu0 %v8328
        %12996 = vmatpush1.bf16.msra.mxu0 %v8327
        %12997 = vmatprep.subr.bf16.mxu0 %v8345
        %12998 = vmatpush1.bf16.msra.mxu0 %v8344
        %12999 = vmatprep.subr.bf16.mxu0 %v8362
        %13000 = vmatpush1.bf16.msra.mxu0 %v8361
        %13001 = vmatprep.subr.bf16.mxu0 %v8379
        %13002 = vmatpush1.bf16.msra.mxu0 %v8378
        %13003 = vmatprep.subr.bf16.mxu0 %v8396
        %13004 = vmatpush1.bf16.msra.mxu0 %v8395
        %13005 = vmatprep.subr.bf16.mxu0 %v8413
        %13006 = vmatpush1.bf16.msra.mxu0 %v8412
        %13007 = vmatprep.subr.bf16.mxu0 %v8430
        %13008 = vmatpush1.bf16.msra.mxu0 %v8429
        %13009 = vmatprep.subr.bf16.mxu0 %v8447
        %13010 = vmatpush1.bf16.msra.mxu0 %v8446
        %13011 = vmatprep.subr.bf16.mxu0 %v8464
        %13012 = vmatpush1.bf16.msra.mxu0 %v8463
        %13013 = vmatprep.subr.bf16.mxu0 %v8481
        %13014 = vmatpush1.bf16.msra.mxu0 %v8480
        %13015 = vmatprep.subr.bf16.mxu0 %v8498
        %13016 = vmatpush1.bf16.msra.mxu0 %v8497
        %13017 = vmatprep.subr.bf16.mxu0 %v8515
        %13018 = vmatpush1.bf16.msra.mxu0 %v8514
        %13019 = vmatprep.mubr.bf16.mxu0 %v3232
        %13020 = vmatmul.mubr.bf16.gmra.mrb[0].mxu0 %v3231
        %v13021 = vpop.f32.mrb[0].mxu0
        %v13022 = vadd.f32 0.0, %v13021
        %v13023 = vpop.f32.mrb[0].mxu0
        %v13024 = vadd.f32 0.0, %v13023
        %v13025 = vpop.f32.mrb[0].mxu0
        %v13026 = vpop.f32.mrb[0].mxu0
        %13027 = vdwg.mxu0
        %13028 = vmatprep.subr.bf16.mxu0 %v8532
        %13029 = vmatpush1.bf16.msra.mxu0 %v8531
        %13030 = vmatprep.subr.bf16.mxu0 %v8549
        %13031 = vmatpush1.bf16.msra.mxu0 %v8548
        %13032 = vmatprep.subr.bf16.mxu0 %v8566
        %13033 = vmatpush1.bf16.msra.mxu0 %v8565
        %13034 = vmatprep.subr.bf16.mxu0 %v8583
        %13035 = vmatpush1.bf16.msra.mxu0 %v8582
        %13036 = vmatprep.subr.bf16.mxu0 %v8600
        %13037 = vmatpush1.bf16.msra.mxu0 %v8599
        %13038 = vmatprep.subr.bf16.mxu0 %v8617
        %13039 = vmatpush1.bf16.msra.mxu0 %v8616
        %13040 = vmatprep.subr.bf16.mxu0 %v8634
        %13041 = vmatpush1.bf16.msra.mxu0 %v8633
        %13042 = vmatprep.subr.bf16.mxu0 %v8651
        %13043 = vmatpush1.bf16.msra.mxu0 %v8650
        %13044 = vmatprep.subr.bf16.mxu0 %v8668
        %13045 = vmatpush1.bf16.msra.mxu0 %v8667
        %13046 = vmatprep.subr.bf16.mxu0 %v8685
        %13047 = vmatpush1.bf16.msra.mxu0 %v8684
        %13048 = vmatprep.subr.bf16.mxu0 %v8702
        %13049 = vmatpush1.bf16.msra.mxu0 %v8701
        %13050 = vmatprep.subr.bf16.mxu0 %v8719
        %13051 = vmatpush1.bf16.msra.mxu0 %v8718
        %13052 = vmatprep.subr.bf16.mxu0 %v8736
        %13053 = vmatpush1.bf16.msra.mxu0 %v8735
        %13054 = vmatprep.subr.bf16.mxu0 %v8753
        %13055 = vmatpush1.bf16.msra.mxu0 %v8752
        %13056 = vmatprep.subr.bf16.mxu0 %v8770
        %13057 = vmatpush1.bf16.msra.mxu0 %v8769
        %13058 = vmatprep.subr.bf16.mxu0 %v8787
        %13059 = vmatpush1.bf16.msra.mxu0 %v8786
        %13060 = vmatprep.mubr.bf16.mxu0 %v3234
        %13061 = vmatmul.mubr.bf16.gmra.mrb[0].mxu0 %v3233
        %v13062 = vpop.f32.mrb[0].mxu0
        %v13063 = vadd.f32 %v13022, %v13062
        %v13064 = vpop.f32.mrb[0].mxu0
        %v13065 = vadd.f32 %v13024, %v13064
        %v13066 = vpop.f32.mrb[0].mxu0
        %v13067 = vpop.f32.mrb[0].mxu0
        %13068 = vdwg.mxu0
        %13069 = vmatprep.subr.bf16.mxu0 %v8804
        %13070 = vmatpush1.bf16.msra.mxu0 %v8803
        %13071 = vmatprep.subr.bf16.mxu0 %v8821
        %13072 = vmatpush1.bf16.msra.mxu0 %v8820
        %13073 = vmatprep.subr.bf16.mxu0 %v8838
        %13074 = vmatpush1.bf16.msra.mxu0 %v8837
        %13075 = vmatprep.subr.bf16.mxu0 %v8855
        %13076 = vmatpush1.bf16.msra.mxu0 %v8854
        %13077 = vmatprep.subr.bf16.mxu0 %v8872
        %13078 = vmatpush1.bf16.msra.mxu0 %v8871
        %13079 = vmatprep.subr.bf16.mxu0 %v8889
        %13080 = vmatpush1.bf16.msra.mxu0 %v8888
        %13081 = vmatprep.subr.bf16.mxu0 %v8906
        %13082 = vmatpush1.bf16.msra.mxu0 %v8905
        %13083 = vmatprep.subr.bf16.mxu0 %v8923
        %13084 = vmatpush1.bf16.msra.mxu0 %v8922
        %13085 = vmatprep.subr.bf16.mxu0 %v8940
        %13086 = vmatpush1.bf16.msra.mxu0 %v8939
        %13087 = vmatprep.subr.bf16.mxu0 %v8957
        %13088 = vmatpush1.bf16.msra.mxu0 %v8956
        %13089 = vmatprep.subr.bf16.mxu0 %v8974
        %13090 = vmatpush1.bf16.msra.mxu0 %v8973
        %13091 = vmatprep.subr.bf16.mxu0 %v8991
        %13092 = vmatpush1.bf16.msra.mxu0 %v8990
        %13093 = vmatprep.subr.bf16.mxu0 %v9008
        %13094 = vmatpush1.bf16.msra.mxu0 %v9007
        %13095 = vmatprep.subr.bf16.mxu0 %v9025
        %13096 = vmatpush1.bf16.msra.mxu0 %v9024
        %13097 = vmatprep.subr.bf16.mxu0 %v9042
        %13098 = vmatpush1.bf16.msra.mxu0 %v9041
        %13099 = vmatprep.subr.bf16.mxu0 %v9059
        %13100 = vmatpush1.bf16.msra.mxu0 %v9058
        %13101 = vmatprep.mubr.bf16.mxu0 %v3236
        %13102 = vmatmul.mubr.bf16.gmra.mrb[0].mxu0 %v3235
        %v13103 = vpop.f32.mrb[0].mxu0
        %v13104 = vadd.f32 %v13063, %v13103
        %v13105 = vpop.f32.mrb[0].mxu0
        %v13106 = vadd.f32 %v13065, %v13105
        %v13107 = vpop.f32.mrb[0].mxu0
        %v13108 = vpop.f32.mrb[0].mxu0
        %13109 = vdwg.mxu0
        %13110 = vmatprep.subr.bf16.mxu0 %v9076
        %13111 = vmatpush1.bf16.msra.mxu0 %v9075
        %13112 = vmatprep.subr.bf16.mxu0 %v9093
        %13113 = vmatpush1.bf16.msra.mxu0 %v9092
        %13114 = vmatprep.subr.bf16.mxu0 %v9110
        %13115 = vmatpush1.bf16.msra.mxu0 %v9109
        %13116 = vmatprep.subr.bf16.mxu0 %v9127
        %13117 = vmatpush1.bf16.msra.mxu0 %v9126
        %13118 = vmatprep.subr.bf16.mxu0 %v9144
        %13119 = vmatpush1.bf16.msra.mxu0 %v9143
        %13120 = vmatprep.subr.bf16.mxu0 %v9161
        %13121 = vmatpush1.bf16.msra.mxu0 %v9160
        %13122 = vmatprep.subr.bf16.mxu0 %v9178
        %13123 = vmatpush1.bf16.msra.mxu0 %v9177
        %13124 = vmatprep.subr.bf16.mxu0 %v9195
        %13125 = vmatpush1.bf16.msra.mxu0 %v9194
        %13126 = vmatprep.subr.bf16.mxu0 %v9212
        %13127 = vmatpush1.bf16.msra.mxu0 %v9211
        %13128 = vmatprep.subr.bf16.mxu0 %v9229
        %13129 = vmatpush1.bf16.msra.mxu0 %v9228
        %13130 = vmatprep.subr.bf16.mxu0 %v9246
        %13131 = vmatpush1.bf16.msra.mxu0 %v9245
        %13132 = vmatprep.subr.bf16.mxu0 %v9263
        %13133 = vmatpush1.bf16.msra.mxu0 %v9262
        %13134 = vmatprep.subr.bf16.mxu0 %v9280
        %13135 = vmatpush1.bf16.msra.mxu0 %v9279
        %13136 = vmatprep.subr.bf16.mxu0 %v9297
        %13137 = vmatpush1.bf16.msra.mxu0 %v9296
        %13138 = vmatprep.subr.bf16.mxu0 %v9314
        %13139 = vmatpush1.bf16.msra.mxu0 %v9313
        %13140 = vmatprep.subr.bf16.mxu0 %v9331
        %13141 = vmatpush1.bf16.msra.mxu0 %v9330
        %13142 = vmatprep.mubr.bf16.mxu0 %v3238
        %13143 = vmatmul.mubr.bf16.gmra.mrb[0].mxu0 %v3237
        %v13144 = vpop.f32.mrb[0].mxu0
        %v13145 = vadd.f32 %v13104, %v13144
        %v13146 = vpop.f32.mrb[0].mxu0
        %v13147 = vadd.f32 %v13106, %v13146
        %v13148 = vpop.f32.mrb[0].mxu0
        %v13149 = vpop.f32.mrb[0].mxu0
        %13150 = vdwg.mxu0
        %13151 = vmatprep.subr.bf16.mxu0 %v9348
        %13152 = vmatpush1.bf16.msra.mxu0 %v9347
        %13153 = vmatprep.subr.bf16.mxu0 %v9365
        %13154 = vmatpush1.bf16.msra.mxu0 %v9364
        %13155 = vmatprep.subr.bf16.mxu0 %v9382
        %13156 = vmatpush1.bf16.msra.mxu0 %v9381
        %13157 = vmatprep.subr.bf16.mxu0 %v9399
        %13158 = vmatpush1.bf16.msra.mxu0 %v9398
        %13159 = vmatprep.subr.bf16.mxu0 %v9416
        %13160 = vmatpush1.bf16.msra.mxu0 %v9415
        %13161 = vmatprep.subr.bf16.mxu0 %v9433
        %13162 = vmatpush1.bf16.msra.mxu0 %v9432
        %13163 = vmatprep.subr.bf16.mxu0 %v9450
        %13164 = vmatpush1.bf16.msra.mxu0 %v9449
        %13165 = vmatprep.subr.bf16.mxu0 %v9467
        %13166 = vmatpush1.bf16.msra.mxu0 %v9466
        %13167 = vmatprep.subr.bf16.mxu0 %v9484
        %13168 = vmatpush1.bf16.msra.mxu0 %v9483
        %13169 = vmatprep.subr.bf16.mxu0 %v9501
        %13170 = vmatpush1.bf16.msra.mxu0 %v9500
        %13171 = vmatprep.subr.bf16.mxu0 %v9518
        %13172 = vmatpush1.bf16.msra.mxu0 %v9517
        %13173 = vmatprep.subr.bf16.mxu0 %v9535
        %13174 = vmatpush1.bf16.msra.mxu0 %v9534
        %13175 = vmatprep.subr.bf16.mxu0 %v9552
        %13176 = vmatpush1.bf16.msra.mxu0 %v9551
        %13177 = vmatprep.subr.bf16.mxu0 %v9569
        %13178 = vmatpush1.bf16.msra.mxu0 %v9568
        %13179 = vmatprep.subr.bf16.mxu0 %v9586
        %13180 = vmatpush1.bf16.msra.mxu0 %v9585
        %13181 = vmatprep.subr.bf16.mxu0 %v9603
        %13182 = vmatpush1.bf16.msra.mxu0 %v9602
        %13183 = vmatprep.mubr.bf16.mxu0 %v3240
        %13184 = vmatmul.mubr.bf16.gmra.mrb[0].mxu0 %v3239
        %v13185 = vpop.f32.mrb[0].mxu0
        %v13186 = vadd.f32 %v13145, %v13185
        %v13187 = vpop.f32.mrb[0].mxu0
        %v13188 = vadd.f32 %v13147, %v13187
        %v13189 = vpop.f32.mrb[0].mxu0
        %v13190 = vpop.f32.mrb[0].mxu0
        %13191 = vdwg.mxu0
        %13192 = vmatprep.subr.bf16.mxu0 %v9620
        %13193 = vmatpush1.bf16.msra.mxu0 %v9619
        %13194 = vmatprep.subr.bf16.mxu0 %v9637
        %13195 = vmatpush1.bf16.msra.mxu0 %v9636
        %13196 = vmatprep.subr.bf16.mxu0 %v9654
        %13197 = vmatpush1.bf16.msra.mxu0 %v9653
        %13198 = vmatprep.subr.bf16.mxu0 %v9671
        %13199 = vmatpush1.bf16.msra.mxu0 %v9670
        %13200 = vmatprep.subr.bf16.mxu0 %v9688
        %13201 = vmatpush1.bf16.msra.mxu0 %v9687
        %13202 = vmatprep.subr.bf16.mxu0 %v9705
        %13203 = vmatpush1.bf16.msra.mxu0 %v9704
        %13204 = vmatprep.subr.bf16.mxu0 %v9722
        %13205 = vmatpush1.bf16.msra.mxu0 %v9721
        %13206 = vmatprep.subr.bf16.mxu0 %v9739
        %13207 = vmatpush1.bf16.msra.mxu0 %v9738
        %13208 = vmatprep.subr.bf16.mxu0 %v9756
        %13209 = vmatpush1.bf16.msra.mxu0 %v9755
        %13210 = vmatprep.subr.bf16.mxu0 %v9773
        %13211 = vmatpush1.bf16.msra.mxu0 %v9772
        %13212 = vmatprep.subr.bf16.mxu0 %v9790
        %13213 = vmatpush1.bf16.msra.mxu0 %v9789
        %13214 = vmatprep.subr.bf16.mxu0 %v9807
        %13215 = vmatpush1.bf16.msra.mxu0 %v9806
        %13216 = vmatprep.subr.bf16.mxu0 %v9824
        %13217 = vmatpush1.bf16.msra.mxu0 %v9823
        %13218 = vmatprep.subr.bf16.mxu0 %v9841
        %13219 = vmatpush1.bf16.msra.mxu0 %v9840
        %13220 = vmatprep.subr.bf16.mxu0 %v9858
        %13221 = vmatpush1.bf16.msra.mxu0 %v9857
        %13222 = vmatprep.subr.bf16.mxu0 %v9875
        %13223 = vmatpush1.bf16.msra.mxu0 %v9874
        %13224 = vmatprep.mubr.bf16.mxu0 %v3242
        %13225 = vmatmul.mubr.bf16.gmra.mrb[0].mxu0 %v3241
        %v13226 = vpop.f32.mrb[0].mxu0
        %v13227 = vadd.f32 %v13186, %v13226
        %v13228 = vpop.f32.mrb[0].mxu0
        %v13229 = vadd.f32 %v13188, %v13228
        %v13230 = vpop.f32.mrb[0].mxu0
        %v13231 = vpop.f32.mrb[0].mxu0
        %13232 = vdwg.mxu0
        %13233 = vmatprep.subr.bf16.mxu0 %v8262
        %13234 = vmatpush1.bf16.msra.mxu0 %v8261
        %13235 = vmatprep.subr.bf16.mxu0 %v8279
        %13236 = vmatpush1.bf16.msra.mxu0 %v8278
        %13237 = vmatprep.subr.bf16.mxu0 %v8296
        %13238 = vmatpush1.bf16.msra.mxu0 %v8295
        %13239 = vmatprep.subr.bf16.mxu0 %v8313
        %13240 = vmatpush1.bf16.msra.mxu0 %v8312
        %13241 = vmatprep.subr.bf16.mxu0 %v8330
        %13242 = vmatpush1.bf16.msra.mxu0 %v8329
        %13243 = vmatprep.subr.bf16.mxu0 %v8347
        %13244 = vmatpush1.bf16.msra.mxu0 %v8346
        %13245 = vmatprep.subr.bf16.mxu0 %v8364
        %13246 = vmatpush1.bf16.msra.mxu0 %v8363
        %13247 = vmatprep.subr.bf16.mxu0 %v8381
        %13248 = vmatpush1.bf16.msra.mxu0 %v8380
        %13249 = vmatprep.subr.bf16.mxu0 %v8398
        %13250 = vmatpush1.bf16.msra.mxu0 %v8397
        %13251 = vmatprep.subr.bf16.mxu0 %v8415
        %13252 = vmatpush1.bf16.msra.mxu0 %v8414
        %13253 = vmatprep.subr.bf16.mxu0 %v8432
        %13254 = vmatpush1.bf16.msra.mxu0 %v8431
        %13255 = vmatprep.subr.bf16.mxu0 %v8449
        %13256 = vmatpush1.bf16.msra.mxu0 %v8448
        %13257 = vmatprep.subr.bf16.mxu0 %v8466
        %13258 = vmatpush1.bf16.msra.mxu0 %v8465
        %13259 = vmatprep.subr.bf16.mxu0 %v8483
        %13260 = vmatpush1.bf16.msra.mxu0 %v8482
        %13261 = vmatprep.subr.bf16.mxu0 %v8500
        %13262 = vmatpush1.bf16.msra.mxu0 %v8499
        %13263 = vmatprep.subr.bf16.mxu0 %v8517
        %13264 = vmatpush1.bf16.msra.mxu0 %v8516
        %13265 = vmatprep.mubr.bf16.mxu0 %v3232
        %13266 = vmatmul.mubr.bf16.gmra.mrb[0].mxu0 %v3231
        %v13267 = vpop.f32.mrb[0].mxu0
        %v13268 = vadd.f32 0.0, %v13267
        %v13269 = vpop.f32.mrb[0].mxu0
        %v13270 = vadd.f32 0.0, %v13269
        %v13271 = vpop.f32.mrb[0].mxu0
        %v13272 = vpop.f32.mrb[0].mxu0
        %13273 = vdwg.mxu0
        %13274 = vmatprep.subr.bf16.mxu0 %v8534
        %13275 = vmatpush1.bf16.msra.mxu0 %v8533
        %13276 = vmatprep.subr.bf16.mxu0 %v8551
        %13277 = vmatpush1.bf16.msra.mxu0 %v8550
        %13278 = vmatprep.subr.bf16.mxu0 %v8568
        %13279 = vmatpush1.bf16.msra.mxu0 %v8567
        %13280 = vmatprep.subr.bf16.mxu0 %v8585
        %13281 = vmatpush1.bf16.msra.mxu0 %v8584
        %13282 = vmatprep.subr.bf16.mxu0 %v8602
        %13283 = vmatpush1.bf16.msra.mxu0 %v8601
        %13284 = vmatprep.subr.bf16.mxu0 %v8619
        %13285 = vmatpush1.bf16.msra.mxu0 %v8618
        %13286 = vmatprep.subr.bf16.mxu0 %v8636
        %13287 = vmatpush1.bf16.msra.mxu0 %v8635
        %13288 = vmatprep.subr.bf16.mxu0 %v8653
        %13289 = vmatpush1.bf16.msra.mxu0 %v8652
        %13290 = vmatprep.subr.bf16.mxu0 %v8670
        %13291 = vmatpush1.bf16.msra.mxu0 %v8669
        %13292 = vmatprep.subr.bf16.mxu0 %v8687
        %13293 = vmatpush1.bf16.msra.mxu0 %v8686
        %13294 = vmatprep.subr.bf16.mxu0 %v8704
        %13295 = vmatpush1.bf16.msra.mxu0 %v8703
        %13296 = vmatprep.subr.bf16.mxu0 %v8721
        %13297 = vmatpush1.bf16.msra.mxu0 %v8720
        %13298 = vmatprep.subr.bf16.mxu0 %v8738
        %13299 = vmatpush1.bf16.msra.mxu0 %v8737
        %13300 = vmatprep.subr.bf16.mxu0 %v8755
        %13301 = vmatpush1.bf16.msra.mxu0 %v8754
        %13302 = vmatprep.subr.bf16.mxu0 %v8772
        %13303 = vmatpush1.bf16.msra.mxu0 %v8771
        %13304 = vmatprep.subr.bf16.mxu0 %v8789
        %13305 = vmatpush1.bf16.msra.mxu0 %v8788
        %13306 = vmatprep.mubr.bf16.mxu0 %v3234
        %13307 = vmatmul.mubr.bf16.gmra.mrb[0].mxu0 %v3233
        %v13308 = vpop.f32.mrb[0].mxu0
        %v13309 = vadd.f32 %v13268, %v13308
        %v13310 = vpop.f32.mrb[0].mxu0
        %v13311 = vadd.f32 %v13270, %v13310
        %v13312 = vpop.f32.mrb[0].mxu0
        %v13313 = vpop.f32.mrb[0].mxu0
        %13314 = vdwg.mxu0
        %13315 = vmatprep.subr.bf16.mxu0 %v8806
        %13316 = vmatpush1.bf16.msra.mxu0 %v8805
        %13317 = vmatprep.subr.bf16.mxu0 %v8823
        %13318 = vmatpush1.bf16.msra.mxu0 %v8822
        %13319 = vmatprep.subr.bf16.mxu0 %v8840
        %13320 = vmatpush1.bf16.msra.mxu0 %v8839
        %13321 = vmatprep.subr.bf16.mxu0 %v8857
        %13322 = vmatpush1.bf16.msra.mxu0 %v8856
        %13323 = vmatprep.subr.bf16.mxu0 %v8874
        %13324 = vmatpush1.bf16.msra.mxu0 %v8873
        %13325 = vmatprep.subr.bf16.mxu0 %v8891
        %13326 = vmatpush1.bf16.msra.mxu0 %v8890
        %13327 = vmatprep.subr.bf16.mxu0 %v8908
        %13328 = vmatpush1.bf16.msra.mxu0 %v8907
        %13329 = vmatprep.subr.bf16.mxu0 %v8925
        %13330 = vmatpush1.bf16.msra.mxu0 %v8924
        %13331 = vmatprep.subr.bf16.mxu0 %v8942
        %13332 = vmatpush1.bf16.msra.mxu0 %v8941
        %13333 = vmatprep.subr.bf16.mxu0 %v8959
        %13334 = vmatpush1.bf16.msra.mxu0 %v8958
        %13335 = vmatprep.subr.bf16.mxu0 %v8976
        %13336 = vmatpush1.bf16.msra.mxu0 %v8975
        %13337 = vmatprep.subr.bf16.mxu0 %v8993
        %13338 = vmatpush1.bf16.msra.mxu0 %v8992
        %13339 = vmatprep.subr.bf16.mxu0 %v9010
        %13340 = vmatpush1.bf16.msra.mxu0 %v9009
        %13341 = vmatprep.subr.bf16.mxu0 %v9027
        %13342 = vmatpush1.bf16.msra.mxu0 %v9026
        %13343 = vmatprep.subr.bf16.mxu0 %v9044
        %13344 = vmatpush1.bf16.msra.mxu0 %v9043
        %13345 = vmatprep.subr.bf16.mxu0 %v9061
        %13346 = vmatpush1.bf16.msra.mxu0 %v9060
        %13347 = vmatprep.mubr.bf16.mxu0 %v3236
        %13348 = vmatmul.mubr.bf16.gmra.mrb[0].mxu0 %v3235
        %v13349 = vpop.f32.mrb[0].mxu0
        %v13350 = vadd.f32 %v13309, %v13349
        %v13351 = vpop.f32.mrb[0].mxu0
        %v13352 = vadd.f32 %v13311, %v13351
        %v13353 = vpop.f32.mrb[0].mxu0
        %v13354 = vpop.f32.mrb[0].mxu0
        %13355 = vdwg.mxu0
        %13356 = vmatprep.subr.bf16.mxu0 %v9078
        %13357 = vmatpush1.bf16.msra.mxu0 %v9077
        %13358 = vmatprep.subr.bf16.mxu0 %v9095
        %13359 = vmatpush1.bf16.msra.mxu0 %v9094
        %13360 = vmatprep.subr.bf16.mxu0 %v9112
        %13361 = vmatpush1.bf16.msra.mxu0 %v9111
        %13362 = vmatprep.subr.bf16.mxu0 %v9129
        %13363 = vmatpush1.bf16.msra.mxu0 %v9128
        %13364 = vmatprep.subr.bf16.mxu0 %v9146
        %13365 = vmatpush1.bf16.msra.mxu0 %v9145
        %13366 = vmatprep.subr.bf16.mxu0 %v9163
        %13367 = vmatpush1.bf16.msra.mxu0 %v9162
        %13368 = vmatprep.subr.bf16.mxu0 %v9180
        %13369 = vmatpush1.bf16.msra.mxu0 %v9179
        %13370 = vmatprep.subr.bf16.mxu0 %v9197
        %13371 = vmatpush1.bf16.msra.mxu0 %v9196
        %13372 = vmatprep.subr.bf16.mxu0 %v9214
        %13373 = vmatpush1.bf16.msra.mxu0 %v9213
        %13374 = vmatprep.subr.bf16.mxu0 %v9231
        %13375 = vmatpush1.bf16.msra.mxu0 %v9230
        %13376 = vmatprep.subr.bf16.mxu0 %v9248
        %13377 = vmatpush1.bf16.msra.mxu0 %v9247
        %13378 = vmatprep.subr.bf16.mxu0 %v9265
        %13379 = vmatpush1.bf16.msra.mxu0 %v9264
        %13380 = vmatprep.subr.bf16.mxu0 %v9282
        %13381 = vmatpush1.bf16.msra.mxu0 %v9281
        %13382 = vmatprep.subr.bf16.mxu0 %v9299
        %13383 = vmatpush1.bf16.msra.mxu0 %v9298
        %13384 = vmatprep.subr.bf16.mxu0 %v9316
        %13385 = vmatpush1.bf16.msra.mxu0 %v9315
        %13386 = vmatprep.subr.bf16.mxu0 %v9333
        %13387 = vmatpush1.bf16.msra.mxu0 %v9332
        %13388 = vmatprep.mubr.bf16.mxu0 %v3238
        %13389 = vmatmul.mubr.bf16.gmra.mrb[0].mxu0 %v3237
        %v13390 = vpop.f32.mrb[0].mxu0
        %v13391 = vadd.f32 %v13350, %v13390
        %v13392 = vpop.f32.mrb[0].mxu0
        %v13393 = vadd.f32 %v13352, %v13392
        %v13394 = vpop.f32.mrb[0].mxu0
        %v13395 = vpop.f32.mrb[0].mxu0
        %13396 = vdwg.mxu0
        %13397 = vmatprep.subr.bf16.mxu0 %v9350
        %13398 = vmatpush1.bf16.msra.mxu0 %v9349
        %13399 = vmatprep.subr.bf16.mxu0 %v9367
        %13400 = vmatpush1.bf16.msra.mxu0 %v9366
        %13401 = vmatprep.subr.bf16.mxu0 %v9384
        %13402 = vmatpush1.bf16.msra.mxu0 %v9383
        %13403 = vmatprep.subr.bf16.mxu0 %v9401
        %13404 = vmatpush1.bf16.msra.mxu0 %v9400
        %13405 = vmatprep.subr.bf16.mxu0 %v9418
        %13406 = vmatpush1.bf16.msra.mxu0 %v9417
        %13407 = vmatprep.subr.bf16.mxu0 %v9435
        %13408 = vmatpush1.bf16.msra.mxu0 %v9434
        %13409 = vmatprep.subr.bf16.mxu0 %v9452
        %13410 = vmatpush1.bf16.msra.mxu0 %v9451
        %13411 = vmatprep.subr.bf16.mxu0 %v9469
        %13412 = vmatpush1.bf16.msra.mxu0 %v9468
        %13413 = vmatprep.subr.bf16.mxu0 %v9486
        %13414 = vmatpush1.bf16.msra.mxu0 %v9485
        %13415 = vmatprep.subr.bf16.mxu0 %v9503
        %13416 = vmatpush1.bf16.msra.mxu0 %v9502
        %13417 = vmatprep.subr.bf16.mxu0 %v9520
        %13418 = vmatpush1.bf16.msra.mxu0 %v9519
        %13419 = vmatprep.subr.bf16.mxu0 %v9537
        %13420 = vmatpush1.bf16.msra.mxu0 %v9536
        %13421 = vmatprep.subr.bf16.mxu0 %v9554
        %13422 = vmatpush1.bf16.msra.mxu0 %v9553
        %13423 = vmatprep.subr.bf16.mxu0 %v9571
        %13424 = vmatpush1.bf16.msra.mxu0 %v9570
        %13425 = vmatprep.subr.bf16.mxu0 %v9588
        %13426 = vmatpush1.bf16.msra.mxu0 %v9587
        %13427 = vmatprep.subr.bf16.mxu0 %v9605
        %13428 = vmatpush1.bf16.msra.mxu0 %v9604
        %13429 = vmatprep.mubr.bf16.mxu0 %v3240
        %13430 = vmatmul.mubr.bf16.gmra.mrb[0].mxu0 %v3239
        %v13431 = vpop.f32.mrb[0].mxu0
        %v13432 = vadd.f32 %v13391, %v13431
        %v13433 = vpop.f32.mrb[0].mxu0
        %v13434 = vadd.f32 %v13393, %v13433
        %v13435 = vpop.f32.mrb[0].mxu0
        %v13436 = vpop.f32.mrb[0].mxu0
        %13437 = vdwg.mxu0
        %13438 = vmatprep.subr.bf16.mxu0 %v9622
        %13439 = vmatpush1.bf16.msra.mxu0 %v9621
        %13440 = vmatprep.subr.bf16.mxu0 %v9639
        %13441 = vmatpush1.bf16.msra.mxu0 %v9638
        %13442 = vmatprep.subr.bf16.mxu0 %v9656
        %13443 = vmatpush1.bf16.msra.mxu0 %v9655
        %13444 = vmatprep.subr.bf16.mxu0 %v9673
        %13445 = vmatpush1.bf16.msra.mxu0 %v9672
        %13446 = vmatprep.subr.bf16.mxu0 %v9690
        %13447 = vmatpush1.bf16.msra.mxu0 %v9689
        %13448 = vmatprep.subr.bf16.mxu0 %v9707
        %13449 = vmatpush1.bf16.msra.mxu0 %v9706
        %13450 = vmatprep.subr.bf16.mxu0 %v9724
        %13451 = vmatpush1.bf16.msra.mxu0 %v9723
        %13452 = vmatprep.subr.bf16.mxu0 %v9741
        %13453 = vmatpush1.bf16.msra.mxu0 %v9740
        %13454 = vmatprep.subr.bf16.mxu0 %v9758
        %13455 = vmatpush1.bf16.msra.mxu0 %v9757
        %13456 = vmatprep.subr.bf16.mxu0 %v9775
        %13457 = vmatpush1.bf16.msra.mxu0 %v9774
        %13458 = vmatprep.subr.bf16.mxu0 %v9792
        %13459 = vmatpush1.bf16.msra.mxu0 %v9791
        %13460 = vmatprep.subr.bf16.mxu0 %v9809
        %13461 = vmatpush1.bf16.msra.mxu0 %v9808
        %13462 = vmatprep.subr.bf16.mxu0 %v9826
        %13463 = vmatpush1.bf16.msra.mxu0 %v9825
        %13464 = vmatprep.subr.bf16.mxu0 %v9843
        %13465 = vmatpush1.bf16.msra.mxu0 %v9842
        %13466 = vmatprep.subr.bf16.mxu0 %v9860
        %13467 = vmatpush1.bf16.msra.mxu0 %v9859
        %13468 = vmatprep.subr.bf16.mxu0 %v9877
        %13469 = vmatpush1.bf16.msra.mxu0 %v9876
        %13470 = vmatprep.mubr.bf16.mxu0 %v3242
        %13471 = vmatmul.mubr.bf16.gmra.mrb[0].mxu0 %v3241
        %v13472 = vpop.f32.mrb[0].mxu0
        %v13473 = vadd.f32 %v13432, %v13472
        %v13474 = vpop.f32.mrb[0].mxu0
        %v13475 = vadd.f32 %v13434, %v13474
        %v13476 = vpop.f32.mrb[0].mxu0
        %v13477 = vpop.f32.mrb[0].mxu0
        %13478 = vdwg.mxu0
        %13479 = vmatprep.subr.bf16.mxu0 0
        %13480 = vmatpush1.bf16.msra.mxu0 %v8263
        %13481 = vmatprep.subr.bf16.mxu0 0
        %13482 = vmatpush1.bf16.msra.mxu0 %v8280
        %13483 = vmatprep.subr.bf16.mxu0 0
        %13484 = vmatpush1.bf16.msra.mxu0 %v8297
        %13485 = vmatprep.subr.bf16.mxu0 0
        %13486 = vmatpush1.bf16.msra.mxu0 %v8314
        %13487 = vmatprep.subr.bf16.mxu0 0
        %13488 = vmatpush1.bf16.msra.mxu0 %v8331
        %13489 = vmatprep.subr.bf16.mxu0 0
        %13490 = vmatpush1.bf16.msra.mxu0 %v8348
        %13491 = vmatprep.subr.bf16.mxu0 0
        %13492 = vmatpush1.bf16.msra.mxu0 %v8365
        %13493 = vmatprep.subr.bf16.mxu0 0
        %13494 = vmatpush1.bf16.msra.mxu0 %v8382
        %13495 = vmatprep.subr.bf16.mxu0 0
        %13496 = vmatpush1.bf16.msra.mxu0 %v8399
        %13497 = vmatprep.subr.bf16.mxu0 0
        %13498 = vmatpush1.bf16.msra.mxu0 %v8416
        %13499 = vmatprep.subr.bf16.mxu0 0
        %13500 = vmatpush1.bf16.msra.mxu0 %v8433
        %13501 = vmatprep.subr.bf16.mxu0 0
        %13502 = vmatpush1.bf16.msra.mxu0 %v8450
        %13503 = vmatprep.subr.bf16.mxu0 0
        %13504 = vmatpush1.bf16.msra.mxu0 %v8467
        %13505 = vmatprep.subr.bf16.mxu0 0
        %13506 = vmatpush1.bf16.msra.mxu0 %v8484
        %13507 = vmatprep.subr.bf16.mxu0 0
        %13508 = vmatpush1.bf16.msra.mxu0 %v8501
        %13509 = vmatprep.subr.bf16.mxu0 0
        %13510 = vmatpush1.bf16.msra.mxu0 %v8518
        %13511 = vmatprep.mubr.bf16.mxu0 %v3232
        %13512 = vmatmul.mubr.bf16.gmra.mrb[0].mxu0 %v3231
        %v13513 = vpop.f32.mrb[0].mxu0
        %v13514 = vadd.f32 0.0, %v13513
        %v13515 = vpop.f32.mrb[0].mxu0
        %v13516 = vpop.f32.mrb[0].mxu0
        %v13517 = vpop.f32.mrb[0].mxu0
        %13518 = vdwg.mxu0
        %13519 = vmatprep.subr.bf16.mxu0 0
        %13520 = vmatpush1.bf16.msra.mxu0 %v8535
        %13521 = vmatprep.subr.bf16.mxu0 0
        %13522 = vmatpush1.bf16.msra.mxu0 %v8552
        %13523 = vmatprep.subr.bf16.mxu0 0
        %13524 = vmatpush1.bf16.msra.mxu0 %v8569
        %13525 = vmatprep.subr.bf16.mxu0 0
        %13526 = vmatpush1.bf16.msra.mxu0 %v8586
        %13527 = vmatprep.subr.bf16.mxu0 0
        %13528 = vmatpush1.bf16.msra.mxu0 %v8603
        %13529 = vmatprep.subr.bf16.mxu0 0
        %13530 = vmatpush1.bf16.msra.mxu0 %v8620
        %13531 = vmatprep.subr.bf16.mxu0 0
        %13532 = vmatpush1.bf16.msra.mxu0 %v8637
        %13533 = vmatprep.subr.bf16.mxu0 0
        %13534 = vmatpush1.bf16.msra.mxu0 %v8654
        %13535 = vmatprep.subr.bf16.mxu0 0
        %13536 = vmatpush1.bf16.msra.mxu0 %v8671
        %13537 = vmatprep.subr.bf16.mxu0 0
        %13538 = vmatpush1.bf16.msra.mxu0 %v8688
        %13539 = vmatprep.subr.bf16.mxu0 0
        %13540 = vmatpush1.bf16.msra.mxu0 %v8705
        %13541 = vmatprep.subr.bf16.mxu0 0
        %13542 = vmatpush1.bf16.msra.mxu0 %v8722
        %13543 = vmatprep.subr.bf16.mxu0 0
        %13544 = vmatpush1.bf16.msra.mxu0 %v8739
        %13545 = vmatprep.subr.bf16.mxu0 0
        %13546 = vmatpush1.bf16.msra.mxu0 %v8756
        %13547 = vmatprep.subr.bf16.mxu0 0
        %13548 = vmatpush1.bf16.msra.mxu0 %v8773
        %13549 = vmatprep.subr.bf16.mxu0 0
        %13550 = vmatpush1.bf16.msra.mxu0 %v8790
        %13551 = vmatprep.mubr.bf16.mxu0 %v3234
        %13552 = vmatmul.mubr.bf16.gmra.mrb[0].mxu0 %v3233
        %v13553 = vpop.f32.mrb[0].mxu0
        %v13554 = vadd.f32 %v13514, %v13553
        %v13555 = vpop.f32.mrb[0].mxu0
        %v13556 = vpop.f32.mrb[0].mxu0
        %v13557 = vpop.f32.mrb[0].mxu0
        %13558 = vdwg.mxu0
        %13559 = vmatprep.subr.bf16.mxu0 0
        %13560 = vmatpush1.bf16.msra.mxu0 %v8807
        %13561 = vmatprep.subr.bf16.mxu0 0
        %13562 = vmatpush1.bf16.msra.mxu0 %v8824
        %13563 = vmatprep.subr.bf16.mxu0 0
        %13564 = vmatpush1.bf16.msra.mxu0 %v8841
        %13565 = vmatprep.subr.bf16.mxu0 0
        %13566 = vmatpush1.bf16.msra.mxu0 %v8858
        %13567 = vmatprep.subr.bf16.mxu0 0
        %13568 = vmatpush1.bf16.msra.mxu0 %v8875
        %13569 = vmatprep.subr.bf16.mxu0 0
        %13570 = vmatpush1.bf16.msra.mxu0 %v8892
        %13571 = vmatprep.subr.bf16.mxu0 0
        %13572 = vmatpush1.bf16.msra.mxu0 %v8909
        %13573 = vmatprep.subr.bf16.mxu0 0
        %13574 = vmatpush1.bf16.msra.mxu0 %v8926
        %13575 = vmatprep.subr.bf16.mxu0 0
        %13576 = vmatpush1.bf16.msra.mxu0 %v8943
        %13577 = vmatprep.subr.bf16.mxu0 0
        %13578 = vmatpush1.bf16.msra.mxu0 %v8960
        %13579 = vmatprep.subr.bf16.mxu0 0
        %13580 = vmatpush1.bf16.msra.mxu0 %v8977
        %13581 = vmatprep.subr.bf16.mxu0 0
        %13582 = vmatpush1.bf16.msra.mxu0 %v8994
        %13583 = vmatprep.subr.bf16.mxu0 0
        %13584 = vmatpush1.bf16.msra.mxu0 %v9011
        %13585 = vmatprep.subr.bf16.mxu0 0
        %13586 = vmatpush1.bf16.msra.mxu0 %v9028
        %13587 = vmatprep.subr.bf16.mxu0 0
        %13588 = vmatpush1.bf16.msra.mxu0 %v9045
        %13589 = vmatprep.subr.bf16.mxu0 0
        %13590 = vmatpush1.bf16.msra.mxu0 %v9062
        %13591 = vmatprep.mubr.bf16.mxu0 %v3236
        %13592 = vmatmul.mubr.bf16.gmra.mrb[0].mxu0 %v3235
        %v13593 = vpop.f32.mrb[0].mxu0
        %v13594 = vadd.f32 %v13554, %v13593
        %v13595 = vpop.f32.mrb[0].mxu0
        %v13596 = vpop.f32.mrb[0].mxu0
        %v13597 = vpop.f32.mrb[0].mxu0
        %13598 = vdwg.mxu0
        %13599 = vmatprep.subr.bf16.mxu0 0
        %13600 = vmatpush1.bf16.msra.mxu0 %v9079
        %13601 = vmatprep.subr.bf16.mxu0 0
        %13602 = vmatpush1.bf16.msra.mxu0 %v9096
        %13603 = vmatprep.subr.bf16.mxu0 0
        %13604 = vmatpush1.bf16.msra.mxu0 %v9113
        %13605 = vmatprep.subr.bf16.mxu0 0
        %13606 = vmatpush1.bf16.msra.mxu0 %v9130
        %13607 = vmatprep.subr.bf16.mxu0 0
        %13608 = vmatpush1.bf16.msra.mxu0 %v9147
        %13609 = vmatprep.subr.bf16.mxu0 0
        %13610 = vmatpush1.bf16.msra.mxu0 %v9164
        %13611 = vmatprep.subr.bf16.mxu0 0
        %13612 = vmatpush1.bf16.msra.mxu0 %v9181
        %13613 = vmatprep.subr.bf16.mxu0 0
        %13614 = vmatpush1.bf16.msra.mxu0 %v9198
        %13615 = vmatprep.subr.bf16.mxu0 0
        %13616 = vmatpush1.bf16.msra.mxu0 %v9215
        %13617 = vmatprep.subr.bf16.mxu0 0
        %13618 = vmatpush1.bf16.msra.mxu0 %v9232
        %13619 = vmatprep.subr.bf16.mxu0 0
        %13620 = vmatpush1.bf16.msra.mxu0 %v9249
        %13621 = vmatprep.subr.bf16.mxu0 0
        %13622 = vmatpush1.bf16.msra.mxu0 %v9266
        %13623 = vmatprep.subr.bf16.mxu0 0
        %13624 = vmatpush1.bf16.msra.mxu0 %v9283
        %13625 = vmatprep.subr.bf16.mxu0 0
        %13626 = vmatpush1.bf16.msra.mxu0 %v9300
        %13627 = vmatprep.subr.bf16.mxu0 0
        %13628 = vmatpush1.bf16.msra.mxu0 %v9317
        %13629 = vmatprep.subr.bf16.mxu0 0
        %13630 = vmatpush1.bf16.msra.mxu0 %v9334
        %13631 = vmatprep.mubr.bf16.mxu0 %v3238
        %13632 = vmatmul.mubr.bf16.gmra.mrb[0].mxu0 %v3237
        %v13633 = vpop.f32.mrb[0].mxu0
        %v13634 = vadd.f32 %v13594, %v13633
        %v13635 = vpop.f32.mrb[0].mxu0
        %v13636 = vpop.f32.mrb[0].mxu0
        %v13637 = vpop.f32.mrb[0].mxu0
        %13638 = vdwg.mxu0
        %13639 = vmatprep.subr.bf16.mxu0 0
        %13640 = vmatpush1.bf16.msra.mxu0 %v9351
        %13641 = vmatprep.subr.bf16.mxu0 0
        %13642 = vmatpush1.bf16.msra.mxu0 %v9368
        %13643 = vmatprep.subr.bf16.mxu0 0
        %13644 = vmatpush1.bf16.msra.mxu0 %v9385
        %13645 = vmatprep.subr.bf16.mxu0 0
        %13646 = vmatpush1.bf16.msra.mxu0 %v9402
        %13647 = vmatprep.subr.bf16.mxu0 0
        %13648 = vmatpush1.bf16.msra.mxu0 %v9419
        %13649 = vmatprep.subr.bf16.mxu0 0
        %13650 = vmatpush1.bf16.msra.mxu0 %v9436
        %13651 = vmatprep.subr.bf16.mxu0 0
        %13652 = vmatpush1.bf16.msra.mxu0 %v9453
        %13653 = vmatprep.subr.bf16.mxu0 0
        %13654 = vmatpush1.bf16.msra.mxu0 %v9470
        %13655 = vmatprep.subr.bf16.mxu0 0
        %13656 = vmatpush1.bf16.msra.mxu0 %v9487
        %13657 = vmatprep.subr.bf16.mxu0 0
        %13658 = vmatpush1.bf16.msra.mxu0 %v9504
        %13659 = vmatprep.subr.bf16.mxu0 0
        %13660 = vmatpush1.bf16.msra.mxu0 %v9521
        %13661 = vmatprep.subr.bf16.mxu0 0
        %13662 = vmatpush1.bf16.msra.mxu0 %v9538
        %13663 = vmatprep.subr.bf16.mxu0 0
        %13664 = vmatpush1.bf16.msra.mxu0 %v9555
        %13665 = vmatprep.subr.bf16.mxu0 0
        %13666 = vmatpush1.bf16.msra.mxu0 %v9572
        %13667 = vmatprep.subr.bf16.mxu0 0
        %13668 = vmatpush1.bf16.msra.mxu0 %v9589
        %13669 = vmatprep.subr.bf16.mxu0 0
        %13670 = vmatpush1.bf16.msra.mxu0 %v9606
        %13671 = vmatprep.mubr.bf16.mxu0 %v3240
        %13672 = vmatmul.mubr.bf16.gmra.mrb[0].mxu0 %v3239
        %v13673 = vpop.f32.mrb[0].mxu0
        %v13674 = vadd.f32 %v13634, %v13673
        %v13675 = vpop.f32.mrb[0].mxu0
        %v13676 = vpop.f32.mrb[0].mxu0
        %v13677 = vpop.f32.mrb[0].mxu0
        %13678 = vdwg.mxu0
        %13679 = vmatprep.subr.bf16.mxu0 0
        %13680 = vmatpush1.bf16.msra.mxu0 %v9623
        %13681 = vmatprep.subr.bf16.mxu0 0
        %13682 = vmatpush1.bf16.msra.mxu0 %v9640
        %13683 = vmatprep.subr.bf16.mxu0 0
        %13684 = vmatpush1.bf16.msra.mxu0 %v9657
        %13685 = vmatprep.subr.bf16.mxu0 0
        %13686 = vmatpush1.bf16.msra.mxu0 %v9674
        %13687 = vmatprep.subr.bf16.mxu0 0
        %13688 = vmatpush1.bf16.msra.mxu0 %v9691
        %13689 = vmatprep.subr.bf16.mxu0 0
        %13690 = vmatpush1.bf16.msra.mxu0 %v9708
        %13691 = vmatprep.subr.bf16.mxu0 0
        %13692 = vmatpush1.bf16.msra.mxu0 %v9725
        %13693 = vmatprep.subr.bf16.mxu0 0
        %13694 = vmatpush1.bf16.msra.mxu0 %v9742
        %13695 = vmatprep.subr.bf16.mxu0 0
        %13696 = vmatpush1.bf16.msra.mxu0 %v9759
        %13697 = vmatprep.subr.bf16.mxu0 0
        %13698 = vmatpush1.bf16.msra.mxu0 %v9776
        %13699 = vmatprep.subr.bf16.mxu0 0
        %13700 = vmatpush1.bf16.msra.mxu0 %v9793
        %13701 = vmatprep.subr.bf16.mxu0 0
        %13702 = vmatpush1.bf16.msra.mxu0 %v9810
        %13703 = vmatprep.subr.bf16.mxu0 0
        %13704 = vmatpush1.bf16.msra.mxu0 %v9827
        %13705 = vmatprep.subr.bf16.mxu0 0
        %13706 = vmatpush1.bf16.msra.mxu0 %v9844
        %13707 = vmatprep.subr.bf16.mxu0 0
        %13708 = vmatpush1.bf16.msra.mxu0 %v9861
        %13709 = vmatprep.subr.bf16.mxu0 0
        %13710 = vmatpush1.bf16.msra.mxu0 %v9878
        %13711 = vmatprep.mubr.bf16.mxu0 %v3242
        %13712 = vmatmul.mubr.bf16.gmra.mrb[0].mxu0 %v3241
        %v13713 = vpop.f32.mrb[0].mxu0
        %v13714 = vadd.f32 %v13674, %v13713
        %v13715 = vpop.f32.mrb[0].mxu0
        %v13716 = vpop.f32.mrb[0].mxu0
        %v13717 = vpop.f32.mrb[0].mxu0
        %13718 = vdwg.mxu0
        %v13719 = vadd.f32 %v1468, %v11751
        %v13720 = vadd.f32 %v1469, %v11753
        %v13721 = vadd.f32 %v1470, %v11997
        %v13722 = vadd.f32 %v1471, %v11999
        %v13723 = vadd.f32 %v1472, %v12243
        %v13724 = vadd.f32 %v1473, %v12245
        %v13725 = vadd.f32 %v1474, %v12489
        %v13726 = vadd.f32 %v1475, %v12491
        %v13727 = vadd.f32 %v1476, %v12735
        %v13728 = vadd.f32 %v1477, %v12737
        %v13729 = vadd.f32 %v1478, %v12981
        %v13730 = vadd.f32 %v1479, %v12983
        %v13731 = vadd.f32 %v1480, %v13227
        %v13732 = vadd.f32 %v1481, %v13229
        %v13733 = vadd.f32 %v1482, %v13473
        %v13734 = vadd.f32 %v1483, %v13475
        %v13735 = vadd.f32 %v1484, %v13714
        %13736 = vst [vmem:[#allocation3] sm:$0xff] %v13719
        %13737 = vst [vmem:[#allocation3 + $0x8] sm:$0xff] %v13720
        %13738 = vst [vmem:[#allocation3 + $0x10] sm:$0xff] %v13721
        %13739 = vst [vmem:[#allocation3 + $0x18] sm:$0xff] %v13722
        %13740 = vst [vmem:[#allocation3 + $0x20] sm:$0xff] %v13723
        %13741 = vst [vmem:[#allocation3 + $0x28] sm:$0xff] %v13724
        %13742 = vst [vmem:[#allocation3 + $0x30] sm:$0xff] %v13725
        %13743 = vst [vmem:[#allocation3 + $0x38] sm:$0xff] %v13726
        %13744 = vst [vmem:[#allocation3 + $0x40] sm:$0xff] %v13727
        %13745 = vst [vmem:[#allocation3 + $0x48] sm:$0xff] %v13728
        %13746 = vst [vmem:[#allocation3 + $0x50] sm:$0xff] %v13729
        %13747 = vst [vmem:[#allocation3 + $0x58] sm:$0xff] %v13730
        %13748 = vst [vmem:[#allocation3 + $0x60] sm:$0xff] %v13731
        %13749 = vst [vmem:[#allocation3 + $0x68] sm:$0xff] %v13732
        %13750 = vst [vmem:[#allocation3 + $0x70] sm:$0xff] %v13733
        %13751 = vst [vmem:[#allocation3 + $0x78] sm:$0xff] %v13734
        %vm13752 = vcmask 261120
        %13753 = vst.msk [vmem:[#allocation3 + $0x80] sm:$0xff] %vm13752, %v13735
        // Predicated region
        $region45: #{tpu_custom_call.1} parent=39 // pred_check
          %p13754 = pneg %p171
        $region46: #{tpu_custom_call.1} parent=39 // pred_check_branch
          %13756 = sbr.rel (%p13754) target = $region48
        $region47: #{tpu_custom_call.1} parent=39 // pred_region
          %s13758 = ssub.s32 2176, 2176
          %13759 = vsyncadd [#allocation4], %s13758
          %s13760 = smul.addr %s21, 17
          %s13761 = smul.addr %s13760, 128
          %s13762 = scalar_lea.hbm %s5, %s13761
          %s13764 = sshll.u32 [#allocation3], 4
          %s13765 = int_to_ptr.vmem [resolvable:$true] %s13764
          %13767 = dma.vmem_to_hbm [thread:$0]  %s13765, 2176, %s13762, [#allocation4]
        $region48: #{tpu_custom_call.1} parent=39 // pred_fallthru
          _
        // Predicated region
        $region49: #{tpu_custom_call.1} parent=39 // pred_check
          %p13768 = pneg %p171
        $region50: #{tpu_custom_call.1} parent=39 // pred_check_branch
          %13770 = sbr.rel (%p13768) target = $region52
        $region51: #{tpu_custom_call.1} parent=39 // pred_region
          %13771 = dma.done [#allocation4], 2176
        $region52: #{tpu_custom_call.1} parent=39 // pred_fallthru
          _
      $region40: #{tpu_custom_call.1} parent=5 // pred_fallthru
        _
      %p13772 = scmp.le.s32.totalorder 2, %s12
      // Predicated region
      $region53: #{tpu_custom_call.1} parent=5 // pred_check
        %p13773 = pneg %p13772
      $region54: #{tpu_custom_call.1} parent=5 // pred_check_branch
        %13775 = sbr.rel (%p13773) target = $region56
      $region55: #{tpu_custom_call.1} parent=5 // pred_region
        %s13776 = ssub.s32 %s12, 2
      $region56: #{tpu_custom_call.1} parent=5 // pred_fallthru
        _
    $region6: #{tpu_custom_call.1} parent=1 // loop_footer
      %s16 = sadd.s32 1, %s12
    $region7: #{tpu_custom_call.1} parent=1 // loop_footer_branch
      %11 = sbr.rel target = $region3
    $region8: #{tpu_custom_call.1} parent=1 // loop_exit
      _
    %13777 = vsyncpa [#allocation4], 1
    %s13778 = scalar_lea.sflag [#allocation4], 1
    %13779 = vsyncpa %s13778, 1

</llo_original>
